<compile_context>
chip_gen: v6e
topology: v6e:2x2x1
jax: 0.10.0
libtpu: 0.0.40
codegen_flags: <defaults>
</compile_context>

<pallas_src>
from functools import partial

import jax
import jax.numpy as jnp
from jax.experimental import pallas as pl
from jax.experimental.pallas import tpu as pltpu


# --------------------------------------------------------------------------
# Kernel 1: fused first 3x3 conv (mask+flow) + ReLU + flow second 3x3 conv
#           + coords residual.  One image per grid step.
# --------------------------------------------------------------------------
def fused_stage1_kernel(x_ref, w1_ref, b1_ref, w2f_ref, b2f_ref, c_ref,
                        hm_ref, co_ref,
                        xsh_ref, acc_ref, hflow_ref, dflow_ref,
                        *, H, W, Cin, Cmid, TH):
    HW = H * W
    f32 = jnp.float32
    bf16 = jnp.bfloat16

    # ---- 3 column-pre-shifted copies of the zero-padded input (bf16) ------
    # xsh[dj] == zero_pad(x)[:, dj:dj+W, :]; rows 0 and H+1 are the row pad.
    # Only the 1-pixel border is written with zeros (tiny, megacore-safe);
    # the interior is fully overwritten for every image.
    x = x_ref[0]                                         # (H, W, Cin) bf16
    zrow = jnp.zeros((1, W, Cin), bf16)
    zcol = jnp.zeros((H, 1, Cin), bf16)
    for dj in range(3):
        xsh_ref[dj, 0:1, :, :] = zrow
        xsh_ref[dj, H + 1:H + 2, :, :] = zrow
    xsh_ref[1, 1:H + 1, :, :] = x
    xsh_ref[0, 1:H + 1, 0:1, :] = zcol
    xsh_ref[0, 1:H + 1, 1:W, :] = x[:, 0:W - 1, :]
    xsh_ref[2, 1:H + 1, W - 1:W, :] = zcol
    xsh_ref[2, 1:H + 1, 0:W - 1, :] = x[:, 1:W, :]

    # ---- fused first 3x3 conv of both branches (Cout = 2*Cmid) + ReLU -----
    # Row-strip loop keeps the f32 accumulator at (TH*W, 2*Cmid); every tap is
    # a leading-dim slice of xsh (no shifted patch materialization).
    strips = [(r0, min(TH, H - r0)) for r0 in range(0, H, TH)]
    for r0, th in strips:
        thw = th * W
        for di in range(3):
            for dj in range(3):
                patch = xsh_ref[dj, r0 + di:r0 + di + th, :, :].reshape(thw, Cin)
                contrib = jnp.dot(patch, w1_ref[di, dj],
                                  preferred_element_type=f32)
                if di == 0 and dj == 0:
                    acc_ref[0:thw, :] = contrib
                else:
                    acc_ref[0:thw, :] += contrib
        row0 = r0 * W
        # bias + ReLU + bf16 cast, half at a time (mask half then flow half):
        # the full (HW, 2*Cmid) f32 hidden state never exists.
        hm_ref[0, row0:row0 + thw, :] = jnp.maximum(
            acc_ref[0:thw, 0:Cmid] + b1_ref[:, 0:Cmid], 0.0).astype(bf16)
        hflow_ref[row0:row0 + thw, :] = jnp.maximum(
            acc_ref[0:thw, Cmid:2 * Cmid] + b1_ref[:, Cmid:2 * Cmid],
            0.0).astype(bf16)

    # ---- flow second 3x3 conv: scatter the taps (no padded scratch) -------
    # Per tap: (2, Cmid) . (Cmid, HW) on the unpadded bf16 h_flow, then a
    # statically-sliced shift-add of the tiny (2, H, W) partial.
    dflow_ref[...] = jnp.zeros_like(dflow_ref)
    for di in range(3):
        for dj in range(3):
            part = jax.lax.dot_general(
                w2f_ref[di, dj], hflow_ref[...],
                (((1,), (1,)), ((), ())),
                preferred_element_type=f32)              # (2, HW)
            part3 = part.reshape(2, H, W)
            ys, ye = max(0, 1 - di), min(H, H + 1 - di)
            xs, xe = max(0, 1 - dj), min(W, W + 1 - dj)
            dflow_ref[:, ys:ye, xs:xe] += part3[:, ys + di - 1:ye + di - 1,
                                                xs + dj - 1:xe + dj - 1]

    # coords residual, written lane-dense in NCHW orientation
    co_ref[0] = c_ref[0] + dflow_ref[...].reshape(2, HW) + b2f_ref[...]


# --------------------------------------------------------------------------
# Kernel 2: mask 1x1 conv head, emitting NCHW directly:
#           out[c, m] = 0.25 * (w2^T . h^T + b)[c, m]
# --------------------------------------------------------------------------
def mask_head_kernel(h_ref, w_ref, b_ref, o_ref):
    # h_ref: (1, TM, Cmid) bf16   w_ref: (Cmask, Cmid) bf16   b_ref: (Cmask,1)
    y = jax.lax.dot_general(w_ref[...], h_ref[0],
                            (((1,), (1,)), ((), ())),
                            preferred_element_type=jnp.float32)
    o_ref[0] = (0.25 * (y + b_ref[...])).astype(o_ref.dtype)


# --------------------------------------------------------------------------
# Helpers: strip size + VMEM limit derived from the actual shapes
# --------------------------------------------------------------------------
def _pick_row_strip(H, W, Cmid, acc_budget_bytes=4 << 20):
    """Rows per strip so the (TH*W, 2*Cmid) f32 accumulator stays ~<= 4 MiB."""
    per_row = max(1, W * 2 * Cmid * 4)
    return int(max(1, min(H, acc_budget_bytes // per_row)))


def _stage1_vmem_limit(H, W, Cin, Cmid, TH):
    HW = H * W
    est = (2 * HW * Cin * 2                 # imgf block (bf16, double-buffer)
           + 2 * 9 * Cin * 2 * Cmid * 2     # fused w1 (bf16)
           + 2 * HW * Cmid * 2              # h_mask out block (bf16)
           + 4 * 2 * HW * 4                 # coords in/out (f32)
           + 3 * (H + 2) * W * Cin * 2      # xsh scratch (bf16)
           + TH * W * 2 * Cmid * 4          # strip accumulator (f32)
           + HW * Cmid * 2                  # h_flow scratch (bf16)
           + 2 * HW * 4)                    # dflow scratch (f32)
    limit = int(min(max(int(est * 1.5), 32 << 20), 100 << 20))
    try:
        # Cap to this chip's physical VMEM (v7x: 64 MiB, v5e/v6e: 128 MiB).
        cap = pltpu.get_tpu_info().vmem_capacity_bytes
        limit = int(min(limit, max(cap - (8 << 20), 32 << 20)))
    except Exception:
        pass
    return limit


# --------------------------------------------------------------------------
# Forward
# --------------------------------------------------------------------------
@jax.jit
def update_block_forward(params, imgf, coords1):
    """imgf: (N,H,W,C) NHWC; coords1: (N,2,H,W) NCHW.
    Returns (mask (N,2304,H,W), coords1 (N,2,H,W)) in NCHW, like PyTorch."""
    N, H, W, Cin = imgf.shape
    HW = H * W
    Cmid = params["mask_b1"].shape[0]       # 256
    Cmask = params["mask_b2"].shape[0]      # 16*16*9 = 2304
    bf16 = jnp.bfloat16

    # -------- host-side weight prep (tiny, one-off reshapes / casts) -------
    w1 = jnp.concatenate([params["mask_w1"], params["flow_w1"]],
                         axis=-1).astype(bf16)                  # (3,3,Cin,512)
    b1 = jnp.concatenate([params["mask_b1"], params["flow_b1"]]
                         ).reshape(1, 2 * Cmid).astype(jnp.float32)
    w2f = jnp.transpose(params["flow_w2"], (0, 1, 3, 2)).astype(bf16)  # (3,3,2,Cmid)
    b2f = params["flow_b2"].reshape(2, 1).astype(jnp.float32)
    w2m = params["mask_w2"].T.astype(bf16)                      # (Cmask, Cmid)
    b2m = params["mask_b2"].reshape(Cmask, 1).astype(jnp.float32)

    imgf_bf = imgf.astype(bf16)             # cast once on host (halves DMA)
    coords_flat = coords1.reshape(N, 2, HW)  # free reshape

    # -------- stage 1: fused convs + flow head + residual ------------------
    TH = _pick_row_strip(H, W, Cmid)
    stage1 = partial(fused_stage1_kernel, H=H, W=W, Cin=Cin, Cmid=Cmid, TH=TH)
    h_mask, coords_new = pl.pallas_call(
        stage1,
        out_shape=(jax.ShapeDtypeStruct((N, HW, Cmid), bf16),
                   jax.ShapeDtypeStruct((N, 2, HW), jnp.float32)),
        grid=(N,),
        in_specs=[
            pl.BlockSpec((1, H, W, Cin), lambda n: (n, 0, 0, 0)),
            pl.BlockSpec((3, 3, Cin, 2 * Cmid), lambda n: (0, 0, 0, 0)),
            pl.BlockSpec((1, 2 * Cmid), lambda n: (0, 0)),
            pl.BlockSpec((3, 3, 2, Cmid), lambda n: (0, 0, 0, 0)),
            pl.BlockSpec((2, 1), lambda n: (0, 0)),
            pl.BlockSpec((1, 2, HW), lambda n: (n, 0, 0)),
        ],
        out_specs=(pl.BlockSpec((1, HW, Cmid), lambda n: (n, 0, 0)),
                   pl.BlockSpec((1, 2, HW), lambda n: (n, 0, 0))),
        scratch_shapes=[
            pltpu.VMEM((3, H + 2, W, Cin), bf16),        # xsh (3 shifts)
            pltpu.VMEM((TH * W, 2 * Cmid), jnp.float32),  # strip accumulator
            pltpu.VMEM((HW, Cmid), bf16),                 # h_flow (ReLU'd)
            pltpu.VMEM((2, H, W), jnp.float32),           # dflow partial sums
        ],
        compiler_params=pltpu.CompilerParams(
            dimension_semantics=("parallel",),
            vmem_limit_bytes=_stage1_vmem_limit(H, W, Cin, Cmid, TH)),
    )(imgf_bf, w1, b1, w2f, b2f, coords_flat)

    # -------- stage 2: 1x1 mask head, full Cout per step, NCHW output ------
    TM = HW if HW <= 512 else 512           # lane-dense; ragged tail masked
    num_m = pl.cdiv(HW, TM)
    mask_flat = pl.pallas_call(
        mask_head_kernel,
        out_shape=jax.ShapeDtypeStruct((N, Cmask, HW), jnp.float32),
        grid=(num_m, N),                    # spatial leading -> megacore shards it
        in_specs=[
            pl.BlockSpec((1, TM, Cmid), lambda m, n: (n, m, 0)),
            pl.BlockSpec((Cmask, Cmid), lambda m, n: (0, 0)),
            pl.BlockSpec((Cmask, 1), lambda m, n: (0, 0)),
        ],
        out_specs=pl.BlockSpec((1, Cmask, TM), lambda m, n: (n, 0, m)),
        compiler_params=pltpu.CompilerParams(
            dimension_semantics=("parallel", "parallel")),
    )(h_mask, w2m, b2m)

    return mask_flat.reshape(N, Cmask, H, W), coords_new.reshape(N, 2, H, W)


# --------------------------------------------------------------------------
# Parameters
# --------------------------------------------------------------------------
def init_params(key, hidden_dim, mid=256, mask_out=16 * 16 * 9, flow_out=2):
    ks = jax.random.split(key, 8)
    s = 0.05
    return {
        # mask branch: Conv2d(hidden,256,3,p=1) -> ReLU -> Conv2d(256,2304,1)
        "mask_w1": s * jax.random.normal(ks[0], (3, 3, hidden_dim, mid), jnp.float32),
        "mask_b1": s * jax.random.normal(ks[1], (mid,), jnp.float32),
        "mask_w2": s * jax.random.normal(ks[2], (mid, mask_out), jnp.float32),
        "mask_b2": s * jax.random.normal(ks[3], (mask_out,), jnp.float32),
        # flow head: Conv2d(hidden,256,3,p=1) -> ReLU -> Conv2d(256,2,3,p=1)
        "flow_w1": s * jax.random.normal(ks[4], (3, 3, hidden_dim, mid), jnp.float32),
        "flow_b1": s * jax.random.normal(ks[5], (mid,), jnp.float32),
        "flow_w2": s * jax.random.normal(ks[6], (3, 3, mid, flow_out), jnp.float32),
        "flow_b2": s * jax.random.normal(ks[7], (flow_out,), jnp.float32),
    }


# --------------------------------------------------------------------------
# Pure-JAX reference (lax.conv) for a correctness spot-check
# --------------------------------------------------------------------------
def _conv_ref(x, w, b, pad):
    y = jax.lax.conv_general_dilated(
        x, w, window_strides=(1, 1), padding=[(pad, pad), (pad, pad)],
        dimension_numbers=("NHWC", "HWIO", "NHWC"))
    return y + b.reshape(1, 1, 1, -1)


def reference_forward(params, imgf, coords1):
    h_m = jax.nn.relu(_conv_ref(imgf, params["mask_w1"], params["mask_b1"], 1))
    w2 = params["mask_w2"].reshape(1, 1, *params["mask_w2"].shape)
    mask = 0.25 * _conv_ref(h_m, w2, params["mask_b2"], 0)
    h_f = jax.nn.relu(_conv_ref(imgf, params["flow_w1"], params["flow_b1"], 1))
    dflow = _conv_ref(h_f, params["flow_w2"], params["flow_b2"], 1)
    coords = jnp.transpose(coords1, (0, 2, 3, 1)) + dflow
    return (jnp.transpose(mask, (0, 3, 1, 2)),
            jnp.transpose(coords, (0, 3, 1, 2)))


if __name__ == "__main__":
    N, H, W = 2, 8, 8
    hidden_dim = 32                      # small test size (module default 128)

    key = jax.random.PRNGKey(0)
    kp, kx, kc = jax.random.split(key, 3)
    params = init_params(kp, hidden_dim)
    imgf = jax.random.normal(kx, (N, H, W, hidden_dim), jnp.float32)
    coords1 = jax.random.normal(kc, (N, 2, H, W), jnp.float32)

    mask, coords_new = update_block_forward(params, imgf, coords1)
    jax.block_until_ready((mask, coords_new))

    assert mask.shape == (N, 16 * 16 * 9, H, W)
    assert coords_new.shape == (N, 2, H, W)

    # spot-check against lax.conv reference (bf16 matmul operands -> 2e-2 tol)
    mask_ref, coords_ref = reference_forward(params, imgf, coords1)
    for out, ref in ((mask, mask_ref), (coords_new, coords_ref)):
        err = jnp.max(jnp.abs(out - ref))
        tol = 2e-2 * (jnp.max(jnp.abs(ref)) + 1.0)
        assert err < tol, f"mismatch: {err} >= {tol}"

    print("KERNEL_OK")
</pallas_src>

<mosaic_0001>
module attributes {stable_mosaic.version = 11 : i64} {
  func.func @mask_head_kernel(%arg0: i32, %arg1: i32, %arg2: memref<1x64x256xbf16, #tpu.memory_space<vmem>>, %arg3: memref<2304x256xbf16, #tpu.memory_space<vmem>>, %arg4: memref<2304x1xf32, #tpu.memory_space<vmem>>, %arg5: memref<1x2304x64xf32, #tpu.memory_space<vmem>>) attributes {dimension_semantics = [#tpu.dimension_semantics<parallel>, #tpu.dimension_semantics<parallel>], iteration_bounds = array<i64: 1, 2>, scalar_prefetch = 0 : i64, scratch_operands = 0 : i64, tpu.core_type = #tpu.core_type<tc>, window_params = [{transform_indices = @transform_0, window_bounds = array<i64: 1, 64, 256>}, {pipeline_mode = #tpu.pipeline_mode<synchronous>, transform_indices = @transform_1, window_bounds = array<i64: 2304, 256>}, {pipeline_mode = #tpu.pipeline_mode<synchronous>, transform_indices = @transform_2, window_bounds = array<i64: 2304, 1>}, {transform_indices = @transform_3, window_bounds = array<i64: 1, 2304, 64>}]} {
    %c0 = arith.constant 0 : index
    %c0_0 = arith.constant 0 : index
    %0 = vector.load %arg3[%c0, %c0_0] : memref<2304x256xbf16, #tpu.memory_space<vmem>>, vector<2304x256xbf16>
    %c0_1 = arith.constant 0 : index
    %c0_2 = arith.constant 0 : index
    %c0_3 = arith.constant 0 : index
    %1 = vector.load %arg2[%c0_1, %c0_2, %c0_3] : memref<1x64x256xbf16, #tpu.memory_space<vmem>>, vector<1x64x256xbf16>
    %2 = vector.shape_cast %1 : vector<1x64x256xbf16> to vector<64x256xbf16>
    %cst = arith.constant dense<0.000000e+00> : vector<2304x64xf32>
    %3 = tpu.matmul %0, %2, %cst {dimension_numbers = #tpu.dot_dimension_numbers<[1], [1], [0], [0], [0, 0, 1, 0], [], []>} : vector<2304x256xbf16>, vector<64x256xbf16>, vector<2304x64xf32> -> vector<2304x64xf32>
    %c0_4 = arith.constant 0 : index
    %c0_5 = arith.constant 0 : index
    %4 = vector.load %arg4[%c0_4, %c0_5] : memref<2304x1xf32, #tpu.memory_space<vmem>>, vector<2304x1xf32>
    %5 = vector.broadcast %4 : vector<2304x1xf32> to vector<2304x64xf32>
    %6 = arith.addf %3, %5 : vector<2304x64xf32>
    %cst_6 = arith.constant 2.500000e-01 : f32
    %7 = vector.broadcast %cst_6 : f32 to vector<2304x64xf32>
    %8 = arith.mulf %7, %6 : vector<2304x64xf32>
    %c0_7 = arith.constant 0 : index
    %c0_8 = arith.constant 0 : index
    %c0_9 = arith.constant 0 : index
    %9 = vector.load %arg5[%c0_7, %c0_8, %c0_9] : memref<1x2304x64xf32, #tpu.memory_space<vmem>>, vector<1x2304x64xf32>
    %10 = vector.shape_cast %9 : vector<1x2304x64xf32> to vector<2304x64xf32>
    %11 = vector.shape_cast %8 : vector<2304x64xf32> to vector<1x2304x64xf32>
    tpu.vector_store %arg5[%c0_7, %c0_8, %c0_9], %11 {strides = array<i32>} : memref<1x2304x64xf32, #tpu.memory_space<vmem>>, vector<1x2304x64xf32>,
    return
  }
  func.func @transform_0(%arg0: i32, %arg1: i32) -> (i32, i32, i32) {
    %c0_i32 = arith.constant 0 : i32
    %c0_i32_0 = arith.constant 0 : i32
    return %arg1, %arg0, %c0_i32 : i32, i32, i32
  }
  func.func @transform_1(%arg0: i32, %arg1: i32) -> (i32, i32) {
    %c0_i32 = arith.constant 0 : i32
    %c0_i32_0 = arith.constant 0 : i32
    %c0_i32_1 = arith.constant 0 : i32
    return %c0_i32, %c0_i32_0 : i32, i32
  }
  func.func @transform_2(%arg0: i32, %arg1: i32) -> (i32, i32) {
    %c0_i32 = arith.constant 0 : i32
    %c0_i32_0 = arith.constant 0 : i32
    %c0_i32_1 = arith.constant 0 : i32
    return %c0_i32, %c0_i32_0 : i32, i32
  }
  func.func @transform_3(%arg0: i32, %arg1: i32) -> (i32, i32, i32) {
    %c0_i32 = arith.constant 0 : i32
    %c0_i32_0 = arith.constant 0 : i32
    return %arg1, %c0_i32, %arg0 : i32, i32, i32
  }
}

module attributes {stable_mosaic.version = 11 : i64} {
  func.func @fused_stage1_kernel(%arg0: i32, %arg1: memref<1x8x8x32xbf16, #tpu.memory_space<vmem>>, %arg2: memref<3x3x32x512xbf16, #tpu.memory_space<vmem>>, %arg3: memref<1x512xf32, #tpu.memory_space<vmem>>, %arg4: memref<3x3x2x256xbf16, #tpu.memory_space<vmem>>, %arg5: memref<2x1xf32, #tpu.memory_space<vmem>>, %arg6: memref<1x2x64xf32, #tpu.memory_space<vmem>>, %arg7: memref<1x64x256xbf16, #tpu.memory_space<vmem>>, %arg8: memref<1x2x64xf32, #tpu.memory_space<vmem>>, %arg9: memref<3x10x8x32xbf16, #tpu.memory_space<vmem>>, %arg10: memref<64x512xf32, #tpu.memory_space<vmem>>, %arg11: memref<64x256xbf16, #tpu.memory_space<vmem>>, %arg12: memref<2x8x8xf32, #tpu.memory_space<vmem>>) attributes {dimension_semantics = [#tpu.dimension_semantics<parallel>], iteration_bounds = array<i64: 2>, scalar_prefetch = 0 : i64, scratch_operands = 4 : i64, tpu.core_type = #tpu.core_type<tc>, window_params = [{transform_indices = @transform_0, window_bounds = array<i64: 1, 8, 8, 32>}, {pipeline_mode = #tpu.pipeline_mode<synchronous>, transform_indices = @transform_1, window_bounds = array<i64: 3, 3, 32, 512>}, {pipeline_mode = #tpu.pipeline_mode<synchronous>, transform_indices = @transform_2, window_bounds = array<i64: 1, 512>}, {pipeline_mode = #tpu.pipeline_mode<synchronous>, transform_indices = @transform_3, window_bounds = array<i64: 3, 3, 2, 256>}, {pipeline_mode = #tpu.pipeline_mode<synchronous>, transform_indices = @transform_4, window_bounds = array<i64: 2, 1>}, {transform_indices = @transform_5, window_bounds = array<i64: 1, 2, 64>}, {transform_indices = @transform_6, window_bounds = array<i64: 1, 64, 256>}, {transform_indices = @transform_7, window_bounds = array<i64: 1, 2, 64>}]} {
    %c0 = arith.constant 0 : index
    %c0_0 = arith.constant 0 : index
    %c0_1 = arith.constant 0 : index
    %c0_2 = arith.constant 0 : index
    %0 = vector.load %arg1[%c0, %c0_0, %c0_1, %c0_2] : memref<1x8x8x32xbf16, #tpu.memory_space<vmem>>, vector<1x8x8x32xbf16>
    %1 = vector.shape_cast %0 : vector<1x8x8x32xbf16> to vector<8x8x32xbf16>
    %cst = arith.constant 0.000000e+00 : bf16
    %2 = vector.broadcast %cst : bf16 to vector<1x8x32xbf16>
    %cst_3 = arith.constant 0.000000e+00 : bf16
    %3 = vector.broadcast %cst_3 : bf16 to vector<8x1x32xbf16>
    %c0_4 = arith.constant 0 : index
    %c0_5 = arith.constant 0 : index
    %c0_6 = arith.constant 0 : index
    %c0_7 = arith.constant 0 : index
    %4 = vector.load %arg9[%c0_4, %c0_5, %c0_6, %c0_7] : memref<3x10x8x32xbf16, #tpu.memory_space<vmem>>, vector<1x1x8x32xbf16>
    %5 = vector.shape_cast %4 : vector<1x1x8x32xbf16> to vector<1x8x32xbf16>
    %6 = vector.shape_cast %2 : vector<1x8x32xbf16> to vector<1x1x8x32xbf16>
    tpu.vector_store %arg9[%c0_4, %c0_5, %c0_6, %c0_7], %6 {strides = array<i32>} : memref<3x10x8x32xbf16, #tpu.memory_space<vmem>>, vector<1x1x8x32xbf16>,
    %c0_8 = arith.constant 0 : index
    %c9 = arith.constant 9 : index
    %c0_9 = arith.constant 0 : index
    %c0_10 = arith.constant 0 : index
    %7 = vector.load %arg9[%c0_8, %c9, %c0_9, %c0_10] : memref<3x10x8x32xbf16, #tpu.memory_space<vmem>>, vector<1x1x8x32xbf16>
    %8 = vector.shape_cast %7 : vector<1x1x8x32xbf16> to vector<1x8x32xbf16>
    %9 = vector.shape_cast %2 : vector<1x8x32xbf16> to vector<1x1x8x32xbf16>
    tpu.vector_store %arg9[%c0_8, %c9, %c0_9, %c0_10], %9 {strides = array<i32>} : memref<3x10x8x32xbf16, #tpu.memory_space<vmem>>, vector<1x1x8x32xbf16>,
    %c1 = arith.constant 1 : index
    %c0_11 = arith.constant 0 : index
    %c0_12 = arith.constant 0 : index
    %c0_13 = arith.constant 0 : index
    %10 = vector.load %arg9[%c1, %c0_11, %c0_12, %c0_13] : memref<3x10x8x32xbf16, #tpu.memory_space<vmem>>, vector<1x1x8x32xbf16>
    %11 = vector.shape_cast %10 : vector<1x1x8x32xbf16> to vector<1x8x32xbf16>
    %12 = vector.shape_cast %2 : vector<1x8x32xbf16> to vector<1x1x8x32xbf16>
    tpu.vector_store %arg9[%c1, %c0_11, %c0_12, %c0_13], %12 {strides = array<i32>} : memref<3x10x8x32xbf16, #tpu.memory_space<vmem>>, vector<1x1x8x32xbf16>,
    %c1_14 = arith.constant 1 : index
    %c9_15 = arith.constant 9 : index
    %c0_16 = arith.constant 0 : index
    %c0_17 = arith.constant 0 : index
    %13 = vector.load %arg9[%c1_14, %c9_15, %c0_16, %c0_17] : memref<3x10x8x32xbf16, #tpu.memory_space<vmem>>, vector<1x1x8x32xbf16>
    %14 = vector.shape_cast %13 : vector<1x1x8x32xbf16> to vector<1x8x32xbf16>
    %15 = vector.shape_cast %2 : vector<1x8x32xbf16> to vector<1x1x8x32xbf16>
    tpu.vector_store %arg9[%c1_14, %c9_15, %c0_16, %c0_17], %15 {strides = array<i32>} : memref<3x10x8x32xbf16, #tpu.memory_space<vmem>>, vector<1x1x8x32xbf16>,
    %c2 = arith.constant 2 : index
    %c0_18 = arith.constant 0 : index
    %c0_19 = arith.constant 0 : index
    %c0_20 = arith.constant 0 : index
    %16 = vector.load %arg9[%c2, %c0_18, %c0_19, %c0_20] : memref<3x10x8x32xbf16, #tpu.memory_space<vmem>>, vector<1x1x8x32xbf16>
    %17 = vector.shape_cast %16 : vector<1x1x8x32xbf16> to vector<1x8x32xbf16>
    %18 = vector.shape_cast %2 : vector<1x8x32xbf16> to vector<1x1x8x32xbf16>
    tpu.vector_store %arg9[%c2, %c0_18, %c0_19, %c0_20], %18 {strides = array<i32>} : memref<3x10x8x32xbf16, #tpu.memory_space<vmem>>, vector<1x1x8x32xbf16>,
    %c2_21 = arith.constant 2 : index
    %c9_22 = arith.constant 9 : index
    %c0_23 = arith.constant 0 : index
    %c0_24 = arith.constant 0 : index
    %19 = vector.load %arg9[%c2_21, %c9_22, %c0_23, %c0_24] : memref<3x10x8x32xbf16, #tpu.memory_space<vmem>>, vector<1x1x8x32xbf16>
    %20 = vector.shape_cast %19 : vector<1x1x8x32xbf16> to vector<1x8x32xbf16>
    %21 = vector.shape_cast %2 : vector<1x8x32xbf16> to vector<1x1x8x32xbf16>
    tpu.vector_store %arg9[%c2_21, %c9_22, %c0_23, %c0_24], %21 {strides = array<i32>} : memref<3x10x8x32xbf16, #tpu.memory_space<vmem>>, vector<1x1x8x32xbf16>,
    %c1_25 = arith.constant 1 : index
    %c1_26 = arith.constant 1 : index
    %c0_27 = arith.constant 0 : index
    %c0_28 = arith.constant 0 : index
    %22 = vector.load %arg9[%c1_25, %c1_26, %c0_27, %c0_28] : memref<3x10x8x32xbf16, #tpu.memory_space<vmem>>, vector<1x8x8x32xbf16>
    %23 = vector.shape_cast %22 : vector<1x8x8x32xbf16> to vector<8x8x32xbf16>
    %24 = vector.shape_cast %1 : vector<8x8x32xbf16> to vector<1x8x8x32xbf16>
    tpu.vector_store %arg9[%c1_25, %c1_26, %c0_27, %c0_28], %24 {strides = array<i32>} : memref<3x10x8x32xbf16, #tpu.memory_space<vmem>>, vector<1x8x8x32xbf16>,
    %c0_29 = arith.constant 0 : index
    %c1_30 = arith.constant 1 : index
    %c0_31 = arith.constant 0 : index
    %c0_32 = arith.constant 0 : index
    %25 = vector.load %arg9[%c0_29, %c1_30, %c0_31, %c0_32] : memref<3x10x8x32xbf16, #tpu.memory_space<vmem>>, vector<1x8x1x32xbf16>
    %26 = vector.shape_cast %25 : vector<1x8x1x32xbf16> to vector<8x1x32xbf16>
    %27 = vector.shape_cast %3 : vector<8x1x32xbf16> to vector<1x8x1x32xbf16>
    tpu.vector_store %arg9[%c0_29, %c1_30, %c0_31, %c0_32], %27 {strides = array<i32>} : memref<3x10x8x32xbf16, #tpu.memory_space<vmem>>, vector<1x8x1x32xbf16>,
    %28 = vector.extract_strided_slice %1 {offsets = [0, 0, 0], sizes = [8, 7, 32], strides = [1, 1, 1]} : vector<8x8x32xbf16> to vector<8x7x32xbf16>
    %c0_33 = arith.constant 0 : index
    %c1_34 = arith.constant 1 : index
    %c1_35 = arith.constant 1 : index
    %c0_36 = arith.constant 0 : index
    %29 = vector.load %arg9[%c0_33, %c1_34, %c1_35, %c0_36] : memref<3x10x8x32xbf16, #tpu.memory_space<vmem>>, vector<1x8x7x32xbf16>
    %30 = vector.shape_cast %29 : vector<1x8x7x32xbf16> to vector<8x7x32xbf16>
    %31 = vector.shape_cast %28 : vector<8x7x32xbf16> to vector<1x8x7x32xbf16>
    tpu.vector_store %arg9[%c0_33, %c1_34, %c1_35, %c0_36], %31 {strides = array<i32>} : memref<3x10x8x32xbf16, #tpu.memory_space<vmem>>, vector<1x8x7x32xbf16>,
    %c2_37 = arith.constant 2 : index
    %c1_38 = arith.constant 1 : index
    %c7 = arith.constant 7 : index
    %c0_39 = arith.constant 0 : index
    %32 = vector.load %arg9[%c2_37, %c1_38, %c7, %c0_39] : memref<3x10x8x32xbf16, #tpu.memory_space<vmem>>, vector<1x8x1x32xbf16>
    %33 = vector.shape_cast %32 : vector<1x8x1x32xbf16> to vector<8x1x32xbf16>
    %34 = vector.shape_cast %3 : vector<8x1x32xbf16> to vector<1x8x1x32xbf16>
    tpu.vector_store %arg9[%c2_37, %c1_38, %c7, %c0_39], %34 {strides = array<i32>} : memref<3x10x8x32xbf16, #tpu.memory_space<vmem>>, vector<1x8x1x32xbf16>,
    %35 = vector.extract_strided_slice %1 {offsets = [0, 1, 0], sizes = [8, 7, 32], strides = [1, 1, 1]} : vector<8x8x32xbf16> to vector<8x7x32xbf16>
    %c2_40 = arith.constant 2 : index
    %c1_41 = arith.constant 1 : index
    %c0_42 = arith.constant 0 : index
    %c0_43 = arith.constant 0 : index
    %36 = vector.load %arg9[%c2_40, %c1_41, %c0_42, %c0_43] : memref<3x10x8x32xbf16, #tpu.memory_space<vmem>>, vector<1x8x7x32xbf16>
    %37 = vector.shape_cast %36 : vector<1x8x7x32xbf16> to vector<8x7x32xbf16>
    %38 = vector.shape_cast %35 : vector<8x7x32xbf16> to vector<1x8x7x32xbf16>
    tpu.vector_store %arg9[%c2_40, %c1_41, %c0_42, %c0_43], %38 {strides = array<i32>} : memref<3x10x8x32xbf16, #tpu.memory_space<vmem>>, vector<1x8x7x32xbf16>,
    %c0_44 = arith.constant 0 : index
    %c0_45 = arith.constant 0 : index
    %c0_46 = arith.constant 0 : index
    %c0_47 = arith.constant 0 : index
    %39 = vector.load %arg9[%c0_44, %c0_45, %c0_46, %c0_47] : memref<3x10x8x32xbf16, #tpu.memory_space<vmem>>, vector<1x8x8x32xbf16>
    %40 = vector.shape_cast %39 : vector<1x8x8x32xbf16> to vector<8x8x32xbf16>
    %41 = vector.shape_cast %40 : vector<8x8x32xbf16> to vector<64x32xbf16>
    %c0_48 = arith.constant 0 : index
    %c0_49 = arith.constant 0 : index
    %c0_50 = arith.constant 0 : index
    %c0_51 = arith.constant 0 : index
    %42 = vector.load %arg2[%c0_48, %c0_49, %c0_50, %c0_51] : memref<3x3x32x512xbf16, #tpu.memory_space<vmem>>, vector<1x1x32x512xbf16>
    %43 = vector.shape_cast %42 : vector<1x1x32x512xbf16> to vector<32x512xbf16>
    %cst_52 = arith.constant dense<0.000000e+00> : vector<64x512xf32>
    %44 = tpu.matmul %41, %43, %cst_52 {dimension_numbers = #tpu.dot_dimension_numbers<[1], [0], [0], [1], [0, 0, 1, 1], [], []>} : vector<64x32xbf16>, vector<32x512xbf16>, vector<64x512xf32> -> vector<64x512xf32>
    %c0_53 = arith.constant 0 : index
    %c0_54 = arith.constant 0 : index
    %45 = vector.load %arg10[%c0_53, %c0_54] : memref<64x512xf32, #tpu.memory_space<vmem>>, vector<64x512xf32>
    tpu.vector_store %arg10[%c0_53, %c0_54], %44 {strides = array<i32>} : memref<64x512xf32, #tpu.memory_space<vmem>>, vector<64x512xf32>,
    %c1_55 = arith.constant 1 : index
    %c0_56 = arith.constant 0 : index
    %c0_57 = arith.constant 0 : index
    %c0_58 = arith.constant 0 : index
    %46 = vector.load %arg9[%c1_55, %c0_56, %c0_57, %c0_58] : memref<3x10x8x32xbf16, #tpu.memory_space<vmem>>, vector<1x8x8x32xbf16>
    %47 = vector.shape_cast %46 : vector<1x8x8x32xbf16> to vector<8x8x32xbf16>
    %48 = vector.shape_cast %47 : vector<8x8x32xbf16> to vector<64x32xbf16>
    %c0_59 = arith.constant 0 : index
    %c1_60 = arith.constant 1 : index
    %c0_61 = arith.constant 0 : index
    %c0_62 = arith.constant 0 : index
    %49 = vector.load %arg2[%c0_59, %c1_60, %c0_61, %c0_62] : memref<3x3x32x512xbf16, #tpu.memory_space<vmem>>, vector<1x1x32x512xbf16>
    %50 = vector.shape_cast %49 : vector<1x1x32x512xbf16> to vector<32x512xbf16>
    %cst_63 = arith.constant dense<0.000000e+00> : vector<64x512xf32>
    %51 = tpu.matmul %48, %50, %cst_63 {dimension_numbers = #tpu.dot_dimension_numbers<[1], [0], [0], [1], [0, 0, 1, 1], [], []>} : vector<64x32xbf16>, vector<32x512xbf16>, vector<64x512xf32> -> vector<64x512xf32>
    %c0_64 = arith.constant 0 : index
    %c0_65 = arith.constant 0 : index
    %52 = vector.load %arg10[%c0_64, %c0_65] : memref<64x512xf32, #tpu.memory_space<vmem>>, vector<64x512xf32>
    %53 = arith.addf %52, %51 : vector<64x512xf32>
    %c0_66 = arith.constant 0 : index
    %c0_67 = arith.constant 0 : index
    %54 = vector.load %arg10[%c0_66, %c0_67] : memref<64x512xf32, #tpu.memory_space<vmem>>, vector<64x512xf32>
    tpu.vector_store %arg10[%c0_66, %c0_67], %53 {strides = array<i32>} : memref<64x512xf32, #tpu.memory_space<vmem>>, vector<64x512xf32>,
    %c2_68 = arith.constant 2 : index
    %c0_69 = arith.constant 0 : index
    %c0_70 = arith.constant 0 : index
    %c0_71 = arith.constant 0 : index
    %55 = vector.load %arg9[%c2_68, %c0_69, %c0_70, %c0_71] : memref<3x10x8x32xbf16, #tpu.memory_space<vmem>>, vector<1x8x8x32xbf16>
    %56 = vector.shape_cast %55 : vector<1x8x8x32xbf16> to vector<8x8x32xbf16>
    %57 = vector.shape_cast %56 : vector<8x8x32xbf16> to vector<64x32xbf16>
    %c0_72 = arith.constant 0 : index
    %c2_73 = arith.constant 2 : index
    %c0_74 = arith.constant 0 : index
    %c0_75 = arith.constant 0 : index
    %58 = vector.load %arg2[%c0_72, %c2_73, %c0_74, %c0_75] : memref<3x3x32x512xbf16, #tpu.memory_space<vmem>>, vector<1x1x32x512xbf16>
    %59 = vector.shape_cast %58 : vector<1x1x32x512xbf16> to vector<32x512xbf16>
    %cst_76 = arith.constant dense<0.000000e+00> : vector<64x512xf32>
    %60 = tpu.matmul %57, %59, %cst_76 {dimension_numbers = #tpu.dot_dimension_numbers<[1], [0], [0], [1], [0, 0, 1, 1], [], []>} : vector<64x32xbf16>, vector<32x512xbf16>, vector<64x512xf32> -> vector<64x512xf32>
    %c0_77 = arith.constant 0 : index
    %c0_78 = arith.constant 0 : index
    %61 = vector.load %arg10[%c0_77, %c0_78] : memref<64x512xf32, #tpu.memory_space<vmem>>, vector<64x512xf32>
    %62 = arith.addf %61, %60 : vector<64x512xf32>
    %c0_79 = arith.constant 0 : index
    %c0_80 = arith.constant 0 : index
    %63 = vector.load %arg10[%c0_79, %c0_80] : memref<64x512xf32, #tpu.memory_space<vmem>>, vector<64x512xf32>
    tpu.vector_store %arg10[%c0_79, %c0_80], %62 {strides = array<i32>} : memref<64x512xf32, #tpu.memory_space<vmem>>, vector<64x512xf32>,
    %c0_81 = arith.constant 0 : index
    %c1_82 = arith.constant 1 : index
    %c0_83 = arith.constant 0 : index
    %c0_84 = arith.constant 0 : index
    %64 = vector.load %arg9[%c0_81, %c1_82, %c0_83, %c0_84] : memref<3x10x8x32xbf16, #tpu.memory_space<vmem>>, vector<1x8x8x32xbf16>
    %65 = vector.shape_cast %64 : vector<1x8x8x32xbf16> to vector<8x8x32xbf16>
    %66 = vector.shape_cast %65 : vector<8x8x32xbf16> to vector<64x32xbf16>
    %c1_85 = arith.constant 1 : index
    %c0_86 = arith.constant 0 : index
    %c0_87 = arith.constant 0 : index
    %c0_88 = arith.constant 0 : index
    %67 = vector.load %arg2[%c1_85, %c0_86, %c0_87, %c0_88] : memref<3x3x32x512xbf16, #tpu.memory_space<vmem>>, vector<1x1x32x512xbf16>
    %68 = vector.shape_cast %67 : vector<1x1x32x512xbf16> to vector<32x512xbf16>
    %cst_89 = arith.constant dense<0.000000e+00> : vector<64x512xf32>
    %69 = tpu.matmul %66, %68, %cst_89 {dimension_numbers = #tpu.dot_dimension_numbers<[1], [0], [0], [1], [0, 0, 1, 1], [], []>} : vector<64x32xbf16>, vector<32x512xbf16>, vector<64x512xf32> -> vector<64x512xf32>
    %c0_90 = arith.constant 0 : index
    %c0_91 = arith.constant 0 : index
    %70 = vector.load %arg10[%c0_90, %c0_91] : memref<64x512xf32, #tpu.memory_space<vmem>>, vector<64x512xf32>
    %71 = arith.addf %70, %69 : vector<64x512xf32>
    %c0_92 = arith.constant 0 : index
    %c0_93 = arith.constant 0 : index
    %72 = vector.load %arg10[%c0_92, %c0_93] : memref<64x512xf32, #tpu.memory_space<vmem>>, vector<64x512xf32>
    tpu.vector_store %arg10[%c0_92, %c0_93], %71 {strides = array<i32>} : memref<64x512xf32, #tpu.memory_space<vmem>>, vector<64x512xf32>,
    %c1_94 = arith.constant 1 : index
    %c1_95 = arith.constant 1 : index
    %c0_96 = arith.constant 0 : index
    %c0_97 = arith.constant 0 : index
    %73 = vector.load %arg9[%c1_94, %c1_95, %c0_96, %c0_97] : memref<3x10x8x32xbf16, #tpu.memory_space<vmem>>, vector<1x8x8x32xbf16>
    %74 = vector.shape_cast %73 : vector<1x8x8x32xbf16> to vector<8x8x32xbf16>
    %75 = vector.shape_cast %74 : vector<8x8x32xbf16> to vector<64x32xbf16>
    %c1_98 = arith.constant 1 : index
    %c1_99 = arith.constant 1 : index
    %c0_100 = arith.constant 0 : index
    %c0_101 = arith.constant 0 : index
    %76 = vector.load %arg2[%c1_98, %c1_99, %c0_100, %c0_101] : memref<3x3x32x512xbf16, #tpu.memory_space<vmem>>, vector<1x1x32x512xbf16>
    %77 = vector.shape_cast %76 : vector<1x1x32x512xbf16> to vector<32x512xbf16>
    %cst_102 = arith.constant dense<0.000000e+00> : vector<64x512xf32>
    %78 = tpu.matmul %75, %77, %cst_102 {dimension_numbers = #tpu.dot_dimension_numbers<[1], [0], [0], [1], [0, 0, 1, 1], [], []>} : vector<64x32xbf16>, vector<32x512xbf16>, vector<64x512xf32> -> vector<64x512xf32>
    %c0_103 = arith.constant 0 : index
    %c0_104 = arith.constant 0 : index
    %79 = vector.load %arg10[%c0_103, %c0_104] : memref<64x512xf32, #tpu.memory_space<vmem>>, vector<64x512xf32>
    %80 = arith.addf %79, %78 : vector<64x512xf32>
    %c0_105 = arith.constant 0 : index
    %c0_106 = arith.constant 0 : index
    %81 = vector.load %arg10[%c0_105, %c0_106] : memref<64x512xf32, #tpu.memory_space<vmem>>, vector<64x512xf32>
    tpu.vector_store %arg10[%c0_105, %c0_106], %80 {strides = array<i32>} : memref<64x512xf32, #tpu.memory_space<vmem>>, vector<64x512xf32>,
    %c2_107 = arith.constant 2 : index
    %c1_108 = arith.constant 1 : index
    %c0_109 = arith.constant 0 : index
    %c0_110 = arith.constant 0 : index
    %82 = vector.load %arg9[%c2_107, %c1_108, %c0_109, %c0_110] : memref<3x10x8x32xbf16, #tpu.memory_space<vmem>>, vector<1x8x8x32xbf16>
    %83 = vector.shape_cast %82 : vector<1x8x8x32xbf16> to vector<8x8x32xbf16>
    %84 = vector.shape_cast %83 : vector<8x8x32xbf16> to vector<64x32xbf16>
    %c1_111 = arith.constant 1 : index
    %c2_112 = arith.constant 2 : index
    %c0_113 = arith.constant 0 : index
    %c0_114 = arith.constant 0 : index
    %85 = vector.load %arg2[%c1_111, %c2_112, %c0_113, %c0_114] : memref<3x3x32x512xbf16, #tpu.memory_space<vmem>>, vector<1x1x32x512xbf16>
    %86 = vector.shape_cast %85 : vector<1x1x32x512xbf16> to vector<32x512xbf16>
    %cst_115 = arith.constant dense<0.000000e+00> : vector<64x512xf32>
    %87 = tpu.matmul %84, %86, %cst_115 {dimension_numbers = #tpu.dot_dimension_numbers<[1], [0], [0], [1], [0, 0, 1, 1], [], []>} : vector<64x32xbf16>, vector<32x512xbf16>, vector<64x512xf32> -> vector<64x512xf32>
    %c0_116 = arith.constant 0 : index
    %c0_117 = arith.constant 0 : index
    %88 = vector.load %arg10[%c0_116, %c0_117] : memref<64x512xf32, #tpu.memory_space<vmem>>, vector<64x512xf32>
    %89 = arith.addf %88, %87 : vector<64x512xf32>
    %c0_118 = arith.constant 0 : index
    %c0_119 = arith.constant 0 : index
    %90 = vector.load %arg10[%c0_118, %c0_119] : memref<64x512xf32, #tpu.memory_space<vmem>>, vector<64x512xf32>
    tpu.vector_store %arg10[%c0_118, %c0_119], %89 {strides = array<i32>} : memref<64x512xf32, #tpu.memory_space<vmem>>, vector<64x512xf32>,
    %c0_120 = arith.constant 0 : index
    %c2_121 = arith.constant 2 : index
    %c0_122 = arith.constant 0 : index
    %c0_123 = arith.constant 0 : index
    %91 = vector.load %arg9[%c0_120, %c2_121, %c0_122, %c0_123] : memref<3x10x8x32xbf16, #tpu.memory_space<vmem>>, vector<1x8x8x32xbf16>
    %92 = vector.shape_cast %91 : vector<1x8x8x32xbf16> to vector<8x8x32xbf16>
    %93 = vector.shape_cast %92 : vector<8x8x32xbf16> to vector<64x32xbf16>
    %c2_124 = arith.constant 2 : index
    %c0_125 = arith.constant 0 : index
    %c0_126 = arith.constant 0 : index
    %c0_127 = arith.constant 0 : index
    %94 = vector.load %arg2[%c2_124, %c0_125, %c0_126, %c0_127] : memref<3x3x32x512xbf16, #tpu.memory_space<vmem>>, vector<1x1x32x512xbf16>
    %95 = vector.shape_cast %94 : vector<1x1x32x512xbf16> to vector<32x512xbf16>
    %cst_128 = arith.constant dense<0.000000e+00> : vector<64x512xf32>
    %96 = tpu.matmul %93, %95, %cst_128 {dimension_numbers = #tpu.dot_dimension_numbers<[1], [0], [0], [1], [0, 0, 1, 1], [], []>} : vector<64x32xbf16>, vector<32x512xbf16>, vector<64x512xf32> -> vector<64x512xf32>
    %c0_129 = arith.constant 0 : index
    %c0_130 = arith.constant 0 : index
    %97 = vector.load %arg10[%c0_129, %c0_130] : memref<64x512xf32, #tpu.memory_space<vmem>>, vector<64x512xf32>
    %98 = arith.addf %97, %96 : vector<64x512xf32>
    %c0_131 = arith.constant 0 : index
    %c0_132 = arith.constant 0 : index
    %99 = vector.load %arg10[%c0_131, %c0_132] : memref<64x512xf32, #tpu.memory_space<vmem>>, vector<64x512xf32>
    tpu.vector_store %arg10[%c0_131, %c0_132], %98 {strides = array<i32>} : memref<64x512xf32, #tpu.memory_space<vmem>>, vector<64x512xf32>,
    %c1_133 = arith.constant 1 : index
    %c2_134 = arith.constant 2 : index
    %c0_135 = arith.constant 0 : index
    %c0_136 = arith.constant 0 : index
    %100 = vector.load %arg9[%c1_133, %c2_134, %c0_135, %c0_136] : memref<3x10x8x32xbf16, #tpu.memory_space<vmem>>, vector<1x8x8x32xbf16>
    %101 = vector.shape_cast %100 : vector<1x8x8x32xbf16> to vector<8x8x32xbf16>
    %102 = vector.shape_cast %101 : vector<8x8x32xbf16> to vector<64x32xbf16>
    %c2_137 = arith.constant 2 : index
    %c1_138 = arith.constant 1 : index
    %c0_139 = arith.constant 0 : index
    %c0_140 = arith.constant 0 : index
    %103 = vector.load %arg2[%c2_137, %c1_138, %c0_139, %c0_140] : memref<3x3x32x512xbf16, #tpu.memory_space<vmem>>, vector<1x1x32x512xbf16>
    %104 = vector.shape_cast %103 : vector<1x1x32x512xbf16> to vector<32x512xbf16>
    %cst_141 = arith.constant dense<0.000000e+00> : vector<64x512xf32>
    %105 = tpu.matmul %102, %104, %cst_141 {dimension_numbers = #tpu.dot_dimension_numbers<[1], [0], [0], [1], [0, 0, 1, 1], [], []>} : vector<64x32xbf16>, vector<32x512xbf16>, vector<64x512xf32> -> vector<64x512xf32>
    %c0_142 = arith.constant 0 : index
    %c0_143 = arith.constant 0 : index
    %106 = vector.load %arg10[%c0_142, %c0_143] : memref<64x512xf32, #tpu.memory_space<vmem>>, vector<64x512xf32>
    %107 = arith.addf %106, %105 : vector<64x512xf32>
    %c0_144 = arith.constant 0 : index
    %c0_145 = arith.constant 0 : index
    %108 = vector.load %arg10[%c0_144, %c0_145] : memref<64x512xf32, #tpu.memory_space<vmem>>, vector<64x512xf32>
    tpu.vector_store %arg10[%c0_144, %c0_145], %107 {strides = array<i32>} : memref<64x512xf32, #tpu.memory_space<vmem>>, vector<64x512xf32>,
    %c2_146 = arith.constant 2 : index
    %c2_147 = arith.constant 2 : index
    %c0_148 = arith.constant 0 : index
    %c0_149 = arith.constant 0 : index
    %109 = vector.load %arg9[%c2_146, %c2_147, %c0_148, %c0_149] : memref<3x10x8x32xbf16, #tpu.memory_space<vmem>>, vector<1x8x8x32xbf16>
    %110 = vector.shape_cast %109 : vector<1x8x8x32xbf16> to vector<8x8x32xbf16>
    %111 = vector.shape_cast %110 : vector<8x8x32xbf16> to vector<64x32xbf16>
    %c2_150 = arith.constant 2 : index
    %c2_151 = arith.constant 2 : index
    %c0_152 = arith.constant 0 : index
    %c0_153 = arith.constant 0 : index
    %112 = vector.load %arg2[%c2_150, %c2_151, %c0_152, %c0_153] : memref<3x3x32x512xbf16, #tpu.memory_space<vmem>>, vector<1x1x32x512xbf16>
    %113 = vector.shape_cast %112 : vector<1x1x32x512xbf16> to vector<32x512xbf16>
    %cst_154 = arith.constant dense<0.000000e+00> : vector<64x512xf32>
    %114 = tpu.matmul %111, %113, %cst_154 {dimension_numbers = #tpu.dot_dimension_numbers<[1], [0], [0], [1], [0, 0, 1, 1], [], []>} : vector<64x32xbf16>, vector<32x512xbf16>, vector<64x512xf32> -> vector<64x512xf32>
    %c0_155 = arith.constant 0 : index
    %c0_156 = arith.constant 0 : index
    %115 = vector.load %arg10[%c0_155, %c0_156] : memref<64x512xf32, #tpu.memory_space<vmem>>, vector<64x512xf32>
    %116 = arith.addf %115, %114 : vector<64x512xf32>
    %c0_157 = arith.constant 0 : index
    %c0_158 = arith.constant 0 : index
    %117 = vector.load %arg10[%c0_157, %c0_158] : memref<64x512xf32, #tpu.memory_space<vmem>>, vector<64x512xf32>
    tpu.vector_store %arg10[%c0_157, %c0_158], %116 {strides = array<i32>} : memref<64x512xf32, #tpu.memory_space<vmem>>, vector<64x512xf32>,
    %c0_159 = arith.constant 0 : index
    %c0_160 = arith.constant 0 : index
    %118 = vector.load %arg10[%c0_159, %c0_160] : memref<64x512xf32, #tpu.memory_space<vmem>>, vector<64x256xf32>
    %c0_161 = arith.constant 0 : index
    %c0_162 = arith.constant 0 : index
    %119 = vector.load %arg3[%c0_161, %c0_162] : memref<1x512xf32, #tpu.memory_space<vmem>>, vector<1x256xf32>
    %120 = vector.broadcast %119 : vector<1x256xf32> to vector<64x256xf32>
    %121 = arith.addf %118, %120 : vector<64x256xf32>
    %cst_163 = arith.constant 0.000000e+00 : f32
    %122 = vector.broadcast %cst_163 : f32 to vector<64x256xf32>
    %123 = arith.maximumf %121, %122 : vector<64x256xf32>
    %124 = arith.truncf %123 : vector<64x256xf32> to vector<64x256xbf16>
    %c0_164 = arith.constant 0 : index
    %c0_165 = arith.constant 0 : index
    %c0_166 = arith.constant 0 : index
    %125 = vector.load %arg7[%c0_164, %c0_165, %c0_166] : memref<1x64x256xbf16, #tpu.memory_space<vmem>>, vector<1x64x256xbf16>
    %126 = vector.shape_cast %125 : vector<1x64x256xbf16> to vector<64x256xbf16>
    %127 = vector.shape_cast %124 : vector<64x256xbf16> to vector<1x64x256xbf16>
    tpu.vector_store %arg7[%c0_164, %c0_165, %c0_166], %127 {strides = array<i32>} : memref<1x64x256xbf16, #tpu.memory_space<vmem>>, vector<1x64x256xbf16>,
    %c0_167 = arith.constant 0 : index
    %c256 = arith.constant 256 : index
    %128 = vector.load %arg10[%c0_167, %c256] : memref<64x512xf32, #tpu.memory_space<vmem>>, vector<64x256xf32>
    %c0_168 = arith.constant 0 : index
    %c256_169 = arith.constant 256 : index
    %129 = vector.load %arg3[%c0_168, %c256_169] : memref<1x512xf32, #tpu.memory_space<vmem>>, vector<1x256xf32>
    %130 = vector.broadcast %129 : vector<1x256xf32> to vector<64x256xf32>
    %131 = arith.addf %128, %130 : vector<64x256xf32>
    %cst_170 = arith.constant 0.000000e+00 : f32
    %132 = vector.broadcast %cst_170 : f32 to vector<64x256xf32>
    %133 = arith.maximumf %131, %132 : vector<64x256xf32>
    %134 = arith.truncf %133 : vector<64x256xf32> to vector<64x256xbf16>
    %c0_171 = arith.constant 0 : index
    %c0_172 = arith.constant 0 : index
    %135 = vector.load %arg11[%c0_171, %c0_172] : memref<64x256xbf16, #tpu.memory_space<vmem>>, vector<64x256xbf16>
    tpu.vector_store %arg11[%c0_171, %c0_172], %134 {strides = array<i32>} : memref<64x256xbf16, #tpu.memory_space<vmem>>, vector<64x256xbf16>,
    %cst_173 = arith.constant 0.000000e+00 : f32
    %136 = vector.broadcast %cst_173 : f32 to vector<2x8x8xf32>
    %c0_174 = arith.constant 0 : index
    %c0_175 = arith.constant 0 : index
    %c0_176 = arith.constant 0 : index
    %137 = vector.load %arg12[%c0_174, %c0_175, %c0_176] : memref<2x8x8xf32, #tpu.memory_space<vmem>>, vector<2x8x8xf32>
    tpu.vector_store %arg12[%c0_174, %c0_175, %c0_176], %136 {strides = array<i32>} : memref<2x8x8xf32, #tpu.memory_space<vmem>>, vector<2x8x8xf32>,
    %c0_177 = arith.constant 0 : index
    %c0_178 = arith.constant 0 : index
    %c0_179 = arith.constant 0 : index
    %c0_180 = arith.constant 0 : index
    %138 = vector.load %arg4[%c0_177, %c0_178, %c0_179, %c0_180] : memref<3x3x2x256xbf16, #tpu.memory_space<vmem>>, vector<1x1x2x256xbf16>
    %139 = vector.shape_cast %138 : vector<1x1x2x256xbf16> to vector<2x256xbf16>
    %c0_181 = arith.constant 0 : index
    %c0_182 = arith.constant 0 : index
    %140 = vector.load %arg11[%c0_181, %c0_182] : memref<64x256xbf16, #tpu.memory_space<vmem>>, vector<64x256xbf16>
    %cst_183 = arith.constant dense<0.000000e+00> : vector<2x64xf32>
    %141 = tpu.matmul %139, %140, %cst_183 {dimension_numbers = #tpu.dot_dimension_numbers<[1], [1], [0], [0], [0, 0, 1, 0], [], []>} : vector<2x256xbf16>, vector<64x256xbf16>, vector<2x64xf32> -> vector<2x64xf32>
    %142 = vector.shape_cast %141 : vector<2x64xf32> to vector<2x8x8xf32>
    %c0_184 = arith.constant 0 : index
    %c1_185 = arith.constant 1 : index
    %c1_186 = arith.constant 1 : index
    %143 = vector.load %arg12[%c0_184, %c1_185, %c1_186] : memref<2x8x8xf32, #tpu.memory_space<vmem>>, vector<2x7x7xf32>
    %144 = vector.extract_strided_slice %142 {offsets = [0, 0, 0], sizes = [2, 7, 7], strides = [1, 1, 1]} : vector<2x8x8xf32> to vector<2x7x7xf32>
    %145 = arith.addf %143, %144 : vector<2x7x7xf32>
    %c0_187 = arith.constant 0 : index
    %c1_188 = arith.constant 1 : index
    %c1_189 = arith.constant 1 : index
    %146 = vector.load %arg12[%c0_187, %c1_188, %c1_189] : memref<2x8x8xf32, #tpu.memory_space<vmem>>, vector<2x7x7xf32>
    tpu.vector_store %arg12[%c0_187, %c1_188, %c1_189], %145 {strides = array<i32>} : memref<2x8x8xf32, #tpu.memory_space<vmem>>, vector<2x7x7xf32>,
    %c0_190 = arith.constant 0 : index
    %c1_191 = arith.constant 1 : index
    %c0_192 = arith.constant 0 : index
    %c0_193 = arith.constant 0 : index
    %147 = vector.load %arg4[%c0_190, %c1_191, %c0_192, %c0_193] : memref<3x3x2x256xbf16, #tpu.memory_space<vmem>>, vector<1x1x2x256xbf16>
    %148 = vector.shape_cast %147 : vector<1x1x2x256xbf16> to vector<2x256xbf16>
    %c0_194 = arith.constant 0 : index
    %c0_195 = arith.constant 0 : index
    %149 = vector.load %arg11[%c0_194, %c0_195] : memref<64x256xbf16, #tpu.memory_space<vmem>>, vector<64x256xbf16>
    %cst_196 = arith.constant dense<0.000000e+00> : vector<2x64xf32>
    %150 = tpu.matmul %148, %149, %cst_196 {dimension_numbers = #tpu.dot_dimension_numbers<[1], [1], [0], [0], [0, 0, 1, 0], [], []>} : vector<2x256xbf16>, vector<64x256xbf16>, vector<2x64xf32> -> vector<2x64xf32>
    %151 = vector.shape_cast %150 : vector<2x64xf32> to vector<2x8x8xf32>
    %c0_197 = arith.constant 0 : index
    %c1_198 = arith.constant 1 : index
    %c0_199 = arith.constant 0 : index
    %152 = vector.load %arg12[%c0_197, %c1_198, %c0_199] : memref<2x8x8xf32, #tpu.memory_space<vmem>>, vector<2x7x8xf32>
    %153 = vector.extract_strided_slice %151 {offsets = [0, 0, 0], sizes = [2, 7, 8], strides = [1, 1, 1]} : vector<2x8x8xf32> to vector<2x7x8xf32>
    %154 = arith.addf %152, %153 : vector<2x7x8xf32>
    %c0_200 = arith.constant 0 : index
    %c1_201 = arith.constant 1 : index
    %c0_202 = arith.constant 0 : index
    %155 = vector.load %arg12[%c0_200, %c1_201, %c0_202] : memref<2x8x8xf32, #tpu.memory_space<vmem>>, vector<2x7x8xf32>
    tpu.vector_store %arg12[%c0_200, %c1_201, %c0_202], %154 {strides = array<i32>} : memref<2x8x8xf32, #tpu.memory_space<vmem>>, vector<2x7x8xf32>,
    %c0_203 = arith.constant 0 : index
    %c2_204 = arith.constant 2 : index
    %c0_205 = arith.constant 0 : index
    %c0_206 = arith.constant 0 : index
    %156 = vector.load %arg4[%c0_203, %c2_204, %c0_205, %c0_206] : memref<3x3x2x256xbf16, #tpu.memory_space<vmem>>, vector<1x1x2x256xbf16>
    %157 = vector.shape_cast %156 : vector<1x1x2x256xbf16> to vector<2x256xbf16>
    %c0_207 = arith.constant 0 : index
    %c0_208 = arith.constant 0 : index
    %158 = vector.load %arg11[%c0_207, %c0_208] : memref<64x256xbf16, #tpu.memory_space<vmem>>, vector<64x256xbf16>
    %cst_209 = arith.constant dense<0.000000e+00> : vector<2x64xf32>
    %159 = tpu.matmul %157, %158, %cst_209 {dimension_numbers = #tpu.dot_dimension_numbers<[1], [1], [0], [0], [0, 0, 1, 0], [], []>} : vector<2x256xbf16>, vector<64x256xbf16>, vector<2x64xf32> -> vector<2x64xf32>
    %160 = vector.shape_cast %159 : vector<2x64xf32> to vector<2x8x8xf32>
    %c0_210 = arith.constant 0 : index
    %c1_211 = arith.constant 1 : index
    %c0_212 = arith.constant 0 : index
    %161 = vector.load %arg12[%c0_210, %c1_211, %c0_212] : memref<2x8x8xf32, #tpu.memory_space<vmem>>, vector<2x7x7xf32>
    %162 = vector.extract_strided_slice %160 {offsets = [0, 0, 1], sizes = [2, 7, 7], strides = [1, 1, 1]} : vector<2x8x8xf32> to vector<2x7x7xf32>
    %163 = arith.addf %161, %162 : vector<2x7x7xf32>
    %c0_213 = arith.constant 0 : index
    %c1_214 = arith.constant 1 : index
    %c0_215 = arith.constant 0 : index
    %164 = vector.load %arg12[%c0_213, %c1_214, %c0_215] : memref<2x8x8xf32, #tpu.memory_space<vmem>>, vector<2x7x7xf32>
    tpu.vector_store %arg12[%c0_213, %c1_214, %c0_215], %163 {strides = array<i32>} : memref<2x8x8xf32, #tpu.memory_space<vmem>>, vector<2x7x7xf32>,
    %c1_216 = arith.constant 1 : index
    %c0_217 = arith.constant 0 : index
    %c0_218 = arith.constant 0 : index
    %c0_219 = arith.constant 0 : index
    %165 = vector.load %arg4[%c1_216, %c0_217, %c0_218, %c0_219] : memref<3x3x2x256xbf16, #tpu.memory_space<vmem>>, vector<1x1x2x256xbf16>
    %166 = vector.shape_cast %165 : vector<1x1x2x256xbf16> to vector<2x256xbf16>
    %c0_220 = arith.constant 0 : index
    %c0_221 = arith.constant 0 : index
    %167 = vector.load %arg11[%c0_220, %c0_221] : memref<64x256xbf16, #tpu.memory_space<vmem>>, vector<64x256xbf16>
    %cst_222 = arith.constant dense<0.000000e+00> : vector<2x64xf32>
    %168 = tpu.matmul %166, %167, %cst_222 {dimension_numbers = #tpu.dot_dimension_numbers<[1], [1], [0], [0], [0, 0, 1, 0], [], []>} : vector<2x256xbf16>, vector<64x256xbf16>, vector<2x64xf32> -> vector<2x64xf32>
    %169 = vector.shape_cast %168 : vector<2x64xf32> to vector<2x8x8xf32>
    %c0_223 = arith.constant 0 : index
    %c0_224 = arith.constant 0 : index
    %c1_225 = arith.constant 1 : index
    %170 = vector.load %arg12[%c0_223, %c0_224, %c1_225] : memref<2x8x8xf32, #tpu.memory_space<vmem>>, vector<2x8x7xf32>
    %171 = vector.extract_strided_slice %169 {offsets = [0, 0, 0], sizes = [2, 8, 7], strides = [1, 1, 1]} : vector<2x8x8xf32> to vector<2x8x7xf32>
    %172 = arith.addf %170, %171 : vector<2x8x7xf32>
    %c0_226 = arith.constant 0 : index
    %c0_227 = arith.constant 0 : index
    %c1_228 = arith.constant 1 : index
    %173 = vector.load %arg12[%c0_226, %c0_227, %c1_228] : memref<2x8x8xf32, #tpu.memory_space<vmem>>, vector<2x8x7xf32>
    tpu.vector_store %arg12[%c0_226, %c0_227, %c1_228], %172 {strides = array<i32>} : memref<2x8x8xf32, #tpu.memory_space<vmem>>, vector<2x8x7xf32>,
    %c1_229 = arith.constant 1 : index
    %c1_230 = arith.constant 1 : index
    %c0_231 = arith.constant 0 : index
    %c0_232 = arith.constant 0 : index
    %174 = vector.load %arg4[%c1_229, %c1_230, %c0_231, %c0_232] : memref<3x3x2x256xbf16, #tpu.memory_space<vmem>>, vector<1x1x2x256xbf16>
    %175 = vector.shape_cast %174 : vector<1x1x2x256xbf16> to vector<2x256xbf16>
    %c0_233 = arith.constant 0 : index
    %c0_234 = arith.constant 0 : index
    %176 = vector.load %arg11[%c0_233, %c0_234] : memref<64x256xbf16, #tpu.memory_space<vmem>>, vector<64x256xbf16>
    %cst_235 = arith.constant dense<0.000000e+00> : vector<2x64xf32>
    %177 = tpu.matmul %175, %176, %cst_235 {dimension_numbers = #tpu.dot_dimension_numbers<[1], [1], [0], [0], [0, 0, 1, 0], [], []>} : vector<2x256xbf16>, vector<64x256xbf16>, vector<2x64xf32> -> vector<2x64xf32>
    %178 = vector.shape_cast %177 : vector<2x64xf32> to vector<2x8x8xf32>
    %c0_236 = arith.constant 0 : index
    %c0_237 = arith.constant 0 : index
    %c0_238 = arith.constant 0 : index
    %179 = vector.load %arg12[%c0_236, %c0_237, %c0_238] : memref<2x8x8xf32, #tpu.memory_space<vmem>>, vector<2x8x8xf32>
    %180 = arith.addf %179, %178 : vector<2x8x8xf32>
    %c0_239 = arith.constant 0 : index
    %c0_240 = arith.constant 0 : index
    %c0_241 = arith.constant 0 : index
    %181 = vector.load %arg12[%c0_239, %c0_240, %c0_241] : memref<2x8x8xf32, #tpu.memory_space<vmem>>, vector<2x8x8xf32>
    tpu.vector_store %arg12[%c0_239, %c0_240, %c0_241], %180 {strides = array<i32>} : memref<2x8x8xf32, #tpu.memory_space<vmem>>, vector<2x8x8xf32>,
    %c1_242 = arith.constant 1 : index
    %c2_243 = arith.constant 2 : index
    %c0_244 = arith.constant 0 : index
    %c0_245 = arith.constant 0 : index
    %182 = vector.load %arg4[%c1_242, %c2_243, %c0_244, %c0_245] : memref<3x3x2x256xbf16, #tpu.memory_space<vmem>>, vector<1x1x2x256xbf16>
    %183 = vector.shape_cast %182 : vector<1x1x2x256xbf16> to vector<2x256xbf16>
    %c0_246 = arith.constant 0 : index
    %c0_247 = arith.constant 0 : index
    %184 = vector.load %arg11[%c0_246, %c0_247] : memref<64x256xbf16, #tpu.memory_space<vmem>>, vector<64x256xbf16>
    %cst_248 = arith.constant dense<0.000000e+00> : vector<2x64xf32>
    %185 = tpu.matmul %183, %184, %cst_248 {dimension_numbers = #tpu.dot_dimension_numbers<[1], [1], [0], [0], [0, 0, 1, 0], [], []>} : vector<2x256xbf16>, vector<64x256xbf16>, vector<2x64xf32> -> vector<2x64xf32>
    %186 = vector.shape_cast %185 : vector<2x64xf32> to vector<2x8x8xf32>
    %c0_249 = arith.constant 0 : index
    %c0_250 = arith.constant 0 : index
    %c0_251 = arith.constant 0 : index
    %187 = vector.load %arg12[%c0_249, %c0_250, %c0_251] : memref<2x8x8xf32, #tpu.memory_space<vmem>>, vector<2x8x7xf32>
    %188 = vector.extract_strided_slice %186 {offsets = [0, 0, 1], sizes = [2, 8, 7], strides = [1, 1, 1]} : vector<2x8x8xf32> to vector<2x8x7xf32>
    %189 = arith.addf %187, %188 : vector<2x8x7xf32>
    %c0_252 = arith.constant 0 : index
    %c0_253 = arith.constant 0 : index
    %c0_254 = arith.constant 0 : index
    %190 = vector.load %arg12[%c0_252, %c0_253, %c0_254] : memref<2x8x8xf32, #tpu.memory_space<vmem>>, vector<2x8x7xf32>
    tpu.vector_store %arg12[%c0_252, %c0_253, %c0_254], %189 {strides = array<i32>} : memref<2x8x8xf32, #tpu.memory_space<vmem>>, vector<2x8x7xf32>,
    %c2_255 = arith.constant 2 : index
    %c0_256 = arith.constant 0 : index
    %c0_257 = arith.constant 0 : index
    %c0_258 = arith.constant 0 : index
    %191 = vector.load %arg4[%c2_255, %c0_256, %c0_257, %c0_258] : memref<3x3x2x256xbf16, #tpu.memory_space<vmem>>, vector<1x1x2x256xbf16>
    %192 = vector.shape_cast %191 : vector<1x1x2x256xbf16> to vector<2x256xbf16>
    %c0_259 = arith.constant 0 : index
    %c0_260 = arith.constant 0 : index
    %193 = vector.load %arg11[%c0_259, %c0_260] : memref<64x256xbf16, #tpu.memory_space<vmem>>, vector<64x256xbf16>
    %cst_261 = arith.constant dense<0.000000e+00> : vector<2x64xf32>
    %194 = tpu.matmul %192, %193, %cst_261 {dimension_numbers = #tpu.dot_dimension_numbers<[1], [1], [0], [0], [0, 0, 1, 0], [], []>} : vector<2x256xbf16>, vector<64x256xbf16>, vector<2x64xf32> -> vector<2x64xf32>
    %195 = vector.shape_cast %194 : vector<2x64xf32> to vector<2x8x8xf32>
    %c0_262 = arith.constant 0 : index
    %c0_263 = arith.constant 0 : index
    %c1_264 = arith.constant 1 : index
    %196 = vector.load %arg12[%c0_262, %c0_263, %c1_264] : memref<2x8x8xf32, #tpu.memory_space<vmem>>, vector<2x7x7xf32>
    %197 = vector.extract_strided_slice %195 {offsets = [0, 1, 0], sizes = [2, 7, 7], strides = [1, 1, 1]} : vector<2x8x8xf32> to vector<2x7x7xf32>
    %198 = arith.addf %196, %197 : vector<2x7x7xf32>
    %c0_265 = arith.constant 0 : index
    %c0_266 = arith.constant 0 : index
    %c1_267 = arith.constant 1 : index
    %199 = vector.load %arg12[%c0_265, %c0_266, %c1_267] : memref<2x8x8xf32, #tpu.memory_space<vmem>>, vector<2x7x7xf32>
    tpu.vector_store %arg12[%c0_265, %c0_266, %c1_267], %198 {strides = array<i32>} : memref<2x8x8xf32, #tpu.memory_space<vmem>>, vector<2x7x7xf32>,
    %c2_268 = arith.constant 2 : index
    %c1_269 = arith.constant 1 : index
    %c0_270 = arith.constant 0 : index
    %c0_271 = arith.constant 0 : index
    %200 = vector.load %arg4[%c2_268, %c1_269, %c0_270, %c0_271] : memref<3x3x2x256xbf16, #tpu.memory_space<vmem>>, vector<1x1x2x256xbf16>
    %201 = vector.shape_cast %200 : vector<1x1x2x256xbf16> to vector<2x256xbf16>
    %c0_272 = arith.constant 0 : index
    %c0_273 = arith.constant 0 : index
    %202 = vector.load %arg11[%c0_272, %c0_273] : memref<64x256xbf16, #tpu.memory_space<vmem>>, vector<64x256xbf16>
    %cst_274 = arith.constant dense<0.000000e+00> : vector<2x64xf32>
    %203 = tpu.matmul %201, %202, %cst_274 {dimension_numbers = #tpu.dot_dimension_numbers<[1], [1], [0], [0], [0, 0, 1, 0], [], []>} : vector<2x256xbf16>, vector<64x256xbf16>, vector<2x64xf32> -> vector<2x64xf32>
    %204 = vector.shape_cast %203 : vector<2x64xf32> to vector<2x8x8xf32>
    %c0_275 = arith.constant 0 : index
    %c0_276 = arith.constant 0 : index
    %c0_277 = arith.constant 0 : index
    %205 = vector.load %arg12[%c0_275, %c0_276, %c0_277] : memref<2x8x8xf32, #tpu.memory_space<vmem>>, vector<2x7x8xf32>
    %206 = vector.extract_strided_slice %204 {offsets = [0, 1, 0], sizes = [2, 7, 8], strides = [1, 1, 1]} : vector<2x8x8xf32> to vector<2x7x8xf32>
    %207 = arith.addf %205, %206 : vector<2x7x8xf32>
    %c0_278 = arith.constant 0 : index
    %c0_279 = arith.constant 0 : index
    %c0_280 = arith.constant 0 : index
    %208 = vector.load %arg12[%c0_278, %c0_279, %c0_280] : memref<2x8x8xf32, #tpu.memory_space<vmem>>, vector<2x7x8xf32>
    tpu.vector_store %arg12[%c0_278, %c0_279, %c0_280], %207 {strides = array<i32>} : memref<2x8x8xf32, #tpu.memory_space<vmem>>, vector<2x7x8xf32>,
    %c2_281 = arith.constant 2 : index
    %c2_282 = arith.constant 2 : index
    %c0_283 = arith.constant 0 : index
    %c0_284 = arith.constant 0 : index
    %209 = vector.load %arg4[%c2_281, %c2_282, %c0_283, %c0_284] : memref<3x3x2x256xbf16, #tpu.memory_space<vmem>>, vector<1x1x2x256xbf16>
    %210 = vector.shape_cast %209 : vector<1x1x2x256xbf16> to vector<2x256xbf16>
    %c0_285 = arith.constant 0 : index
    %c0_286 = arith.constant 0 : index
    %211 = vector.load %arg11[%c0_285, %c0_286] : memref<64x256xbf16, #tpu.memory_space<vmem>>, vector<64x256xbf16>
    %cst_287 = arith.constant dense<0.000000e+00> : vector<2x64xf32>
    %212 = tpu.matmul %210, %211, %cst_287 {dimension_numbers = #tpu.dot_dimension_numbers<[1], [1], [0], [0], [0, 0, 1, 0], [], []>} : vector<2x256xbf16>, vector<64x256xbf16>, vector<2x64xf32> -> vector<2x64xf32>
    %213 = vector.shape_cast %212 : vector<2x64xf32> to vector<2x8x8xf32>
    %c0_288 = arith.constant 0 : index
    %c0_289 = arith.constant 0 : index
    %c0_290 = arith.constant 0 : index
    %214 = vector.load %arg12[%c0_288, %c0_289, %c0_290] : memref<2x8x8xf32, #tpu.memory_space<vmem>>, vector<2x7x7xf32>
    %215 = vector.extract_strided_slice %213 {offsets = [0, 1, 1], sizes = [2, 7, 7], strides = [1, 1, 1]} : vector<2x8x8xf32> to vector<2x7x7xf32>
    %216 = arith.addf %214, %215 : vector<2x7x7xf32>
    %c0_291 = arith.constant 0 : index
    %c0_292 = arith.constant 0 : index
    %c0_293 = arith.constant 0 : index
    %217 = vector.load %arg12[%c0_291, %c0_292, %c0_293] : memref<2x8x8xf32, #tpu.memory_space<vmem>>, vector<2x7x7xf32>
    tpu.vector_store %arg12[%c0_291, %c0_292, %c0_293], %216 {strides = array<i32>} : memref<2x8x8xf32, #tpu.memory_space<vmem>>, vector<2x7x7xf32>,
    %c0_294 = arith.constant 0 : index
    %c0_295 = arith.constant 0 : index
    %c0_296 = arith.constant 0 : index
    %218 = vector.load %arg6[%c0_294, %c0_295, %c0_296] : memref<1x2x64xf32, #tpu.memory_space<vmem>>, vector<1x2x64xf32>
    %219 = vector.shape_cast %218 : vector<1x2x64xf32> to vector<2x64xf32>
    %c0_297 = arith.constant 0 : index
    %c0_298 = arith.constant 0 : index
    %c0_299 = arith.constant 0 : index
    %220 = vector.load %arg12[%c0_297, %c0_298, %c0_299] : memref<2x8x8xf32, #tpu.memory_space<vmem>>, vector<2x8x8xf32>
    %221 = vector.shape_cast %220 : vector<2x8x8xf32> to vector<2x64xf32>
    %222 = arith.addf %219, %221 : vector<2x64xf32>
    %c0_300 = arith.constant 0 : index
    %c0_301 = arith.constant 0 : index
    %223 = vector.load %arg5[%c0_300, %c0_301] : memref<2x1xf32, #tpu.memory_space<vmem>>, vector<2x1xf32>
    %224 = vector.broadcast %223 : vector<2x1xf32> to vector<2x64xf32>
    %225 = arith.addf %222, %224 : vector<2x64xf32>
    %c0_302 = arith.constant 0 : index
    %c0_303 = arith.constant 0 : index
    %c0_304 = arith.constant 0 : index
    %226 = vector.load %arg8[%c0_302, %c0_303, %c0_304] : memref<1x2x64xf32, #tpu.memory_space<vmem>>, vector<1x2x64xf32>
    %227 = vector.shape_cast %226 : vector<1x2x64xf32> to vector<2x64xf32>
    %228 = vector.shape_cast %225 : vector<2x64xf32> to vector<1x2x64xf32>
    tpu.vector_store %arg8[%c0_302, %c0_303, %c0_304], %228 {strides = array<i32>} : memref<1x2x64xf32, #tpu.memory_space<vmem>>, vector<1x2x64xf32>,
    return
  }
  func.func @transform_0(%arg0: i32) -> (i32, i32, i32, i32) {
    %c0_i32 = arith.constant 0 : i32
    %c0_i32_0 = arith.constant 0 : i32
    %c0_i32_1 = arith.constant 0 : i32
    %c0_i32_2 = arith.constant 0 : i32
    return %arg0, %c0_i32, %c0_i32_0, %c0_i32_1 : i32, i32, i32, i32
  }
  func.func @transform_1(%arg0: i32) -> (i32, i32, i32, i32) {
    %c0_i32 = arith.constant 0 : i32
    %c0_i32_0 = arith.constant 0 : i32
    %c0_i32_1 = arith.constant 0 : i32
    %c0_i32_2 = arith.constant 0 : i32
    %c0_i32_3 = arith.constant 0 : i32
    return %c0_i32, %c0_i32_0, %c0_i32_1, %c0_i32_2 : i32, i32, i32, i32
  }
  func.func @transform_2(%arg0: i32) -> (i32, i32) {
    %c0_i32 = arith.constant 0 : i32
    %c0_i32_0 = arith.constant 0 : i32
    %c0_i32_1 = arith.constant 0 : i32
    return %c0_i32, %c0_i32_0 : i32, i32
  }
  func.func @transform_3(%arg0: i32) -> (i32, i32, i32, i32) {
    %c0_i32 = arith.constant 0 : i32
    %c0_i32_0 = arith.constant 0 : i32
    %c0_i32_1 = arith.constant 0 : i32
    %c0_i32_2 = arith.constant 0 : i32
    %c0_i32_3 = arith.constant 0 : i32
    return %c0_i32, %c0_i32_0, %c0_i32_1, %c0_i32_2 : i32, i32, i32, i32
  }
  func.func @transform_4(%arg0: i32) -> (i32, i32) {
    %c0_i32 = arith.constant 0 : i32
    %c0_i32_0 = arith.constant 0 : i32
    %c0_i32_1 = arith.constant 0 : i32
    return %c0_i32, %c0_i32_0 : i32, i32
  }
  func.func @transform_5(%arg0: i32) -> (i32, i32, i32) {
    %c0_i32 = arith.constant 0 : i32
    %c0_i32_0 = arith.constant 0 : i32
    %c0_i32_1 = arith.constant 0 : i32
    return %arg0, %c0_i32, %c0_i32_0 : i32, i32, i32
  }
  func.func @transform_6(%arg0: i32) -> (i32, i32, i32) {
    %c0_i32 = arith.constant 0 : i32
    %c0_i32_0 = arith.constant 0 : i32
    %c0_i32_1 = arith.constant 0 : i32
    return %arg0, %c0_i32, %c0_i32_0 : i32, i32, i32
  }
  func.func @transform_7(%arg0: i32) -> (i32, i32, i32) {
    %c0_i32 = arith.constant 0 : i32
    %c0_i32_0 = arith.constant 0 : i32
    %c0_i32_1 = arith.constant 0 : i32
    return %arg0, %c0_i32, %c0_i32_0 : i32, i32, i32
  }
}

</mosaic_0001>

<llo_original>
// kernel: update_block_forward.3
$region0: #{update_block_forward.3}
  #allocation0 [shape = 'u32[]', space=smem, size = 0x4, offset = 0x4, fixed_abs, tag = 'smem constant byte address 0x4 - core index']
  #allocation1 [shape = 'u32[144,128]{1,0:T(1,128)}', space=vmem, size = 0x12000, scoped, tag = 'internal scratch']
  %s0 = inlined_call_operand.vmem [shape: bf16[2,64,256], index: 0, kind: input, shape index: {}]
  %s1 = inlined_call_operand.vmem [shape: bf16[2304,256], index: 1, kind: input, shape index: {}]
  %s2 = inlined_call_operand.vmem [shape: f32[2304,1], index: 2, kind: input, shape index: {}]
  %s3 = inlined_call_operand.vmem [shape: f32[2,2304,64], index: 3, kind: output, shape index: {}]
  %s4 = sld [smem:[#allocation0]]
  $region45: #{update_block_forward.3} parent=0
    _
  %s6 = ssub.s32 1, %s4
  %s7 = scalar_select 0, %s6, %s4
  loop: start=0, step=1, limit=4
  $region2: #{update_block_forward.3} parent=0 // loop_pre_header
    _
  $region3: #{update_block_forward.3} parent=0 // loop_header
    %s9 = sphi 0, %s13
    %p10 = scmp.ge.s32.totalorder %s9, 4
    %s16 = sphi 0, %s28
    %s17 = sphi 0, %s24
    %s18 = sphi 0, %s16
    %s19 = sphi 0, %s17
    %s20 = sphi 0, %s18
    %s21 = sphi 0, %s19
    %s33 = sphi 0, %s35
    %s36 = sphi 0, %s33
    %s37 = sphi 0, %s36
    %s53 = sphi 0, %s37
    %s57 = sphi 0, %s57
    %s59 = sphi 0, %s57
    %s60 = sphi 0, %s59
    %s74 = sphi 0, %s60
    %s78 = sphi 0, %s78
    %s80 = sphi 0, %s78
    %s81 = sphi 0, %s80
    %s95 = sphi 0, %s81
    %s103 = sphi 0, %s105
    %s106 = sphi 0, %s103
    %s107 = sphi 0, %s106
    %s123 = sphi 0, %s107
  $region4: #{update_block_forward.3} parent=0 // loop_header_branch
    %12 = sbr.rel (%p10) target = $region8
  $region5: #{update_block_forward.3} parent=0 // loop_body
    %s14 = ssub.s32 %s9, 1
    %s15 = ssub.s32 %s9, 2
    %s22 = sadd.s32 1, %s17
    %p23 = scmp.ge.s32.totalorder %s22, 2
    %s24 = scalar_select %p23, 0, %s22
    %s25 = sadd.s32 1, %s16
    %s26 = scalar_select %p23, %s25, %s16
    %p27 = scmp.ge.s32.totalorder %s26, 1
    %s28 = scalar_select %p27, 0, %s26
    %s29 = ssub.s32 %s17, %s24
    %s30 = ssub.s32 %s16, %s28
    %s31 = sor.u32 %s29, %s30
    %p32 = scmp.eq.s32.totalorder %s31, 0
    %s34 = sadd.s32 %s33, 1
    %s35 = scalar_select %p32, %s33, %s34
    %p38 = pneg %p32
    %p39 = scmp.eq.s32.totalorder %s9, 1
    %p40 = por %p38, %p39
    %p41 = scmp.ne.s32.totalorder %s33, %s36
    %p42 = scmp.eq.s32.totalorder %s9, 0
    %p43 = por %p41, %p42
    %p44 = scmp.ne.s32.totalorder %s33, %s36
    %p45 = scmp.eq.s32.totalorder %s14, 1
    %p46 = por %p44, %p45
    %p47 = scmp.ne.s32.totalorder %s36, %s37
    %p48 = scmp.eq.s32.totalorder %s14, 0
    %p49 = por %p47, %p48
    %p50 = scmp.ne.s32.totalorder %s36, %s37
    %p51 = scmp.eq.s32.totalorder %s15, 1
    %p52 = por %p50, %p51
    %p54 = scmp.ne.s32.totalorder %s37, %s53
    %p55 = scmp.eq.s32.totalorder %s15, 0
    %p56 = por %p54, %p55
    %s58 = sadd.s32 %s57, 1
    %p61 = scmp.eq.s32.totalorder %s9, 1
    %p62 = scmp.ne.s32.totalorder %s57, %s59
    %p63 = scmp.eq.s32.totalorder %s9, 0
    %p64 = por %p62, %p63
    %p65 = scmp.ne.s32.totalorder %s57, %s59
    %p66 = scmp.eq.s32.totalorder %s14, 1
    %p67 = por %p65, %p66
    %p68 = scmp.ne.s32.totalorder %s59, %s60
    %p69 = scmp.eq.s32.totalorder %s14, 0
    %p70 = por %p68, %p69
    %p71 = scmp.ne.s32.totalorder %s59, %s60
    %p72 = scmp.eq.s32.totalorder %s15, 1
    %p73 = por %p71, %p72
    %p75 = scmp.ne.s32.totalorder %s60, %s74
    %p76 = scmp.eq.s32.totalorder %s15, 0
    %p77 = por %p75, %p76
    %s79 = sadd.s32 %s78, 1
    %p82 = scmp.eq.s32.totalorder %s9, 1
    %p83 = scmp.ne.s32.totalorder %s78, %s80
    %p84 = scmp.eq.s32.totalorder %s9, 0
    %p85 = por %p83, %p84
    %p86 = scmp.ne.s32.totalorder %s78, %s80
    %p87 = scmp.eq.s32.totalorder %s14, 1
    %p88 = por %p86, %p87
    %p89 = scmp.ne.s32.totalorder %s80, %s81
    %p90 = scmp.eq.s32.totalorder %s14, 0
    %p91 = por %p89, %p90
    %p92 = scmp.ne.s32.totalorder %s80, %s81
    %p93 = scmp.eq.s32.totalorder %s15, 1
    %p94 = por %p92, %p93
    %p96 = scmp.ne.s32.totalorder %s81, %s95
    %p97 = scmp.eq.s32.totalorder %s15, 0
    %p98 = por %p96, %p97
    %s99 = ssub.s32 %s17, %s24
    %s100 = ssub.s32 %s16, %s28
    %s101 = sor.u32 %s99, %s100
    %p102 = scmp.eq.s32.totalorder %s101, 0
    %s104 = sadd.s32 %s103, 1
    %s105 = scalar_select %p102, %s103, %s104
    %p108 = pneg %p102
    %p109 = scmp.eq.s32.totalorder %s9, 1
    %p110 = por %p108, %p109
    %p111 = scmp.ne.s32.totalorder %s103, %s106
    %p112 = scmp.eq.s32.totalorder %s9, 0
    %p113 = por %p111, %p112
    %p114 = scmp.ne.s32.totalorder %s103, %s106
    %p115 = scmp.eq.s32.totalorder %s14, 1
    %p116 = por %p114, %p115
    %p117 = scmp.ne.s32.totalorder %s106, %s107
    %p118 = scmp.eq.s32.totalorder %s14, 0
    %p119 = por %p117, %p118
    %p120 = scmp.ne.s32.totalorder %s106, %s107
    %p121 = scmp.eq.s32.totalorder %s15, 1
    %p122 = por %p120, %p121
    %p124 = scmp.ne.s32.totalorder %s107, %s123
    %p125 = scmp.eq.s32.totalorder %s15, 0
    %p126 = por %p124, %p125
    %p127 = scmp.le.s32.totalorder 1, %s9
    %p128 = scmp.lt.s32.totalorder %s9, 3
    %p129 = pnand %p127, %p128
    %p130 = pneg %p129
    // Predicated region
    $region9: #{update_block_forward.3} parent=5 // pred_check
      _
    $region10: #{update_block_forward.3} parent=5 // pred_check_branch
      %132 = sbr.rel (%p129) target = $region12
    $region11: #{update_block_forward.3} parent=5 // pred_region
      %s133 = ssub.s32 %s9, 1
      // Predicated region
      $region13: #{update_block_forward.3} parent=11 // pred_check
        %p134 = pneg %p70
      $region14: #{update_block_forward.3} parent=11 // pred_check_branch
        %136 = sbr.rel (%p134) target = $region16
      $region15: #{update_block_forward.3} parent=11 // pred_region
        _
      $region16: #{update_block_forward.3} parent=11 // pred_fallthru
        _
      // Predicated region
      $region17: #{update_block_forward.3} parent=11 // pred_check
        %p137 = pneg %p91
      $region18: #{update_block_forward.3} parent=11 // pred_check_branch
        %139 = sbr.rel (%p137) target = $region20
      $region19: #{update_block_forward.3} parent=11 // pred_region
        _
      $region20: #{update_block_forward.3} parent=11 // pred_fallthru
        _
    $region12: #{update_block_forward.3} parent=5 // pred_fallthru
      _
    %p140 = scmp.lt.s32.totalorder %s9, 2
    // Predicated region
    $region21: #{update_block_forward.3} parent=5 // pred_check
      %p141 = pneg %p140
    $region22: #{update_block_forward.3} parent=5 // pred_check_branch
      %143 = sbr.rel (%p141) target = $region24
    $region23: #{update_block_forward.3} parent=5 // pred_region
      // Predicated region
      $region25: #{update_block_forward.3} parent=23 // pred_check
        %p144 = pneg %p43
      $region26: #{update_block_forward.3} parent=23 // pred_check_branch
        %146 = sbr.rel (%p144) target = $region28
      $region27: #{update_block_forward.3} parent=23 // pred_region
        %s147 = smul.u32 8, %s16
        %p148 = scmp.lt.s32.totalorder %s17, 1
        %s149 = scalar_select %p148, %s17, 1
        %p150 = scmp.lt.s32.totalorder %s147, 7
        %s151 = scalar_select %p150, %s147, 7
        %s152 = smul.addr %s151, 2
        %s153 = smul.addr %s149, 16
        %s154 = sadd.s32 %s152, %s153
        %s155 = smul.addr %s154, 4
        %s156 = scalar_lea.vmem %s0, %s155
        %s157 = smul.u32 8, %s16
      $region28: #{update_block_forward.3} parent=23 // pred_fallthru
        _
    $region24: #{update_block_forward.3} parent=5 // pred_fallthru
      _
    %p158 = scmp.le.s32.totalorder 1, %s9
    %p159 = scmp.lt.s32.totalorder %s9, 3
    %p160 = pnand %p158, %p159
    %p161 = pneg %p160
    // Predicated region
    $region29: #{update_block_forward.3} parent=5 // pred_check
      _
    $region30: #{update_block_forward.3} parent=5 // pred_check_branch
      %163 = sbr.rel (%p160) target = $region32
    $region31: #{update_block_forward.3} parent=5 // pred_region
      %s164 = ssub.s32 %s9, 1
      %s165 = smul.u32 8, %s18
      %p166 = scmp.lt.s32.totalorder %s19, 1
      %s167 = scalar_select %p166, %s19, 1
      %p168 = scmp.lt.s32.totalorder %s165, 7
      %s169 = scalar_select %p168, %s165, 7
      %s170 = smul.addr %s169, 2
      %s171 = smul.addr %s167, 16
      %s172 = sadd.s32 %s170, %s171
      %s173 = smul.addr %s172, 4
      %s174 = scalar_lea.vmem %s0, %s173
      %p175 = pneg %p49
      %p176 = pneg %p46
      %p177 = pneg %p70
      %p178 = pneg %p67
      %p179 = pneg %p91
      %p180 = pneg %p88
      %p181 = pneg %p119
      %p182 = pneg %p116
      %p183 = scmp.lt.s32.totalorder %s19, 1
      %s184 = scalar_select %p183, %s19, 1
      %p185 = scmp.lt.s32.totalorder %s18, 0
      %s186 = scalar_select %p185, %s18, 0
      %s187 = smul.addr %s184, 288
      %s188 = sadd.s32 %s186, %s187
      %s189 = smul.addr %s188, 8
      %s190 = scalar_lea.vmem %s3, %s189
      %s191 = smul.u32 8, %s18
      %p192 = scmp.lt.s32.totalorder %s19, 1
      %s193 = scalar_select %p192, %s19, 1
      %p194 = scmp.lt.s32.totalorder %s191, 7
      %s195 = scalar_select %p194, %s191, 7
      %s196 = smul.addr %s195, 2
      %s197 = smul.addr %s193, 16
      %s198 = sadd.s32 %s196, %s197
      %s199 = smul.addr %s198, 4
      %s200 = scalar_lea.vmem %s0, %s199
      %s201 = smul.u32 8, %s18
      %p202 = scmp.lt.s32.totalorder %s19, 1
      %s203 = scalar_select %p202, %s19, 1
      %p204 = scmp.lt.s32.totalorder %s18, 0
      %s205 = scalar_select %p204, %s18, 0
      %s206 = smul.addr %s203, 288
      %s207 = sadd.s32 %s205, %s206
      %s208 = smul.addr %s207, 8
      %s209 = scalar_lea.vmem %s3, %s208
      %v211 = vld [vmem:[%s1] sm:$0xff]
      %v212 = vld [vmem:[%s1 + $0x8] sm:$0xff]
      %v213 = vld [vmem:[%s1 + $0x10] sm:$0xff]
      %v214 = vld [vmem:[%s1 + $0x18] sm:$0xff]
      %v215 = vld [vmem:[%s1 + $0x20] sm:$0xff]
      %v216 = vld [vmem:[%s1 + $0x28] sm:$0xff]
      %v217 = vld [vmem:[%s1 + $0x30] sm:$0xff]
      %v218 = vld [vmem:[%s1 + $0x38] sm:$0xff]
      %v219 = vld [vmem:[%s1 + $0x40] sm:$0xff]
      %v220 = vld [vmem:[%s1 + $0x48] sm:$0xff]
      %v221 = vld [vmem:[%s1 + $0x50] sm:$0xff]
      %v222 = vld [vmem:[%s1 + $0x58] sm:$0xff]
      %v223 = vld [vmem:[%s1 + $0x60] sm:$0xff]
      %v224 = vld [vmem:[%s1 + $0x68] sm:$0xff]
      %v225 = vld [vmem:[%s1 + $0x70] sm:$0xff]
      %v226 = vld [vmem:[%s1 + $0x78] sm:$0xff]
      %v227 = vld [vmem:[%s1 + $0x80] sm:$0xff]
      %v228 = vld [vmem:[%s1 + $0x88] sm:$0xff]
      %v229 = vld [vmem:[%s1 + $0x90] sm:$0xff]
      %v230 = vld [vmem:[%s1 + $0x98] sm:$0xff]
      %v231 = vld [vmem:[%s1 + $0xa0] sm:$0xff]
      %v232 = vld [vmem:[%s1 + $0xa8] sm:$0xff]
      %v233 = vld [vmem:[%s1 + $0xb0] sm:$0xff]
      %v234 = vld [vmem:[%s1 + $0xb8] sm:$0xff]
      %v235 = vld [vmem:[%s1 + $0xc0] sm:$0xff]
      %v236 = vld [vmem:[%s1 + $0xc8] sm:$0xff]
      %v237 = vld [vmem:[%s1 + $0xd0] sm:$0xff]
      %v238 = vld [vmem:[%s1 + $0xd8] sm:$0xff]
      %v239 = vld [vmem:[%s1 + $0xe0] sm:$0xff]
      %v240 = vld [vmem:[%s1 + $0xe8] sm:$0xff]
      %v241 = vld [vmem:[%s1 + $0xf0] sm:$0xff]
      %v242 = vld [vmem:[%s1 + $0xf8] sm:$0xff]
      %v243 = vld [vmem:[%s1 + $0x100] sm:$0xff]
      %v244 = vld [vmem:[%s1 + $0x108] sm:$0xff]
      %v245 = vld [vmem:[%s1 + $0x110] sm:$0xff]
      %v246 = vld [vmem:[%s1 + $0x118] sm:$0xff]
      %v247 = vld [vmem:[%s1 + $0x120] sm:$0xff]
      %v248 = vld [vmem:[%s1 + $0x128] sm:$0xff]
      %v249 = vld [vmem:[%s1 + $0x130] sm:$0xff]
      %v250 = vld [vmem:[%s1 + $0x138] sm:$0xff]
      %v251 = vld [vmem:[%s1 + $0x140] sm:$0xff]
      %v252 = vld [vmem:[%s1 + $0x148] sm:$0xff]
      %v253 = vld [vmem:[%s1 + $0x150] sm:$0xff]
      %v254 = vld [vmem:[%s1 + $0x158] sm:$0xff]
      %v255 = vld [vmem:[%s1 + $0x160] sm:$0xff]
      %v256 = vld [vmem:[%s1 + $0x168] sm:$0xff]
      %v257 = vld [vmem:[%s1 + $0x170] sm:$0xff]
      %v258 = vld [vmem:[%s1 + $0x178] sm:$0xff]
      %v259 = vld [vmem:[%s1 + $0x180] sm:$0xff]
      %v260 = vld [vmem:[%s1 + $0x188] sm:$0xff]
      %v261 = vld [vmem:[%s1 + $0x190] sm:$0xff]
      %v262 = vld [vmem:[%s1 + $0x198] sm:$0xff]
      %v263 = vld [vmem:[%s1 + $0x1a0] sm:$0xff]
      %v264 = vld [vmem:[%s1 + $0x1a8] sm:$0xff]
      %v265 = vld [vmem:[%s1 + $0x1b0] sm:$0xff]
      %v266 = vld [vmem:[%s1 + $0x1b8] sm:$0xff]
      %v267 = vld [vmem:[%s1 + $0x1c0] sm:$0xff]
      %v268 = vld [vmem:[%s1 + $0x1c8] sm:$0xff]
      %v269 = vld [vmem:[%s1 + $0x1d0] sm:$0xff]
      %v270 = vld [vmem:[%s1 + $0x1d8] sm:$0xff]
      %v271 = vld [vmem:[%s1 + $0x1e0] sm:$0xff]
      %v272 = vld [vmem:[%s1 + $0x1e8] sm:$0xff]
      %v273 = vld [vmem:[%s1 + $0x1f0] sm:$0xff]
      %v274 = vld [vmem:[%s1 + $0x1f8] sm:$0xff]
      %v275 = vld [vmem:[%s1 + $0x200] sm:$0xff]
      %v276 = vld [vmem:[%s1 + $0x208] sm:$0xff]
      %v277 = vld [vmem:[%s1 + $0x210] sm:$0xff]
      %v278 = vld [vmem:[%s1 + $0x218] sm:$0xff]
      %v279 = vld [vmem:[%s1 + $0x220] sm:$0xff]
      %v280 = vld [vmem:[%s1 + $0x228] sm:$0xff]
      %v281 = vld [vmem:[%s1 + $0x230] sm:$0xff]
      %v282 = vld [vmem:[%s1 + $0x238] sm:$0xff]
      %v283 = vld [vmem:[%s1 + $0x240] sm:$0xff]
      %v284 = vld [vmem:[%s1 + $0x248] sm:$0xff]
      %v285 = vld [vmem:[%s1 + $0x250] sm:$0xff]
      %v286 = vld [vmem:[%s1 + $0x258] sm:$0xff]
      %v287 = vld [vmem:[%s1 + $0x260] sm:$0xff]
      %v288 = vld [vmem:[%s1 + $0x268] sm:$0xff]
      %v289 = vld [vmem:[%s1 + $0x270] sm:$0xff]
      %v290 = vld [vmem:[%s1 + $0x278] sm:$0xff]
      %v291 = vld [vmem:[%s1 + $0x280] sm:$0xff]
      %v292 = vld [vmem:[%s1 + $0x288] sm:$0xff]
      %v293 = vld [vmem:[%s1 + $0x290] sm:$0xff]
      %v294 = vld [vmem:[%s1 + $0x298] sm:$0xff]
      %v295 = vld [vmem:[%s1 + $0x2a0] sm:$0xff]
      %v296 = vld [vmem:[%s1 + $0x2a8] sm:$0xff]
      %v297 = vld [vmem:[%s1 + $0x2b0] sm:$0xff]
      %v298 = vld [vmem:[%s1 + $0x2b8] sm:$0xff]
      %v299 = vld [vmem:[%s1 + $0x2c0] sm:$0xff]
      %v300 = vld [vmem:[%s1 + $0x2c8] sm:$0xff]
      %v301 = vld [vmem:[%s1 + $0x2d0] sm:$0xff]
      %v302 = vld [vmem:[%s1 + $0x2d8] sm:$0xff]
      %v303 = vld [vmem:[%s1 + $0x2e0] sm:$0xff]
      %v304 = vld [vmem:[%s1 + $0x2e8] sm:$0xff]
      %v305 = vld [vmem:[%s1 + $0x2f0] sm:$0xff]
      %v306 = vld [vmem:[%s1 + $0x2f8] sm:$0xff]
      %v307 = vld [vmem:[%s1 + $0x300] sm:$0xff]
      %v308 = vld [vmem:[%s1 + $0x308] sm:$0xff]
      %v309 = vld [vmem:[%s1 + $0x310] sm:$0xff]
      %v310 = vld [vmem:[%s1 + $0x318] sm:$0xff]
      %v311 = vld [vmem:[%s1 + $0x320] sm:$0xff]
      %v312 = vld [vmem:[%s1 + $0x328] sm:$0xff]
      %v313 = vld [vmem:[%s1 + $0x330] sm:$0xff]
      %v314 = vld [vmem:[%s1 + $0x338] sm:$0xff]
      %v315 = vld [vmem:[%s1 + $0x340] sm:$0xff]
      %v316 = vld [vmem:[%s1 + $0x348] sm:$0xff]
      %v317 = vld [vmem:[%s1 + $0x350] sm:$0xff]
      %v318 = vld [vmem:[%s1 + $0x358] sm:$0xff]
      %v319 = vld [vmem:[%s1 + $0x360] sm:$0xff]
      %v320 = vld [vmem:[%s1 + $0x368] sm:$0xff]
      %v321 = vld [vmem:[%s1 + $0x370] sm:$0xff]
      %v322 = vld [vmem:[%s1 + $0x378] sm:$0xff]
      %v323 = vld [vmem:[%s1 + $0x380] sm:$0xff]
      %v324 = vld [vmem:[%s1 + $0x388] sm:$0xff]
      %v325 = vld [vmem:[%s1 + $0x390] sm:$0xff]
      %v326 = vld [vmem:[%s1 + $0x398] sm:$0xff]
      %v327 = vld [vmem:[%s1 + $0x3a0] sm:$0xff]
      %v328 = vld [vmem:[%s1 + $0x3a8] sm:$0xff]
      %v329 = vld [vmem:[%s1 + $0x3b0] sm:$0xff]
      %v330 = vld [vmem:[%s1 + $0x3b8] sm:$0xff]
      %v331 = vld [vmem:[%s1 + $0x3c0] sm:$0xff]
      %v332 = vld [vmem:[%s1 + $0x3c8] sm:$0xff]
      %v333 = vld [vmem:[%s1 + $0x3d0] sm:$0xff]
      %v334 = vld [vmem:[%s1 + $0x3d8] sm:$0xff]
      %v335 = vld [vmem:[%s1 + $0x3e0] sm:$0xff]
      %v336 = vld [vmem:[%s1 + $0x3e8] sm:$0xff]
      %v337 = vld [vmem:[%s1 + $0x3f0] sm:$0xff]
      %v338 = vld [vmem:[%s1 + $0x3f8] sm:$0xff]
      %v339 = vld [vmem:[%s1 + $0x400] sm:$0xff]
      %v340 = vld [vmem:[%s1 + $0x408] sm:$0xff]
      %v341 = vld [vmem:[%s1 + $0x410] sm:$0xff]
      %v342 = vld [vmem:[%s1 + $0x418] sm:$0xff]
      %v343 = vld [vmem:[%s1 + $0x420] sm:$0xff]
      %v344 = vld [vmem:[%s1 + $0x428] sm:$0xff]
      %v345 = vld [vmem:[%s1 + $0x430] sm:$0xff]
      %v346 = vld [vmem:[%s1 + $0x438] sm:$0xff]
      %v347 = vld [vmem:[%s1 + $0x440] sm:$0xff]
      %v348 = vld [vmem:[%s1 + $0x448] sm:$0xff]
      %v349 = vld [vmem:[%s1 + $0x450] sm:$0xff]
      %v350 = vld [vmem:[%s1 + $0x458] sm:$0xff]
      %v351 = vld [vmem:[%s1 + $0x460] sm:$0xff]
      %v352 = vld [vmem:[%s1 + $0x468] sm:$0xff]
      %v353 = vld [vmem:[%s1 + $0x470] sm:$0xff]
      %v354 = vld [vmem:[%s1 + $0x478] sm:$0xff]
      %v355 = vld [vmem:[%s1 + $0x480] sm:$0xff]
      %v356 = vld [vmem:[%s1 + $0x488] sm:$0xff]
      %v357 = vld [vmem:[%s1 + $0x490] sm:$0xff]
      %v358 = vld [vmem:[%s1 + $0x498] sm:$0xff]
      %v359 = vld [vmem:[%s1 + $0x4a0] sm:$0xff]
      %v360 = vld [vmem:[%s1 + $0x4a8] sm:$0xff]
      %v361 = vld [vmem:[%s1 + $0x4b0] sm:$0xff]
      %v362 = vld [vmem:[%s1 + $0x4b8] sm:$0xff]
      %v363 = vld [vmem:[%s1 + $0x4c0] sm:$0xff]
      %v364 = vld [vmem:[%s1 + $0x4c8] sm:$0xff]
      %v365 = vld [vmem:[%s1 + $0x4d0] sm:$0xff]
      %v366 = vld [vmem:[%s1 + $0x4d8] sm:$0xff]
      %v367 = vld [vmem:[%s1 + $0x4e0] sm:$0xff]
      %v368 = vld [vmem:[%s1 + $0x4e8] sm:$0xff]
      %v369 = vld [vmem:[%s1 + $0x4f0] sm:$0xff]
      %v370 = vld [vmem:[%s1 + $0x4f8] sm:$0xff]
      %v371 = vld [vmem:[%s1 + $0x500] sm:$0xff]
      %v372 = vld [vmem:[%s1 + $0x508] sm:$0xff]
      %v373 = vld [vmem:[%s1 + $0x510] sm:$0xff]
      %v374 = vld [vmem:[%s1 + $0x518] sm:$0xff]
      %v375 = vld [vmem:[%s1 + $0x520] sm:$0xff]
      %v376 = vld [vmem:[%s1 + $0x528] sm:$0xff]
      %v377 = vld [vmem:[%s1 + $0x530] sm:$0xff]
      %v378 = vld [vmem:[%s1 + $0x538] sm:$0xff]
      %v379 = vld [vmem:[%s1 + $0x540] sm:$0xff]
      %v380 = vld [vmem:[%s1 + $0x548] sm:$0xff]
      %v381 = vld [vmem:[%s1 + $0x550] sm:$0xff]
      %v382 = vld [vmem:[%s1 + $0x558] sm:$0xff]
      %v383 = vld [vmem:[%s1 + $0x560] sm:$0xff]
      %v384 = vld [vmem:[%s1 + $0x568] sm:$0xff]
      %v385 = vld [vmem:[%s1 + $0x570] sm:$0xff]
      %v386 = vld [vmem:[%s1 + $0x578] sm:$0xff]
      %v387 = vld [vmem:[%s1 + $0x580] sm:$0xff]
      %v388 = vld [vmem:[%s1 + $0x588] sm:$0xff]
      %v389 = vld [vmem:[%s1 + $0x590] sm:$0xff]
      %v390 = vld [vmem:[%s1 + $0x598] sm:$0xff]
      %v391 = vld [vmem:[%s1 + $0x5a0] sm:$0xff]
      %v392 = vld [vmem:[%s1 + $0x5a8] sm:$0xff]
      %v393 = vld [vmem:[%s1 + $0x5b0] sm:$0xff]
      %v394 = vld [vmem:[%s1 + $0x5b8] sm:$0xff]
      %v395 = vld [vmem:[%s1 + $0x5c0] sm:$0xff]
      %v396 = vld [vmem:[%s1 + $0x5c8] sm:$0xff]
      %v397 = vld [vmem:[%s1 + $0x5d0] sm:$0xff]
      %v398 = vld [vmem:[%s1 + $0x5d8] sm:$0xff]
      %v399 = vld [vmem:[%s1 + $0x5e0] sm:$0xff]
      %v400 = vld [vmem:[%s1 + $0x5e8] sm:$0xff]
      %v401 = vld [vmem:[%s1 + $0x5f0] sm:$0xff]
      %v402 = vld [vmem:[%s1 + $0x5f8] sm:$0xff]
      %v403 = vld [vmem:[%s1 + $0x600] sm:$0xff]
      %v404 = vld [vmem:[%s1 + $0x608] sm:$0xff]
      %v405 = vld [vmem:[%s1 + $0x610] sm:$0xff]
      %v406 = vld [vmem:[%s1 + $0x618] sm:$0xff]
      %v407 = vld [vmem:[%s1 + $0x620] sm:$0xff]
      %v408 = vld [vmem:[%s1 + $0x628] sm:$0xff]
      %v409 = vld [vmem:[%s1 + $0x630] sm:$0xff]
      %v410 = vld [vmem:[%s1 + $0x638] sm:$0xff]
      %v411 = vld [vmem:[%s1 + $0x640] sm:$0xff]
      %v412 = vld [vmem:[%s1 + $0x648] sm:$0xff]
      %v413 = vld [vmem:[%s1 + $0x650] sm:$0xff]
      %v414 = vld [vmem:[%s1 + $0x658] sm:$0xff]
      %v415 = vld [vmem:[%s1 + $0x660] sm:$0xff]
      %v416 = vld [vmem:[%s1 + $0x668] sm:$0xff]
      %v417 = vld [vmem:[%s1 + $0x670] sm:$0xff]
      %v418 = vld [vmem:[%s1 + $0x678] sm:$0xff]
      %v419 = vld [vmem:[%s1 + $0x680] sm:$0xff]
      %v420 = vld [vmem:[%s1 + $0x688] sm:$0xff]
      %v421 = vld [vmem:[%s1 + $0x690] sm:$0xff]
      %v422 = vld [vmem:[%s1 + $0x698] sm:$0xff]
      %v423 = vld [vmem:[%s1 + $0x6a0] sm:$0xff]
      %v424 = vld [vmem:[%s1 + $0x6a8] sm:$0xff]
      %v425 = vld [vmem:[%s1 + $0x6b0] sm:$0xff]
      %v426 = vld [vmem:[%s1 + $0x6b8] sm:$0xff]
      %v427 = vld [vmem:[%s1 + $0x6c0] sm:$0xff]
      %v428 = vld [vmem:[%s1 + $0x6c8] sm:$0xff]
      %v429 = vld [vmem:[%s1 + $0x6d0] sm:$0xff]
      %v430 = vld [vmem:[%s1 + $0x6d8] sm:$0xff]
      %v431 = vld [vmem:[%s1 + $0x6e0] sm:$0xff]
      %v432 = vld [vmem:[%s1 + $0x6e8] sm:$0xff]
      %v433 = vld [vmem:[%s1 + $0x6f0] sm:$0xff]
      %v434 = vld [vmem:[%s1 + $0x6f8] sm:$0xff]
      %v435 = vld [vmem:[%s1 + $0x700] sm:$0xff]
      %v436 = vld [vmem:[%s1 + $0x708] sm:$0xff]
      %v437 = vld [vmem:[%s1 + $0x710] sm:$0xff]
      %v438 = vld [vmem:[%s1 + $0x718] sm:$0xff]
      %v439 = vld [vmem:[%s1 + $0x720] sm:$0xff]
      %v440 = vld [vmem:[%s1 + $0x728] sm:$0xff]
      %v441 = vld [vmem:[%s1 + $0x730] sm:$0xff]
      %v442 = vld [vmem:[%s1 + $0x738] sm:$0xff]
      %v443 = vld [vmem:[%s1 + $0x740] sm:$0xff]
      %v444 = vld [vmem:[%s1 + $0x748] sm:$0xff]
      %v445 = vld [vmem:[%s1 + $0x750] sm:$0xff]
      %v446 = vld [vmem:[%s1 + $0x758] sm:$0xff]
      %v447 = vld [vmem:[%s1 + $0x760] sm:$0xff]
      %v448 = vld [vmem:[%s1 + $0x768] sm:$0xff]
      %v449 = vld [vmem:[%s1 + $0x770] sm:$0xff]
      %v450 = vld [vmem:[%s1 + $0x778] sm:$0xff]
      %v451 = vld [vmem:[%s1 + $0x780] sm:$0xff]
      %v452 = vld [vmem:[%s1 + $0x788] sm:$0xff]
      %v453 = vld [vmem:[%s1 + $0x790] sm:$0xff]
      %v454 = vld [vmem:[%s1 + $0x798] sm:$0xff]
      %v455 = vld [vmem:[%s1 + $0x7a0] sm:$0xff]
      %v456 = vld [vmem:[%s1 + $0x7a8] sm:$0xff]
      %v457 = vld [vmem:[%s1 + $0x7b0] sm:$0xff]
      %v458 = vld [vmem:[%s1 + $0x7b8] sm:$0xff]
      %v459 = vld [vmem:[%s1 + $0x7c0] sm:$0xff]
      %v460 = vld [vmem:[%s1 + $0x7c8] sm:$0xff]
      %v461 = vld [vmem:[%s1 + $0x7d0] sm:$0xff]
      %v462 = vld [vmem:[%s1 + $0x7d8] sm:$0xff]
      %v463 = vld [vmem:[%s1 + $0x7e0] sm:$0xff]
      %v464 = vld [vmem:[%s1 + $0x7e8] sm:$0xff]
      %v465 = vld [vmem:[%s1 + $0x7f0] sm:$0xff]
      %v466 = vld [vmem:[%s1 + $0x7f8] sm:$0xff]
      %v467 = vld [vmem:[%s1 + $0x800] sm:$0xff]
      %v468 = vld [vmem:[%s1 + $0x808] sm:$0xff]
      %v469 = vld [vmem:[%s1 + $0x810] sm:$0xff]
      %v470 = vld [vmem:[%s1 + $0x818] sm:$0xff]
      %v471 = vld [vmem:[%s1 + $0x820] sm:$0xff]
      %v472 = vld [vmem:[%s1 + $0x828] sm:$0xff]
      %v473 = vld [vmem:[%s1 + $0x830] sm:$0xff]
      %v474 = vld [vmem:[%s1 + $0x838] sm:$0xff]
      %v475 = vld [vmem:[%s1 + $0x840] sm:$0xff]
      %v476 = vld [vmem:[%s1 + $0x848] sm:$0xff]
      %v477 = vld [vmem:[%s1 + $0x850] sm:$0xff]
      %v478 = vld [vmem:[%s1 + $0x858] sm:$0xff]
      %v479 = vld [vmem:[%s1 + $0x860] sm:$0xff]
      %v480 = vld [vmem:[%s1 + $0x868] sm:$0xff]
      %v481 = vld [vmem:[%s1 + $0x870] sm:$0xff]
      %v482 = vld [vmem:[%s1 + $0x878] sm:$0xff]
      %v483 = vld [vmem:[%s1 + $0x880] sm:$0xff]
      %v484 = vld [vmem:[%s1 + $0x888] sm:$0xff]
      %v485 = vld [vmem:[%s1 + $0x890] sm:$0xff]
      %v486 = vld [vmem:[%s1 + $0x898] sm:$0xff]
      %v487 = vld [vmem:[%s1 + $0x8a0] sm:$0xff]
      %v488 = vld [vmem:[%s1 + $0x8a8] sm:$0xff]
      %v489 = vld [vmem:[%s1 + $0x8b0] sm:$0xff]
      %v490 = vld [vmem:[%s1 + $0x8b8] sm:$0xff]
      %v491 = vld [vmem:[%s1 + $0x8c0] sm:$0xff]
      %v492 = vld [vmem:[%s1 + $0x8c8] sm:$0xff]
      %v493 = vld [vmem:[%s1 + $0x8d0] sm:$0xff]
      %v494 = vld [vmem:[%s1 + $0x8d8] sm:$0xff]
      %v495 = vld [vmem:[%s1 + $0x8e0] sm:$0xff]
      %v496 = vld [vmem:[%s1 + $0x8e8] sm:$0xff]
      %v497 = vld [vmem:[%s1 + $0x8f0] sm:$0xff]
      %v498 = vld [vmem:[%s1 + $0x8f8] sm:$0xff]
      %v499 = vld [vmem:[%s200] sm:$0xff]
      %v500 = vld [vmem:[%s200 + $0x8] sm:$0xff]
      %v501 = vld [vmem:[%s200 + $0x10] sm:$0xff]
      %v502 = vld [vmem:[%s200 + $0x18] sm:$0xff]
      %v503 = vld [vmem:[%s200 + $0x20] sm:$0xff]
      %v504 = vld [vmem:[%s200 + $0x28] sm:$0xff]
      %v505 = vld [vmem:[%s200 + $0x30] sm:$0xff]
      %v506 = vld [vmem:[%s200 + $0x38] sm:$0xff]
      %v507 = vld [vmem:[%s2] sm:$0xff]
      %v508 = vld [vmem:[%s2 + $0x8] sm:$0xff]
      %v509 = vld [vmem:[%s2 + $0x10] sm:$0xff]
      %v510 = vld [vmem:[%s2 + $0x18] sm:$0xff]
      %v511 = vld [vmem:[%s2 + $0x20] sm:$0xff]
      %v512 = vld [vmem:[%s2 + $0x28] sm:$0xff]
      %v513 = vld [vmem:[%s2 + $0x30] sm:$0xff]
      %v514 = vld [vmem:[%s2 + $0x38] sm:$0xff]
      %v515 = vld [vmem:[%s2 + $0x40] sm:$0xff]
      %v516 = vld [vmem:[%s2 + $0x48] sm:$0xff]
      %v517 = vld [vmem:[%s2 + $0x50] sm:$0xff]
      %v518 = vld [vmem:[%s2 + $0x58] sm:$0xff]
      %v519 = vld [vmem:[%s2 + $0x60] sm:$0xff]
      %v520 = vld [vmem:[%s2 + $0x68] sm:$0xff]
      %v521 = vld [vmem:[%s2 + $0x70] sm:$0xff]
      %v522 = vld [vmem:[%s2 + $0x78] sm:$0xff]
      %v523 = vld [vmem:[%s2 + $0x80] sm:$0xff]
      %v524 = vld [vmem:[%s2 + $0x88] sm:$0xff]
      %v525 = vld [vmem:[%s2 + $0x90] sm:$0xff]
      %v526 = vld [vmem:[%s2 + $0x98] sm:$0xff]
      %v527 = vld [vmem:[%s2 + $0xa0] sm:$0xff]
      %v528 = vld [vmem:[%s2 + $0xa8] sm:$0xff]
      %v529 = vld [vmem:[%s2 + $0xb0] sm:$0xff]
      %v530 = vld [vmem:[%s2 + $0xb8] sm:$0xff]
      %v531 = vld [vmem:[%s2 + $0xc0] sm:$0xff]
      %v532 = vld [vmem:[%s2 + $0xc8] sm:$0xff]
      %v533 = vld [vmem:[%s2 + $0xd0] sm:$0xff]
      %v534 = vld [vmem:[%s2 + $0xd8] sm:$0xff]
      %v535 = vld [vmem:[%s2 + $0xe0] sm:$0xff]
      %v536 = vld [vmem:[%s2 + $0xe8] sm:$0xff]
      %v537 = vld [vmem:[%s2 + $0xf0] sm:$0xff]
      %v538 = vld [vmem:[%s2 + $0xf8] sm:$0xff]
      %v539 = vld [vmem:[%s2 + $0x100] sm:$0xff]
      %v540 = vld [vmem:[%s2 + $0x108] sm:$0xff]
      %v541 = vld [vmem:[%s2 + $0x110] sm:$0xff]
      %v542 = vld [vmem:[%s2 + $0x118] sm:$0xff]
      %v543 = vld [vmem:[%s2 + $0x120] sm:$0xff]
      %v544 = vld [vmem:[%s2 + $0x128] sm:$0xff]
      %v545 = vld [vmem:[%s2 + $0x130] sm:$0xff]
      %v546 = vld [vmem:[%s2 + $0x138] sm:$0xff]
      %v547 = vld [vmem:[%s2 + $0x140] sm:$0xff]
      %v548 = vld [vmem:[%s2 + $0x148] sm:$0xff]
      %v549 = vld [vmem:[%s2 + $0x150] sm:$0xff]
      %v550 = vld [vmem:[%s2 + $0x158] sm:$0xff]
      %v551 = vld [vmem:[%s2 + $0x160] sm:$0xff]
      %v552 = vld [vmem:[%s2 + $0x168] sm:$0xff]
      %v553 = vld [vmem:[%s2 + $0x170] sm:$0xff]
      %v554 = vld [vmem:[%s2 + $0x178] sm:$0xff]
      %v555 = vld [vmem:[%s2 + $0x180] sm:$0xff]
      %v556 = vld [vmem:[%s2 + $0x188] sm:$0xff]
      %v557 = vld [vmem:[%s2 + $0x190] sm:$0xff]
      %v558 = vld [vmem:[%s2 + $0x198] sm:$0xff]
      %v559 = vld [vmem:[%s2 + $0x1a0] sm:$0xff]
      %v560 = vld [vmem:[%s2 + $0x1a8] sm:$0xff]
      %v561 = vld [vmem:[%s2 + $0x1b0] sm:$0xff]
      %v562 = vld [vmem:[%s2 + $0x1b8] sm:$0xff]
      %v563 = vld [vmem:[%s2 + $0x1c0] sm:$0xff]
      %v564 = vld [vmem:[%s2 + $0x1c8] sm:$0xff]
      %v565 = vld [vmem:[%s2 + $0x1d0] sm:$0xff]
      %v566 = vld [vmem:[%s2 + $0x1d8] sm:$0xff]
      %v567 = vld [vmem:[%s2 + $0x1e0] sm:$0xff]
      %v568 = vld [vmem:[%s2 + $0x1e8] sm:$0xff]
      %v569 = vld [vmem:[%s2 + $0x1f0] sm:$0xff]
      %v570 = vld [vmem:[%s2 + $0x1f8] sm:$0xff]
      %v571 = vld [vmem:[%s2 + $0x200] sm:$0xff]
      %v572 = vld [vmem:[%s2 + $0x208] sm:$0xff]
      %v573 = vld [vmem:[%s2 + $0x210] sm:$0xff]
      %v574 = vld [vmem:[%s2 + $0x218] sm:$0xff]
      %v575 = vld [vmem:[%s2 + $0x220] sm:$0xff]
      %v576 = vld [vmem:[%s2 + $0x228] sm:$0xff]
      %v577 = vld [vmem:[%s2 + $0x230] sm:$0xff]
      %v578 = vld [vmem:[%s2 + $0x238] sm:$0xff]
      %v579 = vld [vmem:[%s2 + $0x240] sm:$0xff]
      %v580 = vld [vmem:[%s2 + $0x248] sm:$0xff]
      %v581 = vld [vmem:[%s2 + $0x250] sm:$0xff]
      %v582 = vld [vmem:[%s2 + $0x258] sm:$0xff]
      %v583 = vld [vmem:[%s2 + $0x260] sm:$0xff]
      %v584 = vld [vmem:[%s2 + $0x268] sm:$0xff]
      %v585 = vld [vmem:[%s2 + $0x270] sm:$0xff]
      %v586 = vld [vmem:[%s2 + $0x278] sm:$0xff]
      %v587 = vld [vmem:[%s2 + $0x280] sm:$0xff]
      %v588 = vld [vmem:[%s2 + $0x288] sm:$0xff]
      %v589 = vld [vmem:[%s2 + $0x290] sm:$0xff]
      %v590 = vld [vmem:[%s2 + $0x298] sm:$0xff]
      %v591 = vld [vmem:[%s2 + $0x2a0] sm:$0xff]
      %v592 = vld [vmem:[%s2 + $0x2a8] sm:$0xff]
      %v593 = vld [vmem:[%s2 + $0x2b0] sm:$0xff]
      %v594 = vld [vmem:[%s2 + $0x2b8] sm:$0xff]
      %v595 = vld [vmem:[%s2 + $0x2c0] sm:$0xff]
      %v596 = vld [vmem:[%s2 + $0x2c8] sm:$0xff]
      %v597 = vld [vmem:[%s2 + $0x2d0] sm:$0xff]
      %v598 = vld [vmem:[%s2 + $0x2d8] sm:$0xff]
      %v599 = vld [vmem:[%s2 + $0x2e0] sm:$0xff]
      %v600 = vld [vmem:[%s2 + $0x2e8] sm:$0xff]
      %v601 = vld [vmem:[%s2 + $0x2f0] sm:$0xff]
      %v602 = vld [vmem:[%s2 + $0x2f8] sm:$0xff]
      %v603 = vld [vmem:[%s2 + $0x300] sm:$0xff]
      %v604 = vld [vmem:[%s2 + $0x308] sm:$0xff]
      %v605 = vld [vmem:[%s2 + $0x310] sm:$0xff]
      %v606 = vld [vmem:[%s2 + $0x318] sm:$0xff]
      %v607 = vld [vmem:[%s2 + $0x320] sm:$0xff]
      %v608 = vld [vmem:[%s2 + $0x328] sm:$0xff]
      %v609 = vld [vmem:[%s2 + $0x330] sm:$0xff]
      %v610 = vld [vmem:[%s2 + $0x338] sm:$0xff]
      %v611 = vld [vmem:[%s2 + $0x340] sm:$0xff]
      %v612 = vld [vmem:[%s2 + $0x348] sm:$0xff]
      %v613 = vld [vmem:[%s2 + $0x350] sm:$0xff]
      %v614 = vld [vmem:[%s2 + $0x358] sm:$0xff]
      %v615 = vld [vmem:[%s2 + $0x360] sm:$0xff]
      %v616 = vld [vmem:[%s2 + $0x368] sm:$0xff]
      %v617 = vld [vmem:[%s2 + $0x370] sm:$0xff]
      %v618 = vld [vmem:[%s2 + $0x378] sm:$0xff]
      %v619 = vld [vmem:[%s2 + $0x380] sm:$0xff]
      %v620 = vld [vmem:[%s2 + $0x388] sm:$0xff]
      %v621 = vld [vmem:[%s2 + $0x390] sm:$0xff]
      %v622 = vld [vmem:[%s2 + $0x398] sm:$0xff]
      %v623 = vld [vmem:[%s2 + $0x3a0] sm:$0xff]
      %v624 = vld [vmem:[%s2 + $0x3a8] sm:$0xff]
      %v625 = vld [vmem:[%s2 + $0x3b0] sm:$0xff]
      %v626 = vld [vmem:[%s2 + $0x3b8] sm:$0xff]
      %v627 = vld [vmem:[%s2 + $0x3c0] sm:$0xff]
      %v628 = vld [vmem:[%s2 + $0x3c8] sm:$0xff]
      %v629 = vld [vmem:[%s2 + $0x3d0] sm:$0xff]
      %v630 = vld [vmem:[%s2 + $0x3d8] sm:$0xff]
      %v631 = vld [vmem:[%s2 + $0x3e0] sm:$0xff]
      %v632 = vld [vmem:[%s2 + $0x3e8] sm:$0xff]
      %v633 = vld [vmem:[%s2 + $0x3f0] sm:$0xff]
      %v634 = vld [vmem:[%s2 + $0x3f8] sm:$0xff]
      %v635 = vld [vmem:[%s2 + $0x400] sm:$0xff]
      %v636 = vld [vmem:[%s2 + $0x408] sm:$0xff]
      %v637 = vld [vmem:[%s2 + $0x410] sm:$0xff]
      %v638 = vld [vmem:[%s2 + $0x418] sm:$0xff]
      %v639 = vld [vmem:[%s2 + $0x420] sm:$0xff]
      %v640 = vld [vmem:[%s2 + $0x428] sm:$0xff]
      %v641 = vld [vmem:[%s2 + $0x430] sm:$0xff]
      %v642 = vld [vmem:[%s2 + $0x438] sm:$0xff]
      %v643 = vld [vmem:[%s2 + $0x440] sm:$0xff]
      %v644 = vld [vmem:[%s2 + $0x448] sm:$0xff]
      %v645 = vld [vmem:[%s2 + $0x450] sm:$0xff]
      %v646 = vld [vmem:[%s2 + $0x458] sm:$0xff]
      %v647 = vld [vmem:[%s2 + $0x460] sm:$0xff]
      %v648 = vld [vmem:[%s2 + $0x468] sm:$0xff]
      %v649 = vld [vmem:[%s2 + $0x470] sm:$0xff]
      %v650 = vld [vmem:[%s2 + $0x478] sm:$0xff]
      %v651 = vld [vmem:[%s2 + $0x480] sm:$0xff]
      %v652 = vld [vmem:[%s2 + $0x488] sm:$0xff]
      %v653 = vld [vmem:[%s2 + $0x490] sm:$0xff]
      %v654 = vld [vmem:[%s2 + $0x498] sm:$0xff]
      %v655 = vld [vmem:[%s2 + $0x4a0] sm:$0xff]
      %v656 = vld [vmem:[%s2 + $0x4a8] sm:$0xff]
      %v657 = vld [vmem:[%s2 + $0x4b0] sm:$0xff]
      %v658 = vld [vmem:[%s2 + $0x4b8] sm:$0xff]
      %v659 = vld [vmem:[%s2 + $0x4c0] sm:$0xff]
      %v660 = vld [vmem:[%s2 + $0x4c8] sm:$0xff]
      %v661 = vld [vmem:[%s2 + $0x4d0] sm:$0xff]
      %v662 = vld [vmem:[%s2 + $0x4d8] sm:$0xff]
      %v663 = vld [vmem:[%s2 + $0x4e0] sm:$0xff]
      %v664 = vld [vmem:[%s2 + $0x4e8] sm:$0xff]
      %v665 = vld [vmem:[%s2 + $0x4f0] sm:$0xff]
      %v666 = vld [vmem:[%s2 + $0x4f8] sm:$0xff]
      %v667 = vld [vmem:[%s2 + $0x500] sm:$0xff]
      %v668 = vld [vmem:[%s2 + $0x508] sm:$0xff]
      %v669 = vld [vmem:[%s2 + $0x510] sm:$0xff]
      %v670 = vld [vmem:[%s2 + $0x518] sm:$0xff]
      %v671 = vld [vmem:[%s2 + $0x520] sm:$0xff]
      %v672 = vld [vmem:[%s2 + $0x528] sm:$0xff]
      %v673 = vld [vmem:[%s2 + $0x530] sm:$0xff]
      %v674 = vld [vmem:[%s2 + $0x538] sm:$0xff]
      %v675 = vld [vmem:[%s2 + $0x540] sm:$0xff]
      %v676 = vld [vmem:[%s2 + $0x548] sm:$0xff]
      %v677 = vld [vmem:[%s2 + $0x550] sm:$0xff]
      %v678 = vld [vmem:[%s2 + $0x558] sm:$0xff]
      %v679 = vld [vmem:[%s2 + $0x560] sm:$0xff]
      %v680 = vld [vmem:[%s2 + $0x568] sm:$0xff]
      %v681 = vld [vmem:[%s2 + $0x570] sm:$0xff]
      %v682 = vld [vmem:[%s2 + $0x578] sm:$0xff]
      %v683 = vld [vmem:[%s2 + $0x580] sm:$0xff]
      %v684 = vld [vmem:[%s2 + $0x588] sm:$0xff]
      %v685 = vld [vmem:[%s2 + $0x590] sm:$0xff]
      %v686 = vld [vmem:[%s2 + $0x598] sm:$0xff]
      %v687 = vld [vmem:[%s2 + $0x5a0] sm:$0xff]
      %v688 = vld [vmem:[%s2 + $0x5a8] sm:$0xff]
      %v689 = vld [vmem:[%s2 + $0x5b0] sm:$0xff]
      %v690 = vld [vmem:[%s2 + $0x5b8] sm:$0xff]
      %v691 = vld [vmem:[%s2 + $0x5c0] sm:$0xff]
      %v692 = vld [vmem:[%s2 + $0x5c8] sm:$0xff]
      %v693 = vld [vmem:[%s2 + $0x5d0] sm:$0xff]
      %v694 = vld [vmem:[%s2 + $0x5d8] sm:$0xff]
      %v695 = vld [vmem:[%s2 + $0x5e0] sm:$0xff]
      %v696 = vld [vmem:[%s2 + $0x5e8] sm:$0xff]
      %v697 = vld [vmem:[%s2 + $0x5f0] sm:$0xff]
      %v698 = vld [vmem:[%s2 + $0x5f8] sm:$0xff]
      %v699 = vld [vmem:[%s2 + $0x600] sm:$0xff]
      %v700 = vld [vmem:[%s2 + $0x608] sm:$0xff]
      %v701 = vld [vmem:[%s2 + $0x610] sm:$0xff]
      %v702 = vld [vmem:[%s2 + $0x618] sm:$0xff]
      %v703 = vld [vmem:[%s2 + $0x620] sm:$0xff]
      %v704 = vld [vmem:[%s2 + $0x628] sm:$0xff]
      %v705 = vld [vmem:[%s2 + $0x630] sm:$0xff]
      %v706 = vld [vmem:[%s2 + $0x638] sm:$0xff]
      %v707 = vld [vmem:[%s2 + $0x640] sm:$0xff]
      %v708 = vld [vmem:[%s2 + $0x648] sm:$0xff]
      %v709 = vld [vmem:[%s2 + $0x650] sm:$0xff]
      %v710 = vld [vmem:[%s2 + $0x658] sm:$0xff]
      %v711 = vld [vmem:[%s2 + $0x660] sm:$0xff]
      %v712 = vld [vmem:[%s2 + $0x668] sm:$0xff]
      %v713 = vld [vmem:[%s2 + $0x670] sm:$0xff]
      %v714 = vld [vmem:[%s2 + $0x678] sm:$0xff]
      %v715 = vld [vmem:[%s2 + $0x680] sm:$0xff]
      %v716 = vld [vmem:[%s2 + $0x688] sm:$0xff]
      %v717 = vld [vmem:[%s2 + $0x690] sm:$0xff]
      %v718 = vld [vmem:[%s2 + $0x698] sm:$0xff]
      %v719 = vld [vmem:[%s2 + $0x6a0] sm:$0xff]
      %v720 = vld [vmem:[%s2 + $0x6a8] sm:$0xff]
      %v721 = vld [vmem:[%s2 + $0x6b0] sm:$0xff]
      %v722 = vld [vmem:[%s2 + $0x6b8] sm:$0xff]
      %v723 = vld [vmem:[%s2 + $0x6c0] sm:$0xff]
      %v724 = vld [vmem:[%s2 + $0x6c8] sm:$0xff]
      %v725 = vld [vmem:[%s2 + $0x6d0] sm:$0xff]
      %v726 = vld [vmem:[%s2 + $0x6d8] sm:$0xff]
      %v727 = vld [vmem:[%s2 + $0x6e0] sm:$0xff]
      %v728 = vld [vmem:[%s2 + $0x6e8] sm:$0xff]
      %v729 = vld [vmem:[%s2 + $0x6f0] sm:$0xff]
      %v730 = vld [vmem:[%s2 + $0x6f8] sm:$0xff]
      %v731 = vld [vmem:[%s2 + $0x700] sm:$0xff]
      %v732 = vld [vmem:[%s2 + $0x708] sm:$0xff]
      %v733 = vld [vmem:[%s2 + $0x710] sm:$0xff]
      %v734 = vld [vmem:[%s2 + $0x718] sm:$0xff]
      %v735 = vld [vmem:[%s2 + $0x720] sm:$0xff]
      %v736 = vld [vmem:[%s2 + $0x728] sm:$0xff]
      %v737 = vld [vmem:[%s2 + $0x730] sm:$0xff]
      %v738 = vld [vmem:[%s2 + $0x738] sm:$0xff]
      %v739 = vld [vmem:[%s2 + $0x740] sm:$0xff]
      %v740 = vld [vmem:[%s2 + $0x748] sm:$0xff]
      %v741 = vld [vmem:[%s2 + $0x750] sm:$0xff]
      %v742 = vld [vmem:[%s2 + $0x758] sm:$0xff]
      %v743 = vld [vmem:[%s2 + $0x760] sm:$0xff]
      %v744 = vld [vmem:[%s2 + $0x768] sm:$0xff]
      %v745 = vld [vmem:[%s2 + $0x770] sm:$0xff]
      %v746 = vld [vmem:[%s2 + $0x778] sm:$0xff]
      %v747 = vld [vmem:[%s2 + $0x780] sm:$0xff]
      %v748 = vld [vmem:[%s2 + $0x788] sm:$0xff]
      %v749 = vld [vmem:[%s2 + $0x790] sm:$0xff]
      %v750 = vld [vmem:[%s2 + $0x798] sm:$0xff]
      %v751 = vld [vmem:[%s2 + $0x7a0] sm:$0xff]
      %v752 = vld [vmem:[%s2 + $0x7a8] sm:$0xff]
      %v753 = vld [vmem:[%s2 + $0x7b0] sm:$0xff]
      %v754 = vld [vmem:[%s2 + $0x7b8] sm:$0xff]
      %v755 = vld [vmem:[%s2 + $0x7c0] sm:$0xff]
      %v756 = vld [vmem:[%s2 + $0x7c8] sm:$0xff]
      %v757 = vld [vmem:[%s2 + $0x7d0] sm:$0xff]
      %v758 = vld [vmem:[%s2 + $0x7d8] sm:$0xff]
      %v759 = vld [vmem:[%s2 + $0x7e0] sm:$0xff]
      %v760 = vld [vmem:[%s2 + $0x7e8] sm:$0xff]
      %v761 = vld [vmem:[%s2 + $0x7f0] sm:$0xff]
      %v762 = vld [vmem:[%s2 + $0x7f8] sm:$0xff]
      %v763 = vld [vmem:[%s2 + $0x800] sm:$0xff]
      %v764 = vld [vmem:[%s2 + $0x808] sm:$0xff]
      %v765 = vld [vmem:[%s2 + $0x810] sm:$0xff]
      %v766 = vld [vmem:[%s2 + $0x818] sm:$0xff]
      %v767 = vld [vmem:[%s2 + $0x820] sm:$0xff]
      %v768 = vld [vmem:[%s2 + $0x828] sm:$0xff]
      %v769 = vld [vmem:[%s2 + $0x830] sm:$0xff]
      %v770 = vld [vmem:[%s2 + $0x838] sm:$0xff]
      %v771 = vld [vmem:[%s2 + $0x840] sm:$0xff]
      %v772 = vld [vmem:[%s2 + $0x848] sm:$0xff]
      %v773 = vld [vmem:[%s2 + $0x850] sm:$0xff]
      %v774 = vld [vmem:[%s2 + $0x858] sm:$0xff]
      %v775 = vld [vmem:[%s2 + $0x860] sm:$0xff]
      %v776 = vld [vmem:[%s2 + $0x868] sm:$0xff]
      %v777 = vld [vmem:[%s2 + $0x870] sm:$0xff]
      %v778 = vld [vmem:[%s2 + $0x878] sm:$0xff]
      %v779 = vld [vmem:[%s2 + $0x880] sm:$0xff]
      %v780 = vld [vmem:[%s2 + $0x888] sm:$0xff]
      %v781 = vld [vmem:[%s2 + $0x890] sm:$0xff]
      %v782 = vld [vmem:[%s2 + $0x898] sm:$0xff]
      %v783 = vld [vmem:[%s2 + $0x8a0] sm:$0xff]
      %v784 = vld [vmem:[%s2 + $0x8a8] sm:$0xff]
      %v785 = vld [vmem:[%s2 + $0x8b0] sm:$0xff]
      %v786 = vld [vmem:[%s2 + $0x8b8] sm:$0xff]
      %v787 = vld [vmem:[%s2 + $0x8c0] sm:$0xff]
      %v788 = vld [vmem:[%s2 + $0x8c8] sm:$0xff]
      %v789 = vld [vmem:[%s2 + $0x8d0] sm:$0xff]
      %v790 = vld [vmem:[%s2 + $0x8d8] sm:$0xff]
      %v791 = vld [vmem:[%s2 + $0x8e0] sm:$0xff]
      %v792 = vld [vmem:[%s2 + $0x8e8] sm:$0xff]
      %v793 = vld [vmem:[%s2 + $0x8f0] sm:$0xff]
      %v794 = vld [vmem:[%s2 + $0x8f8] sm:$0xff]
      %796 = vset.pattern.permute.xlu0 0
      %797 = vperm.xlu0 %796, %v507
      %v798 = vpop.permute.xlu0 %797
      %801 = vset.pattern.permute.xlu0 0
      %802 = vperm.xlu0 %801, %v508
      %v803 = vpop.permute.xlu0 %802
      %806 = vset.pattern.permute.xlu0 0
      %807 = vperm.xlu0 %806, %v509
      %v808 = vpop.permute.xlu0 %807
      %811 = vset.pattern.permute.xlu0 0
      %812 = vperm.xlu0 %811, %v510
      %v813 = vpop.permute.xlu0 %812
      %816 = vset.pattern.permute.xlu0 0
      %817 = vperm.xlu0 %816, %v511
      %v818 = vpop.permute.xlu0 %817
      %821 = vset.pattern.permute.xlu0 0
      %822 = vperm.xlu0 %821, %v512
      %v823 = vpop.permute.xlu0 %822
      %826 = vset.pattern.permute.xlu0 0
      %827 = vperm.xlu0 %826, %v513
      %v828 = vpop.permute.xlu0 %827
      %831 = vset.pattern.permute.xlu0 0
      %832 = vperm.xlu0 %831, %v514
      %v833 = vpop.permute.xlu0 %832
      %836 = vset.pattern.permute.xlu0 0
      %837 = vperm.xlu0 %836, %v515
      %v838 = vpop.permute.xlu0 %837
      %841 = vset.pattern.permute.xlu0 0
      %842 = vperm.xlu0 %841, %v516
      %v843 = vpop.permute.xlu0 %842
      %846 = vset.pattern.permute.xlu0 0
      %847 = vperm.xlu0 %846, %v517
      %v848 = vpop.permute.xlu0 %847
      %851 = vset.pattern.permute.xlu0 0
      %852 = vperm.xlu0 %851, %v518
      %v853 = vpop.permute.xlu0 %852
      %856 = vset.pattern.permute.xlu0 0
      %857 = vperm.xlu0 %856, %v519
      %v858 = vpop.permute.xlu0 %857
      %861 = vset.pattern.permute.xlu0 0
      %862 = vperm.xlu0 %861, %v520
      %v863 = vpop.permute.xlu0 %862
      %866 = vset.pattern.permute.xlu0 0
      %867 = vperm.xlu0 %866, %v521
      %v868 = vpop.permute.xlu0 %867
      %871 = vset.pattern.permute.xlu0 0
      %872 = vperm.xlu0 %871, %v522
      %v873 = vpop.permute.xlu0 %872
      %876 = vset.pattern.permute.xlu0 0
      %877 = vperm.xlu0 %876, %v523
      %v878 = vpop.permute.xlu0 %877
      %881 = vset.pattern.permute.xlu0 0
      %882 = vperm.xlu0 %881, %v524
      %v883 = vpop.permute.xlu0 %882
      %886 = vset.pattern.permute.xlu0 0
      %887 = vperm.xlu0 %886, %v525
      %v888 = vpop.permute.xlu0 %887
      %891 = vset.pattern.permute.xlu0 0
      %892 = vperm.xlu0 %891, %v526
      %v893 = vpop.permute.xlu0 %892
      %896 = vset.pattern.permute.xlu0 0
      %897 = vperm.xlu0 %896, %v527
      %v898 = vpop.permute.xlu0 %897
      %901 = vset.pattern.permute.xlu0 0
      %902 = vperm.xlu0 %901, %v528
      %v903 = vpop.permute.xlu0 %902
      %906 = vset.pattern.permute.xlu0 0
      %907 = vperm.xlu0 %906, %v529
      %v908 = vpop.permute.xlu0 %907
      %911 = vset.pattern.permute.xlu0 0
      %912 = vperm.xlu0 %911, %v530
      %v913 = vpop.permute.xlu0 %912
      %916 = vset.pattern.permute.xlu0 0
      %917 = vperm.xlu0 %916, %v531
      %v918 = vpop.permute.xlu0 %917
      %921 = vset.pattern.permute.xlu0 0
      %922 = vperm.xlu0 %921, %v532
      %v923 = vpop.permute.xlu0 %922
      %926 = vset.pattern.permute.xlu0 0
      %927 = vperm.xlu0 %926, %v533
      %v928 = vpop.permute.xlu0 %927
      %931 = vset.pattern.permute.xlu0 0
      %932 = vperm.xlu0 %931, %v534
      %v933 = vpop.permute.xlu0 %932
      %936 = vset.pattern.permute.xlu0 0
      %937 = vperm.xlu0 %936, %v535
      %v938 = vpop.permute.xlu0 %937
      %941 = vset.pattern.permute.xlu0 0
      %942 = vperm.xlu0 %941, %v536
      %v943 = vpop.permute.xlu0 %942
      %946 = vset.pattern.permute.xlu0 0
      %947 = vperm.xlu0 %946, %v537
      %v948 = vpop.permute.xlu0 %947
      %951 = vset.pattern.permute.xlu0 0
      %952 = vperm.xlu0 %951, %v538
      %v953 = vpop.permute.xlu0 %952
      %956 = vset.pattern.permute.xlu0 0
      %957 = vperm.xlu0 %956, %v539
      %v958 = vpop.permute.xlu0 %957
      %961 = vset.pattern.permute.xlu0 0
      %962 = vperm.xlu0 %961, %v540
      %v963 = vpop.permute.xlu0 %962
      %966 = vset.pattern.permute.xlu0 0
      %967 = vperm.xlu0 %966, %v541
      %v968 = vpop.permute.xlu0 %967
      %971 = vset.pattern.permute.xlu0 0
      %972 = vperm.xlu0 %971, %v542
      %v973 = vpop.permute.xlu0 %972
      %976 = vset.pattern.permute.xlu0 0
      %977 = vperm.xlu0 %976, %v543
      %v978 = vpop.permute.xlu0 %977
      %981 = vset.pattern.permute.xlu0 0
      %982 = vperm.xlu0 %981, %v544
      %v983 = vpop.permute.xlu0 %982
      %986 = vset.pattern.permute.xlu0 0
      %987 = vperm.xlu0 %986, %v545
      %v988 = vpop.permute.xlu0 %987
      %991 = vset.pattern.permute.xlu0 0
      %992 = vperm.xlu0 %991, %v546
      %v993 = vpop.permute.xlu0 %992
      %996 = vset.pattern.permute.xlu0 0
      %997 = vperm.xlu0 %996, %v547
      %v998 = vpop.permute.xlu0 %997
      %1001 = vset.pattern.permute.xlu0 0
      %1002 = vperm.xlu0 %1001, %v548
      %v1003 = vpop.permute.xlu0 %1002
      %1006 = vset.pattern.permute.xlu0 0
      %1007 = vperm.xlu0 %1006, %v549
      %v1008 = vpop.permute.xlu0 %1007
      %1011 = vset.pattern.permute.xlu0 0
      %1012 = vperm.xlu0 %1011, %v550
      %v1013 = vpop.permute.xlu0 %1012
      %1016 = vset.pattern.permute.xlu0 0
      %1017 = vperm.xlu0 %1016, %v551
      %v1018 = vpop.permute.xlu0 %1017
      %1021 = vset.pattern.permute.xlu0 0
      %1022 = vperm.xlu0 %1021, %v552
      %v1023 = vpop.permute.xlu0 %1022
      %1026 = vset.pattern.permute.xlu0 0
      %1027 = vperm.xlu0 %1026, %v553
      %v1028 = vpop.permute.xlu0 %1027
      %1031 = vset.pattern.permute.xlu0 0
      %1032 = vperm.xlu0 %1031, %v554
      %v1033 = vpop.permute.xlu0 %1032
      %1036 = vset.pattern.permute.xlu0 0
      %1037 = vperm.xlu0 %1036, %v555
      %v1038 = vpop.permute.xlu0 %1037
      %1041 = vset.pattern.permute.xlu0 0
      %1042 = vperm.xlu0 %1041, %v556
      %v1043 = vpop.permute.xlu0 %1042
      %1046 = vset.pattern.permute.xlu0 0
      %1047 = vperm.xlu0 %1046, %v557
      %v1048 = vpop.permute.xlu0 %1047
      %1051 = vset.pattern.permute.xlu0 0
      %1052 = vperm.xlu0 %1051, %v558
      %v1053 = vpop.permute.xlu0 %1052
      %1056 = vset.pattern.permute.xlu0 0
      %1057 = vperm.xlu0 %1056, %v559
      %v1058 = vpop.permute.xlu0 %1057
      %1061 = vset.pattern.permute.xlu0 0
      %1062 = vperm.xlu0 %1061, %v560
      %v1063 = vpop.permute.xlu0 %1062
      %1066 = vset.pattern.permute.xlu0 0
      %1067 = vperm.xlu0 %1066, %v561
      %v1068 = vpop.permute.xlu0 %1067
      %1071 = vset.pattern.permute.xlu0 0
      %1072 = vperm.xlu0 %1071, %v562
      %v1073 = vpop.permute.xlu0 %1072
      %1076 = vset.pattern.permute.xlu0 0
      %1077 = vperm.xlu0 %1076, %v563
      %v1078 = vpop.permute.xlu0 %1077
      %1081 = vset.pattern.permute.xlu0 0
      %1082 = vperm.xlu0 %1081, %v564
      %v1083 = vpop.permute.xlu0 %1082
      %1086 = vset.pattern.permute.xlu0 0
      %1087 = vperm.xlu0 %1086, %v565
      %v1088 = vpop.permute.xlu0 %1087
      %1091 = vset.pattern.permute.xlu0 0
      %1092 = vperm.xlu0 %1091, %v566
      %v1093 = vpop.permute.xlu0 %1092
      %1096 = vset.pattern.permute.xlu0 0
      %1097 = vperm.xlu0 %1096, %v567
      %v1098 = vpop.permute.xlu0 %1097
      %1101 = vset.pattern.permute.xlu0 0
      %1102 = vperm.xlu0 %1101, %v568
      %v1103 = vpop.permute.xlu0 %1102
      %1106 = vset.pattern.permute.xlu0 0
      %1107 = vperm.xlu0 %1106, %v569
      %v1108 = vpop.permute.xlu0 %1107
      %1111 = vset.pattern.permute.xlu0 0
      %1112 = vperm.xlu0 %1111, %v570
      %v1113 = vpop.permute.xlu0 %1112
      %1116 = vset.pattern.permute.xlu0 0
      %1117 = vperm.xlu0 %1116, %v571
      %v1118 = vpop.permute.xlu0 %1117
      %1121 = vset.pattern.permute.xlu0 0
      %1122 = vperm.xlu0 %1121, %v572
      %v1123 = vpop.permute.xlu0 %1122
      %1126 = vset.pattern.permute.xlu0 0
      %1127 = vperm.xlu0 %1126, %v573
      %v1128 = vpop.permute.xlu0 %1127
      %1131 = vset.pattern.permute.xlu0 0
      %1132 = vperm.xlu0 %1131, %v574
      %v1133 = vpop.permute.xlu0 %1132
      %1136 = vset.pattern.permute.xlu0 0
      %1137 = vperm.xlu0 %1136, %v575
      %v1138 = vpop.permute.xlu0 %1137
      %1141 = vset.pattern.permute.xlu0 0
      %1142 = vperm.xlu0 %1141, %v576
      %v1143 = vpop.permute.xlu0 %1142
      %1146 = vset.pattern.permute.xlu0 0
      %1147 = vperm.xlu0 %1146, %v577
      %v1148 = vpop.permute.xlu0 %1147
      %1151 = vset.pattern.permute.xlu0 0
      %1152 = vperm.xlu0 %1151, %v578
      %v1153 = vpop.permute.xlu0 %1152
      %1156 = vset.pattern.permute.xlu0 0
      %1157 = vperm.xlu0 %1156, %v579
      %v1158 = vpop.permute.xlu0 %1157
      %1161 = vset.pattern.permute.xlu0 0
      %1162 = vperm.xlu0 %1161, %v580
      %v1163 = vpop.permute.xlu0 %1162
      %1166 = vset.pattern.permute.xlu0 0
      %1167 = vperm.xlu0 %1166, %v581
      %v1168 = vpop.permute.xlu0 %1167
      %1171 = vset.pattern.permute.xlu0 0
      %1172 = vperm.xlu0 %1171, %v582
      %v1173 = vpop.permute.xlu0 %1172
      %1176 = vset.pattern.permute.xlu0 0
      %1177 = vperm.xlu0 %1176, %v583
      %v1178 = vpop.permute.xlu0 %1177
      %1181 = vset.pattern.permute.xlu0 0
      %1182 = vperm.xlu0 %1181, %v584
      %v1183 = vpop.permute.xlu0 %1182
      %1186 = vset.pattern.permute.xlu0 0
      %1187 = vperm.xlu0 %1186, %v585
      %v1188 = vpop.permute.xlu0 %1187
      %1191 = vset.pattern.permute.xlu0 0
      %1192 = vperm.xlu0 %1191, %v586
      %v1193 = vpop.permute.xlu0 %1192
      %1196 = vset.pattern.permute.xlu0 0
      %1197 = vperm.xlu0 %1196, %v587
      %v1198 = vpop.permute.xlu0 %1197
      %1201 = vset.pattern.permute.xlu0 0
      %1202 = vperm.xlu0 %1201, %v588
      %v1203 = vpop.permute.xlu0 %1202
      %1206 = vset.pattern.permute.xlu0 0
      %1207 = vperm.xlu0 %1206, %v589
      %v1208 = vpop.permute.xlu0 %1207
      %1211 = vset.pattern.permute.xlu0 0
      %1212 = vperm.xlu0 %1211, %v590
      %v1213 = vpop.permute.xlu0 %1212
      %1216 = vset.pattern.permute.xlu0 0
      %1217 = vperm.xlu0 %1216, %v591
      %v1218 = vpop.permute.xlu0 %1217
      %1221 = vset.pattern.permute.xlu0 0
      %1222 = vperm.xlu0 %1221, %v592
      %v1223 = vpop.permute.xlu0 %1222
      %1226 = vset.pattern.permute.xlu0 0
      %1227 = vperm.xlu0 %1226, %v593
      %v1228 = vpop.permute.xlu0 %1227
      %1231 = vset.pattern.permute.xlu0 0
      %1232 = vperm.xlu0 %1231, %v594
      %v1233 = vpop.permute.xlu0 %1232
      %1236 = vset.pattern.permute.xlu0 0
      %1237 = vperm.xlu0 %1236, %v595
      %v1238 = vpop.permute.xlu0 %1237
      %1241 = vset.pattern.permute.xlu0 0
      %1242 = vperm.xlu0 %1241, %v596
      %v1243 = vpop.permute.xlu0 %1242
      %1246 = vset.pattern.permute.xlu0 0
      %1247 = vperm.xlu0 %1246, %v597
      %v1248 = vpop.permute.xlu0 %1247
      %1251 = vset.pattern.permute.xlu0 0
      %1252 = vperm.xlu0 %1251, %v598
      %v1253 = vpop.permute.xlu0 %1252
      %1256 = vset.pattern.permute.xlu0 0
      %1257 = vperm.xlu0 %1256, %v599
      %v1258 = vpop.permute.xlu0 %1257
      %1261 = vset.pattern.permute.xlu0 0
      %1262 = vperm.xlu0 %1261, %v600
      %v1263 = vpop.permute.xlu0 %1262
      %1266 = vset.pattern.permute.xlu0 0
      %1267 = vperm.xlu0 %1266, %v601
      %v1268 = vpop.permute.xlu0 %1267
      %1271 = vset.pattern.permute.xlu0 0
      %1272 = vperm.xlu0 %1271, %v602
      %v1273 = vpop.permute.xlu0 %1272
      %1276 = vset.pattern.permute.xlu0 0
      %1277 = vperm.xlu0 %1276, %v603
      %v1278 = vpop.permute.xlu0 %1277
      %1281 = vset.pattern.permute.xlu0 0
      %1282 = vperm.xlu0 %1281, %v604
      %v1283 = vpop.permute.xlu0 %1282
      %1286 = vset.pattern.permute.xlu0 0
      %1287 = vperm.xlu0 %1286, %v605
      %v1288 = vpop.permute.xlu0 %1287
      %1291 = vset.pattern.permute.xlu0 0
      %1292 = vperm.xlu0 %1291, %v606
      %v1293 = vpop.permute.xlu0 %1292
      %1296 = vset.pattern.permute.xlu0 0
      %1297 = vperm.xlu0 %1296, %v607
      %v1298 = vpop.permute.xlu0 %1297
      %1301 = vset.pattern.permute.xlu0 0
      %1302 = vperm.xlu0 %1301, %v608
      %v1303 = vpop.permute.xlu0 %1302
      %1306 = vset.pattern.permute.xlu0 0
      %1307 = vperm.xlu0 %1306, %v609
      %v1308 = vpop.permute.xlu0 %1307
      %1311 = vset.pattern.permute.xlu0 0
      %1312 = vperm.xlu0 %1311, %v610
      %v1313 = vpop.permute.xlu0 %1312
      %1316 = vset.pattern.permute.xlu0 0
      %1317 = vperm.xlu0 %1316, %v611
      %v1318 = vpop.permute.xlu0 %1317
      %1321 = vset.pattern.permute.xlu0 0
      %1322 = vperm.xlu0 %1321, %v612
      %v1323 = vpop.permute.xlu0 %1322
      %1326 = vset.pattern.permute.xlu0 0
      %1327 = vperm.xlu0 %1326, %v613
      %v1328 = vpop.permute.xlu0 %1327
      %1331 = vset.pattern.permute.xlu0 0
      %1332 = vperm.xlu0 %1331, %v614
      %v1333 = vpop.permute.xlu0 %1332
      %1336 = vset.pattern.permute.xlu0 0
      %1337 = vperm.xlu0 %1336, %v615
      %v1338 = vpop.permute.xlu0 %1337
      %1341 = vset.pattern.permute.xlu0 0
      %1342 = vperm.xlu0 %1341, %v616
      %v1343 = vpop.permute.xlu0 %1342
      %1346 = vset.pattern.permute.xlu0 0
      %1347 = vperm.xlu0 %1346, %v617
      %v1348 = vpop.permute.xlu0 %1347
      %1351 = vset.pattern.permute.xlu0 0
      %1352 = vperm.xlu0 %1351, %v618
      %v1353 = vpop.permute.xlu0 %1352
      %1356 = vset.pattern.permute.xlu0 0
      %1357 = vperm.xlu0 %1356, %v619
      %v1358 = vpop.permute.xlu0 %1357
      %1361 = vset.pattern.permute.xlu0 0
      %1362 = vperm.xlu0 %1361, %v620
      %v1363 = vpop.permute.xlu0 %1362
      %1366 = vset.pattern.permute.xlu0 0
      %1367 = vperm.xlu0 %1366, %v621
      %v1368 = vpop.permute.xlu0 %1367
      %1371 = vset.pattern.permute.xlu0 0
      %1372 = vperm.xlu0 %1371, %v622
      %v1373 = vpop.permute.xlu0 %1372
      %1376 = vset.pattern.permute.xlu0 0
      %1377 = vperm.xlu0 %1376, %v623
      %v1378 = vpop.permute.xlu0 %1377
      %1381 = vset.pattern.permute.xlu0 0
      %1382 = vperm.xlu0 %1381, %v624
      %v1383 = vpop.permute.xlu0 %1382
      %1386 = vset.pattern.permute.xlu0 0
      %1387 = vperm.xlu0 %1386, %v625
      %v1388 = vpop.permute.xlu0 %1387
      %1391 = vset.pattern.permute.xlu0 0
      %1392 = vperm.xlu0 %1391, %v626
      %v1393 = vpop.permute.xlu0 %1392
      %1396 = vset.pattern.permute.xlu0 0
      %1397 = vperm.xlu0 %1396, %v627
      %v1398 = vpop.permute.xlu0 %1397
      %1401 = vset.pattern.permute.xlu0 0
      %1402 = vperm.xlu0 %1401, %v628
      %v1403 = vpop.permute.xlu0 %1402
      %1406 = vset.pattern.permute.xlu0 0
      %1407 = vperm.xlu0 %1406, %v629
      %v1408 = vpop.permute.xlu0 %1407
      %1411 = vset.pattern.permute.xlu0 0
      %1412 = vperm.xlu0 %1411, %v630
      %v1413 = vpop.permute.xlu0 %1412
      %1416 = vset.pattern.permute.xlu0 0
      %1417 = vperm.xlu0 %1416, %v631
      %v1418 = vpop.permute.xlu0 %1417
      %1421 = vset.pattern.permute.xlu0 0
      %1422 = vperm.xlu0 %1421, %v632
      %v1423 = vpop.permute.xlu0 %1422
      %1426 = vset.pattern.permute.xlu0 0
      %1427 = vperm.xlu0 %1426, %v633
      %v1428 = vpop.permute.xlu0 %1427
      %1431 = vset.pattern.permute.xlu0 0
      %1432 = vperm.xlu0 %1431, %v634
      %v1433 = vpop.permute.xlu0 %1432
      %1436 = vset.pattern.permute.xlu0 0
      %1437 = vperm.xlu0 %1436, %v635
      %v1438 = vpop.permute.xlu0 %1437
      %1441 = vset.pattern.permute.xlu0 0
      %1442 = vperm.xlu0 %1441, %v636
      %v1443 = vpop.permute.xlu0 %1442
      %1446 = vset.pattern.permute.xlu0 0
      %1447 = vperm.xlu0 %1446, %v637
      %v1448 = vpop.permute.xlu0 %1447
      %1451 = vset.pattern.permute.xlu0 0
      %1452 = vperm.xlu0 %1451, %v638
      %v1453 = vpop.permute.xlu0 %1452
      %1456 = vset.pattern.permute.xlu0 0
      %1457 = vperm.xlu0 %1456, %v639
      %v1458 = vpop.permute.xlu0 %1457
      %1461 = vset.pattern.permute.xlu0 0
      %1462 = vperm.xlu0 %1461, %v640
      %v1463 = vpop.permute.xlu0 %1462
      %1466 = vset.pattern.permute.xlu0 0
      %1467 = vperm.xlu0 %1466, %v641
      %v1468 = vpop.permute.xlu0 %1467
      %1471 = vset.pattern.permute.xlu0 0
      %1472 = vperm.xlu0 %1471, %v642
      %v1473 = vpop.permute.xlu0 %1472
      %1476 = vset.pattern.permute.xlu0 0
      %1477 = vperm.xlu0 %1476, %v643
      %v1478 = vpop.permute.xlu0 %1477
      %1481 = vset.pattern.permute.xlu0 0
      %1482 = vperm.xlu0 %1481, %v644
      %v1483 = vpop.permute.xlu0 %1482
      %1486 = vset.pattern.permute.xlu0 0
      %1487 = vperm.xlu0 %1486, %v645
      %v1488 = vpop.permute.xlu0 %1487
      %1491 = vset.pattern.permute.xlu0 0
      %1492 = vperm.xlu0 %1491, %v646
      %v1493 = vpop.permute.xlu0 %1492
      %1496 = vset.pattern.permute.xlu0 0
      %1497 = vperm.xlu0 %1496, %v647
      %v1498 = vpop.permute.xlu0 %1497
      %1501 = vset.pattern.permute.xlu0 0
      %1502 = vperm.xlu0 %1501, %v648
      %v1503 = vpop.permute.xlu0 %1502
      %1506 = vset.pattern.permute.xlu0 0
      %1507 = vperm.xlu0 %1506, %v649
      %v1508 = vpop.permute.xlu0 %1507
      %1511 = vset.pattern.permute.xlu0 0
      %1512 = vperm.xlu0 %1511, %v650
      %v1513 = vpop.permute.xlu0 %1512
      %1516 = vset.pattern.permute.xlu0 0
      %1517 = vperm.xlu0 %1516, %v651
      %v1518 = vpop.permute.xlu0 %1517
      %1521 = vset.pattern.permute.xlu0 0
      %1522 = vperm.xlu0 %1521, %v652
      %v1523 = vpop.permute.xlu0 %1522
      %1526 = vset.pattern.permute.xlu0 0
      %1527 = vperm.xlu0 %1526, %v653
      %v1528 = vpop.permute.xlu0 %1527
      %1531 = vset.pattern.permute.xlu0 0
      %1532 = vperm.xlu0 %1531, %v654
      %v1533 = vpop.permute.xlu0 %1532
      %1536 = vset.pattern.permute.xlu0 0
      %1537 = vperm.xlu0 %1536, %v655
      %v1538 = vpop.permute.xlu0 %1537
      %1541 = vset.pattern.permute.xlu0 0
      %1542 = vperm.xlu0 %1541, %v656
      %v1543 = vpop.permute.xlu0 %1542
      %1546 = vset.pattern.permute.xlu0 0
      %1547 = vperm.xlu0 %1546, %v657
      %v1548 = vpop.permute.xlu0 %1547
      %1551 = vset.pattern.permute.xlu0 0
      %1552 = vperm.xlu0 %1551, %v658
      %v1553 = vpop.permute.xlu0 %1552
      %1556 = vset.pattern.permute.xlu0 0
      %1557 = vperm.xlu0 %1556, %v659
      %v1558 = vpop.permute.xlu0 %1557
      %1561 = vset.pattern.permute.xlu0 0
      %1562 = vperm.xlu0 %1561, %v660
      %v1563 = vpop.permute.xlu0 %1562
      %1566 = vset.pattern.permute.xlu0 0
      %1567 = vperm.xlu0 %1566, %v661
      %v1568 = vpop.permute.xlu0 %1567
      %1571 = vset.pattern.permute.xlu0 0
      %1572 = vperm.xlu0 %1571, %v662
      %v1573 = vpop.permute.xlu0 %1572
      %1576 = vset.pattern.permute.xlu0 0
      %1577 = vperm.xlu0 %1576, %v663
      %v1578 = vpop.permute.xlu0 %1577
      %1581 = vset.pattern.permute.xlu0 0
      %1582 = vperm.xlu0 %1581, %v664
      %v1583 = vpop.permute.xlu0 %1582
      %1586 = vset.pattern.permute.xlu0 0
      %1587 = vperm.xlu0 %1586, %v665
      %v1588 = vpop.permute.xlu0 %1587
      %1591 = vset.pattern.permute.xlu0 0
      %1592 = vperm.xlu0 %1591, %v666
      %v1593 = vpop.permute.xlu0 %1592
      %1596 = vset.pattern.permute.xlu0 0
      %1597 = vperm.xlu0 %1596, %v667
      %v1598 = vpop.permute.xlu0 %1597
      %1601 = vset.pattern.permute.xlu0 0
      %1602 = vperm.xlu0 %1601, %v668
      %v1603 = vpop.permute.xlu0 %1602
      %1606 = vset.pattern.permute.xlu0 0
      %1607 = vperm.xlu0 %1606, %v669
      %v1608 = vpop.permute.xlu0 %1607
      %1611 = vset.pattern.permute.xlu0 0
      %1612 = vperm.xlu0 %1611, %v670
      %v1613 = vpop.permute.xlu0 %1612
      %1616 = vset.pattern.permute.xlu0 0
      %1617 = vperm.xlu0 %1616, %v671
      %v1618 = vpop.permute.xlu0 %1617
      %1621 = vset.pattern.permute.xlu0 0
      %1622 = vperm.xlu0 %1621, %v672
      %v1623 = vpop.permute.xlu0 %1622
      %1626 = vset.pattern.permute.xlu0 0
      %1627 = vperm.xlu0 %1626, %v673
      %v1628 = vpop.permute.xlu0 %1627
      %1631 = vset.pattern.permute.xlu0 0
      %1632 = vperm.xlu0 %1631, %v674
      %v1633 = vpop.permute.xlu0 %1632
      %1636 = vset.pattern.permute.xlu0 0
      %1637 = vperm.xlu0 %1636, %v675
      %v1638 = vpop.permute.xlu0 %1637
      %1641 = vset.pattern.permute.xlu0 0
      %1642 = vperm.xlu0 %1641, %v676
      %v1643 = vpop.permute.xlu0 %1642
      %1646 = vset.pattern.permute.xlu0 0
      %1647 = vperm.xlu0 %1646, %v677
      %v1648 = vpop.permute.xlu0 %1647
      %1651 = vset.pattern.permute.xlu0 0
      %1652 = vperm.xlu0 %1651, %v678
      %v1653 = vpop.permute.xlu0 %1652
      %1656 = vset.pattern.permute.xlu0 0
      %1657 = vperm.xlu0 %1656, %v679
      %v1658 = vpop.permute.xlu0 %1657
      %1661 = vset.pattern.permute.xlu0 0
      %1662 = vperm.xlu0 %1661, %v680
      %v1663 = vpop.permute.xlu0 %1662
      %1666 = vset.pattern.permute.xlu0 0
      %1667 = vperm.xlu0 %1666, %v681
      %v1668 = vpop.permute.xlu0 %1667
      %1671 = vset.pattern.permute.xlu0 0
      %1672 = vperm.xlu0 %1671, %v682
      %v1673 = vpop.permute.xlu0 %1672
      %1676 = vset.pattern.permute.xlu0 0
      %1677 = vperm.xlu0 %1676, %v683
      %v1678 = vpop.permute.xlu0 %1677
      %1681 = vset.pattern.permute.xlu0 0
      %1682 = vperm.xlu0 %1681, %v684
      %v1683 = vpop.permute.xlu0 %1682
      %1686 = vset.pattern.permute.xlu0 0
      %1687 = vperm.xlu0 %1686, %v685
      %v1688 = vpop.permute.xlu0 %1687
      %1691 = vset.pattern.permute.xlu0 0
      %1692 = vperm.xlu0 %1691, %v686
      %v1693 = vpop.permute.xlu0 %1692
      %1696 = vset.pattern.permute.xlu0 0
      %1697 = vperm.xlu0 %1696, %v687
      %v1698 = vpop.permute.xlu0 %1697
      %1701 = vset.pattern.permute.xlu0 0
      %1702 = vperm.xlu0 %1701, %v688
      %v1703 = vpop.permute.xlu0 %1702
      %1706 = vset.pattern.permute.xlu0 0
      %1707 = vperm.xlu0 %1706, %v689
      %v1708 = vpop.permute.xlu0 %1707
      %1711 = vset.pattern.permute.xlu0 0
      %1712 = vperm.xlu0 %1711, %v690
      %v1713 = vpop.permute.xlu0 %1712
      %1716 = vset.pattern.permute.xlu0 0
      %1717 = vperm.xlu0 %1716, %v691
      %v1718 = vpop.permute.xlu0 %1717
      %1721 = vset.pattern.permute.xlu0 0
      %1722 = vperm.xlu0 %1721, %v692
      %v1723 = vpop.permute.xlu0 %1722
      %1726 = vset.pattern.permute.xlu0 0
      %1727 = vperm.xlu0 %1726, %v693
      %v1728 = vpop.permute.xlu0 %1727
      %1731 = vset.pattern.permute.xlu0 0
      %1732 = vperm.xlu0 %1731, %v694
      %v1733 = vpop.permute.xlu0 %1732
      %1736 = vset.pattern.permute.xlu0 0
      %1737 = vperm.xlu0 %1736, %v695
      %v1738 = vpop.permute.xlu0 %1737
      %1741 = vset.pattern.permute.xlu0 0
      %1742 = vperm.xlu0 %1741, %v696
      %v1743 = vpop.permute.xlu0 %1742
      %1746 = vset.pattern.permute.xlu0 0
      %1747 = vperm.xlu0 %1746, %v697
      %v1748 = vpop.permute.xlu0 %1747
      %1751 = vset.pattern.permute.xlu0 0
      %1752 = vperm.xlu0 %1751, %v698
      %v1753 = vpop.permute.xlu0 %1752
      %1756 = vset.pattern.permute.xlu0 0
      %1757 = vperm.xlu0 %1756, %v699
      %v1758 = vpop.permute.xlu0 %1757
      %1761 = vset.pattern.permute.xlu0 0
      %1762 = vperm.xlu0 %1761, %v700
      %v1763 = vpop.permute.xlu0 %1762
      %1766 = vset.pattern.permute.xlu0 0
      %1767 = vperm.xlu0 %1766, %v701
      %v1768 = vpop.permute.xlu0 %1767
      %1771 = vset.pattern.permute.xlu0 0
      %1772 = vperm.xlu0 %1771, %v702
      %v1773 = vpop.permute.xlu0 %1772
      %1776 = vset.pattern.permute.xlu0 0
      %1777 = vperm.xlu0 %1776, %v703
      %v1778 = vpop.permute.xlu0 %1777
      %1781 = vset.pattern.permute.xlu0 0
      %1782 = vperm.xlu0 %1781, %v704
      %v1783 = vpop.permute.xlu0 %1782
      %1786 = vset.pattern.permute.xlu0 0
      %1787 = vperm.xlu0 %1786, %v705
      %v1788 = vpop.permute.xlu0 %1787
      %1791 = vset.pattern.permute.xlu0 0
      %1792 = vperm.xlu0 %1791, %v706
      %v1793 = vpop.permute.xlu0 %1792
      %1796 = vset.pattern.permute.xlu0 0
      %1797 = vperm.xlu0 %1796, %v707
      %v1798 = vpop.permute.xlu0 %1797
      %1801 = vset.pattern.permute.xlu0 0
      %1802 = vperm.xlu0 %1801, %v708
      %v1803 = vpop.permute.xlu0 %1802
      %1806 = vset.pattern.permute.xlu0 0
      %1807 = vperm.xlu0 %1806, %v709
      %v1808 = vpop.permute.xlu0 %1807
      %1811 = vset.pattern.permute.xlu0 0
      %1812 = vperm.xlu0 %1811, %v710
      %v1813 = vpop.permute.xlu0 %1812
      %1816 = vset.pattern.permute.xlu0 0
      %1817 = vperm.xlu0 %1816, %v711
      %v1818 = vpop.permute.xlu0 %1817
      %1821 = vset.pattern.permute.xlu0 0
      %1822 = vperm.xlu0 %1821, %v712
      %v1823 = vpop.permute.xlu0 %1822
      %1826 = vset.pattern.permute.xlu0 0
      %1827 = vperm.xlu0 %1826, %v713
      %v1828 = vpop.permute.xlu0 %1827
      %1831 = vset.pattern.permute.xlu0 0
      %1832 = vperm.xlu0 %1831, %v714
      %v1833 = vpop.permute.xlu0 %1832
      %1836 = vset.pattern.permute.xlu0 0
      %1837 = vperm.xlu0 %1836, %v715
      %v1838 = vpop.permute.xlu0 %1837
      %1841 = vset.pattern.permute.xlu0 0
      %1842 = vperm.xlu0 %1841, %v716
      %v1843 = vpop.permute.xlu0 %1842
      %1846 = vset.pattern.permute.xlu0 0
      %1847 = vperm.xlu0 %1846, %v717
      %v1848 = vpop.permute.xlu0 %1847
      %1851 = vset.pattern.permute.xlu0 0
      %1852 = vperm.xlu0 %1851, %v718
      %v1853 = vpop.permute.xlu0 %1852
      %1856 = vset.pattern.permute.xlu0 0
      %1857 = vperm.xlu0 %1856, %v719
      %v1858 = vpop.permute.xlu0 %1857
      %1861 = vset.pattern.permute.xlu0 0
      %1862 = vperm.xlu0 %1861, %v720
      %v1863 = vpop.permute.xlu0 %1862
      %1866 = vset.pattern.permute.xlu0 0
      %1867 = vperm.xlu0 %1866, %v721
      %v1868 = vpop.permute.xlu0 %1867
      %1871 = vset.pattern.permute.xlu0 0
      %1872 = vperm.xlu0 %1871, %v722
      %v1873 = vpop.permute.xlu0 %1872
      %1876 = vset.pattern.permute.xlu0 0
      %1877 = vperm.xlu0 %1876, %v723
      %v1878 = vpop.permute.xlu0 %1877
      %1881 = vset.pattern.permute.xlu0 0
      %1882 = vperm.xlu0 %1881, %v724
      %v1883 = vpop.permute.xlu0 %1882
      %1886 = vset.pattern.permute.xlu0 0
      %1887 = vperm.xlu0 %1886, %v725
      %v1888 = vpop.permute.xlu0 %1887
      %1891 = vset.pattern.permute.xlu0 0
      %1892 = vperm.xlu0 %1891, %v726
      %v1893 = vpop.permute.xlu0 %1892
      %1896 = vset.pattern.permute.xlu0 0
      %1897 = vperm.xlu0 %1896, %v727
      %v1898 = vpop.permute.xlu0 %1897
      %1901 = vset.pattern.permute.xlu0 0
      %1902 = vperm.xlu0 %1901, %v728
      %v1903 = vpop.permute.xlu0 %1902
      %1906 = vset.pattern.permute.xlu0 0
      %1907 = vperm.xlu0 %1906, %v729
      %v1908 = vpop.permute.xlu0 %1907
      %1911 = vset.pattern.permute.xlu0 0
      %1912 = vperm.xlu0 %1911, %v730
      %v1913 = vpop.permute.xlu0 %1912
      %1916 = vset.pattern.permute.xlu0 0
      %1917 = vperm.xlu0 %1916, %v731
      %v1918 = vpop.permute.xlu0 %1917
      %1921 = vset.pattern.permute.xlu0 0
      %1922 = vperm.xlu0 %1921, %v732
      %v1923 = vpop.permute.xlu0 %1922
      %1926 = vset.pattern.permute.xlu0 0
      %1927 = vperm.xlu0 %1926, %v733
      %v1928 = vpop.permute.xlu0 %1927
      %1931 = vset.pattern.permute.xlu0 0
      %1932 = vperm.xlu0 %1931, %v734
      %v1933 = vpop.permute.xlu0 %1932
      %1936 = vset.pattern.permute.xlu0 0
      %1937 = vperm.xlu0 %1936, %v735
      %v1938 = vpop.permute.xlu0 %1937
      %1941 = vset.pattern.permute.xlu0 0
      %1942 = vperm.xlu0 %1941, %v736
      %v1943 = vpop.permute.xlu0 %1942
      %1946 = vset.pattern.permute.xlu0 0
      %1947 = vperm.xlu0 %1946, %v737
      %v1948 = vpop.permute.xlu0 %1947
      %1951 = vset.pattern.permute.xlu0 0
      %1952 = vperm.xlu0 %1951, %v738
      %v1953 = vpop.permute.xlu0 %1952
      %1956 = vset.pattern.permute.xlu0 0
      %1957 = vperm.xlu0 %1956, %v739
      %v1958 = vpop.permute.xlu0 %1957
      %1961 = vset.pattern.permute.xlu0 0
      %1962 = vperm.xlu0 %1961, %v740
      %v1963 = vpop.permute.xlu0 %1962
      %1966 = vset.pattern.permute.xlu0 0
      %1967 = vperm.xlu0 %1966, %v741
      %v1968 = vpop.permute.xlu0 %1967
      %1971 = vset.pattern.permute.xlu0 0
      %1972 = vperm.xlu0 %1971, %v742
      %v1973 = vpop.permute.xlu0 %1972
      %1976 = vset.pattern.permute.xlu0 0
      %1977 = vperm.xlu0 %1976, %v743
      %v1978 = vpop.permute.xlu0 %1977
      %1981 = vset.pattern.permute.xlu0 0
      %1982 = vperm.xlu0 %1981, %v744
      %v1983 = vpop.permute.xlu0 %1982
      %1986 = vset.pattern.permute.xlu0 0
      %1987 = vperm.xlu0 %1986, %v745
      %v1988 = vpop.permute.xlu0 %1987
      %1991 = vset.pattern.permute.xlu0 0
      %1992 = vperm.xlu0 %1991, %v746
      %v1993 = vpop.permute.xlu0 %1992
      %1996 = vset.pattern.permute.xlu0 0
      %1997 = vperm.xlu0 %1996, %v747
      %v1998 = vpop.permute.xlu0 %1997
      %2001 = vset.pattern.permute.xlu0 0
      %2002 = vperm.xlu0 %2001, %v748
      %v2003 = vpop.permute.xlu0 %2002
      %2006 = vset.pattern.permute.xlu0 0
      %2007 = vperm.xlu0 %2006, %v749
      %v2008 = vpop.permute.xlu0 %2007
      %2011 = vset.pattern.permute.xlu0 0
      %2012 = vperm.xlu0 %2011, %v750
      %v2013 = vpop.permute.xlu0 %2012
      %2016 = vset.pattern.permute.xlu0 0
      %2017 = vperm.xlu0 %2016, %v751
      %v2018 = vpop.permute.xlu0 %2017
      %2021 = vset.pattern.permute.xlu0 0
      %2022 = vperm.xlu0 %2021, %v752
      %v2023 = vpop.permute.xlu0 %2022
      %2026 = vset.pattern.permute.xlu0 0
      %2027 = vperm.xlu0 %2026, %v753
      %v2028 = vpop.permute.xlu0 %2027
      %2031 = vset.pattern.permute.xlu0 0
      %2032 = vperm.xlu0 %2031, %v754
      %v2033 = vpop.permute.xlu0 %2032
      %2036 = vset.pattern.permute.xlu0 0
      %2037 = vperm.xlu0 %2036, %v755
      %v2038 = vpop.permute.xlu0 %2037
      %2041 = vset.pattern.permute.xlu0 0
      %2042 = vperm.xlu0 %2041, %v756
      %v2043 = vpop.permute.xlu0 %2042
      %2046 = vset.pattern.permute.xlu0 0
      %2047 = vperm.xlu0 %2046, %v757
      %v2048 = vpop.permute.xlu0 %2047
      %2051 = vset.pattern.permute.xlu0 0
      %2052 = vperm.xlu0 %2051, %v758
      %v2053 = vpop.permute.xlu0 %2052
      %2056 = vset.pattern.permute.xlu0 0
      %2057 = vperm.xlu0 %2056, %v759
      %v2058 = vpop.permute.xlu0 %2057
      %2061 = vset.pattern.permute.xlu0 0
      %2062 = vperm.xlu0 %2061, %v760
      %v2063 = vpop.permute.xlu0 %2062
      %2066 = vset.pattern.permute.xlu0 0
      %2067 = vperm.xlu0 %2066, %v761
      %v2068 = vpop.permute.xlu0 %2067
      %2071 = vset.pattern.permute.xlu0 0
      %2072 = vperm.xlu0 %2071, %v762
      %v2073 = vpop.permute.xlu0 %2072
      %2076 = vset.pattern.permute.xlu0 0
      %2077 = vperm.xlu0 %2076, %v763
      %v2078 = vpop.permute.xlu0 %2077
      %2081 = vset.pattern.permute.xlu0 0
      %2082 = vperm.xlu0 %2081, %v764
      %v2083 = vpop.permute.xlu0 %2082
      %2086 = vset.pattern.permute.xlu0 0
      %2087 = vperm.xlu0 %2086, %v765
      %v2088 = vpop.permute.xlu0 %2087
      %2091 = vset.pattern.permute.xlu0 0
      %2092 = vperm.xlu0 %2091, %v766
      %v2093 = vpop.permute.xlu0 %2092
      %2096 = vset.pattern.permute.xlu0 0
      %2097 = vperm.xlu0 %2096, %v767
      %v2098 = vpop.permute.xlu0 %2097
      %2101 = vset.pattern.permute.xlu0 0
      %2102 = vperm.xlu0 %2101, %v768
      %v2103 = vpop.permute.xlu0 %2102
      %2106 = vset.pattern.permute.xlu0 0
      %2107 = vperm.xlu0 %2106, %v769
      %v2108 = vpop.permute.xlu0 %2107
      %2111 = vset.pattern.permute.xlu0 0
      %2112 = vperm.xlu0 %2111, %v770
      %v2113 = vpop.permute.xlu0 %2112
      %2116 = vset.pattern.permute.xlu0 0
      %2117 = vperm.xlu0 %2116, %v771
      %v2118 = vpop.permute.xlu0 %2117
      %2121 = vset.pattern.permute.xlu0 0
      %2122 = vperm.xlu0 %2121, %v772
      %v2123 = vpop.permute.xlu0 %2122
      %2126 = vset.pattern.permute.xlu0 0
      %2127 = vperm.xlu0 %2126, %v773
      %v2128 = vpop.permute.xlu0 %2127
      %2131 = vset.pattern.permute.xlu0 0
      %2132 = vperm.xlu0 %2131, %v774
      %v2133 = vpop.permute.xlu0 %2132
      %2136 = vset.pattern.permute.xlu0 0
      %2137 = vperm.xlu0 %2136, %v775
      %v2138 = vpop.permute.xlu0 %2137
      %2141 = vset.pattern.permute.xlu0 0
      %2142 = vperm.xlu0 %2141, %v776
      %v2143 = vpop.permute.xlu0 %2142
      %2146 = vset.pattern.permute.xlu0 0
      %2147 = vperm.xlu0 %2146, %v777
      %v2148 = vpop.permute.xlu0 %2147
      %2151 = vset.pattern.permute.xlu0 0
      %2152 = vperm.xlu0 %2151, %v778
      %v2153 = vpop.permute.xlu0 %2152
      %2156 = vset.pattern.permute.xlu0 0
      %2157 = vperm.xlu0 %2156, %v779
      %v2158 = vpop.permute.xlu0 %2157
      %2161 = vset.pattern.permute.xlu0 0
      %2162 = vperm.xlu0 %2161, %v780
      %v2163 = vpop.permute.xlu0 %2162
      %2166 = vset.pattern.permute.xlu0 0
      %2167 = vperm.xlu0 %2166, %v781
      %v2168 = vpop.permute.xlu0 %2167
      %2171 = vset.pattern.permute.xlu0 0
      %2172 = vperm.xlu0 %2171, %v782
      %v2173 = vpop.permute.xlu0 %2172
      %2176 = vset.pattern.permute.xlu0 0
      %2177 = vperm.xlu0 %2176, %v783
      %v2178 = vpop.permute.xlu0 %2177
      %2181 = vset.pattern.permute.xlu0 0
      %2182 = vperm.xlu0 %2181, %v784
      %v2183 = vpop.permute.xlu0 %2182
      %2186 = vset.pattern.permute.xlu0 0
      %2187 = vperm.xlu0 %2186, %v785
      %v2188 = vpop.permute.xlu0 %2187
      %2191 = vset.pattern.permute.xlu0 0
      %2192 = vperm.xlu0 %2191, %v786
      %v2193 = vpop.permute.xlu0 %2192
      %2196 = vset.pattern.permute.xlu0 0
      %2197 = vperm.xlu0 %2196, %v787
      %v2198 = vpop.permute.xlu0 %2197
      %2201 = vset.pattern.permute.xlu0 0
      %2202 = vperm.xlu0 %2201, %v788
      %v2203 = vpop.permute.xlu0 %2202
      %2206 = vset.pattern.permute.xlu0 0
      %2207 = vperm.xlu0 %2206, %v789
      %v2208 = vpop.permute.xlu0 %2207
      %2211 = vset.pattern.permute.xlu0 0
      %2212 = vperm.xlu0 %2211, %v790
      %v2213 = vpop.permute.xlu0 %2212
      %2216 = vset.pattern.permute.xlu0 0
      %2217 = vperm.xlu0 %2216, %v791
      %v2218 = vpop.permute.xlu0 %2217
      %2221 = vset.pattern.permute.xlu0 0
      %2222 = vperm.xlu0 %2221, %v792
      %v2223 = vpop.permute.xlu0 %2222
      %2226 = vset.pattern.permute.xlu0 0
      %2227 = vperm.xlu0 %2226, %v793
      %v2228 = vpop.permute.xlu0 %2227
      %2231 = vset.pattern.permute.xlu0 0
      %2232 = vperm.xlu0 %2231, %v794
      %v2233 = vpop.permute.xlu0 %2232
      %v2523 = vunpack.c.l.b16 %v211
      %v2524 = vunpack.c.h.b16 %v211
      %v2525 = vunpack.c.l.b16 %v212
      %v2526 = vunpack.c.h.b16 %v212
      %v2527 = vunpack.c.l.b16 %v213
      %v2528 = vunpack.c.h.b16 %v213
      %v2529 = vunpack.c.l.b16 %v214
      %v2530 = vunpack.c.h.b16 %v214
      %v2531 = vunpack.c.l.b16 %v215
      %v2532 = vunpack.c.h.b16 %v215
      %v2533 = vunpack.c.l.b16 %v216
      %v2534 = vunpack.c.h.b16 %v216
      %v2535 = vunpack.c.l.b16 %v217
      %v2536 = vunpack.c.h.b16 %v217
      %v2537 = vunpack.c.l.b16 %v218
      %v2538 = vunpack.c.h.b16 %v218
      %v2539 = vunpack.c.l.b16 %v219
      %v2540 = vunpack.c.h.b16 %v219
      %v2541 = vunpack.c.l.b16 %v220
      %v2542 = vunpack.c.h.b16 %v220
      %v2543 = vunpack.c.l.b16 %v221
      %v2544 = vunpack.c.h.b16 %v221
      %v2545 = vunpack.c.l.b16 %v222
      %v2546 = vunpack.c.h.b16 %v222
      %v2547 = vunpack.c.l.b16 %v223
      %v2548 = vunpack.c.h.b16 %v223
      %v2549 = vunpack.c.l.b16 %v224
      %v2550 = vunpack.c.h.b16 %v224
      %v2551 = vunpack.c.l.b16 %v225
      %v2552 = vunpack.c.h.b16 %v225
      %v2553 = vunpack.c.l.b16 %v226
      %v2554 = vunpack.c.h.b16 %v226
      %v2555 = vunpack.c.l.b16 %v227
      %v2556 = vunpack.c.h.b16 %v227
      %v2557 = vunpack.c.l.b16 %v228
      %v2558 = vunpack.c.h.b16 %v228
      %v2559 = vunpack.c.l.b16 %v229
      %v2560 = vunpack.c.h.b16 %v229
      %v2561 = vunpack.c.l.b16 %v230
      %v2562 = vunpack.c.h.b16 %v230
      %v2563 = vunpack.c.l.b16 %v231
      %v2564 = vunpack.c.h.b16 %v231
      %v2565 = vunpack.c.l.b16 %v232
      %v2566 = vunpack.c.h.b16 %v232
      %v2567 = vunpack.c.l.b16 %v233
      %v2568 = vunpack.c.h.b16 %v233
      %v2569 = vunpack.c.l.b16 %v234
      %v2570 = vunpack.c.h.b16 %v234
      %v2571 = vunpack.c.l.b16 %v235
      %v2572 = vunpack.c.h.b16 %v235
      %v2573 = vunpack.c.l.b16 %v236
      %v2574 = vunpack.c.h.b16 %v236
      %v2575 = vunpack.c.l.b16 %v237
      %v2576 = vunpack.c.h.b16 %v237
      %v2577 = vunpack.c.l.b16 %v238
      %v2578 = vunpack.c.h.b16 %v238
      %v2579 = vunpack.c.l.b16 %v239
      %v2580 = vunpack.c.h.b16 %v239
      %v2581 = vunpack.c.l.b16 %v240
      %v2582 = vunpack.c.h.b16 %v240
      %v2583 = vunpack.c.l.b16 %v241
      %v2584 = vunpack.c.h.b16 %v241
      %v2585 = vunpack.c.l.b16 %v242
      %v2586 = vunpack.c.h.b16 %v242
      %v2587 = vunpack.c.l.b16 %v243
      %v2588 = vunpack.c.h.b16 %v243
      %v2589 = vunpack.c.l.b16 %v244
      %v2590 = vunpack.c.h.b16 %v244
      %v2591 = vunpack.c.l.b16 %v245
      %v2592 = vunpack.c.h.b16 %v245
      %v2593 = vunpack.c.l.b16 %v246
      %v2594 = vunpack.c.h.b16 %v246
      %v2595 = vunpack.c.l.b16 %v247
      %v2596 = vunpack.c.h.b16 %v247
      %v2597 = vunpack.c.l.b16 %v248
      %v2598 = vunpack.c.h.b16 %v248
      %v2599 = vunpack.c.l.b16 %v249
      %v2600 = vunpack.c.h.b16 %v249
      %v2601 = vunpack.c.l.b16 %v250
      %v2602 = vunpack.c.h.b16 %v250
      %v2603 = vunpack.c.l.b16 %v251
      %v2604 = vunpack.c.h.b16 %v251
      %v2605 = vunpack.c.l.b16 %v252
      %v2606 = vunpack.c.h.b16 %v252
      %v2607 = vunpack.c.l.b16 %v253
      %v2608 = vunpack.c.h.b16 %v253
      %v2609 = vunpack.c.l.b16 %v254
      %v2610 = vunpack.c.h.b16 %v254
      %v2611 = vunpack.c.l.b16 %v255
      %v2612 = vunpack.c.h.b16 %v255
      %v2613 = vunpack.c.l.b16 %v256
      %v2614 = vunpack.c.h.b16 %v256
      %v2615 = vunpack.c.l.b16 %v257
      %v2616 = vunpack.c.h.b16 %v257
      %v2617 = vunpack.c.l.b16 %v258
      %v2618 = vunpack.c.h.b16 %v258
      %v2619 = vunpack.c.l.b16 %v259
      %v2620 = vunpack.c.h.b16 %v259
      %v2621 = vunpack.c.l.b16 %v260
      %v2622 = vunpack.c.h.b16 %v260
      %v2623 = vunpack.c.l.b16 %v261
      %v2624 = vunpack.c.h.b16 %v261
      %v2625 = vunpack.c.l.b16 %v262
      %v2626 = vunpack.c.h.b16 %v262
      %v2627 = vunpack.c.l.b16 %v263
      %v2628 = vunpack.c.h.b16 %v263
      %v2629 = vunpack.c.l.b16 %v264
      %v2630 = vunpack.c.h.b16 %v264
      %v2631 = vunpack.c.l.b16 %v265
      %v2632 = vunpack.c.h.b16 %v265
      %v2633 = vunpack.c.l.b16 %v266
      %v2634 = vunpack.c.h.b16 %v266
      %v2635 = vunpack.c.l.b16 %v267
      %v2636 = vunpack.c.h.b16 %v267
      %v2637 = vunpack.c.l.b16 %v268
      %v2638 = vunpack.c.h.b16 %v268
      %v2639 = vunpack.c.l.b16 %v269
      %v2640 = vunpack.c.h.b16 %v269
      %v2641 = vunpack.c.l.b16 %v270
      %v2642 = vunpack.c.h.b16 %v270
      %v2643 = vunpack.c.l.b16 %v271
      %v2644 = vunpack.c.h.b16 %v271
      %v2645 = vunpack.c.l.b16 %v272
      %v2646 = vunpack.c.h.b16 %v272
      %v2647 = vunpack.c.l.b16 %v273
      %v2648 = vunpack.c.h.b16 %v273
      %v2649 = vunpack.c.l.b16 %v274
      %v2650 = vunpack.c.h.b16 %v274
      %v2651 = vunpack.c.l.b16 %v275
      %v2652 = vunpack.c.h.b16 %v275
      %v2653 = vunpack.c.l.b16 %v276
      %v2654 = vunpack.c.h.b16 %v276
      %v2655 = vunpack.c.l.b16 %v277
      %v2656 = vunpack.c.h.b16 %v277
      %v2657 = vunpack.c.l.b16 %v278
      %v2658 = vunpack.c.h.b16 %v278
      %v2659 = vunpack.c.l.b16 %v279
      %v2660 = vunpack.c.h.b16 %v279
      %v2661 = vunpack.c.l.b16 %v280
      %v2662 = vunpack.c.h.b16 %v280
      %v2663 = vunpack.c.l.b16 %v281
      %v2664 = vunpack.c.h.b16 %v281
      %v2665 = vunpack.c.l.b16 %v282
      %v2666 = vunpack.c.h.b16 %v282
      %v2667 = vunpack.c.l.b16 %v283
      %v2668 = vunpack.c.h.b16 %v283
      %v2669 = vunpack.c.l.b16 %v284
      %v2670 = vunpack.c.h.b16 %v284
      %v2671 = vunpack.c.l.b16 %v285
      %v2672 = vunpack.c.h.b16 %v285
      %v2673 = vunpack.c.l.b16 %v286
      %v2674 = vunpack.c.h.b16 %v286
      %v2675 = vunpack.c.l.b16 %v287
      %v2676 = vunpack.c.h.b16 %v287
      %v2677 = vunpack.c.l.b16 %v288
      %v2678 = vunpack.c.h.b16 %v288
      %v2679 = vunpack.c.l.b16 %v289
      %v2680 = vunpack.c.h.b16 %v289
      %v2681 = vunpack.c.l.b16 %v290
      %v2682 = vunpack.c.h.b16 %v290
      %v2683 = vunpack.c.l.b16 %v291
      %v2684 = vunpack.c.h.b16 %v291
      %v2685 = vunpack.c.l.b16 %v292
      %v2686 = vunpack.c.h.b16 %v292
      %v2687 = vunpack.c.l.b16 %v293
      %v2688 = vunpack.c.h.b16 %v293
      %v2689 = vunpack.c.l.b16 %v294
      %v2690 = vunpack.c.h.b16 %v294
      %v2691 = vunpack.c.l.b16 %v295
      %v2692 = vunpack.c.h.b16 %v295
      %v2693 = vunpack.c.l.b16 %v296
      %v2694 = vunpack.c.h.b16 %v296
      %v2695 = vunpack.c.l.b16 %v297
      %v2696 = vunpack.c.h.b16 %v297
      %v2697 = vunpack.c.l.b16 %v298
      %v2698 = vunpack.c.h.b16 %v298
      %v2699 = vunpack.c.l.b16 %v299
      %v2700 = vunpack.c.h.b16 %v299
      %v2701 = vunpack.c.l.b16 %v300
      %v2702 = vunpack.c.h.b16 %v300
      %v2703 = vunpack.c.l.b16 %v301
      %v2704 = vunpack.c.h.b16 %v301
      %v2705 = vunpack.c.l.b16 %v302
      %v2706 = vunpack.c.h.b16 %v302
      %v2707 = vunpack.c.l.b16 %v303
      %v2708 = vunpack.c.h.b16 %v303
      %v2709 = vunpack.c.l.b16 %v304
      %v2710 = vunpack.c.h.b16 %v304
      %v2711 = vunpack.c.l.b16 %v305
      %v2712 = vunpack.c.h.b16 %v305
      %v2713 = vunpack.c.l.b16 %v306
      %v2714 = vunpack.c.h.b16 %v306
      %v2715 = vunpack.c.l.b16 %v307
      %v2716 = vunpack.c.h.b16 %v307
      %v2717 = vunpack.c.l.b16 %v308
      %v2718 = vunpack.c.h.b16 %v308
      %v2719 = vunpack.c.l.b16 %v309
      %v2720 = vunpack.c.h.b16 %v309
      %v2721 = vunpack.c.l.b16 %v310
      %v2722 = vunpack.c.h.b16 %v310
      %v2723 = vunpack.c.l.b16 %v311
      %v2724 = vunpack.c.h.b16 %v311
      %v2725 = vunpack.c.l.b16 %v312
      %v2726 = vunpack.c.h.b16 %v312
      %v2727 = vunpack.c.l.b16 %v313
      %v2728 = vunpack.c.h.b16 %v313
      %v2729 = vunpack.c.l.b16 %v314
      %v2730 = vunpack.c.h.b16 %v314
      %v2731 = vunpack.c.l.b16 %v315
      %v2732 = vunpack.c.h.b16 %v315
      %v2733 = vunpack.c.l.b16 %v316
      %v2734 = vunpack.c.h.b16 %v316
      %v2735 = vunpack.c.l.b16 %v317
      %v2736 = vunpack.c.h.b16 %v317
      %v2737 = vunpack.c.l.b16 %v318
      %v2738 = vunpack.c.h.b16 %v318
      %v2739 = vunpack.c.l.b16 %v319
      %v2740 = vunpack.c.h.b16 %v319
      %v2741 = vunpack.c.l.b16 %v320
      %v2742 = vunpack.c.h.b16 %v320
      %v2743 = vunpack.c.l.b16 %v321
      %v2744 = vunpack.c.h.b16 %v321
      %v2745 = vunpack.c.l.b16 %v322
      %v2746 = vunpack.c.h.b16 %v322
      %v2747 = vunpack.c.l.b16 %v323
      %v2748 = vunpack.c.h.b16 %v323
      %v2749 = vunpack.c.l.b16 %v324
      %v2750 = vunpack.c.h.b16 %v324
      %v2751 = vunpack.c.l.b16 %v325
      %v2752 = vunpack.c.h.b16 %v325
      %v2753 = vunpack.c.l.b16 %v326
      %v2754 = vunpack.c.h.b16 %v326
      %v2755 = vunpack.c.l.b16 %v327
      %v2756 = vunpack.c.h.b16 %v327
      %v2757 = vunpack.c.l.b16 %v328
      %v2758 = vunpack.c.h.b16 %v328
      %v2759 = vunpack.c.l.b16 %v329
      %v2760 = vunpack.c.h.b16 %v329
      %v2761 = vunpack.c.l.b16 %v330
      %v2762 = vunpack.c.h.b16 %v330
      %v2763 = vunpack.c.l.b16 %v331
      %v2764 = vunpack.c.h.b16 %v331
      %v2765 = vunpack.c.l.b16 %v332
      %v2766 = vunpack.c.h.b16 %v332
      %v2767 = vunpack.c.l.b16 %v333
      %v2768 = vunpack.c.h.b16 %v333
      %v2769 = vunpack.c.l.b16 %v334
      %v2770 = vunpack.c.h.b16 %v334
      %v2771 = vunpack.c.l.b16 %v335
      %v2772 = vunpack.c.h.b16 %v335
      %v2773 = vunpack.c.l.b16 %v336
      %v2774 = vunpack.c.h.b16 %v336
      %v2775 = vunpack.c.l.b16 %v337
      %v2776 = vunpack.c.h.b16 %v337
      %v2777 = vunpack.c.l.b16 %v338
      %v2778 = vunpack.c.h.b16 %v338
      %v2779 = vunpack.c.l.b16 %v339
      %v2780 = vunpack.c.h.b16 %v339
      %v2781 = vunpack.c.l.b16 %v340
      %v2782 = vunpack.c.h.b16 %v340
      %v2783 = vunpack.c.l.b16 %v341
      %v2784 = vunpack.c.h.b16 %v341
      %v2785 = vunpack.c.l.b16 %v342
      %v2786 = vunpack.c.h.b16 %v342
      %v2787 = vunpack.c.l.b16 %v343
      %v2788 = vunpack.c.h.b16 %v343
      %v2789 = vunpack.c.l.b16 %v344
      %v2790 = vunpack.c.h.b16 %v344
      %v2791 = vunpack.c.l.b16 %v345
      %v2792 = vunpack.c.h.b16 %v345
      %v2793 = vunpack.c.l.b16 %v346
      %v2794 = vunpack.c.h.b16 %v346
      %v2795 = vunpack.c.l.b16 %v347
      %v2796 = vunpack.c.h.b16 %v347
      %v2797 = vunpack.c.l.b16 %v348
      %v2798 = vunpack.c.h.b16 %v348
      %v2799 = vunpack.c.l.b16 %v349
      %v2800 = vunpack.c.h.b16 %v349
      %v2801 = vunpack.c.l.b16 %v350
      %v2802 = vunpack.c.h.b16 %v350
      %v2803 = vunpack.c.l.b16 %v351
      %v2804 = vunpack.c.h.b16 %v351
      %v2805 = vunpack.c.l.b16 %v352
      %v2806 = vunpack.c.h.b16 %v352
      %v2807 = vunpack.c.l.b16 %v353
      %v2808 = vunpack.c.h.b16 %v353
      %v2809 = vunpack.c.l.b16 %v354
      %v2810 = vunpack.c.h.b16 %v354
      %v2811 = vunpack.c.l.b16 %v355
      %v2812 = vunpack.c.h.b16 %v355
      %v2813 = vunpack.c.l.b16 %v356
      %v2814 = vunpack.c.h.b16 %v356
      %v2815 = vunpack.c.l.b16 %v357
      %v2816 = vunpack.c.h.b16 %v357
      %v2817 = vunpack.c.l.b16 %v358
      %v2818 = vunpack.c.h.b16 %v358
      %v2819 = vunpack.c.l.b16 %v359
      %v2820 = vunpack.c.h.b16 %v359
      %v2821 = vunpack.c.l.b16 %v360
      %v2822 = vunpack.c.h.b16 %v360
      %v2823 = vunpack.c.l.b16 %v361
      %v2824 = vunpack.c.h.b16 %v361
      %v2825 = vunpack.c.l.b16 %v362
      %v2826 = vunpack.c.h.b16 %v362
      %v2827 = vunpack.c.l.b16 %v363
      %v2828 = vunpack.c.h.b16 %v363
      %v2829 = vunpack.c.l.b16 %v364
      %v2830 = vunpack.c.h.b16 %v364
      %v2831 = vunpack.c.l.b16 %v365
      %v2832 = vunpack.c.h.b16 %v365
      %v2833 = vunpack.c.l.b16 %v366
      %v2834 = vunpack.c.h.b16 %v366
      %v2835 = vunpack.c.l.b16 %v367
      %v2836 = vunpack.c.h.b16 %v367
      %v2837 = vunpack.c.l.b16 %v368
      %v2838 = vunpack.c.h.b16 %v368
      %v2839 = vunpack.c.l.b16 %v369
      %v2840 = vunpack.c.h.b16 %v369
      %v2841 = vunpack.c.l.b16 %v370
      %v2842 = vunpack.c.h.b16 %v370
      %v2843 = vunpack.c.l.b16 %v371
      %v2844 = vunpack.c.h.b16 %v371
      %v2845 = vunpack.c.l.b16 %v372
      %v2846 = vunpack.c.h.b16 %v372
      %v2847 = vunpack.c.l.b16 %v373
      %v2848 = vunpack.c.h.b16 %v373
      %v2849 = vunpack.c.l.b16 %v374
      %v2850 = vunpack.c.h.b16 %v374
      %v2851 = vunpack.c.l.b16 %v375
      %v2852 = vunpack.c.h.b16 %v375
      %v2853 = vunpack.c.l.b16 %v376
      %v2854 = vunpack.c.h.b16 %v376
      %v2855 = vunpack.c.l.b16 %v377
      %v2856 = vunpack.c.h.b16 %v377
      %v2857 = vunpack.c.l.b16 %v378
      %v2858 = vunpack.c.h.b16 %v378
      %v2859 = vunpack.c.l.b16 %v379
      %v2860 = vunpack.c.h.b16 %v379
      %v2861 = vunpack.c.l.b16 %v380
      %v2862 = vunpack.c.h.b16 %v380
      %v2863 = vunpack.c.l.b16 %v381
      %v2864 = vunpack.c.h.b16 %v381
      %v2865 = vunpack.c.l.b16 %v382
      %v2866 = vunpack.c.h.b16 %v382
      %v2867 = vunpack.c.l.b16 %v383
      %v2868 = vunpack.c.h.b16 %v383
      %v2869 = vunpack.c.l.b16 %v384
      %v2870 = vunpack.c.h.b16 %v384
      %v2871 = vunpack.c.l.b16 %v385
      %v2872 = vunpack.c.h.b16 %v385
      %v2873 = vunpack.c.l.b16 %v386
      %v2874 = vunpack.c.h.b16 %v386
      %v2875 = vunpack.c.l.b16 %v387
      %v2876 = vunpack.c.h.b16 %v387
      %v2877 = vunpack.c.l.b16 %v388
      %v2878 = vunpack.c.h.b16 %v388
      %v2879 = vunpack.c.l.b16 %v389
      %v2880 = vunpack.c.h.b16 %v389
      %v2881 = vunpack.c.l.b16 %v390
      %v2882 = vunpack.c.h.b16 %v390
      %v2883 = vunpack.c.l.b16 %v391
      %v2884 = vunpack.c.h.b16 %v391
      %v2885 = vunpack.c.l.b16 %v392
      %v2886 = vunpack.c.h.b16 %v392
      %v2887 = vunpack.c.l.b16 %v393
      %v2888 = vunpack.c.h.b16 %v393
      %v2889 = vunpack.c.l.b16 %v394
      %v2890 = vunpack.c.h.b16 %v394
      %v2891 = vunpack.c.l.b16 %v395
      %v2892 = vunpack.c.h.b16 %v395
      %v2893 = vunpack.c.l.b16 %v396
      %v2894 = vunpack.c.h.b16 %v396
      %v2895 = vunpack.c.l.b16 %v397
      %v2896 = vunpack.c.h.b16 %v397
      %v2897 = vunpack.c.l.b16 %v398
      %v2898 = vunpack.c.h.b16 %v398
      %v2899 = vunpack.c.l.b16 %v399
      %v2900 = vunpack.c.h.b16 %v399
      %v2901 = vunpack.c.l.b16 %v400
      %v2902 = vunpack.c.h.b16 %v400
      %v2903 = vunpack.c.l.b16 %v401
      %v2904 = vunpack.c.h.b16 %v401
      %v2905 = vunpack.c.l.b16 %v402
      %v2906 = vunpack.c.h.b16 %v402
      %v2907 = vunpack.c.l.b16 %v403
      %v2908 = vunpack.c.h.b16 %v403
      %v2909 = vunpack.c.l.b16 %v404
      %v2910 = vunpack.c.h.b16 %v404
      %v2911 = vunpack.c.l.b16 %v405
      %v2912 = vunpack.c.h.b16 %v405
      %v2913 = vunpack.c.l.b16 %v406
      %v2914 = vunpack.c.h.b16 %v406
      %v2915 = vunpack.c.l.b16 %v407
      %v2916 = vunpack.c.h.b16 %v407
      %v2917 = vunpack.c.l.b16 %v408
      %v2918 = vunpack.c.h.b16 %v408
      %v2919 = vunpack.c.l.b16 %v409
      %v2920 = vunpack.c.h.b16 %v409
      %v2921 = vunpack.c.l.b16 %v410
      %v2922 = vunpack.c.h.b16 %v410
      %v2923 = vunpack.c.l.b16 %v411
      %v2924 = vunpack.c.h.b16 %v411
      %v2925 = vunpack.c.l.b16 %v412
      %v2926 = vunpack.c.h.b16 %v412
      %v2927 = vunpack.c.l.b16 %v413
      %v2928 = vunpack.c.h.b16 %v413
      %v2929 = vunpack.c.l.b16 %v414
      %v2930 = vunpack.c.h.b16 %v414
      %v2931 = vunpack.c.l.b16 %v415
      %v2932 = vunpack.c.h.b16 %v415
      %v2933 = vunpack.c.l.b16 %v416
      %v2934 = vunpack.c.h.b16 %v416
      %v2935 = vunpack.c.l.b16 %v417
      %v2936 = vunpack.c.h.b16 %v417
      %v2937 = vunpack.c.l.b16 %v418
      %v2938 = vunpack.c.h.b16 %v418
      %v2939 = vunpack.c.l.b16 %v419
      %v2940 = vunpack.c.h.b16 %v419
      %v2941 = vunpack.c.l.b16 %v420
      %v2942 = vunpack.c.h.b16 %v420
      %v2943 = vunpack.c.l.b16 %v421
      %v2944 = vunpack.c.h.b16 %v421
      %v2945 = vunpack.c.l.b16 %v422
      %v2946 = vunpack.c.h.b16 %v422
      %v2947 = vunpack.c.l.b16 %v423
      %v2948 = vunpack.c.h.b16 %v423
      %v2949 = vunpack.c.l.b16 %v424
      %v2950 = vunpack.c.h.b16 %v424
      %v2951 = vunpack.c.l.b16 %v425
      %v2952 = vunpack.c.h.b16 %v425
      %v2953 = vunpack.c.l.b16 %v426
      %v2954 = vunpack.c.h.b16 %v426
      %v2955 = vunpack.c.l.b16 %v427
      %v2956 = vunpack.c.h.b16 %v427
      %v2957 = vunpack.c.l.b16 %v428
      %v2958 = vunpack.c.h.b16 %v428
      %v2959 = vunpack.c.l.b16 %v429
      %v2960 = vunpack.c.h.b16 %v429
      %v2961 = vunpack.c.l.b16 %v430
      %v2962 = vunpack.c.h.b16 %v430
      %v2963 = vunpack.c.l.b16 %v431
      %v2964 = vunpack.c.h.b16 %v431
      %v2965 = vunpack.c.l.b16 %v432
      %v2966 = vunpack.c.h.b16 %v432
      %v2967 = vunpack.c.l.b16 %v433
      %v2968 = vunpack.c.h.b16 %v433
      %v2969 = vunpack.c.l.b16 %v434
      %v2970 = vunpack.c.h.b16 %v434
      %v2971 = vunpack.c.l.b16 %v435
      %v2972 = vunpack.c.h.b16 %v435
      %v2973 = vunpack.c.l.b16 %v436
      %v2974 = vunpack.c.h.b16 %v436
      %v2975 = vunpack.c.l.b16 %v437
      %v2976 = vunpack.c.h.b16 %v437
      %v2977 = vunpack.c.l.b16 %v438
      %v2978 = vunpack.c.h.b16 %v438
      %v2979 = vunpack.c.l.b16 %v439
      %v2980 = vunpack.c.h.b16 %v439
      %v2981 = vunpack.c.l.b16 %v440
      %v2982 = vunpack.c.h.b16 %v440
      %v2983 = vunpack.c.l.b16 %v441
      %v2984 = vunpack.c.h.b16 %v441
      %v2985 = vunpack.c.l.b16 %v442
      %v2986 = vunpack.c.h.b16 %v442
      %v2987 = vunpack.c.l.b16 %v443
      %v2988 = vunpack.c.h.b16 %v443
      %v2989 = vunpack.c.l.b16 %v444
      %v2990 = vunpack.c.h.b16 %v444
      %v2991 = vunpack.c.l.b16 %v445
      %v2992 = vunpack.c.h.b16 %v445
      %v2993 = vunpack.c.l.b16 %v446
      %v2994 = vunpack.c.h.b16 %v446
      %v2995 = vunpack.c.l.b16 %v447
      %v2996 = vunpack.c.h.b16 %v447
      %v2997 = vunpack.c.l.b16 %v448
      %v2998 = vunpack.c.h.b16 %v448
      %v2999 = vunpack.c.l.b16 %v449
      %v3000 = vunpack.c.h.b16 %v449
      %v3001 = vunpack.c.l.b16 %v450
      %v3002 = vunpack.c.h.b16 %v450
      %v3003 = vunpack.c.l.b16 %v451
      %v3004 = vunpack.c.h.b16 %v451
      %v3005 = vunpack.c.l.b16 %v452
      %v3006 = vunpack.c.h.b16 %v452
      %v3007 = vunpack.c.l.b16 %v453
      %v3008 = vunpack.c.h.b16 %v453
      %v3009 = vunpack.c.l.b16 %v454
      %v3010 = vunpack.c.h.b16 %v454
      %v3011 = vunpack.c.l.b16 %v455
      %v3012 = vunpack.c.h.b16 %v455
      %v3013 = vunpack.c.l.b16 %v456
      %v3014 = vunpack.c.h.b16 %v456
      %v3015 = vunpack.c.l.b16 %v457
      %v3016 = vunpack.c.h.b16 %v457
      %v3017 = vunpack.c.l.b16 %v458
      %v3018 = vunpack.c.h.b16 %v458
      %v3019 = vunpack.c.l.b16 %v459
      %v3020 = vunpack.c.h.b16 %v459
      %v3021 = vunpack.c.l.b16 %v460
      %v3022 = vunpack.c.h.b16 %v460
      %v3023 = vunpack.c.l.b16 %v461
      %v3024 = vunpack.c.h.b16 %v461
      %v3025 = vunpack.c.l.b16 %v462
      %v3026 = vunpack.c.h.b16 %v462
      %v3027 = vunpack.c.l.b16 %v463
      %v3028 = vunpack.c.h.b16 %v463
      %v3029 = vunpack.c.l.b16 %v464
      %v3030 = vunpack.c.h.b16 %v464
      %v3031 = vunpack.c.l.b16 %v465
      %v3032 = vunpack.c.h.b16 %v465
      %v3033 = vunpack.c.l.b16 %v466
      %v3034 = vunpack.c.h.b16 %v466
      %v3035 = vunpack.c.l.b16 %v467
      %v3036 = vunpack.c.h.b16 %v467
      %v3037 = vunpack.c.l.b16 %v468
      %v3038 = vunpack.c.h.b16 %v468
      %v3039 = vunpack.c.l.b16 %v469
      %v3040 = vunpack.c.h.b16 %v469
      %v3041 = vunpack.c.l.b16 %v470
      %v3042 = vunpack.c.h.b16 %v470
      %v3043 = vunpack.c.l.b16 %v471
      %v3044 = vunpack.c.h.b16 %v471
      %v3045 = vunpack.c.l.b16 %v472
      %v3046 = vunpack.c.h.b16 %v472
      %v3047 = vunpack.c.l.b16 %v473
      %v3048 = vunpack.c.h.b16 %v473
      %v3049 = vunpack.c.l.b16 %v474
      %v3050 = vunpack.c.h.b16 %v474
      %v3051 = vunpack.c.l.b16 %v475
      %v3052 = vunpack.c.h.b16 %v475
      %v3053 = vunpack.c.l.b16 %v476
      %v3054 = vunpack.c.h.b16 %v476
      %v3055 = vunpack.c.l.b16 %v477
      %v3056 = vunpack.c.h.b16 %v477
      %v3057 = vunpack.c.l.b16 %v478
      %v3058 = vunpack.c.h.b16 %v478
      %v3059 = vunpack.c.l.b16 %v479
      %v3060 = vunpack.c.h.b16 %v479
      %v3061 = vunpack.c.l.b16 %v480
      %v3062 = vunpack.c.h.b16 %v480
      %v3063 = vunpack.c.l.b16 %v481
      %v3064 = vunpack.c.h.b16 %v481
      %v3065 = vunpack.c.l.b16 %v482
      %v3066 = vunpack.c.h.b16 %v482
      %v3067 = vunpack.c.l.b16 %v483
      %v3068 = vunpack.c.h.b16 %v483
      %v3069 = vunpack.c.l.b16 %v484
      %v3070 = vunpack.c.h.b16 %v484
      %v3071 = vunpack.c.l.b16 %v485
      %v3072 = vunpack.c.h.b16 %v485
      %v3073 = vunpack.c.l.b16 %v486
      %v3074 = vunpack.c.h.b16 %v486
      %v3075 = vunpack.c.l.b16 %v487
      %v3076 = vunpack.c.h.b16 %v487
      %v3077 = vunpack.c.l.b16 %v488
      %v3078 = vunpack.c.h.b16 %v488
      %v3079 = vunpack.c.l.b16 %v489
      %v3080 = vunpack.c.h.b16 %v489
      %v3081 = vunpack.c.l.b16 %v490
      %v3082 = vunpack.c.h.b16 %v490
      %v3083 = vunpack.c.l.b16 %v491
      %v3084 = vunpack.c.h.b16 %v491
      %v3085 = vunpack.c.l.b16 %v492
      %v3086 = vunpack.c.h.b16 %v492
      %v3087 = vunpack.c.l.b16 %v493
      %v3088 = vunpack.c.h.b16 %v493
      %v3089 = vunpack.c.l.b16 %v494
      %v3090 = vunpack.c.h.b16 %v494
      %v3091 = vunpack.c.l.b16 %v495
      %v3092 = vunpack.c.h.b16 %v495
      %v3093 = vunpack.c.l.b16 %v496
      %v3094 = vunpack.c.h.b16 %v496
      %v3095 = vunpack.c.l.b16 %v497
      %v3096 = vunpack.c.h.b16 %v497
      %v3097 = vunpack.c.l.b16 %v498
      %v3098 = vunpack.c.h.b16 %v498
      %v3099 = vpack.c.b16 %v2525, %v2523
      %v3100 = vpack.c.b16 %v2526, %v2524
      %v3101 = vpack.c.b16 %v2529, %v2527
      %v3102 = vpack.c.b16 %v2530, %v2528
      %v3103 = vpack.c.b16 %v2533, %v2531
      %v3104 = vpack.c.b16 %v2534, %v2532
      %v3105 = vpack.c.b16 %v2537, %v2535
      %v3106 = vpack.c.b16 %v2538, %v2536
      %v3107 = vpack.c.b16 %v2541, %v2539
      %v3108 = vpack.c.b16 %v2542, %v2540
      %v3109 = vpack.c.b16 %v2545, %v2543
      %v3110 = vpack.c.b16 %v2546, %v2544
      %v3111 = vpack.c.b16 %v2549, %v2547
      %v3112 = vpack.c.b16 %v2550, %v2548
      %v3113 = vpack.c.b16 %v2553, %v2551
      %v3114 = vpack.c.b16 %v2554, %v2552
      %v3115 = vpack.c.b16 %v2557, %v2555
      %v3116 = vpack.c.b16 %v2558, %v2556
      %v3117 = vpack.c.b16 %v2561, %v2559
      %v3118 = vpack.c.b16 %v2562, %v2560
      %v3119 = vpack.c.b16 %v2565, %v2563
      %v3120 = vpack.c.b16 %v2566, %v2564
      %v3121 = vpack.c.b16 %v2569, %v2567
      %v3122 = vpack.c.b16 %v2570, %v2568
      %v3123 = vpack.c.b16 %v2573, %v2571
      %v3124 = vpack.c.b16 %v2574, %v2572
      %v3125 = vpack.c.b16 %v2577, %v2575
      %v3126 = vpack.c.b16 %v2578, %v2576
      %v3127 = vpack.c.b16 %v2581, %v2579
      %v3128 = vpack.c.b16 %v2582, %v2580
      %v3129 = vpack.c.b16 %v2585, %v2583
      %v3130 = vpack.c.b16 %v2586, %v2584
      %v3131 = vpack.c.b16 %v2589, %v2587
      %v3132 = vpack.c.b16 %v2590, %v2588
      %v3133 = vpack.c.b16 %v2593, %v2591
      %v3134 = vpack.c.b16 %v2594, %v2592
      %v3135 = vpack.c.b16 %v2597, %v2595
      %v3136 = vpack.c.b16 %v2598, %v2596
      %v3137 = vpack.c.b16 %v2601, %v2599
      %v3138 = vpack.c.b16 %v2602, %v2600
      %v3139 = vpack.c.b16 %v2605, %v2603
      %v3140 = vpack.c.b16 %v2606, %v2604
      %v3141 = vpack.c.b16 %v2609, %v2607
      %v3142 = vpack.c.b16 %v2610, %v2608
      %v3143 = vpack.c.b16 %v2613, %v2611
      %v3144 = vpack.c.b16 %v2614, %v2612
      %v3145 = vpack.c.b16 %v2617, %v2615
      %v3146 = vpack.c.b16 %v2618, %v2616
      %v3147 = vpack.c.b16 %v2621, %v2619
      %v3148 = vpack.c.b16 %v2622, %v2620
      %v3149 = vpack.c.b16 %v2625, %v2623
      %v3150 = vpack.c.b16 %v2626, %v2624
      %v3151 = vpack.c.b16 %v2629, %v2627
      %v3152 = vpack.c.b16 %v2630, %v2628
      %v3153 = vpack.c.b16 %v2633, %v2631
      %v3154 = vpack.c.b16 %v2634, %v2632
      %v3155 = vpack.c.b16 %v2637, %v2635
      %v3156 = vpack.c.b16 %v2638, %v2636
      %v3157 = vpack.c.b16 %v2641, %v2639
      %v3158 = vpack.c.b16 %v2642, %v2640
      %v3159 = vpack.c.b16 %v2645, %v2643
      %v3160 = vpack.c.b16 %v2646, %v2644
      %v3161 = vpack.c.b16 %v2649, %v2647
      %v3162 = vpack.c.b16 %v2650, %v2648
      %v3163 = vpack.c.b16 %v2653, %v2651
      %v3164 = vpack.c.b16 %v2654, %v2652
      %v3165 = vpack.c.b16 %v2657, %v2655
      %v3166 = vpack.c.b16 %v2658, %v2656
      %v3167 = vpack.c.b16 %v2661, %v2659
      %v3168 = vpack.c.b16 %v2662, %v2660
      %v3169 = vpack.c.b16 %v2665, %v2663
      %v3170 = vpack.c.b16 %v2666, %v2664
      %v3171 = vpack.c.b16 %v2669, %v2667
      %v3172 = vpack.c.b16 %v2670, %v2668
      %v3173 = vpack.c.b16 %v2673, %v2671
      %v3174 = vpack.c.b16 %v2674, %v2672
      %v3175 = vpack.c.b16 %v2677, %v2675
      %v3176 = vpack.c.b16 %v2678, %v2676
      %v3177 = vpack.c.b16 %v2681, %v2679
      %v3178 = vpack.c.b16 %v2682, %v2680
      %v3179 = vpack.c.b16 %v2685, %v2683
      %v3180 = vpack.c.b16 %v2686, %v2684
      %v3181 = vpack.c.b16 %v2689, %v2687
      %v3182 = vpack.c.b16 %v2690, %v2688
      %v3183 = vpack.c.b16 %v2693, %v2691
      %v3184 = vpack.c.b16 %v2694, %v2692
      %v3185 = vpack.c.b16 %v2697, %v2695
      %v3186 = vpack.c.b16 %v2698, %v2696
      %v3187 = vpack.c.b16 %v2701, %v2699
      %v3188 = vpack.c.b16 %v2702, %v2700
      %v3189 = vpack.c.b16 %v2705, %v2703
      %v3190 = vpack.c.b16 %v2706, %v2704
      %v3191 = vpack.c.b16 %v2709, %v2707
      %v3192 = vpack.c.b16 %v2710, %v2708
      %v3193 = vpack.c.b16 %v2713, %v2711
      %v3194 = vpack.c.b16 %v2714, %v2712
      %v3195 = vpack.c.b16 %v2717, %v2715
      %v3196 = vpack.c.b16 %v2718, %v2716
      %v3197 = vpack.c.b16 %v2721, %v2719
      %v3198 = vpack.c.b16 %v2722, %v2720
      %v3199 = vpack.c.b16 %v2725, %v2723
      %v3200 = vpack.c.b16 %v2726, %v2724
      %v3201 = vpack.c.b16 %v2729, %v2727
      %v3202 = vpack.c.b16 %v2730, %v2728
      %v3203 = vpack.c.b16 %v2733, %v2731
      %v3204 = vpack.c.b16 %v2734, %v2732
      %v3205 = vpack.c.b16 %v2737, %v2735
      %v3206 = vpack.c.b16 %v2738, %v2736
      %v3207 = vpack.c.b16 %v2741, %v2739
      %v3208 = vpack.c.b16 %v2742, %v2740
      %v3209 = vpack.c.b16 %v2745, %v2743
      %v3210 = vpack.c.b16 %v2746, %v2744
      %v3211 = vpack.c.b16 %v2749, %v2747
      %v3212 = vpack.c.b16 %v2750, %v2748
      %v3213 = vpack.c.b16 %v2753, %v2751
      %v3214 = vpack.c.b16 %v2754, %v2752
      %v3215 = vpack.c.b16 %v2757, %v2755
      %v3216 = vpack.c.b16 %v2758, %v2756
      %v3217 = vpack.c.b16 %v2761, %v2759
      %v3218 = vpack.c.b16 %v2762, %v2760
      %v3219 = vpack.c.b16 %v2765, %v2763
      %v3220 = vpack.c.b16 %v2766, %v2764
      %v3221 = vpack.c.b16 %v2769, %v2767
      %v3222 = vpack.c.b16 %v2770, %v2768
      %v3223 = vpack.c.b16 %v2773, %v2771
      %v3224 = vpack.c.b16 %v2774, %v2772
      %v3225 = vpack.c.b16 %v2777, %v2775
      %v3226 = vpack.c.b16 %v2778, %v2776
      %v3227 = vpack.c.b16 %v2781, %v2779
      %v3228 = vpack.c.b16 %v2782, %v2780
      %v3229 = vpack.c.b16 %v2785, %v2783
      %v3230 = vpack.c.b16 %v2786, %v2784
      %v3231 = vpack.c.b16 %v2789, %v2787
      %v3232 = vpack.c.b16 %v2790, %v2788
      %v3233 = vpack.c.b16 %v2793, %v2791
      %v3234 = vpack.c.b16 %v2794, %v2792
      %v3235 = vpack.c.b16 %v2797, %v2795
      %v3236 = vpack.c.b16 %v2798, %v2796
      %v3237 = vpack.c.b16 %v2801, %v2799
      %v3238 = vpack.c.b16 %v2802, %v2800
      %v3239 = vpack.c.b16 %v2805, %v2803
      %v3240 = vpack.c.b16 %v2806, %v2804
      %v3241 = vpack.c.b16 %v2809, %v2807
      %v3242 = vpack.c.b16 %v2810, %v2808
      %v3243 = vpack.c.b16 %v2813, %v2811
      %v3244 = vpack.c.b16 %v2814, %v2812
      %v3245 = vpack.c.b16 %v2817, %v2815
      %v3246 = vpack.c.b16 %v2818, %v2816
      %v3247 = vpack.c.b16 %v2821, %v2819
      %v3248 = vpack.c.b16 %v2822, %v2820
      %v3249 = vpack.c.b16 %v2825, %v2823
      %v3250 = vpack.c.b16 %v2826, %v2824
      %v3251 = vpack.c.b16 %v2829, %v2827
      %v3252 = vpack.c.b16 %v2830, %v2828
      %v3253 = vpack.c.b16 %v2833, %v2831
      %v3254 = vpack.c.b16 %v2834, %v2832
      %v3255 = vpack.c.b16 %v2837, %v2835
      %v3256 = vpack.c.b16 %v2838, %v2836
      %v3257 = vpack.c.b16 %v2841, %v2839
      %v3258 = vpack.c.b16 %v2842, %v2840
      %v3259 = vpack.c.b16 %v2845, %v2843
      %v3260 = vpack.c.b16 %v2846, %v2844
      %v3261 = vpack.c.b16 %v2849, %v2847
      %v3262 = vpack.c.b16 %v2850, %v2848
      %v3263 = vpack.c.b16 %v2853, %v2851
      %v3264 = vpack.c.b16 %v2854, %v2852
      %v3265 = vpack.c.b16 %v2857, %v2855
      %v3266 = vpack.c.b16 %v2858, %v2856
      %v3267 = vpack.c.b16 %v2861, %v2859
      %v3268 = vpack.c.b16 %v2862, %v2860
      %v3269 = vpack.c.b16 %v2865, %v2863
      %v3270 = vpack.c.b16 %v2866, %v2864
      %v3271 = vpack.c.b16 %v2869, %v2867
      %v3272 = vpack.c.b16 %v2870, %v2868
      %v3273 = vpack.c.b16 %v2873, %v2871
      %v3274 = vpack.c.b16 %v2874, %v2872
      %v3275 = vpack.c.b16 %v2877, %v2875
      %v3276 = vpack.c.b16 %v2878, %v2876
      %v3277 = vpack.c.b16 %v2881, %v2879
      %v3278 = vpack.c.b16 %v2882, %v2880
      %v3279 = vpack.c.b16 %v2885, %v2883
      %v3280 = vpack.c.b16 %v2886, %v2884
      %v3281 = vpack.c.b16 %v2889, %v2887
      %v3282 = vpack.c.b16 %v2890, %v2888
      %v3283 = vpack.c.b16 %v2893, %v2891
      %v3284 = vpack.c.b16 %v2894, %v2892
      %v3285 = vpack.c.b16 %v2897, %v2895
      %v3286 = vpack.c.b16 %v2898, %v2896
      %v3287 = vpack.c.b16 %v2901, %v2899
      %v3288 = vpack.c.b16 %v2902, %v2900
      %v3289 = vpack.c.b16 %v2905, %v2903
      %v3290 = vpack.c.b16 %v2906, %v2904
      %v3291 = vpack.c.b16 %v2909, %v2907
      %v3292 = vpack.c.b16 %v2910, %v2908
      %v3293 = vpack.c.b16 %v2913, %v2911
      %v3294 = vpack.c.b16 %v2914, %v2912
      %v3295 = vpack.c.b16 %v2917, %v2915
      %v3296 = vpack.c.b16 %v2918, %v2916
      %v3297 = vpack.c.b16 %v2921, %v2919
      %v3298 = vpack.c.b16 %v2922, %v2920
      %v3299 = vpack.c.b16 %v2925, %v2923
      %v3300 = vpack.c.b16 %v2926, %v2924
      %v3301 = vpack.c.b16 %v2929, %v2927
      %v3302 = vpack.c.b16 %v2930, %v2928
      %v3303 = vpack.c.b16 %v2933, %v2931
      %v3304 = vpack.c.b16 %v2934, %v2932
      %v3305 = vpack.c.b16 %v2937, %v2935
      %v3306 = vpack.c.b16 %v2938, %v2936
      %v3307 = vpack.c.b16 %v2941, %v2939
      %v3308 = vpack.c.b16 %v2942, %v2940
      %v3309 = vpack.c.b16 %v2945, %v2943
      %v3310 = vpack.c.b16 %v2946, %v2944
      %v3311 = vpack.c.b16 %v2949, %v2947
      %v3312 = vpack.c.b16 %v2950, %v2948
      %v3313 = vpack.c.b16 %v2953, %v2951
      %v3314 = vpack.c.b16 %v2954, %v2952
      %v3315 = vpack.c.b16 %v2957, %v2955
      %v3316 = vpack.c.b16 %v2958, %v2956
      %v3317 = vpack.c.b16 %v2961, %v2959
      %v3318 = vpack.c.b16 %v2962, %v2960
      %v3319 = vpack.c.b16 %v2965, %v2963
      %v3320 = vpack.c.b16 %v2966, %v2964
      %v3321 = vpack.c.b16 %v2969, %v2967
      %v3322 = vpack.c.b16 %v2970, %v2968
      %v3323 = vpack.c.b16 %v2973, %v2971
      %v3324 = vpack.c.b16 %v2974, %v2972
      %v3325 = vpack.c.b16 %v2977, %v2975
      %v3326 = vpack.c.b16 %v2978, %v2976
      %v3327 = vpack.c.b16 %v2981, %v2979
      %v3328 = vpack.c.b16 %v2982, %v2980
      %v3329 = vpack.c.b16 %v2985, %v2983
      %v3330 = vpack.c.b16 %v2986, %v2984
      %v3331 = vpack.c.b16 %v2989, %v2987
      %v3332 = vpack.c.b16 %v2990, %v2988
      %v3333 = vpack.c.b16 %v2993, %v2991
      %v3334 = vpack.c.b16 %v2994, %v2992
      %v3335 = vpack.c.b16 %v2997, %v2995
      %v3336 = vpack.c.b16 %v2998, %v2996
      %v3337 = vpack.c.b16 %v3001, %v2999
      %v3338 = vpack.c.b16 %v3002, %v3000
      %v3339 = vpack.c.b16 %v3005, %v3003
      %v3340 = vpack.c.b16 %v3006, %v3004
      %v3341 = vpack.c.b16 %v3009, %v3007
      %v3342 = vpack.c.b16 %v3010, %v3008
      %v3343 = vpack.c.b16 %v3013, %v3011
      %v3344 = vpack.c.b16 %v3014, %v3012
      %v3345 = vpack.c.b16 %v3017, %v3015
      %v3346 = vpack.c.b16 %v3018, %v3016
      %v3347 = vpack.c.b16 %v3021, %v3019
      %v3348 = vpack.c.b16 %v3022, %v3020
      %v3349 = vpack.c.b16 %v3025, %v3023
      %v3350 = vpack.c.b16 %v3026, %v3024
      %v3351 = vpack.c.b16 %v3029, %v3027
      %v3352 = vpack.c.b16 %v3030, %v3028
      %v3353 = vpack.c.b16 %v3033, %v3031
      %v3354 = vpack.c.b16 %v3034, %v3032
      %v3355 = vpack.c.b16 %v3037, %v3035
      %v3356 = vpack.c.b16 %v3038, %v3036
      %v3357 = vpack.c.b16 %v3041, %v3039
      %v3358 = vpack.c.b16 %v3042, %v3040
      %v3359 = vpack.c.b16 %v3045, %v3043
      %v3360 = vpack.c.b16 %v3046, %v3044
      %v3361 = vpack.c.b16 %v3049, %v3047
      %v3362 = vpack.c.b16 %v3050, %v3048
      %v3363 = vpack.c.b16 %v3053, %v3051
      %v3364 = vpack.c.b16 %v3054, %v3052
      %v3365 = vpack.c.b16 %v3057, %v3055
      %v3366 = vpack.c.b16 %v3058, %v3056
      %v3367 = vpack.c.b16 %v3061, %v3059
      %v3368 = vpack.c.b16 %v3062, %v3060
      %v3369 = vpack.c.b16 %v3065, %v3063
      %v3370 = vpack.c.b16 %v3066, %v3064
      %v3371 = vpack.c.b16 %v3069, %v3067
      %v3372 = vpack.c.b16 %v3070, %v3068
      %v3373 = vpack.c.b16 %v3073, %v3071
      %v3374 = vpack.c.b16 %v3074, %v3072
      %v3375 = vpack.c.b16 %v3077, %v3075
      %v3376 = vpack.c.b16 %v3078, %v3076
      %v3377 = vpack.c.b16 %v3081, %v3079
      %v3378 = vpack.c.b16 %v3082, %v3080
      %v3379 = vpack.c.b16 %v3085, %v3083
      %v3380 = vpack.c.b16 %v3086, %v3084
      %v3381 = vpack.c.b16 %v3089, %v3087
      %v3382 = vpack.c.b16 %v3090, %v3088
      %v3383 = vpack.c.b16 %v3093, %v3091
      %v3384 = vpack.c.b16 %v3094, %v3092
      %v3385 = vpack.c.b16 %v3097, %v3095
      %v3386 = vpack.c.b16 %v3098, %v3096
      %v3683 = vunpack.c.l.b16 %v499
      %v3684 = vunpack.c.h.b16 %v499
      %v3685 = vunpack.c.l.b16 %v500
      %v3686 = vunpack.c.h.b16 %v500
      %v3687 = vunpack.c.l.b16 %v501
      %v3688 = vunpack.c.h.b16 %v501
      %v3689 = vunpack.c.l.b16 %v502
      %v3690 = vunpack.c.h.b16 %v502
      %v3691 = vunpack.c.l.b16 %v503
      %v3692 = vunpack.c.h.b16 %v503
      %v3693 = vunpack.c.l.b16 %v504
      %v3694 = vunpack.c.h.b16 %v504
      %v3695 = vunpack.c.l.b16 %v505
      %v3696 = vunpack.c.h.b16 %v505
      %v3697 = vunpack.c.l.b16 %v506
      %v3698 = vunpack.c.h.b16 %v506
      %v3699 = vpack.c.b16 %v3685, %v3683
      %v3700 = vpack.c.b16 %v3686, %v3684
      %v3701 = vpack.c.b16 %v3689, %v3687
      %v3702 = vpack.c.b16 %v3690, %v3688
      %v3703 = vpack.c.b16 %v3693, %v3691
      %v3704 = vpack.c.b16 %v3694, %v3692
      %v3705 = vpack.c.b16 %v3697, %v3695
      %v3706 = vpack.c.b16 %v3698, %v3696
      %3715 = vmatprep.subr.bf16.mxu0 0
      %3716 = vmatpush1.bf16.xpose.msra.mxu0 0
      %3717 = vmatprep.subr.bf16.mxu0 0
      %3718 = vmatpush1.bf16.xpose.msra.mxu0 0
      %3719 = vmatprep.subr.bf16.mxu0 0
      %3720 = vmatpush1.bf16.xpose.msra.mxu0 0
      %3721 = vmatprep.subr.bf16.mxu0 0
      %3722 = vmatpush1.bf16.xpose.msra.mxu0 0
      %3723 = vmatprep.subr.bf16.mxu0 %v3706
      %3724 = vmatpush1.bf16.xpose.msra.mxu0 %v3705
      %3725 = vmatprep.subr.bf16.mxu0 %v3704
      %3726 = vmatpush1.bf16.xpose.msra.mxu0 %v3703
      %3727 = vmatprep.subr.bf16.mxu0 %v3702
      %3728 = vmatpush1.bf16.xpose.msra.mxu0 %v3701
      %3729 = vmatprep.subr.bf16.mxu0 %v3700
      %3730 = vmatpush1.bf16.xpose.msra.mxu0 %v3699
      %3731 = vmatprep.subr.bf16.mxu0 0
      %3732 = vmatpush2.bf16.xpose.msra.mxu0 0
      %3733 = vmatprep.subr.bf16.mxu0 0
      %3734 = vmatpush2.bf16.xpose.msra.mxu0 0
      %3735 = vmatprep.subr.bf16.mxu0 0
      %3736 = vmatpush2.bf16.xpose.msra.mxu0 0
      %3737 = vmatprep.subr.bf16.mxu0 0
      %3738 = vmatpush2.bf16.xpose.msra.mxu0 0
      %3739 = vmatprep.subr.bf16.mxu0 0
      %3740 = vmatpush2.bf16.xpose.msra.mxu0 0
      %3741 = vmatprep.subr.bf16.mxu0 0
      %3742 = vmatpush2.bf16.xpose.msra.mxu0 0
      %3743 = vmatprep.subr.bf16.mxu0 0
      %3744 = vmatpush2.bf16.xpose.msra.mxu0 0
      %3745 = vmatprep.subr.bf16.mxu0 0
      %3746 = vmatpush2.bf16.xpose.msra.mxu0 0
      %3747 = vmatprep.mubr.bf16.mxu0 %v3100
      %3748 = vmatmul.mubr.bf16.gmra.mxu0 %v3099
      %v3749 = vpop.f32.mrf.mxu0
      %v3750 = vadd.f32 %v798, %v3749
      %v3751 = vpop.f32.mrf.mxu0
      %v3752 = vpop.f32.mrf.mxu0
      %v3753 = vadd.f32 %v803, %v3752
      %v3754 = vpop.f32.mrf.mxu0
      %3755 = vmatprep.mubr.bf16.mxu0 %v3102
      %3756 = vmatmul.mubr.bf16.gmra.mxu0 %v3101
      %v3757 = vpop.f32.mrf.mxu0
      %v3758 = vadd.f32 %v808, %v3757
      %v3759 = vpop.f32.mrf.mxu0
      %v3760 = vpop.f32.mrf.mxu0
      %v3761 = vadd.f32 %v813, %v3760
      %v3762 = vpop.f32.mrf.mxu0
      %3763 = vmatprep.mubr.bf16.mxu0 %v3104
      %3764 = vmatmul.mubr.bf16.gmra.mxu0 %v3103
      %v3765 = vpop.f32.mrf.mxu0
      %v3766 = vadd.f32 %v818, %v3765
      %v3767 = vpop.f32.mrf.mxu0
      %v3768 = vpop.f32.mrf.mxu0
      %v3769 = vadd.f32 %v823, %v3768
      %v3770 = vpop.f32.mrf.mxu0
      %3771 = vmatprep.mubr.bf16.mxu0 %v3106
      %3772 = vmatmul.mubr.bf16.gmra.mxu0 %v3105
      %v3773 = vpop.f32.mrf.mxu0
      %v3774 = vadd.f32 %v828, %v3773
      %v3775 = vpop.f32.mrf.mxu0
      %v3776 = vpop.f32.mrf.mxu0
      %v3777 = vadd.f32 %v833, %v3776
      %v3778 = vpop.f32.mrf.mxu0
      %3779 = vmatprep.mubr.bf16.mxu0 %v3108
      %3780 = vmatmul.mubr.bf16.gmra.mxu0 %v3107
      %v3781 = vpop.f32.mrf.mxu0
      %v3782 = vadd.f32 %v838, %v3781
      %v3783 = vpop.f32.mrf.mxu0
      %v3784 = vpop.f32.mrf.mxu0
      %v3785 = vadd.f32 %v843, %v3784
      %v3786 = vpop.f32.mrf.mxu0
      %3787 = vmatprep.mubr.bf16.mxu0 %v3110
      %3788 = vmatmul.mubr.bf16.gmra.mxu0 %v3109
      %v3789 = vpop.f32.mrf.mxu0
      %v3790 = vadd.f32 %v848, %v3789
      %v3791 = vpop.f32.mrf.mxu0
      %v3792 = vpop.f32.mrf.mxu0
      %v3793 = vadd.f32 %v853, %v3792
      %v3794 = vpop.f32.mrf.mxu0
      %3795 = vmatprep.mubr.bf16.mxu0 %v3112
      %3796 = vmatmul.mubr.bf16.gmra.mxu0 %v3111
      %v3797 = vpop.f32.mrf.mxu0
      %v3798 = vadd.f32 %v858, %v3797
      %v3799 = vpop.f32.mrf.mxu0
      %v3800 = vpop.f32.mrf.mxu0
      %v3801 = vadd.f32 %v863, %v3800
      %v3802 = vpop.f32.mrf.mxu0
      %3803 = vmatprep.mubr.bf16.mxu0 %v3114
      %3804 = vmatmul.mubr.bf16.gmra.mxu0 %v3113
      %v3805 = vpop.f32.mrf.mxu0
      %v3806 = vadd.f32 %v868, %v3805
      %v3807 = vpop.f32.mrf.mxu0
      %v3808 = vpop.f32.mrf.mxu0
      %v3809 = vadd.f32 %v873, %v3808
      %v3810 = vpop.f32.mrf.mxu0
      %3811 = vmatprep.mubr.bf16.mxu0 %v3116
      %3812 = vmatmul.mubr.bf16.gmra.mxu0 %v3115
      %v3813 = vpop.f32.mrf.mxu0
      %v3814 = vadd.f32 %v878, %v3813
      %v3815 = vpop.f32.mrf.mxu0
      %v3816 = vpop.f32.mrf.mxu0
      %v3817 = vadd.f32 %v883, %v3816
      %v3818 = vpop.f32.mrf.mxu0
      %3819 = vmatprep.mubr.bf16.mxu0 %v3118
      %3820 = vmatmul.mubr.bf16.gmra.mxu0 %v3117
      %v3821 = vpop.f32.mrf.mxu0
      %v3822 = vadd.f32 %v888, %v3821
      %v3823 = vpop.f32.mrf.mxu0
      %v3824 = vpop.f32.mrf.mxu0
      %v3825 = vadd.f32 %v893, %v3824
      %v3826 = vpop.f32.mrf.mxu0
      %3827 = vmatprep.mubr.bf16.mxu0 %v3120
      %3828 = vmatmul.mubr.bf16.gmra.mxu0 %v3119
      %v3829 = vpop.f32.mrf.mxu0
      %v3830 = vadd.f32 %v898, %v3829
      %v3831 = vpop.f32.mrf.mxu0
      %v3832 = vpop.f32.mrf.mxu0
      %v3833 = vadd.f32 %v903, %v3832
      %v3834 = vpop.f32.mrf.mxu0
      %3835 = vmatprep.mubr.bf16.mxu0 %v3122
      %3836 = vmatmul.mubr.bf16.gmra.mxu0 %v3121
      %v3837 = vpop.f32.mrf.mxu0
      %v3838 = vadd.f32 %v908, %v3837
      %v3839 = vpop.f32.mrf.mxu0
      %v3840 = vpop.f32.mrf.mxu0
      %v3841 = vadd.f32 %v913, %v3840
      %v3842 = vpop.f32.mrf.mxu0
      %3843 = vmatprep.mubr.bf16.mxu0 %v3124
      %3844 = vmatmul.mubr.bf16.gmra.mxu0 %v3123
      %v3845 = vpop.f32.mrf.mxu0
      %v3846 = vadd.f32 %v918, %v3845
      %v3847 = vpop.f32.mrf.mxu0
      %v3848 = vpop.f32.mrf.mxu0
      %v3849 = vadd.f32 %v923, %v3848
      %v3850 = vpop.f32.mrf.mxu0
      %3851 = vmatprep.mubr.bf16.mxu0 %v3126
      %3852 = vmatmul.mubr.bf16.gmra.mxu0 %v3125
      %v3853 = vpop.f32.mrf.mxu0
      %v3854 = vadd.f32 %v928, %v3853
      %v3855 = vpop.f32.mrf.mxu0
      %v3856 = vpop.f32.mrf.mxu0
      %v3857 = vadd.f32 %v933, %v3856
      %v3858 = vpop.f32.mrf.mxu0
      %3859 = vmatprep.mubr.bf16.mxu0 %v3128
      %3860 = vmatmul.mubr.bf16.gmra.mxu0 %v3127
      %v3861 = vpop.f32.mrf.mxu0
      %v3862 = vadd.f32 %v938, %v3861
      %v3863 = vpop.f32.mrf.mxu0
      %v3864 = vpop.f32.mrf.mxu0
      %v3865 = vadd.f32 %v943, %v3864
      %v3866 = vpop.f32.mrf.mxu0
      %3867 = vmatprep.mubr.bf16.mxu0 %v3130
      %3868 = vmatmul.mubr.bf16.gmra.mxu0 %v3129
      %v3869 = vpop.f32.mrf.mxu0
      %v3870 = vadd.f32 %v948, %v3869
      %v3871 = vpop.f32.mrf.mxu0
      %v3872 = vpop.f32.mrf.mxu0
      %v3873 = vadd.f32 %v953, %v3872
      %v3874 = vpop.f32.mrf.mxu0
      %3875 = vmatprep.mubr.bf16.mxu0 %v3132
      %3876 = vmatmul.mubr.bf16.gmra.mxu0 %v3131
      %v3877 = vpop.f32.mrf.mxu0
      %v3878 = vadd.f32 %v958, %v3877
      %v3879 = vpop.f32.mrf.mxu0
      %v3880 = vpop.f32.mrf.mxu0
      %v3881 = vadd.f32 %v963, %v3880
      %v3882 = vpop.f32.mrf.mxu0
      %3883 = vmatprep.mubr.bf16.mxu0 %v3134
      %3884 = vmatmul.mubr.bf16.gmra.mxu0 %v3133
      %v3885 = vpop.f32.mrf.mxu0
      %v3886 = vadd.f32 %v968, %v3885
      %v3887 = vpop.f32.mrf.mxu0
      %v3888 = vpop.f32.mrf.mxu0
      %v3889 = vadd.f32 %v973, %v3888
      %v3890 = vpop.f32.mrf.mxu0
      %3891 = vmatprep.mubr.bf16.mxu0 %v3136
      %3892 = vmatmul.mubr.bf16.gmra.mxu0 %v3135
      %v3893 = vpop.f32.mrf.mxu0
      %v3894 = vadd.f32 %v978, %v3893
      %v3895 = vpop.f32.mrf.mxu0
      %v3896 = vpop.f32.mrf.mxu0
      %v3897 = vadd.f32 %v983, %v3896
      %v3898 = vpop.f32.mrf.mxu0
      %3899 = vmatprep.mubr.bf16.mxu0 %v3138
      %3900 = vmatmul.mubr.bf16.gmra.mxu0 %v3137
      %v3901 = vpop.f32.mrf.mxu0
      %v3902 = vadd.f32 %v988, %v3901
      %v3903 = vpop.f32.mrf.mxu0
      %v3904 = vpop.f32.mrf.mxu0
      %v3905 = vadd.f32 %v993, %v3904
      %v3906 = vpop.f32.mrf.mxu0
      %3907 = vmatprep.mubr.bf16.mxu0 %v3140
      %3908 = vmatmul.mubr.bf16.gmra.mxu0 %v3139
      %v3909 = vpop.f32.mrf.mxu0
      %v3910 = vadd.f32 %v998, %v3909
      %v3911 = vpop.f32.mrf.mxu0
      %v3912 = vpop.f32.mrf.mxu0
      %v3913 = vadd.f32 %v1003, %v3912
      %v3914 = vpop.f32.mrf.mxu0
      %3915 = vmatprep.mubr.bf16.mxu0 %v3142
      %3916 = vmatmul.mubr.bf16.gmra.mxu0 %v3141
      %v3917 = vpop.f32.mrf.mxu0
      %v3918 = vadd.f32 %v1008, %v3917
      %v3919 = vpop.f32.mrf.mxu0
      %v3920 = vpop.f32.mrf.mxu0
      %v3921 = vadd.f32 %v1013, %v3920
      %v3922 = vpop.f32.mrf.mxu0
      %3923 = vmatprep.mubr.bf16.mxu0 %v3144
      %3924 = vmatmul.mubr.bf16.gmra.mxu0 %v3143
      %v3925 = vpop.f32.mrf.mxu0
      %v3926 = vadd.f32 %v1018, %v3925
      %v3927 = vpop.f32.mrf.mxu0
      %v3928 = vpop.f32.mrf.mxu0
      %v3929 = vadd.f32 %v1023, %v3928
      %v3930 = vpop.f32.mrf.mxu0
      %3931 = vmatprep.mubr.bf16.mxu0 %v3146
      %3932 = vmatmul.mubr.bf16.gmra.mxu0 %v3145
      %v3933 = vpop.f32.mrf.mxu0
      %v3934 = vadd.f32 %v1028, %v3933
      %v3935 = vpop.f32.mrf.mxu0
      %v3936 = vpop.f32.mrf.mxu0
      %v3937 = vadd.f32 %v1033, %v3936
      %v3938 = vpop.f32.mrf.mxu0
      %3939 = vmatprep.mubr.bf16.mxu0 %v3148
      %3940 = vmatmul.mubr.bf16.gmra.mxu0 %v3147
      %v3941 = vpop.f32.mrf.mxu0
      %v3942 = vadd.f32 %v1038, %v3941
      %v3943 = vpop.f32.mrf.mxu0
      %v3944 = vpop.f32.mrf.mxu0
      %v3945 = vadd.f32 %v1043, %v3944
      %v3946 = vpop.f32.mrf.mxu0
      %3947 = vmatprep.mubr.bf16.mxu0 %v3150
      %3948 = vmatmul.mubr.bf16.gmra.mxu0 %v3149
      %v3949 = vpop.f32.mrf.mxu0
      %v3950 = vadd.f32 %v1048, %v3949
      %v3951 = vpop.f32.mrf.mxu0
      %v3952 = vpop.f32.mrf.mxu0
      %v3953 = vadd.f32 %v1053, %v3952
      %v3954 = vpop.f32.mrf.mxu0
      %3955 = vmatprep.mubr.bf16.mxu0 %v3152
      %3956 = vmatmul.mubr.bf16.gmra.mxu0 %v3151
      %v3957 = vpop.f32.mrf.mxu0
      %v3958 = vadd.f32 %v1058, %v3957
      %v3959 = vpop.f32.mrf.mxu0
      %v3960 = vpop.f32.mrf.mxu0
      %v3961 = vadd.f32 %v1063, %v3960
      %v3962 = vpop.f32.mrf.mxu0
      %3963 = vmatprep.mubr.bf16.mxu0 %v3154
      %3964 = vmatmul.mubr.bf16.gmra.mxu0 %v3153
      %v3965 = vpop.f32.mrf.mxu0
      %v3966 = vadd.f32 %v1068, %v3965
      %v3967 = vpop.f32.mrf.mxu0
      %v3968 = vpop.f32.mrf.mxu0
      %v3969 = vadd.f32 %v1073, %v3968
      %v3970 = vpop.f32.mrf.mxu0
      %3971 = vmatprep.mubr.bf16.mxu0 %v3156
      %3972 = vmatmul.mubr.bf16.gmra.mxu0 %v3155
      %v3973 = vpop.f32.mrf.mxu0
      %v3974 = vadd.f32 %v1078, %v3973
      %v3975 = vpop.f32.mrf.mxu0
      %v3976 = vpop.f32.mrf.mxu0
      %v3977 = vadd.f32 %v1083, %v3976
      %v3978 = vpop.f32.mrf.mxu0
      %3979 = vmatprep.mubr.bf16.mxu0 %v3158
      %3980 = vmatmul.mubr.bf16.gmra.mxu0 %v3157
      %v3981 = vpop.f32.mrf.mxu0
      %v3982 = vadd.f32 %v1088, %v3981
      %v3983 = vpop.f32.mrf.mxu0
      %v3984 = vpop.f32.mrf.mxu0
      %v3985 = vadd.f32 %v1093, %v3984
      %v3986 = vpop.f32.mrf.mxu0
      %3987 = vmatprep.mubr.bf16.mxu0 %v3160
      %3988 = vmatmul.mubr.bf16.gmra.mxu0 %v3159
      %v3989 = vpop.f32.mrf.mxu0
      %v3990 = vadd.f32 %v1098, %v3989
      %v3991 = vpop.f32.mrf.mxu0
      %v3992 = vpop.f32.mrf.mxu0
      %v3993 = vadd.f32 %v1103, %v3992
      %v3994 = vpop.f32.mrf.mxu0
      %3995 = vmatprep.mubr.bf16.mxu0 %v3162
      %3996 = vmatmul.mubr.bf16.gmra.mxu0 %v3161
      %v3997 = vpop.f32.mrf.mxu0
      %v3998 = vadd.f32 %v1108, %v3997
      %v3999 = vpop.f32.mrf.mxu0
      %v4000 = vpop.f32.mrf.mxu0
      %v4001 = vadd.f32 %v1113, %v4000
      %v4002 = vpop.f32.mrf.mxu0
      %4003 = vmatprep.mubr.bf16.mxu0 %v3164
      %4004 = vmatmul.mubr.bf16.gmra.mxu0 %v3163
      %v4005 = vpop.f32.mrf.mxu0
      %v4006 = vadd.f32 %v1118, %v4005
      %v4007 = vpop.f32.mrf.mxu0
      %v4008 = vpop.f32.mrf.mxu0
      %v4009 = vadd.f32 %v1123, %v4008
      %v4010 = vpop.f32.mrf.mxu0
      %4011 = vmatprep.mubr.bf16.mxu0 %v3166
      %4012 = vmatmul.mubr.bf16.gmra.mxu0 %v3165
      %v4013 = vpop.f32.mrf.mxu0
      %v4014 = vadd.f32 %v1128, %v4013
      %v4015 = vpop.f32.mrf.mxu0
      %v4016 = vpop.f32.mrf.mxu0
      %v4017 = vadd.f32 %v1133, %v4016
      %v4018 = vpop.f32.mrf.mxu0
      %4019 = vmatprep.mubr.bf16.mxu0 %v3168
      %4020 = vmatmul.mubr.bf16.gmra.mxu0 %v3167
      %v4021 = vpop.f32.mrf.mxu0
      %v4022 = vadd.f32 %v1138, %v4021
      %v4023 = vpop.f32.mrf.mxu0
      %v4024 = vpop.f32.mrf.mxu0
      %v4025 = vadd.f32 %v1143, %v4024
      %v4026 = vpop.f32.mrf.mxu0
      %4027 = vmatprep.mubr.bf16.mxu0 %v3170
      %4028 = vmatmul.mubr.bf16.gmra.mxu0 %v3169
      %v4029 = vpop.f32.mrf.mxu0
      %v4030 = vadd.f32 %v1148, %v4029
      %v4031 = vpop.f32.mrf.mxu0
      %v4032 = vpop.f32.mrf.mxu0
      %v4033 = vadd.f32 %v1153, %v4032
      %v4034 = vpop.f32.mrf.mxu0
      %4035 = vmatprep.mubr.bf16.mxu0 %v3172
      %4036 = vmatmul.mubr.bf16.gmra.mxu0 %v3171
      %v4037 = vpop.f32.mrf.mxu0
      %v4038 = vadd.f32 %v1158, %v4037
      %v4039 = vpop.f32.mrf.mxu0
      %v4040 = vpop.f32.mrf.mxu0
      %v4041 = vadd.f32 %v1163, %v4040
      %v4042 = vpop.f32.mrf.mxu0
      %4043 = vmatprep.mubr.bf16.mxu0 %v3174
      %4044 = vmatmul.mubr.bf16.gmra.mxu0 %v3173
      %v4045 = vpop.f32.mrf.mxu0
      %v4046 = vadd.f32 %v1168, %v4045
      %v4047 = vpop.f32.mrf.mxu0
      %v4048 = vpop.f32.mrf.mxu0
      %v4049 = vadd.f32 %v1173, %v4048
      %v4050 = vpop.f32.mrf.mxu0
      %4051 = vmatprep.mubr.bf16.mxu0 %v3176
      %4052 = vmatmul.mubr.bf16.gmra.mxu0 %v3175
      %v4053 = vpop.f32.mrf.mxu0
      %v4054 = vadd.f32 %v1178, %v4053
      %v4055 = vpop.f32.mrf.mxu0
      %v4056 = vpop.f32.mrf.mxu0
      %v4057 = vadd.f32 %v1183, %v4056
      %v4058 = vpop.f32.mrf.mxu0
      %4059 = vmatprep.mubr.bf16.mxu0 %v3178
      %4060 = vmatmul.mubr.bf16.gmra.mxu0 %v3177
      %v4061 = vpop.f32.mrf.mxu0
      %v4062 = vadd.f32 %v1188, %v4061
      %v4063 = vpop.f32.mrf.mxu0
      %v4064 = vpop.f32.mrf.mxu0
      %v4065 = vadd.f32 %v1193, %v4064
      %v4066 = vpop.f32.mrf.mxu0
      %4067 = vmatprep.mubr.bf16.mxu0 %v3180
      %4068 = vmatmul.mubr.bf16.gmra.mxu0 %v3179
      %v4069 = vpop.f32.mrf.mxu0
      %v4070 = vadd.f32 %v1198, %v4069
      %v4071 = vpop.f32.mrf.mxu0
      %v4072 = vpop.f32.mrf.mxu0
      %v4073 = vadd.f32 %v1203, %v4072
      %v4074 = vpop.f32.mrf.mxu0
      %4075 = vmatprep.mubr.bf16.mxu0 %v3182
      %4076 = vmatmul.mubr.bf16.gmra.mxu0 %v3181
      %v4077 = vpop.f32.mrf.mxu0
      %v4078 = vadd.f32 %v1208, %v4077
      %v4079 = vpop.f32.mrf.mxu0
      %v4080 = vpop.f32.mrf.mxu0
      %v4081 = vadd.f32 %v1213, %v4080
      %v4082 = vpop.f32.mrf.mxu0
      %4083 = vmatprep.mubr.bf16.mxu0 %v3184
      %4084 = vmatmul.mubr.bf16.gmra.mxu0 %v3183
      %v4085 = vpop.f32.mrf.mxu0
      %v4086 = vadd.f32 %v1218, %v4085
      %v4087 = vpop.f32.mrf.mxu0
      %v4088 = vpop.f32.mrf.mxu0
      %v4089 = vadd.f32 %v1223, %v4088
      %v4090 = vpop.f32.mrf.mxu0
      %4091 = vmatprep.mubr.bf16.mxu0 %v3186
      %4092 = vmatmul.mubr.bf16.gmra.mxu0 %v3185
      %v4093 = vpop.f32.mrf.mxu0
      %v4094 = vadd.f32 %v1228, %v4093
      %v4095 = vpop.f32.mrf.mxu0
      %v4096 = vpop.f32.mrf.mxu0
      %v4097 = vadd.f32 %v1233, %v4096
      %v4098 = vpop.f32.mrf.mxu0
      %4099 = vmatprep.mubr.bf16.mxu0 %v3188
      %4100 = vmatmul.mubr.bf16.gmra.mxu0 %v3187
      %v4101 = vpop.f32.mrf.mxu0
      %v4102 = vadd.f32 %v1238, %v4101
      %v4103 = vpop.f32.mrf.mxu0
      %v4104 = vpop.f32.mrf.mxu0
      %v4105 = vadd.f32 %v1243, %v4104
      %v4106 = vpop.f32.mrf.mxu0
      %4107 = vmatprep.mubr.bf16.mxu0 %v3190
      %4108 = vmatmul.mubr.bf16.gmra.mxu0 %v3189
      %v4109 = vpop.f32.mrf.mxu0
      %v4110 = vadd.f32 %v1248, %v4109
      %v4111 = vpop.f32.mrf.mxu0
      %v4112 = vpop.f32.mrf.mxu0
      %v4113 = vadd.f32 %v1253, %v4112
      %v4114 = vpop.f32.mrf.mxu0
      %4115 = vmatprep.mubr.bf16.mxu0 %v3192
      %4116 = vmatmul.mubr.bf16.gmra.mxu0 %v3191
      %v4117 = vpop.f32.mrf.mxu0
      %v4118 = vadd.f32 %v1258, %v4117
      %v4119 = vpop.f32.mrf.mxu0
      %v4120 = vpop.f32.mrf.mxu0
      %v4121 = vadd.f32 %v1263, %v4120
      %v4122 = vpop.f32.mrf.mxu0
      %4123 = vmatprep.mubr.bf16.mxu0 %v3194
      %4124 = vmatmul.mubr.bf16.gmra.mxu0 %v3193
      %v4125 = vpop.f32.mrf.mxu0
      %v4126 = vadd.f32 %v1268, %v4125
      %v4127 = vpop.f32.mrf.mxu0
      %v4128 = vpop.f32.mrf.mxu0
      %v4129 = vadd.f32 %v1273, %v4128
      %v4130 = vpop.f32.mrf.mxu0
      %4131 = vmatprep.mubr.bf16.mxu0 %v3196
      %4132 = vmatmul.mubr.bf16.gmra.mxu0 %v3195
      %v4133 = vpop.f32.mrf.mxu0
      %v4134 = vadd.f32 %v1278, %v4133
      %v4135 = vpop.f32.mrf.mxu0
      %v4136 = vpop.f32.mrf.mxu0
      %v4137 = vadd.f32 %v1283, %v4136
      %v4138 = vpop.f32.mrf.mxu0
      %4139 = vmatprep.mubr.bf16.mxu0 %v3198
      %4140 = vmatmul.mubr.bf16.gmra.mxu0 %v3197
      %v4141 = vpop.f32.mrf.mxu0
      %v4142 = vadd.f32 %v1288, %v4141
      %v4143 = vpop.f32.mrf.mxu0
      %v4144 = vpop.f32.mrf.mxu0
      %v4145 = vadd.f32 %v1293, %v4144
      %v4146 = vpop.f32.mrf.mxu0
      %4147 = vmatprep.mubr.bf16.mxu0 %v3200
      %4148 = vmatmul.mubr.bf16.gmra.mxu0 %v3199
      %v4149 = vpop.f32.mrf.mxu0
      %v4150 = vadd.f32 %v1298, %v4149
      %v4151 = vpop.f32.mrf.mxu0
      %v4152 = vpop.f32.mrf.mxu0
      %v4153 = vadd.f32 %v1303, %v4152
      %v4154 = vpop.f32.mrf.mxu0
      %4155 = vmatprep.mubr.bf16.mxu0 %v3202
      %4156 = vmatmul.mubr.bf16.gmra.mxu0 %v3201
      %v4157 = vpop.f32.mrf.mxu0
      %v4158 = vadd.f32 %v1308, %v4157
      %v4159 = vpop.f32.mrf.mxu0
      %v4160 = vpop.f32.mrf.mxu0
      %v4161 = vadd.f32 %v1313, %v4160
      %v4162 = vpop.f32.mrf.mxu0
      %4163 = vmatprep.mubr.bf16.mxu0 %v3204
      %4164 = vmatmul.mubr.bf16.gmra.mxu0 %v3203
      %v4165 = vpop.f32.mrf.mxu0
      %v4166 = vadd.f32 %v1318, %v4165
      %v4167 = vpop.f32.mrf.mxu0
      %v4168 = vpop.f32.mrf.mxu0
      %v4169 = vadd.f32 %v1323, %v4168
      %v4170 = vpop.f32.mrf.mxu0
      %4171 = vmatprep.mubr.bf16.mxu0 %v3206
      %4172 = vmatmul.mubr.bf16.gmra.mxu0 %v3205
      %v4173 = vpop.f32.mrf.mxu0
      %v4174 = vadd.f32 %v1328, %v4173
      %v4175 = vpop.f32.mrf.mxu0
      %v4176 = vpop.f32.mrf.mxu0
      %v4177 = vadd.f32 %v1333, %v4176
      %v4178 = vpop.f32.mrf.mxu0
      %4179 = vmatprep.mubr.bf16.mxu0 %v3208
      %4180 = vmatmul.mubr.bf16.gmra.mxu0 %v3207
      %v4181 = vpop.f32.mrf.mxu0
      %v4182 = vadd.f32 %v1338, %v4181
      %v4183 = vpop.f32.mrf.mxu0
      %v4184 = vpop.f32.mrf.mxu0
      %v4185 = vadd.f32 %v1343, %v4184
      %v4186 = vpop.f32.mrf.mxu0
      %4187 = vmatprep.mubr.bf16.mxu0 %v3210
      %4188 = vmatmul.mubr.bf16.gmra.mxu0 %v3209
      %v4189 = vpop.f32.mrf.mxu0
      %v4190 = vadd.f32 %v1348, %v4189
      %v4191 = vpop.f32.mrf.mxu0
      %v4192 = vpop.f32.mrf.mxu0
      %v4193 = vadd.f32 %v1353, %v4192
      %v4194 = vpop.f32.mrf.mxu0
      %4195 = vmatprep.mubr.bf16.mxu0 %v3212
      %4196 = vmatmul.mubr.bf16.gmra.mxu0 %v3211
      %v4197 = vpop.f32.mrf.mxu0
      %v4198 = vadd.f32 %v1358, %v4197
      %v4199 = vpop.f32.mrf.mxu0
      %v4200 = vpop.f32.mrf.mxu0
      %v4201 = vadd.f32 %v1363, %v4200
      %v4202 = vpop.f32.mrf.mxu0
      %4203 = vmatprep.mubr.bf16.mxu0 %v3214
      %4204 = vmatmul.mubr.bf16.gmra.mxu0 %v3213
      %v4205 = vpop.f32.mrf.mxu0
      %v4206 = vadd.f32 %v1368, %v4205
      %v4207 = vpop.f32.mrf.mxu0
      %v4208 = vpop.f32.mrf.mxu0
      %v4209 = vadd.f32 %v1373, %v4208
      %v4210 = vpop.f32.mrf.mxu0
      %4211 = vmatprep.mubr.bf16.mxu0 %v3216
      %4212 = vmatmul.mubr.bf16.gmra.mxu0 %v3215
      %v4213 = vpop.f32.mrf.mxu0
      %v4214 = vadd.f32 %v1378, %v4213
      %v4215 = vpop.f32.mrf.mxu0
      %v4216 = vpop.f32.mrf.mxu0
      %v4217 = vadd.f32 %v1383, %v4216
      %v4218 = vpop.f32.mrf.mxu0
      %4219 = vmatprep.mubr.bf16.mxu0 %v3218
      %4220 = vmatmul.mubr.bf16.gmra.mxu0 %v3217
      %v4221 = vpop.f32.mrf.mxu0
      %v4222 = vadd.f32 %v1388, %v4221
      %v4223 = vpop.f32.mrf.mxu0
      %v4224 = vpop.f32.mrf.mxu0
      %v4225 = vadd.f32 %v1393, %v4224
      %v4226 = vpop.f32.mrf.mxu0
      %4227 = vmatprep.mubr.bf16.mxu0 %v3220
      %4228 = vmatmul.mubr.bf16.gmra.mxu0 %v3219
      %v4229 = vpop.f32.mrf.mxu0
      %v4230 = vadd.f32 %v1398, %v4229
      %v4231 = vpop.f32.mrf.mxu0
      %v4232 = vpop.f32.mrf.mxu0
      %v4233 = vadd.f32 %v1403, %v4232
      %v4234 = vpop.f32.mrf.mxu0
      %4235 = vmatprep.mubr.bf16.mxu0 %v3222
      %4236 = vmatmul.mubr.bf16.gmra.mxu0 %v3221
      %v4237 = vpop.f32.mrf.mxu0
      %v4238 = vadd.f32 %v1408, %v4237
      %v4239 = vpop.f32.mrf.mxu0
      %v4240 = vpop.f32.mrf.mxu0
      %v4241 = vadd.f32 %v1413, %v4240
      %v4242 = vpop.f32.mrf.mxu0
      %4243 = vmatprep.mubr.bf16.mxu0 %v3224
      %4244 = vmatmul.mubr.bf16.gmra.mxu0 %v3223
      %v4245 = vpop.f32.mrf.mxu0
      %v4246 = vadd.f32 %v1418, %v4245
      %v4247 = vpop.f32.mrf.mxu0
      %v4248 = vpop.f32.mrf.mxu0
      %v4249 = vadd.f32 %v1423, %v4248
      %v4250 = vpop.f32.mrf.mxu0
      %4251 = vmatprep.mubr.bf16.mxu0 %v3226
      %4252 = vmatmul.mubr.bf16.gmra.mxu0 %v3225
      %v4253 = vpop.f32.mrf.mxu0
      %v4254 = vadd.f32 %v1428, %v4253
      %v4255 = vpop.f32.mrf.mxu0
      %v4256 = vpop.f32.mrf.mxu0
      %v4257 = vadd.f32 %v1433, %v4256
      %v4258 = vpop.f32.mrf.mxu0
      %4259 = vmatprep.mubr.bf16.mxu0 %v3228
      %4260 = vmatmul.mubr.bf16.gmra.mxu0 %v3227
      %v4261 = vpop.f32.mrf.mxu0
      %v4262 = vadd.f32 %v1438, %v4261
      %v4263 = vpop.f32.mrf.mxu0
      %v4264 = vpop.f32.mrf.mxu0
      %v4265 = vadd.f32 %v1443, %v4264
      %v4266 = vpop.f32.mrf.mxu0
      %4267 = vmatprep.mubr.bf16.mxu0 %v3230
      %4268 = vmatmul.mubr.bf16.gmra.mxu0 %v3229
      %v4269 = vpop.f32.mrf.mxu0
      %v4270 = vadd.f32 %v1448, %v4269
      %v4271 = vpop.f32.mrf.mxu0
      %v4272 = vpop.f32.mrf.mxu0
      %v4273 = vadd.f32 %v1453, %v4272
      %v4274 = vpop.f32.mrf.mxu0
      %4275 = vmatprep.mubr.bf16.mxu0 %v3232
      %4276 = vmatmul.mubr.bf16.gmra.mxu0 %v3231
      %v4277 = vpop.f32.mrf.mxu0
      %v4278 = vadd.f32 %v1458, %v4277
      %v4279 = vpop.f32.mrf.mxu0
      %v4280 = vpop.f32.mrf.mxu0
      %v4281 = vadd.f32 %v1463, %v4280
      %v4282 = vpop.f32.mrf.mxu0
      %4283 = vmatprep.mubr.bf16.mxu0 %v3234
      %4284 = vmatmul.mubr.bf16.gmra.mxu0 %v3233
      %v4285 = vpop.f32.mrf.mxu0
      %v4286 = vadd.f32 %v1468, %v4285
      %v4287 = vpop.f32.mrf.mxu0
      %v4288 = vpop.f32.mrf.mxu0
      %v4289 = vadd.f32 %v1473, %v4288
      %v4290 = vpop.f32.mrf.mxu0
      %4291 = vmatprep.mubr.bf16.mxu0 %v3236
      %4292 = vmatmul.mubr.bf16.gmra.mxu0 %v3235
      %v4293 = vpop.f32.mrf.mxu0
      %v4294 = vadd.f32 %v1478, %v4293
      %v4295 = vpop.f32.mrf.mxu0
      %v4296 = vpop.f32.mrf.mxu0
      %v4297 = vadd.f32 %v1483, %v4296
      %v4298 = vpop.f32.mrf.mxu0
      %4299 = vmatprep.mubr.bf16.mxu0 %v3238
      %4300 = vmatmul.mubr.bf16.gmra.mxu0 %v3237
      %v4301 = vpop.f32.mrf.mxu0
      %v4302 = vadd.f32 %v1488, %v4301
      %v4303 = vpop.f32.mrf.mxu0
      %v4304 = vpop.f32.mrf.mxu0
      %v4305 = vadd.f32 %v1493, %v4304
      %v4306 = vpop.f32.mrf.mxu0
      %4307 = vmatprep.mubr.bf16.mxu0 %v3240
      %4308 = vmatmul.mubr.bf16.gmra.mxu0 %v3239
      %v4309 = vpop.f32.mrf.mxu0
      %v4310 = vadd.f32 %v1498, %v4309
      %v4311 = vpop.f32.mrf.mxu0
      %v4312 = vpop.f32.mrf.mxu0
      %v4313 = vadd.f32 %v1503, %v4312
      %v4314 = vpop.f32.mrf.mxu0
      %4315 = vmatprep.mubr.bf16.mxu0 %v3242
      %4316 = vmatmul.mubr.bf16.gmra.mxu0 %v3241
      %v4317 = vpop.f32.mrf.mxu0
      %v4318 = vadd.f32 %v1508, %v4317
      %v4319 = vpop.f32.mrf.mxu0
      %v4320 = vpop.f32.mrf.mxu0
      %v4321 = vadd.f32 %v1513, %v4320
      %v4322 = vpop.f32.mrf.mxu0
      %4323 = vmatprep.mubr.bf16.mxu0 %v3244
      %4324 = vmatmul.mubr.bf16.gmra.mxu0 %v3243
      %v4325 = vpop.f32.mrf.mxu0
      %v4326 = vadd.f32 %v1518, %v4325
      %v4327 = vpop.f32.mrf.mxu0
      %v4328 = vpop.f32.mrf.mxu0
      %v4329 = vadd.f32 %v1523, %v4328
      %v4330 = vpop.f32.mrf.mxu0
      %4331 = vmatprep.mubr.bf16.mxu0 %v3246
      %4332 = vmatmul.mubr.bf16.gmra.mxu0 %v3245
      %v4333 = vpop.f32.mrf.mxu0
      %v4334 = vadd.f32 %v1528, %v4333
      %v4335 = vpop.f32.mrf.mxu0
      %v4336 = vpop.f32.mrf.mxu0
      %v4337 = vadd.f32 %v1533, %v4336
      %v4338 = vpop.f32.mrf.mxu0
      %4339 = vmatprep.mubr.bf16.mxu0 %v3248
      %4340 = vmatmul.mubr.bf16.gmra.mxu0 %v3247
      %v4341 = vpop.f32.mrf.mxu0
      %v4342 = vadd.f32 %v1538, %v4341
      %v4343 = vpop.f32.mrf.mxu0
      %v4344 = vpop.f32.mrf.mxu0
      %v4345 = vadd.f32 %v1543, %v4344
      %v4346 = vpop.f32.mrf.mxu0
      %4347 = vmatprep.mubr.bf16.mxu0 %v3250
      %4348 = vmatmul.mubr.bf16.gmra.mxu0 %v3249
      %v4349 = vpop.f32.mrf.mxu0
      %v4350 = vadd.f32 %v1548, %v4349
      %v4351 = vpop.f32.mrf.mxu0
      %v4352 = vpop.f32.mrf.mxu0
      %v4353 = vadd.f32 %v1553, %v4352
      %v4354 = vpop.f32.mrf.mxu0
      %4355 = vmatprep.mubr.bf16.mxu0 %v3252
      %4356 = vmatmul.mubr.bf16.gmra.mxu0 %v3251
      %v4357 = vpop.f32.mrf.mxu0
      %v4358 = vadd.f32 %v1558, %v4357
      %v4359 = vpop.f32.mrf.mxu0
      %v4360 = vpop.f32.mrf.mxu0
      %v4361 = vadd.f32 %v1563, %v4360
      %v4362 = vpop.f32.mrf.mxu0
      %4363 = vmatprep.mubr.bf16.mxu0 %v3254
      %4364 = vmatmul.mubr.bf16.gmra.mxu0 %v3253
      %v4365 = vpop.f32.mrf.mxu0
      %v4366 = vadd.f32 %v1568, %v4365
      %v4367 = vpop.f32.mrf.mxu0
      %v4368 = vpop.f32.mrf.mxu0
      %v4369 = vadd.f32 %v1573, %v4368
      %v4370 = vpop.f32.mrf.mxu0
      %4371 = vmatprep.mubr.bf16.mxu0 %v3256
      %4372 = vmatmul.mubr.bf16.gmra.mxu0 %v3255
      %v4373 = vpop.f32.mrf.mxu0
      %v4374 = vadd.f32 %v1578, %v4373
      %v4375 = vpop.f32.mrf.mxu0
      %v4376 = vpop.f32.mrf.mxu0
      %v4377 = vadd.f32 %v1583, %v4376
      %v4378 = vpop.f32.mrf.mxu0
      %4379 = vmatprep.mubr.bf16.mxu0 %v3258
      %4380 = vmatmul.mubr.bf16.gmra.mxu0 %v3257
      %v4381 = vpop.f32.mrf.mxu0
      %v4382 = vadd.f32 %v1588, %v4381
      %v4383 = vpop.f32.mrf.mxu0
      %v4384 = vpop.f32.mrf.mxu0
      %v4385 = vadd.f32 %v1593, %v4384
      %v4386 = vpop.f32.mrf.mxu0
      %4387 = vmatprep.mubr.bf16.mxu0 %v3260
      %4388 = vmatmul.mubr.bf16.gmra.mxu0 %v3259
      %v4389 = vpop.f32.mrf.mxu0
      %v4390 = vadd.f32 %v1598, %v4389
      %v4391 = vpop.f32.mrf.mxu0
      %v4392 = vpop.f32.mrf.mxu0
      %v4393 = vadd.f32 %v1603, %v4392
      %v4394 = vpop.f32.mrf.mxu0
      %4395 = vmatprep.mubr.bf16.mxu0 %v3262
      %4396 = vmatmul.mubr.bf16.gmra.mxu0 %v3261
      %v4397 = vpop.f32.mrf.mxu0
      %v4398 = vadd.f32 %v1608, %v4397
      %v4399 = vpop.f32.mrf.mxu0
      %v4400 = vpop.f32.mrf.mxu0
      %v4401 = vadd.f32 %v1613, %v4400
      %v4402 = vpop.f32.mrf.mxu0
      %4403 = vmatprep.mubr.bf16.mxu0 %v3264
      %4404 = vmatmul.mubr.bf16.gmra.mxu0 %v3263
      %v4405 = vpop.f32.mrf.mxu0
      %v4406 = vadd.f32 %v1618, %v4405
      %v4407 = vpop.f32.mrf.mxu0
      %v4408 = vpop.f32.mrf.mxu0
      %v4409 = vadd.f32 %v1623, %v4408
      %v4410 = vpop.f32.mrf.mxu0
      %4411 = vmatprep.mubr.bf16.mxu0 %v3266
      %4412 = vmatmul.mubr.bf16.gmra.mxu0 %v3265
      %v4413 = vpop.f32.mrf.mxu0
      %v4414 = vadd.f32 %v1628, %v4413
      %v4415 = vpop.f32.mrf.mxu0
      %v4416 = vpop.f32.mrf.mxu0
      %v4417 = vadd.f32 %v1633, %v4416
      %v4418 = vpop.f32.mrf.mxu0
      %4419 = vmatprep.mubr.bf16.mxu0 %v3268
      %4420 = vmatmul.mubr.bf16.gmra.mxu0 %v3267
      %v4421 = vpop.f32.mrf.mxu0
      %v4422 = vadd.f32 %v1638, %v4421
      %v4423 = vpop.f32.mrf.mxu0
      %v4424 = vpop.f32.mrf.mxu0
      %v4425 = vadd.f32 %v1643, %v4424
      %v4426 = vpop.f32.mrf.mxu0
      %4427 = vmatprep.mubr.bf16.mxu0 %v3270
      %4428 = vmatmul.mubr.bf16.gmra.mxu0 %v3269
      %v4429 = vpop.f32.mrf.mxu0
      %v4430 = vadd.f32 %v1648, %v4429
      %v4431 = vpop.f32.mrf.mxu0
      %v4432 = vpop.f32.mrf.mxu0
      %v4433 = vadd.f32 %v1653, %v4432
      %v4434 = vpop.f32.mrf.mxu0
      %4435 = vmatprep.mubr.bf16.mxu0 %v3272
      %4436 = vmatmul.mubr.bf16.gmra.mxu0 %v3271
      %v4437 = vpop.f32.mrf.mxu0
      %v4438 = vadd.f32 %v1658, %v4437
      %v4439 = vpop.f32.mrf.mxu0
      %v4440 = vpop.f32.mrf.mxu0
      %v4441 = vadd.f32 %v1663, %v4440
      %v4442 = vpop.f32.mrf.mxu0
      %4443 = vmatprep.mubr.bf16.mxu0 %v3274
      %4444 = vmatmul.mubr.bf16.gmra.mxu0 %v3273
      %v4445 = vpop.f32.mrf.mxu0
      %v4446 = vadd.f32 %v1668, %v4445
      %v4447 = vpop.f32.mrf.mxu0
      %v4448 = vpop.f32.mrf.mxu0
      %v4449 = vadd.f32 %v1673, %v4448
      %v4450 = vpop.f32.mrf.mxu0
      %4451 = vmatprep.mubr.bf16.mxu0 %v3276
      %4452 = vmatmul.mubr.bf16.gmra.mxu0 %v3275
      %v4453 = vpop.f32.mrf.mxu0
      %v4454 = vadd.f32 %v1678, %v4453
      %v4455 = vpop.f32.mrf.mxu0
      %v4456 = vpop.f32.mrf.mxu0
      %v4457 = vadd.f32 %v1683, %v4456
      %v4458 = vpop.f32.mrf.mxu0
      %4459 = vmatprep.mubr.bf16.mxu0 %v3278
      %4460 = vmatmul.mubr.bf16.gmra.mxu0 %v3277
      %v4461 = vpop.f32.mrf.mxu0
      %v4462 = vadd.f32 %v1688, %v4461
      %v4463 = vpop.f32.mrf.mxu0
      %v4464 = vpop.f32.mrf.mxu0
      %v4465 = vadd.f32 %v1693, %v4464
      %v4466 = vpop.f32.mrf.mxu0
      %4467 = vmatprep.mubr.bf16.mxu0 %v3280
      %4468 = vmatmul.mubr.bf16.gmra.mxu0 %v3279
      %v4469 = vpop.f32.mrf.mxu0
      %v4470 = vadd.f32 %v1698, %v4469
      %v4471 = vpop.f32.mrf.mxu0
      %v4472 = vpop.f32.mrf.mxu0
      %v4473 = vadd.f32 %v1703, %v4472
      %v4474 = vpop.f32.mrf.mxu0
      %4475 = vmatprep.mubr.bf16.mxu0 %v3282
      %4476 = vmatmul.mubr.bf16.gmra.mxu0 %v3281
      %v4477 = vpop.f32.mrf.mxu0
      %v4478 = vadd.f32 %v1708, %v4477
      %v4479 = vpop.f32.mrf.mxu0
      %v4480 = vpop.f32.mrf.mxu0
      %v4481 = vadd.f32 %v1713, %v4480
      %v4482 = vpop.f32.mrf.mxu0
      %4483 = vmatprep.mubr.bf16.mxu0 %v3284
      %4484 = vmatmul.mubr.bf16.gmra.mxu0 %v3283
      %v4485 = vpop.f32.mrf.mxu0
      %v4486 = vadd.f32 %v1718, %v4485
      %v4487 = vpop.f32.mrf.mxu0
      %v4488 = vpop.f32.mrf.mxu0
      %v4489 = vadd.f32 %v1723, %v4488
      %v4490 = vpop.f32.mrf.mxu0
      %4491 = vmatprep.mubr.bf16.mxu0 %v3286
      %4492 = vmatmul.mubr.bf16.gmra.mxu0 %v3285
      %v4493 = vpop.f32.mrf.mxu0
      %v4494 = vadd.f32 %v1728, %v4493
      %v4495 = vpop.f32.mrf.mxu0
      %v4496 = vpop.f32.mrf.mxu0
      %v4497 = vadd.f32 %v1733, %v4496
      %v4498 = vpop.f32.mrf.mxu0
      %4499 = vmatprep.mubr.bf16.mxu0 %v3288
      %4500 = vmatmul.mubr.bf16.gmra.mxu0 %v3287
      %v4501 = vpop.f32.mrf.mxu0
      %v4502 = vadd.f32 %v1738, %v4501
      %v4503 = vpop.f32.mrf.mxu0
      %v4504 = vpop.f32.mrf.mxu0
      %v4505 = vadd.f32 %v1743, %v4504
      %v4506 = vpop.f32.mrf.mxu0
      %4507 = vmatprep.mubr.bf16.mxu0 %v3290
      %4508 = vmatmul.mubr.bf16.gmra.mxu0 %v3289
      %v4509 = vpop.f32.mrf.mxu0
      %v4510 = vadd.f32 %v1748, %v4509
      %v4511 = vpop.f32.mrf.mxu0
      %v4512 = vpop.f32.mrf.mxu0
      %v4513 = vadd.f32 %v1753, %v4512
      %v4514 = vpop.f32.mrf.mxu0
      %4515 = vmatprep.mubr.bf16.mxu0 %v3292
      %4516 = vmatmul.mubr.bf16.gmra.mxu0 %v3291
      %v4517 = vpop.f32.mrf.mxu0
      %v4518 = vadd.f32 %v1758, %v4517
      %v4519 = vpop.f32.mrf.mxu0
      %v4520 = vpop.f32.mrf.mxu0
      %v4521 = vadd.f32 %v1763, %v4520
      %v4522 = vpop.f32.mrf.mxu0
      %4523 = vmatprep.mubr.bf16.mxu0 %v3294
      %4524 = vmatmul.mubr.bf16.gmra.mxu0 %v3293
      %v4525 = vpop.f32.mrf.mxu0
      %v4526 = vadd.f32 %v1768, %v4525
      %v4527 = vpop.f32.mrf.mxu0
      %v4528 = vpop.f32.mrf.mxu0
      %v4529 = vadd.f32 %v1773, %v4528
      %v4530 = vpop.f32.mrf.mxu0
      %4531 = vmatprep.mubr.bf16.mxu0 %v3296
      %4532 = vmatmul.mubr.bf16.gmra.mxu0 %v3295
      %v4533 = vpop.f32.mrf.mxu0
      %v4534 = vadd.f32 %v1778, %v4533
      %v4535 = vpop.f32.mrf.mxu0
      %v4536 = vpop.f32.mrf.mxu0
      %v4537 = vadd.f32 %v1783, %v4536
      %v4538 = vpop.f32.mrf.mxu0
      %4539 = vmatprep.mubr.bf16.mxu0 %v3298
      %4540 = vmatmul.mubr.bf16.gmra.mxu0 %v3297
      %v4541 = vpop.f32.mrf.mxu0
      %v4542 = vadd.f32 %v1788, %v4541
      %v4543 = vpop.f32.mrf.mxu0
      %v4544 = vpop.f32.mrf.mxu0
      %v4545 = vadd.f32 %v1793, %v4544
      %v4546 = vpop.f32.mrf.mxu0
      %4547 = vmatprep.mubr.bf16.mxu0 %v3300
      %4548 = vmatmul.mubr.bf16.gmra.mxu0 %v3299
      %v4549 = vpop.f32.mrf.mxu0
      %v4550 = vadd.f32 %v1798, %v4549
      %v4551 = vpop.f32.mrf.mxu0
      %v4552 = vpop.f32.mrf.mxu0
      %v4553 = vadd.f32 %v1803, %v4552
      %v4554 = vpop.f32.mrf.mxu0
      %4555 = vmatprep.mubr.bf16.mxu0 %v3302
      %4556 = vmatmul.mubr.bf16.gmra.mxu0 %v3301
      %v4557 = vpop.f32.mrf.mxu0
      %v4558 = vadd.f32 %v1808, %v4557
      %v4559 = vpop.f32.mrf.mxu0
      %v4560 = vpop.f32.mrf.mxu0
      %v4561 = vadd.f32 %v1813, %v4560
      %v4562 = vpop.f32.mrf.mxu0
      %4563 = vmatprep.mubr.bf16.mxu0 %v3304
      %4564 = vmatmul.mubr.bf16.gmra.mxu0 %v3303
      %v4565 = vpop.f32.mrf.mxu0
      %v4566 = vadd.f32 %v1818, %v4565
      %v4567 = vpop.f32.mrf.mxu0
      %v4568 = vpop.f32.mrf.mxu0
      %v4569 = vadd.f32 %v1823, %v4568
      %v4570 = vpop.f32.mrf.mxu0
      %4571 = vmatprep.mubr.bf16.mxu0 %v3306
      %4572 = vmatmul.mubr.bf16.gmra.mxu0 %v3305
      %v4573 = vpop.f32.mrf.mxu0
      %v4574 = vadd.f32 %v1828, %v4573
      %v4575 = vpop.f32.mrf.mxu0
      %v4576 = vpop.f32.mrf.mxu0
      %v4577 = vadd.f32 %v1833, %v4576
      %v4578 = vpop.f32.mrf.mxu0
      %4579 = vmatprep.mubr.bf16.mxu0 %v3308
      %4580 = vmatmul.mubr.bf16.gmra.mxu0 %v3307
      %v4581 = vpop.f32.mrf.mxu0
      %v4582 = vadd.f32 %v1838, %v4581
      %v4583 = vpop.f32.mrf.mxu0
      %v4584 = vpop.f32.mrf.mxu0
      %v4585 = vadd.f32 %v1843, %v4584
      %v4586 = vpop.f32.mrf.mxu0
      %4587 = vmatprep.mubr.bf16.mxu0 %v3310
      %4588 = vmatmul.mubr.bf16.gmra.mxu0 %v3309
      %v4589 = vpop.f32.mrf.mxu0
      %v4590 = vadd.f32 %v1848, %v4589
      %v4591 = vpop.f32.mrf.mxu0
      %v4592 = vpop.f32.mrf.mxu0
      %v4593 = vadd.f32 %v1853, %v4592
      %v4594 = vpop.f32.mrf.mxu0
      %4595 = vmatprep.mubr.bf16.mxu0 %v3312
      %4596 = vmatmul.mubr.bf16.gmra.mxu0 %v3311
      %v4597 = vpop.f32.mrf.mxu0
      %v4598 = vadd.f32 %v1858, %v4597
      %v4599 = vpop.f32.mrf.mxu0
      %v4600 = vpop.f32.mrf.mxu0
      %v4601 = vadd.f32 %v1863, %v4600
      %v4602 = vpop.f32.mrf.mxu0
      %4603 = vmatprep.mubr.bf16.mxu0 %v3314
      %4604 = vmatmul.mubr.bf16.gmra.mxu0 %v3313
      %v4605 = vpop.f32.mrf.mxu0
      %v4606 = vadd.f32 %v1868, %v4605
      %v4607 = vpop.f32.mrf.mxu0
      %v4608 = vpop.f32.mrf.mxu0
      %v4609 = vadd.f32 %v1873, %v4608
      %v4610 = vpop.f32.mrf.mxu0
      %4611 = vmatprep.mubr.bf16.mxu0 %v3316
      %4612 = vmatmul.mubr.bf16.gmra.mxu0 %v3315
      %v4613 = vpop.f32.mrf.mxu0
      %v4614 = vadd.f32 %v1878, %v4613
      %v4615 = vpop.f32.mrf.mxu0
      %v4616 = vpop.f32.mrf.mxu0
      %v4617 = vadd.f32 %v1883, %v4616
      %v4618 = vpop.f32.mrf.mxu0
      %4619 = vmatprep.mubr.bf16.mxu0 %v3318
      %4620 = vmatmul.mubr.bf16.gmra.mxu0 %v3317
      %v4621 = vpop.f32.mrf.mxu0
      %v4622 = vadd.f32 %v1888, %v4621
      %v4623 = vpop.f32.mrf.mxu0
      %v4624 = vpop.f32.mrf.mxu0
      %v4625 = vadd.f32 %v1893, %v4624
      %v4626 = vpop.f32.mrf.mxu0
      %4627 = vmatprep.mubr.bf16.mxu0 %v3320
      %4628 = vmatmul.mubr.bf16.gmra.mxu0 %v3319
      %v4629 = vpop.f32.mrf.mxu0
      %v4630 = vadd.f32 %v1898, %v4629
      %v4631 = vpop.f32.mrf.mxu0
      %v4632 = vpop.f32.mrf.mxu0
      %v4633 = vadd.f32 %v1903, %v4632
      %v4634 = vpop.f32.mrf.mxu0
      %4635 = vmatprep.mubr.bf16.mxu0 %v3322
      %4636 = vmatmul.mubr.bf16.gmra.mxu0 %v3321
      %v4637 = vpop.f32.mrf.mxu0
      %v4638 = vadd.f32 %v1908, %v4637
      %v4639 = vpop.f32.mrf.mxu0
      %v4640 = vpop.f32.mrf.mxu0
      %v4641 = vadd.f32 %v1913, %v4640
      %v4642 = vpop.f32.mrf.mxu0
      %4643 = vmatprep.mubr.bf16.mxu0 %v3324
      %4644 = vmatmul.mubr.bf16.gmra.mxu0 %v3323
      %v4645 = vpop.f32.mrf.mxu0
      %v4646 = vadd.f32 %v1918, %v4645
      %v4647 = vpop.f32.mrf.mxu0
      %v4648 = vpop.f32.mrf.mxu0
      %v4649 = vadd.f32 %v1923, %v4648
      %v4650 = vpop.f32.mrf.mxu0
      %4651 = vmatprep.mubr.bf16.mxu0 %v3326
      %4652 = vmatmul.mubr.bf16.gmra.mxu0 %v3325
      %v4653 = vpop.f32.mrf.mxu0
      %v4654 = vadd.f32 %v1928, %v4653
      %v4655 = vpop.f32.mrf.mxu0
      %v4656 = vpop.f32.mrf.mxu0
      %v4657 = vadd.f32 %v1933, %v4656
      %v4658 = vpop.f32.mrf.mxu0
      %4659 = vmatprep.mubr.bf16.mxu0 %v3328
      %4660 = vmatmul.mubr.bf16.gmra.mxu0 %v3327
      %v4661 = vpop.f32.mrf.mxu0
      %v4662 = vadd.f32 %v1938, %v4661
      %v4663 = vpop.f32.mrf.mxu0
      %v4664 = vpop.f32.mrf.mxu0
      %v4665 = vadd.f32 %v1943, %v4664
      %v4666 = vpop.f32.mrf.mxu0
      %4667 = vmatprep.mubr.bf16.mxu0 %v3330
      %4668 = vmatmul.mubr.bf16.gmra.mxu0 %v3329
      %v4669 = vpop.f32.mrf.mxu0
      %v4670 = vadd.f32 %v1948, %v4669
      %v4671 = vpop.f32.mrf.mxu0
      %v4672 = vpop.f32.mrf.mxu0
      %v4673 = vadd.f32 %v1953, %v4672
      %v4674 = vpop.f32.mrf.mxu0
      %4675 = vmatprep.mubr.bf16.mxu0 %v3332
      %4676 = vmatmul.mubr.bf16.gmra.mxu0 %v3331
      %v4677 = vpop.f32.mrf.mxu0
      %v4678 = vadd.f32 %v1958, %v4677
      %v4679 = vpop.f32.mrf.mxu0
      %v4680 = vpop.f32.mrf.mxu0
      %v4681 = vadd.f32 %v1963, %v4680
      %v4682 = vpop.f32.mrf.mxu0
      %4683 = vmatprep.mubr.bf16.mxu0 %v3334
      %4684 = vmatmul.mubr.bf16.gmra.mxu0 %v3333
      %v4685 = vpop.f32.mrf.mxu0
      %v4686 = vadd.f32 %v1968, %v4685
      %v4687 = vpop.f32.mrf.mxu0
      %v4688 = vpop.f32.mrf.mxu0
      %v4689 = vadd.f32 %v1973, %v4688
      %v4690 = vpop.f32.mrf.mxu0
      %4691 = vmatprep.mubr.bf16.mxu0 %v3336
      %4692 = vmatmul.mubr.bf16.gmra.mxu0 %v3335
      %v4693 = vpop.f32.mrf.mxu0
      %v4694 = vadd.f32 %v1978, %v4693
      %v4695 = vpop.f32.mrf.mxu0
      %v4696 = vpop.f32.mrf.mxu0
      %v4697 = vadd.f32 %v1983, %v4696
      %v4698 = vpop.f32.mrf.mxu0
      %4699 = vmatprep.mubr.bf16.mxu0 %v3338
      %4700 = vmatmul.mubr.bf16.gmra.mxu0 %v3337
      %v4701 = vpop.f32.mrf.mxu0
      %v4702 = vadd.f32 %v1988, %v4701
      %v4703 = vpop.f32.mrf.mxu0
      %v4704 = vpop.f32.mrf.mxu0
      %v4705 = vadd.f32 %v1993, %v4704
      %v4706 = vpop.f32.mrf.mxu0
      %4707 = vmatprep.mubr.bf16.mxu0 %v3340
      %4708 = vmatmul.mubr.bf16.gmra.mxu0 %v3339
      %v4709 = vpop.f32.mrf.mxu0
      %v4710 = vadd.f32 %v1998, %v4709
      %v4711 = vpop.f32.mrf.mxu0
      %v4712 = vpop.f32.mrf.mxu0
      %v4713 = vadd.f32 %v2003, %v4712
      %v4714 = vpop.f32.mrf.mxu0
      %4715 = vmatprep.mubr.bf16.mxu0 %v3342
      %4716 = vmatmul.mubr.bf16.gmra.mxu0 %v3341
      %v4717 = vpop.f32.mrf.mxu0
      %v4718 = vadd.f32 %v2008, %v4717
      %v4719 = vpop.f32.mrf.mxu0
      %v4720 = vpop.f32.mrf.mxu0
      %v4721 = vadd.f32 %v2013, %v4720
      %v4722 = vpop.f32.mrf.mxu0
      %4723 = vmatprep.mubr.bf16.mxu0 %v3344
      %4724 = vmatmul.mubr.bf16.gmra.mxu0 %v3343
      %v4725 = vpop.f32.mrf.mxu0
      %v4726 = vadd.f32 %v2018, %v4725
      %v4727 = vpop.f32.mrf.mxu0
      %v4728 = vpop.f32.mrf.mxu0
      %v4729 = vadd.f32 %v2023, %v4728
      %v4730 = vpop.f32.mrf.mxu0
      %4731 = vmatprep.mubr.bf16.mxu0 %v3346
      %4732 = vmatmul.mubr.bf16.gmra.mxu0 %v3345
      %v4733 = vpop.f32.mrf.mxu0
      %v4734 = vadd.f32 %v2028, %v4733
      %v4735 = vpop.f32.mrf.mxu0
      %v4736 = vpop.f32.mrf.mxu0
      %v4737 = vadd.f32 %v2033, %v4736
      %v4738 = vpop.f32.mrf.mxu0
      %4739 = vmatprep.mubr.bf16.mxu0 %v3348
      %4740 = vmatmul.mubr.bf16.gmra.mxu0 %v3347
      %v4741 = vpop.f32.mrf.mxu0
      %v4742 = vadd.f32 %v2038, %v4741
      %v4743 = vpop.f32.mrf.mxu0
      %v4744 = vpop.f32.mrf.mxu0
      %v4745 = vadd.f32 %v2043, %v4744
      %v4746 = vpop.f32.mrf.mxu0
      %4747 = vmatprep.mubr.bf16.mxu0 %v3350
      %4748 = vmatmul.mubr.bf16.gmra.mxu0 %v3349
      %v4749 = vpop.f32.mrf.mxu0
      %v4750 = vadd.f32 %v2048, %v4749
      %v4751 = vpop.f32.mrf.mxu0
      %v4752 = vpop.f32.mrf.mxu0
      %v4753 = vadd.f32 %v2053, %v4752
      %v4754 = vpop.f32.mrf.mxu0
      %4755 = vmatprep.mubr.bf16.mxu0 %v3352
      %4756 = vmatmul.mubr.bf16.gmra.mxu0 %v3351
      %v4757 = vpop.f32.mrf.mxu0
      %v4758 = vadd.f32 %v2058, %v4757
      %v4759 = vpop.f32.mrf.mxu0
      %v4760 = vpop.f32.mrf.mxu0
      %v4761 = vadd.f32 %v2063, %v4760
      %v4762 = vpop.f32.mrf.mxu0
      %4763 = vmatprep.mubr.bf16.mxu0 %v3354
      %4764 = vmatmul.mubr.bf16.gmra.mxu0 %v3353
      %v4765 = vpop.f32.mrf.mxu0
      %v4766 = vadd.f32 %v2068, %v4765
      %v4767 = vpop.f32.mrf.mxu0
      %v4768 = vpop.f32.mrf.mxu0
      %v4769 = vadd.f32 %v2073, %v4768
      %v4770 = vpop.f32.mrf.mxu0
      %4771 = vmatprep.mubr.bf16.mxu0 %v3356
      %4772 = vmatmul.mubr.bf16.gmra.mxu0 %v3355
      %v4773 = vpop.f32.mrf.mxu0
      %v4774 = vadd.f32 %v2078, %v4773
      %v4775 = vpop.f32.mrf.mxu0
      %v4776 = vpop.f32.mrf.mxu0
      %v4777 = vadd.f32 %v2083, %v4776
      %v4778 = vpop.f32.mrf.mxu0
      %4779 = vmatprep.mubr.bf16.mxu0 %v3358
      %4780 = vmatmul.mubr.bf16.gmra.mxu0 %v3357
      %v4781 = vpop.f32.mrf.mxu0
      %v4782 = vadd.f32 %v2088, %v4781
      %v4783 = vpop.f32.mrf.mxu0
      %v4784 = vpop.f32.mrf.mxu0
      %v4785 = vadd.f32 %v2093, %v4784
      %v4786 = vpop.f32.mrf.mxu0
      %4787 = vmatprep.mubr.bf16.mxu0 %v3360
      %4788 = vmatmul.mubr.bf16.gmra.mxu0 %v3359
      %v4789 = vpop.f32.mrf.mxu0
      %v4790 = vadd.f32 %v2098, %v4789
      %v4791 = vpop.f32.mrf.mxu0
      %v4792 = vpop.f32.mrf.mxu0
      %v4793 = vadd.f32 %v2103, %v4792
      %v4794 = vpop.f32.mrf.mxu0
      %4795 = vmatprep.mubr.bf16.mxu0 %v3362
      %4796 = vmatmul.mubr.bf16.gmra.mxu0 %v3361
      %v4797 = vpop.f32.mrf.mxu0
      %v4798 = vadd.f32 %v2108, %v4797
      %v4799 = vpop.f32.mrf.mxu0
      %v4800 = vpop.f32.mrf.mxu0
      %v4801 = vadd.f32 %v2113, %v4800
      %v4802 = vpop.f32.mrf.mxu0
      %4803 = vmatprep.mubr.bf16.mxu0 %v3364
      %4804 = vmatmul.mubr.bf16.gmra.mxu0 %v3363
      %v4805 = vpop.f32.mrf.mxu0
      %v4806 = vadd.f32 %v2118, %v4805
      %v4807 = vpop.f32.mrf.mxu0
      %v4808 = vpop.f32.mrf.mxu0
      %v4809 = vadd.f32 %v2123, %v4808
      %v4810 = vpop.f32.mrf.mxu0
      %4811 = vmatprep.mubr.bf16.mxu0 %v3366
      %4812 = vmatmul.mubr.bf16.gmra.mxu0 %v3365
      %v4813 = vpop.f32.mrf.mxu0
      %v4814 = vadd.f32 %v2128, %v4813
      %v4815 = vpop.f32.mrf.mxu0
      %v4816 = vpop.f32.mrf.mxu0
      %v4817 = vadd.f32 %v2133, %v4816
      %v4818 = vpop.f32.mrf.mxu0
      %4819 = vmatprep.mubr.bf16.mxu0 %v3368
      %4820 = vmatmul.mubr.bf16.gmra.mxu0 %v3367
      %v4821 = vpop.f32.mrf.mxu0
      %v4822 = vadd.f32 %v2138, %v4821
      %v4823 = vpop.f32.mrf.mxu0
      %v4824 = vpop.f32.mrf.mxu0
      %v4825 = vadd.f32 %v2143, %v4824
      %v4826 = vpop.f32.mrf.mxu0
      %4827 = vmatprep.mubr.bf16.mxu0 %v3370
      %4828 = vmatmul.mubr.bf16.gmra.mxu0 %v3369
      %v4829 = vpop.f32.mrf.mxu0
      %v4830 = vadd.f32 %v2148, %v4829
      %v4831 = vpop.f32.mrf.mxu0
      %v4832 = vpop.f32.mrf.mxu0
      %v4833 = vadd.f32 %v2153, %v4832
      %v4834 = vpop.f32.mrf.mxu0
      %4835 = vmatprep.mubr.bf16.mxu0 %v3372
      %4836 = vmatmul.mubr.bf16.gmra.mxu0 %v3371
      %v4837 = vpop.f32.mrf.mxu0
      %v4838 = vadd.f32 %v2158, %v4837
      %v4839 = vpop.f32.mrf.mxu0
      %v4840 = vpop.f32.mrf.mxu0
      %v4841 = vadd.f32 %v2163, %v4840
      %v4842 = vpop.f32.mrf.mxu0
      %4843 = vmatprep.mubr.bf16.mxu0 %v3374
      %4844 = vmatmul.mubr.bf16.gmra.mxu0 %v3373
      %v4845 = vpop.f32.mrf.mxu0
      %v4846 = vadd.f32 %v2168, %v4845
      %v4847 = vpop.f32.mrf.mxu0
      %v4848 = vpop.f32.mrf.mxu0
      %v4849 = vadd.f32 %v2173, %v4848
      %v4850 = vpop.f32.mrf.mxu0
      %4851 = vmatprep.mubr.bf16.mxu0 %v3376
      %4852 = vmatmul.mubr.bf16.gmra.mxu0 %v3375
      %v4853 = vpop.f32.mrf.mxu0
      %v4854 = vadd.f32 %v2178, %v4853
      %v4855 = vpop.f32.mrf.mxu0
      %v4856 = vpop.f32.mrf.mxu0
      %v4857 = vadd.f32 %v2183, %v4856
      %v4858 = vpop.f32.mrf.mxu0
      %4859 = vmatprep.mubr.bf16.mxu0 %v3378
      %4860 = vmatmul.mubr.bf16.gmra.mxu0 %v3377
      %v4861 = vpop.f32.mrf.mxu0
      %v4862 = vadd.f32 %v2188, %v4861
      %v4863 = vpop.f32.mrf.mxu0
      %v4864 = vpop.f32.mrf.mxu0
      %v4865 = vadd.f32 %v2193, %v4864
      %v4866 = vpop.f32.mrf.mxu0
      %4867 = vmatprep.mubr.bf16.mxu0 %v3380
      %4868 = vmatmul.mubr.bf16.gmra.mxu0 %v3379
      %v4869 = vpop.f32.mrf.mxu0
      %v4870 = vadd.f32 %v2198, %v4869
      %v4871 = vpop.f32.mrf.mxu0
      %v4872 = vpop.f32.mrf.mxu0
      %v4873 = vadd.f32 %v2203, %v4872
      %v4874 = vpop.f32.mrf.mxu0
      %4875 = vmatprep.mubr.bf16.mxu0 %v3382
      %4876 = vmatmul.mubr.bf16.gmra.mxu0 %v3381
      %v4877 = vpop.f32.mrf.mxu0
      %v4878 = vadd.f32 %v2208, %v4877
      %v4879 = vpop.f32.mrf.mxu0
      %v4880 = vpop.f32.mrf.mxu0
      %v4881 = vadd.f32 %v2213, %v4880
      %v4882 = vpop.f32.mrf.mxu0
      %4883 = vmatprep.mubr.bf16.mxu0 %v3384
      %4884 = vmatmul.mubr.bf16.gmra.mxu0 %v3383
      %v4885 = vpop.f32.mrf.mxu0
      %v4886 = vadd.f32 %v2218, %v4885
      %v4887 = vpop.f32.mrf.mxu0
      %v4888 = vpop.f32.mrf.mxu0
      %v4889 = vadd.f32 %v2223, %v4888
      %v4890 = vpop.f32.mrf.mxu0
      %4891 = vmatprep.mubr.bf16.mxu0 %v3386
      %4892 = vmatmul.mubr.bf16.gmra.mxu0 %v3385
      %v4893 = vpop.f32.mrf.mxu0
      %v4894 = vadd.f32 %v2228, %v4893
      %v4895 = vpop.f32.mrf.mxu0
      %v4896 = vpop.f32.mrf.mxu0
      %v4897 = vadd.f32 %v2233, %v4896
      %v4898 = vpop.f32.mrf.mxu0
      %4899 = vdwg.mxu0
      %v4900 = vmul.f32 %v3750, 0.25
      %v4901 = vmul.f32 %v3753, 0.25
      %v4902 = vmul.f32 %v3758, 0.25
      %v4903 = vmul.f32 %v3761, 0.25
      %v4904 = vmul.f32 %v3766, 0.25
      %v4905 = vmul.f32 %v3769, 0.25
      %v4906 = vmul.f32 %v3774, 0.25
      %v4907 = vmul.f32 %v3777, 0.25
      %v4908 = vmul.f32 %v3782, 0.25
      %v4909 = vmul.f32 %v3785, 0.25
      %v4910 = vmul.f32 %v3790, 0.25
      %v4911 = vmul.f32 %v3793, 0.25
      %v4912 = vmul.f32 %v3798, 0.25
      %v4913 = vmul.f32 %v3801, 0.25
      %v4914 = vmul.f32 %v3806, 0.25
      %v4915 = vmul.f32 %v3809, 0.25
      %v4916 = vmul.f32 %v3814, 0.25
      %v4917 = vmul.f32 %v3817, 0.25
      %v4918 = vmul.f32 %v3822, 0.25
      %v4919 = vmul.f32 %v3825, 0.25
      %v4920 = vmul.f32 %v3830, 0.25
      %v4921 = vmul.f32 %v3833, 0.25
      %v4922 = vmul.f32 %v3838, 0.25
      %v4923 = vmul.f32 %v3841, 0.25
      %v4924 = vmul.f32 %v3846, 0.25
      %v4925 = vmul.f32 %v3849, 0.25
      %v4926 = vmul.f32 %v3854, 0.25
      %v4927 = vmul.f32 %v3857, 0.25
      %v4928 = vmul.f32 %v3862, 0.25
      %v4929 = vmul.f32 %v3865, 0.25
      %v4930 = vmul.f32 %v3870, 0.25
      %v4931 = vmul.f32 %v3873, 0.25
      %v4932 = vmul.f32 %v3878, 0.25
      %v4933 = vmul.f32 %v3881, 0.25
      %v4934 = vmul.f32 %v3886, 0.25
      %v4935 = vmul.f32 %v3889, 0.25
      %v4936 = vmul.f32 %v3894, 0.25
      %v4937 = vmul.f32 %v3897, 0.25
      %v4938 = vmul.f32 %v3902, 0.25
      %v4939 = vmul.f32 %v3905, 0.25
      %v4940 = vmul.f32 %v3910, 0.25
      %v4941 = vmul.f32 %v3913, 0.25
      %v4942 = vmul.f32 %v3918, 0.25
      %v4943 = vmul.f32 %v3921, 0.25
      %v4944 = vmul.f32 %v3926, 0.25
      %v4945 = vmul.f32 %v3929, 0.25
      %v4946 = vmul.f32 %v3934, 0.25
      %v4947 = vmul.f32 %v3937, 0.25
      %v4948 = vmul.f32 %v3942, 0.25
      %v4949 = vmul.f32 %v3945, 0.25
      %v4950 = vmul.f32 %v3950, 0.25
      %v4951 = vmul.f32 %v3953, 0.25
      %v4952 = vmul.f32 %v3958, 0.25
      %v4953 = vmul.f32 %v3961, 0.25
      %v4954 = vmul.f32 %v3966, 0.25
      %v4955 = vmul.f32 %v3969, 0.25
      %v4956 = vmul.f32 %v3974, 0.25
      %v4957 = vmul.f32 %v3977, 0.25
      %v4958 = vmul.f32 %v3982, 0.25
      %v4959 = vmul.f32 %v3985, 0.25
      %v4960 = vmul.f32 %v3990, 0.25
      %v4961 = vmul.f32 %v3993, 0.25
      %v4962 = vmul.f32 %v3998, 0.25
      %v4963 = vmul.f32 %v4001, 0.25
      %v4964 = vmul.f32 %v4006, 0.25
      %v4965 = vmul.f32 %v4009, 0.25
      %v4966 = vmul.f32 %v4014, 0.25
      %v4967 = vmul.f32 %v4017, 0.25
      %v4968 = vmul.f32 %v4022, 0.25
      %v4969 = vmul.f32 %v4025, 0.25
      %v4970 = vmul.f32 %v4030, 0.25
      %v4971 = vmul.f32 %v4033, 0.25
      %v4972 = vmul.f32 %v4038, 0.25
      %v4973 = vmul.f32 %v4041, 0.25
      %v4974 = vmul.f32 %v4046, 0.25
      %v4975 = vmul.f32 %v4049, 0.25
      %v4976 = vmul.f32 %v4054, 0.25
      %v4977 = vmul.f32 %v4057, 0.25
      %v4978 = vmul.f32 %v4062, 0.25
      %v4979 = vmul.f32 %v4065, 0.25
      %v4980 = vmul.f32 %v4070, 0.25
      %v4981 = vmul.f32 %v4073, 0.25
      %v4982 = vmul.f32 %v4078, 0.25
      %v4983 = vmul.f32 %v4081, 0.25
      %v4984 = vmul.f32 %v4086, 0.25
      %v4985 = vmul.f32 %v4089, 0.25
      %v4986 = vmul.f32 %v4094, 0.25
      %v4987 = vmul.f32 %v4097, 0.25
      %v4988 = vmul.f32 %v4102, 0.25
      %v4989 = vmul.f32 %v4105, 0.25
      %v4990 = vmul.f32 %v4110, 0.25
      %v4991 = vmul.f32 %v4113, 0.25
      %v4992 = vmul.f32 %v4118, 0.25
      %v4993 = vmul.f32 %v4121, 0.25
      %v4994 = vmul.f32 %v4126, 0.25
      %v4995 = vmul.f32 %v4129, 0.25
      %v4996 = vmul.f32 %v4134, 0.25
      %v4997 = vmul.f32 %v4137, 0.25
      %v4998 = vmul.f32 %v4142, 0.25
      %v4999 = vmul.f32 %v4145, 0.25
      %v5000 = vmul.f32 %v4150, 0.25
      %v5001 = vmul.f32 %v4153, 0.25
      %v5002 = vmul.f32 %v4158, 0.25
      %v5003 = vmul.f32 %v4161, 0.25
      %v5004 = vmul.f32 %v4166, 0.25
      %v5005 = vmul.f32 %v4169, 0.25
      %v5006 = vmul.f32 %v4174, 0.25
      %v5007 = vmul.f32 %v4177, 0.25
      %v5008 = vmul.f32 %v4182, 0.25
      %v5009 = vmul.f32 %v4185, 0.25
      %v5010 = vmul.f32 %v4190, 0.25
      %v5011 = vmul.f32 %v4193, 0.25
      %v5012 = vmul.f32 %v4198, 0.25
      %v5013 = vmul.f32 %v4201, 0.25
      %v5014 = vmul.f32 %v4206, 0.25
      %v5015 = vmul.f32 %v4209, 0.25
      %v5016 = vmul.f32 %v4214, 0.25
      %v5017 = vmul.f32 %v4217, 0.25
      %v5018 = vmul.f32 %v4222, 0.25
      %v5019 = vmul.f32 %v4225, 0.25
      %v5020 = vmul.f32 %v4230, 0.25
      %v5021 = vmul.f32 %v4233, 0.25
      %v5022 = vmul.f32 %v4238, 0.25
      %v5023 = vmul.f32 %v4241, 0.25
      %v5024 = vmul.f32 %v4246, 0.25
      %v5025 = vmul.f32 %v4249, 0.25
      %v5026 = vmul.f32 %v4254, 0.25
      %v5027 = vmul.f32 %v4257, 0.25
      %v5028 = vmul.f32 %v4262, 0.25
      %v5029 = vmul.f32 %v4265, 0.25
      %v5030 = vmul.f32 %v4270, 0.25
      %v5031 = vmul.f32 %v4273, 0.25
      %v5032 = vmul.f32 %v4278, 0.25
      %v5033 = vmul.f32 %v4281, 0.25
      %v5034 = vmul.f32 %v4286, 0.25
      %v5035 = vmul.f32 %v4289, 0.25
      %v5036 = vmul.f32 %v4294, 0.25
      %v5037 = vmul.f32 %v4297, 0.25
      %v5038 = vmul.f32 %v4302, 0.25
      %v5039 = vmul.f32 %v4305, 0.25
      %v5040 = vmul.f32 %v4310, 0.25
      %v5041 = vmul.f32 %v4313, 0.25
      %v5042 = vmul.f32 %v4318, 0.25
      %v5043 = vmul.f32 %v4321, 0.25
      %v5044 = vmul.f32 %v4326, 0.25
      %v5045 = vmul.f32 %v4329, 0.25
      %v5046 = vmul.f32 %v4334, 0.25
      %v5047 = vmul.f32 %v4337, 0.25
      %v5048 = vmul.f32 %v4342, 0.25
      %v5049 = vmul.f32 %v4345, 0.25
      %v5050 = vmul.f32 %v4350, 0.25
      %v5051 = vmul.f32 %v4353, 0.25
      %v5052 = vmul.f32 %v4358, 0.25
      %v5053 = vmul.f32 %v4361, 0.25
      %v5054 = vmul.f32 %v4366, 0.25
      %v5055 = vmul.f32 %v4369, 0.25
      %v5056 = vmul.f32 %v4374, 0.25
      %v5057 = vmul.f32 %v4377, 0.25
      %v5058 = vmul.f32 %v4382, 0.25
      %v5059 = vmul.f32 %v4385, 0.25
      %v5060 = vmul.f32 %v4390, 0.25
      %v5061 = vmul.f32 %v4393, 0.25
      %v5062 = vmul.f32 %v4398, 0.25
      %v5063 = vmul.f32 %v4401, 0.25
      %v5064 = vmul.f32 %v4406, 0.25
      %v5065 = vmul.f32 %v4409, 0.25
      %v5066 = vmul.f32 %v4414, 0.25
      %v5067 = vmul.f32 %v4417, 0.25
      %v5068 = vmul.f32 %v4422, 0.25
      %v5069 = vmul.f32 %v4425, 0.25
      %v5070 = vmul.f32 %v4430, 0.25
      %v5071 = vmul.f32 %v4433, 0.25
      %v5072 = vmul.f32 %v4438, 0.25
      %v5073 = vmul.f32 %v4441, 0.25
      %v5074 = vmul.f32 %v4446, 0.25
      %v5075 = vmul.f32 %v4449, 0.25
      %v5076 = vmul.f32 %v4454, 0.25
      %v5077 = vmul.f32 %v4457, 0.25
      %v5078 = vmul.f32 %v4462, 0.25
      %v5079 = vmul.f32 %v4465, 0.25
      %v5080 = vmul.f32 %v4470, 0.25
      %v5081 = vmul.f32 %v4473, 0.25
      %v5082 = vmul.f32 %v4478, 0.25
      %v5083 = vmul.f32 %v4481, 0.25
      %v5084 = vmul.f32 %v4486, 0.25
      %v5085 = vmul.f32 %v4489, 0.25
      %v5086 = vmul.f32 %v4494, 0.25
      %v5087 = vmul.f32 %v4497, 0.25
      %v5088 = vmul.f32 %v4502, 0.25
      %v5089 = vmul.f32 %v4505, 0.25
      %v5090 = vmul.f32 %v4510, 0.25
      %v5091 = vmul.f32 %v4513, 0.25
      %v5092 = vmul.f32 %v4518, 0.25
      %v5093 = vmul.f32 %v4521, 0.25
      %v5094 = vmul.f32 %v4526, 0.25
      %v5095 = vmul.f32 %v4529, 0.25
      %v5096 = vmul.f32 %v4534, 0.25
      %v5097 = vmul.f32 %v4537, 0.25
      %v5098 = vmul.f32 %v4542, 0.25
      %v5099 = vmul.f32 %v4545, 0.25
      %v5100 = vmul.f32 %v4550, 0.25
      %v5101 = vmul.f32 %v4553, 0.25
      %v5102 = vmul.f32 %v4558, 0.25
      %v5103 = vmul.f32 %v4561, 0.25
      %v5104 = vmul.f32 %v4566, 0.25
      %v5105 = vmul.f32 %v4569, 0.25
      %v5106 = vmul.f32 %v4574, 0.25
      %v5107 = vmul.f32 %v4577, 0.25
      %v5108 = vmul.f32 %v4582, 0.25
      %v5109 = vmul.f32 %v4585, 0.25
      %v5110 = vmul.f32 %v4590, 0.25
      %v5111 = vmul.f32 %v4593, 0.25
      %v5112 = vmul.f32 %v4598, 0.25
      %v5113 = vmul.f32 %v4601, 0.25
      %v5114 = vmul.f32 %v4606, 0.25
      %v5115 = vmul.f32 %v4609, 0.25
      %v5116 = vmul.f32 %v4614, 0.25
      %v5117 = vmul.f32 %v4617, 0.25
      %v5118 = vmul.f32 %v4622, 0.25
      %v5119 = vmul.f32 %v4625, 0.25
      %v5120 = vmul.f32 %v4630, 0.25
      %v5121 = vmul.f32 %v4633, 0.25
      %v5122 = vmul.f32 %v4638, 0.25
      %v5123 = vmul.f32 %v4641, 0.25
      %v5124 = vmul.f32 %v4646, 0.25
      %v5125 = vmul.f32 %v4649, 0.25
      %v5126 = vmul.f32 %v4654, 0.25
      %v5127 = vmul.f32 %v4657, 0.25
      %v5128 = vmul.f32 %v4662, 0.25
      %v5129 = vmul.f32 %v4665, 0.25
      %v5130 = vmul.f32 %v4670, 0.25
      %v5131 = vmul.f32 %v4673, 0.25
      %v5132 = vmul.f32 %v4678, 0.25
      %v5133 = vmul.f32 %v4681, 0.25
      %v5134 = vmul.f32 %v4686, 0.25
      %v5135 = vmul.f32 %v4689, 0.25
      %v5136 = vmul.f32 %v4694, 0.25
      %v5137 = vmul.f32 %v4697, 0.25
      %v5138 = vmul.f32 %v4702, 0.25
      %v5139 = vmul.f32 %v4705, 0.25
      %v5140 = vmul.f32 %v4710, 0.25
      %v5141 = vmul.f32 %v4713, 0.25
      %v5142 = vmul.f32 %v4718, 0.25
      %v5143 = vmul.f32 %v4721, 0.25
      %v5144 = vmul.f32 %v4726, 0.25
      %v5145 = vmul.f32 %v4729, 0.25
      %v5146 = vmul.f32 %v4734, 0.25
      %v5147 = vmul.f32 %v4737, 0.25
      %v5148 = vmul.f32 %v4742, 0.25
      %v5149 = vmul.f32 %v4745, 0.25
      %v5150 = vmul.f32 %v4750, 0.25
      %v5151 = vmul.f32 %v4753, 0.25
      %v5152 = vmul.f32 %v4758, 0.25
      %v5153 = vmul.f32 %v4761, 0.25
      %v5154 = vmul.f32 %v4766, 0.25
      %v5155 = vmul.f32 %v4769, 0.25
      %v5156 = vmul.f32 %v4774, 0.25
      %v5157 = vmul.f32 %v4777, 0.25
      %v5158 = vmul.f32 %v4782, 0.25
      %v5159 = vmul.f32 %v4785, 0.25
      %v5160 = vmul.f32 %v4790, 0.25
      %v5161 = vmul.f32 %v4793, 0.25
      %v5162 = vmul.f32 %v4798, 0.25
      %v5163 = vmul.f32 %v4801, 0.25
      %v5164 = vmul.f32 %v4806, 0.25
      %v5165 = vmul.f32 %v4809, 0.25
      %v5166 = vmul.f32 %v4814, 0.25
      %v5167 = vmul.f32 %v4817, 0.25
      %v5168 = vmul.f32 %v4822, 0.25
      %v5169 = vmul.f32 %v4825, 0.25
      %v5170 = vmul.f32 %v4830, 0.25
      %v5171 = vmul.f32 %v4833, 0.25
      %v5172 = vmul.f32 %v4838, 0.25
      %v5173 = vmul.f32 %v4841, 0.25
      %v5174 = vmul.f32 %v4846, 0.25
      %v5175 = vmul.f32 %v4849, 0.25
      %v5176 = vmul.f32 %v4854, 0.25
      %v5177 = vmul.f32 %v4857, 0.25
      %v5178 = vmul.f32 %v4862, 0.25
      %v5179 = vmul.f32 %v4865, 0.25
      %v5180 = vmul.f32 %v4870, 0.25
      %v5181 = vmul.f32 %v4873, 0.25
      %v5182 = vmul.f32 %v4878, 0.25
      %v5183 = vmul.f32 %v4881, 0.25
      %v5184 = vmul.f32 %v4886, 0.25
      %v5185 = vmul.f32 %v4889, 0.25
      %v5186 = vmul.f32 %v4894, 0.25
      %v5187 = vmul.f32 %v4897, 0.25
      %vm5188 = vcmask 523264
      %5189 = vst.msk [vmem:[%s209] sm:$0xff] %vm5188, %v4900
      %5190 = vst.msk [vmem:[%s209 + $0x8] sm:$0xff] %vm5188, %v4901
      %5191 = vst.msk [vmem:[%s209 + $0x10] sm:$0xff] %vm5188, %v4902
      %5192 = vst.msk [vmem:[%s209 + $0x18] sm:$0xff] %vm5188, %v4903
      %5193 = vst.msk [vmem:[%s209 + $0x20] sm:$0xff] %vm5188, %v4904
      %5194 = vst.msk [vmem:[%s209 + $0x28] sm:$0xff] %vm5188, %v4905
      %5195 = vst.msk [vmem:[%s209 + $0x30] sm:$0xff] %vm5188, %v4906
      %5196 = vst.msk [vmem:[%s209 + $0x38] sm:$0xff] %vm5188, %v4907
      %5197 = vst.msk [vmem:[%s209 + $0x40] sm:$0xff] %vm5188, %v4908
      %5198 = vst.msk [vmem:[%s209 + $0x48] sm:$0xff] %vm5188, %v4909
      %5199 = vst.msk [vmem:[%s209 + $0x50] sm:$0xff] %vm5188, %v4910
      %5200 = vst.msk [vmem:[%s209 + $0x58] sm:$0xff] %vm5188, %v4911
      %5201 = vst.msk [vmem:[%s209 + $0x60] sm:$0xff] %vm5188, %v4912
      %5202 = vst.msk [vmem:[%s209 + $0x68] sm:$0xff] %vm5188, %v4913
      %5203 = vst.msk [vmem:[%s209 + $0x70] sm:$0xff] %vm5188, %v4914
      %5204 = vst.msk [vmem:[%s209 + $0x78] sm:$0xff] %vm5188, %v4915
      %5205 = vst.msk [vmem:[%s209 + $0x80] sm:$0xff] %vm5188, %v4916
      %5206 = vst.msk [vmem:[%s209 + $0x88] sm:$0xff] %vm5188, %v4917
      %5207 = vst.msk [vmem:[%s209 + $0x90] sm:$0xff] %vm5188, %v4918
      %5208 = vst.msk [vmem:[%s209 + $0x98] sm:$0xff] %vm5188, %v4919
      %5209 = vst.msk [vmem:[%s209 + $0xa0] sm:$0xff] %vm5188, %v4920
      %5210 = vst.msk [vmem:[%s209 + $0xa8] sm:$0xff] %vm5188, %v4921
      %5211 = vst.msk [vmem:[%s209 + $0xb0] sm:$0xff] %vm5188, %v4922
      %5212 = vst.msk [vmem:[%s209 + $0xb8] sm:$0xff] %vm5188, %v4923
      %5213 = vst.msk [vmem:[%s209 + $0xc0] sm:$0xff] %vm5188, %v4924
      %5214 = vst.msk [vmem:[%s209 + $0xc8] sm:$0xff] %vm5188, %v4925
      %5215 = vst.msk [vmem:[%s209 + $0xd0] sm:$0xff] %vm5188, %v4926
      %5216 = vst.msk [vmem:[%s209 + $0xd8] sm:$0xff] %vm5188, %v4927
      %5217 = vst.msk [vmem:[%s209 + $0xe0] sm:$0xff] %vm5188, %v4928
      %5218 = vst.msk [vmem:[%s209 + $0xe8] sm:$0xff] %vm5188, %v4929
      %5219 = vst.msk [vmem:[%s209 + $0xf0] sm:$0xff] %vm5188, %v4930
      %5220 = vst.msk [vmem:[%s209 + $0xf8] sm:$0xff] %vm5188, %v4931
      %5221 = vst.msk [vmem:[%s209 + $0x100] sm:$0xff] %vm5188, %v4932
      %5222 = vst.msk [vmem:[%s209 + $0x108] sm:$0xff] %vm5188, %v4933
      %5223 = vst.msk [vmem:[%s209 + $0x110] sm:$0xff] %vm5188, %v4934
      %5224 = vst.msk [vmem:[%s209 + $0x118] sm:$0xff] %vm5188, %v4935
      %5225 = vst.msk [vmem:[%s209 + $0x120] sm:$0xff] %vm5188, %v4936
      %5226 = vst.msk [vmem:[%s209 + $0x128] sm:$0xff] %vm5188, %v4937
      %5227 = vst.msk [vmem:[%s209 + $0x130] sm:$0xff] %vm5188, %v4938
      %5228 = vst.msk [vmem:[%s209 + $0x138] sm:$0xff] %vm5188, %v4939
      %5229 = vst.msk [vmem:[%s209 + $0x140] sm:$0xff] %vm5188, %v4940
      %5230 = vst.msk [vmem:[%s209 + $0x148] sm:$0xff] %vm5188, %v4941
      %5231 = vst.msk [vmem:[%s209 + $0x150] sm:$0xff] %vm5188, %v4942
      %5232 = vst.msk [vmem:[%s209 + $0x158] sm:$0xff] %vm5188, %v4943
      %5233 = vst.msk [vmem:[%s209 + $0x160] sm:$0xff] %vm5188, %v4944
      %5234 = vst.msk [vmem:[%s209 + $0x168] sm:$0xff] %vm5188, %v4945
      %5235 = vst.msk [vmem:[%s209 + $0x170] sm:$0xff] %vm5188, %v4946
      %5236 = vst.msk [vmem:[%s209 + $0x178] sm:$0xff] %vm5188, %v4947
      %5237 = vst.msk [vmem:[%s209 + $0x180] sm:$0xff] %vm5188, %v4948
      %5238 = vst.msk [vmem:[%s209 + $0x188] sm:$0xff] %vm5188, %v4949
      %5239 = vst.msk [vmem:[%s209 + $0x190] sm:$0xff] %vm5188, %v4950
      %5240 = vst.msk [vmem:[%s209 + $0x198] sm:$0xff] %vm5188, %v4951
      %5241 = vst.msk [vmem:[%s209 + $0x1a0] sm:$0xff] %vm5188, %v4952
      %5242 = vst.msk [vmem:[%s209 + $0x1a8] sm:$0xff] %vm5188, %v4953
      %5243 = vst.msk [vmem:[%s209 + $0x1b0] sm:$0xff] %vm5188, %v4954
      %5244 = vst.msk [vmem:[%s209 + $0x1b8] sm:$0xff] %vm5188, %v4955
      %5245 = vst.msk [vmem:[%s209 + $0x1c0] sm:$0xff] %vm5188, %v4956
      %5246 = vst.msk [vmem:[%s209 + $0x1c8] sm:$0xff] %vm5188, %v4957
      %5247 = vst.msk [vmem:[%s209 + $0x1d0] sm:$0xff] %vm5188, %v4958
      %5248 = vst.msk [vmem:[%s209 + $0x1d8] sm:$0xff] %vm5188, %v4959
      %5249 = vst.msk [vmem:[%s209 + $0x1e0] sm:$0xff] %vm5188, %v4960
      %5250 = vst.msk [vmem:[%s209 + $0x1e8] sm:$0xff] %vm5188, %v4961
      %5251 = vst.msk [vmem:[%s209 + $0x1f0] sm:$0xff] %vm5188, %v4962
      %5252 = vst.msk [vmem:[%s209 + $0x1f8] sm:$0xff] %vm5188, %v4963
      %5253 = vst.msk [vmem:[%s209 + $0x200] sm:$0xff] %vm5188, %v4964
      %5254 = vst.msk [vmem:[%s209 + $0x208] sm:$0xff] %vm5188, %v4965
      %5255 = vst.msk [vmem:[%s209 + $0x210] sm:$0xff] %vm5188, %v4966
      %5256 = vst.msk [vmem:[%s209 + $0x218] sm:$0xff] %vm5188, %v4967
      %5257 = vst.msk [vmem:[%s209 + $0x220] sm:$0xff] %vm5188, %v4968
      %5258 = vst.msk [vmem:[%s209 + $0x228] sm:$0xff] %vm5188, %v4969
      %5259 = vst.msk [vmem:[%s209 + $0x230] sm:$0xff] %vm5188, %v4970
      %5260 = vst.msk [vmem:[%s209 + $0x238] sm:$0xff] %vm5188, %v4971
      %5261 = vst.msk [vmem:[%s209 + $0x240] sm:$0xff] %vm5188, %v4972
      %5262 = vst.msk [vmem:[%s209 + $0x248] sm:$0xff] %vm5188, %v4973
      %5263 = vst.msk [vmem:[%s209 + $0x250] sm:$0xff] %vm5188, %v4974
      %5264 = vst.msk [vmem:[%s209 + $0x258] sm:$0xff] %vm5188, %v4975
      %5265 = vst.msk [vmem:[%s209 + $0x260] sm:$0xff] %vm5188, %v4976
      %5266 = vst.msk [vmem:[%s209 + $0x268] sm:$0xff] %vm5188, %v4977
      %5267 = vst.msk [vmem:[%s209 + $0x270] sm:$0xff] %vm5188, %v4978
      %5268 = vst.msk [vmem:[%s209 + $0x278] sm:$0xff] %vm5188, %v4979
      %5269 = vst.msk [vmem:[%s209 + $0x280] sm:$0xff] %vm5188, %v4980
      %5270 = vst.msk [vmem:[%s209 + $0x288] sm:$0xff] %vm5188, %v4981
      %5271 = vst.msk [vmem:[%s209 + $0x290] sm:$0xff] %vm5188, %v4982
      %5272 = vst.msk [vmem:[%s209 + $0x298] sm:$0xff] %vm5188, %v4983
      %5273 = vst.msk [vmem:[%s209 + $0x2a0] sm:$0xff] %vm5188, %v4984
      %5274 = vst.msk [vmem:[%s209 + $0x2a8] sm:$0xff] %vm5188, %v4985
      %5275 = vst.msk [vmem:[%s209 + $0x2b0] sm:$0xff] %vm5188, %v4986
      %5276 = vst.msk [vmem:[%s209 + $0x2b8] sm:$0xff] %vm5188, %v4987
      %5277 = vst.msk [vmem:[%s209 + $0x2c0] sm:$0xff] %vm5188, %v4988
      %5278 = vst.msk [vmem:[%s209 + $0x2c8] sm:$0xff] %vm5188, %v4989
      %5279 = vst.msk [vmem:[%s209 + $0x2d0] sm:$0xff] %vm5188, %v4990
      %5280 = vst.msk [vmem:[%s209 + $0x2d8] sm:$0xff] %vm5188, %v4991
      %5281 = vst.msk [vmem:[%s209 + $0x2e0] sm:$0xff] %vm5188, %v4992
      %5282 = vst.msk [vmem:[%s209 + $0x2e8] sm:$0xff] %vm5188, %v4993
      %5283 = vst.msk [vmem:[%s209 + $0x2f0] sm:$0xff] %vm5188, %v4994
      %5284 = vst.msk [vmem:[%s209 + $0x2f8] sm:$0xff] %vm5188, %v4995
      %5285 = vst.msk [vmem:[%s209 + $0x300] sm:$0xff] %vm5188, %v4996
      %5286 = vst.msk [vmem:[%s209 + $0x308] sm:$0xff] %vm5188, %v4997
      %5287 = vst.msk [vmem:[%s209 + $0x310] sm:$0xff] %vm5188, %v4998
      %5288 = vst.msk [vmem:[%s209 + $0x318] sm:$0xff] %vm5188, %v4999
      %5289 = vst.msk [vmem:[%s209 + $0x320] sm:$0xff] %vm5188, %v5000
      %5290 = vst.msk [vmem:[%s209 + $0x328] sm:$0xff] %vm5188, %v5001
      %5291 = vst.msk [vmem:[%s209 + $0x330] sm:$0xff] %vm5188, %v5002
      %5292 = vst.msk [vmem:[%s209 + $0x338] sm:$0xff] %vm5188, %v5003
      %5293 = vst.msk [vmem:[%s209 + $0x340] sm:$0xff] %vm5188, %v5004
      %5294 = vst.msk [vmem:[%s209 + $0x348] sm:$0xff] %vm5188, %v5005
      %5295 = vst.msk [vmem:[%s209 + $0x350] sm:$0xff] %vm5188, %v5006
      %5296 = vst.msk [vmem:[%s209 + $0x358] sm:$0xff] %vm5188, %v5007
      %5297 = vst.msk [vmem:[%s209 + $0x360] sm:$0xff] %vm5188, %v5008
      %5298 = vst.msk [vmem:[%s209 + $0x368] sm:$0xff] %vm5188, %v5009
      %5299 = vst.msk [vmem:[%s209 + $0x370] sm:$0xff] %vm5188, %v5010
      %5300 = vst.msk [vmem:[%s209 + $0x378] sm:$0xff] %vm5188, %v5011
      %5301 = vst.msk [vmem:[%s209 + $0x380] sm:$0xff] %vm5188, %v5012
      %5302 = vst.msk [vmem:[%s209 + $0x388] sm:$0xff] %vm5188, %v5013
      %5303 = vst.msk [vmem:[%s209 + $0x390] sm:$0xff] %vm5188, %v5014
      %5304 = vst.msk [vmem:[%s209 + $0x398] sm:$0xff] %vm5188, %v5015
      %5305 = vst.msk [vmem:[%s209 + $0x3a0] sm:$0xff] %vm5188, %v5016
      %5306 = vst.msk [vmem:[%s209 + $0x3a8] sm:$0xff] %vm5188, %v5017
      %5307 = vst.msk [vmem:[%s209 + $0x3b0] sm:$0xff] %vm5188, %v5018
      %5308 = vst.msk [vmem:[%s209 + $0x3b8] sm:$0xff] %vm5188, %v5019
      %5309 = vst.msk [vmem:[%s209 + $0x3c0] sm:$0xff] %vm5188, %v5020
      %5310 = vst.msk [vmem:[%s209 + $0x3c8] sm:$0xff] %vm5188, %v5021
      %5311 = vst.msk [vmem:[%s209 + $0x3d0] sm:$0xff] %vm5188, %v5022
      %5312 = vst.msk [vmem:[%s209 + $0x3d8] sm:$0xff] %vm5188, %v5023
      %5313 = vst.msk [vmem:[%s209 + $0x3e0] sm:$0xff] %vm5188, %v5024
      %5314 = vst.msk [vmem:[%s209 + $0x3e8] sm:$0xff] %vm5188, %v5025
      %5315 = vst.msk [vmem:[%s209 + $0x3f0] sm:$0xff] %vm5188, %v5026
      %5316 = vst.msk [vmem:[%s209 + $0x3f8] sm:$0xff] %vm5188, %v5027
      %5317 = vst.msk [vmem:[%s209 + $0x400] sm:$0xff] %vm5188, %v5028
      %5318 = vst.msk [vmem:[%s209 + $0x408] sm:$0xff] %vm5188, %v5029
      %5319 = vst.msk [vmem:[%s209 + $0x410] sm:$0xff] %vm5188, %v5030
      %5320 = vst.msk [vmem:[%s209 + $0x418] sm:$0xff] %vm5188, %v5031
      %5321 = vst.msk [vmem:[%s209 + $0x420] sm:$0xff] %vm5188, %v5032
      %5322 = vst.msk [vmem:[%s209 + $0x428] sm:$0xff] %vm5188, %v5033
      %5323 = vst.msk [vmem:[%s209 + $0x430] sm:$0xff] %vm5188, %v5034
      %5324 = vst.msk [vmem:[%s209 + $0x438] sm:$0xff] %vm5188, %v5035
      %5325 = vst.msk [vmem:[%s209 + $0x440] sm:$0xff] %vm5188, %v5036
      %5326 = vst.msk [vmem:[%s209 + $0x448] sm:$0xff] %vm5188, %v5037
      %5327 = vst.msk [vmem:[%s209 + $0x450] sm:$0xff] %vm5188, %v5038
      %5328 = vst.msk [vmem:[%s209 + $0x458] sm:$0xff] %vm5188, %v5039
      %5329 = vst.msk [vmem:[%s209 + $0x460] sm:$0xff] %vm5188, %v5040
      %5330 = vst.msk [vmem:[%s209 + $0x468] sm:$0xff] %vm5188, %v5041
      %5331 = vst.msk [vmem:[%s209 + $0x470] sm:$0xff] %vm5188, %v5042
      %5332 = vst.msk [vmem:[%s209 + $0x478] sm:$0xff] %vm5188, %v5043
      %5333 = vst.msk [vmem:[%s209 + $0x480] sm:$0xff] %vm5188, %v5044
      %5334 = vst.msk [vmem:[%s209 + $0x488] sm:$0xff] %vm5188, %v5045
      %5335 = vst.msk [vmem:[%s209 + $0x490] sm:$0xff] %vm5188, %v5046
      %5336 = vst.msk [vmem:[%s209 + $0x498] sm:$0xff] %vm5188, %v5047
      %5337 = vst.msk [vmem:[%s209 + $0x4a0] sm:$0xff] %vm5188, %v5048
      %5338 = vst.msk [vmem:[%s209 + $0x4a8] sm:$0xff] %vm5188, %v5049
      %5339 = vst.msk [vmem:[%s209 + $0x4b0] sm:$0xff] %vm5188, %v5050
      %5340 = vst.msk [vmem:[%s209 + $0x4b8] sm:$0xff] %vm5188, %v5051
      %5341 = vst.msk [vmem:[%s209 + $0x4c0] sm:$0xff] %vm5188, %v5052
      %5342 = vst.msk [vmem:[%s209 + $0x4c8] sm:$0xff] %vm5188, %v5053
      %5343 = vst.msk [vmem:[%s209 + $0x4d0] sm:$0xff] %vm5188, %v5054
      %5344 = vst.msk [vmem:[%s209 + $0x4d8] sm:$0xff] %vm5188, %v5055
      %5345 = vst.msk [vmem:[%s209 + $0x4e0] sm:$0xff] %vm5188, %v5056
      %5346 = vst.msk [vmem:[%s209 + $0x4e8] sm:$0xff] %vm5188, %v5057
      %5347 = vst.msk [vmem:[%s209 + $0x4f0] sm:$0xff] %vm5188, %v5058
      %5348 = vst.msk [vmem:[%s209 + $0x4f8] sm:$0xff] %vm5188, %v5059
      %5349 = vst.msk [vmem:[%s209 + $0x500] sm:$0xff] %vm5188, %v5060
      %5350 = vst.msk [vmem:[%s209 + $0x508] sm:$0xff] %vm5188, %v5061
      %5351 = vst.msk [vmem:[%s209 + $0x510] sm:$0xff] %vm5188, %v5062
      %5352 = vst.msk [vmem:[%s209 + $0x518] sm:$0xff] %vm5188, %v5063
      %5353 = vst.msk [vmem:[%s209 + $0x520] sm:$0xff] %vm5188, %v5064
      %5354 = vst.msk [vmem:[%s209 + $0x528] sm:$0xff] %vm5188, %v5065
      %5355 = vst.msk [vmem:[%s209 + $0x530] sm:$0xff] %vm5188, %v5066
      %5356 = vst.msk [vmem:[%s209 + $0x538] sm:$0xff] %vm5188, %v5067
      %5357 = vst.msk [vmem:[%s209 + $0x540] sm:$0xff] %vm5188, %v5068
      %5358 = vst.msk [vmem:[%s209 + $0x548] sm:$0xff] %vm5188, %v5069
      %5359 = vst.msk [vmem:[%s209 + $0x550] sm:$0xff] %vm5188, %v5070
      %5360 = vst.msk [vmem:[%s209 + $0x558] sm:$0xff] %vm5188, %v5071
      %5361 = vst.msk [vmem:[%s209 + $0x560] sm:$0xff] %vm5188, %v5072
      %5362 = vst.msk [vmem:[%s209 + $0x568] sm:$0xff] %vm5188, %v5073
      %5363 = vst.msk [vmem:[%s209 + $0x570] sm:$0xff] %vm5188, %v5074
      %5364 = vst.msk [vmem:[%s209 + $0x578] sm:$0xff] %vm5188, %v5075
      %5365 = vst.msk [vmem:[%s209 + $0x580] sm:$0xff] %vm5188, %v5076
      %5366 = vst.msk [vmem:[%s209 + $0x588] sm:$0xff] %vm5188, %v5077
      %5367 = vst.msk [vmem:[%s209 + $0x590] sm:$0xff] %vm5188, %v5078
      %5368 = vst.msk [vmem:[%s209 + $0x598] sm:$0xff] %vm5188, %v5079
      %5369 = vst.msk [vmem:[%s209 + $0x5a0] sm:$0xff] %vm5188, %v5080
      %5370 = vst.msk [vmem:[%s209 + $0x5a8] sm:$0xff] %vm5188, %v5081
      %5371 = vst.msk [vmem:[%s209 + $0x5b0] sm:$0xff] %vm5188, %v5082
      %5372 = vst.msk [vmem:[%s209 + $0x5b8] sm:$0xff] %vm5188, %v5083
      %5373 = vst.msk [vmem:[%s209 + $0x5c0] sm:$0xff] %vm5188, %v5084
      %5374 = vst.msk [vmem:[%s209 + $0x5c8] sm:$0xff] %vm5188, %v5085
      %5375 = vst.msk [vmem:[%s209 + $0x5d0] sm:$0xff] %vm5188, %v5086
      %5376 = vst.msk [vmem:[%s209 + $0x5d8] sm:$0xff] %vm5188, %v5087
      %5377 = vst.msk [vmem:[%s209 + $0x5e0] sm:$0xff] %vm5188, %v5088
      %5378 = vst.msk [vmem:[%s209 + $0x5e8] sm:$0xff] %vm5188, %v5089
      %5379 = vst.msk [vmem:[%s209 + $0x5f0] sm:$0xff] %vm5188, %v5090
      %5380 = vst.msk [vmem:[%s209 + $0x5f8] sm:$0xff] %vm5188, %v5091
      %5381 = vst.msk [vmem:[%s209 + $0x600] sm:$0xff] %vm5188, %v5092
      %5382 = vst.msk [vmem:[%s209 + $0x608] sm:$0xff] %vm5188, %v5093
      %5383 = vst.msk [vmem:[%s209 + $0x610] sm:$0xff] %vm5188, %v5094
      %5384 = vst.msk [vmem:[%s209 + $0x618] sm:$0xff] %vm5188, %v5095
      %5385 = vst.msk [vmem:[%s209 + $0x620] sm:$0xff] %vm5188, %v5096
      %5386 = vst.msk [vmem:[%s209 + $0x628] sm:$0xff] %vm5188, %v5097
      %5387 = vst.msk [vmem:[%s209 + $0x630] sm:$0xff] %vm5188, %v5098
      %5388 = vst.msk [vmem:[%s209 + $0x638] sm:$0xff] %vm5188, %v5099
      %5389 = vst.msk [vmem:[%s209 + $0x640] sm:$0xff] %vm5188, %v5100
      %5390 = vst.msk [vmem:[%s209 + $0x648] sm:$0xff] %vm5188, %v5101
      %5391 = vst.msk [vmem:[%s209 + $0x650] sm:$0xff] %vm5188, %v5102
      %5392 = vst.msk [vmem:[%s209 + $0x658] sm:$0xff] %vm5188, %v5103
      %5393 = vst.msk [vmem:[%s209 + $0x660] sm:$0xff] %vm5188, %v5104
      %5394 = vst.msk [vmem:[%s209 + $0x668] sm:$0xff] %vm5188, %v5105
      %5395 = vst.msk [vmem:[%s209 + $0x670] sm:$0xff] %vm5188, %v5106
      %5396 = vst.msk [vmem:[%s209 + $0x678] sm:$0xff] %vm5188, %v5107
      %5397 = vst.msk [vmem:[%s209 + $0x680] sm:$0xff] %vm5188, %v5108
      %5398 = vst.msk [vmem:[%s209 + $0x688] sm:$0xff] %vm5188, %v5109
      %5399 = vst.msk [vmem:[%s209 + $0x690] sm:$0xff] %vm5188, %v5110
      %5400 = vst.msk [vmem:[%s209 + $0x698] sm:$0xff] %vm5188, %v5111
      %5401 = vst.msk [vmem:[%s209 + $0x6a0] sm:$0xff] %vm5188, %v5112
      %5402 = vst.msk [vmem:[%s209 + $0x6a8] sm:$0xff] %vm5188, %v5113
      %5403 = vst.msk [vmem:[%s209 + $0x6b0] sm:$0xff] %vm5188, %v5114
      %5404 = vst.msk [vmem:[%s209 + $0x6b8] sm:$0xff] %vm5188, %v5115
      %5405 = vst.msk [vmem:[%s209 + $0x6c0] sm:$0xff] %vm5188, %v5116
      %5406 = vst.msk [vmem:[%s209 + $0x6c8] sm:$0xff] %vm5188, %v5117
      %5407 = vst.msk [vmem:[%s209 + $0x6d0] sm:$0xff] %vm5188, %v5118
      %5408 = vst.msk [vmem:[%s209 + $0x6d8] sm:$0xff] %vm5188, %v5119
      %5409 = vst.msk [vmem:[%s209 + $0x6e0] sm:$0xff] %vm5188, %v5120
      %5410 = vst.msk [vmem:[%s209 + $0x6e8] sm:$0xff] %vm5188, %v5121
      %5411 = vst.msk [vmem:[%s209 + $0x6f0] sm:$0xff] %vm5188, %v5122
      %5412 = vst.msk [vmem:[%s209 + $0x6f8] sm:$0xff] %vm5188, %v5123
      %5413 = vst.msk [vmem:[%s209 + $0x700] sm:$0xff] %vm5188, %v5124
      %5414 = vst.msk [vmem:[%s209 + $0x708] sm:$0xff] %vm5188, %v5125
      %5415 = vst.msk [vmem:[%s209 + $0x710] sm:$0xff] %vm5188, %v5126
      %5416 = vst.msk [vmem:[%s209 + $0x718] sm:$0xff] %vm5188, %v5127
      %5417 = vst.msk [vmem:[%s209 + $0x720] sm:$0xff] %vm5188, %v5128
      %5418 = vst.msk [vmem:[%s209 + $0x728] sm:$0xff] %vm5188, %v5129
      %5419 = vst.msk [vmem:[%s209 + $0x730] sm:$0xff] %vm5188, %v5130
      %5420 = vst.msk [vmem:[%s209 + $0x738] sm:$0xff] %vm5188, %v5131
      %5421 = vst.msk [vmem:[%s209 + $0x740] sm:$0xff] %vm5188, %v5132
      %5422 = vst.msk [vmem:[%s209 + $0x748] sm:$0xff] %vm5188, %v5133
      %5423 = vst.msk [vmem:[%s209 + $0x750] sm:$0xff] %vm5188, %v5134
      %5424 = vst.msk [vmem:[%s209 + $0x758] sm:$0xff] %vm5188, %v5135
      %5425 = vst.msk [vmem:[%s209 + $0x760] sm:$0xff] %vm5188, %v5136
      %5426 = vst.msk [vmem:[%s209 + $0x768] sm:$0xff] %vm5188, %v5137
      %5427 = vst.msk [vmem:[%s209 + $0x770] sm:$0xff] %vm5188, %v5138
      %5428 = vst.msk [vmem:[%s209 + $0x778] sm:$0xff] %vm5188, %v5139
      %5429 = vst.msk [vmem:[%s209 + $0x780] sm:$0xff] %vm5188, %v5140
      %5430 = vst.msk [vmem:[%s209 + $0x788] sm:$0xff] %vm5188, %v5141
      %5431 = vst.msk [vmem:[%s209 + $0x790] sm:$0xff] %vm5188, %v5142
      %5432 = vst.msk [vmem:[%s209 + $0x798] sm:$0xff] %vm5188, %v5143
      %5433 = vst.msk [vmem:[%s209 + $0x7a0] sm:$0xff] %vm5188, %v5144
      %5434 = vst.msk [vmem:[%s209 + $0x7a8] sm:$0xff] %vm5188, %v5145
      %5435 = vst.msk [vmem:[%s209 + $0x7b0] sm:$0xff] %vm5188, %v5146
      %5436 = vst.msk [vmem:[%s209 + $0x7b8] sm:$0xff] %vm5188, %v5147
      %5437 = vst.msk [vmem:[%s209 + $0x7c0] sm:$0xff] %vm5188, %v5148
      %5438 = vst.msk [vmem:[%s209 + $0x7c8] sm:$0xff] %vm5188, %v5149
      %5439 = vst.msk [vmem:[%s209 + $0x7d0] sm:$0xff] %vm5188, %v5150
      %5440 = vst.msk [vmem:[%s209 + $0x7d8] sm:$0xff] %vm5188, %v5151
      %5441 = vst.msk [vmem:[%s209 + $0x7e0] sm:$0xff] %vm5188, %v5152
      %5442 = vst.msk [vmem:[%s209 + $0x7e8] sm:$0xff] %vm5188, %v5153
      %5443 = vst.msk [vmem:[%s209 + $0x7f0] sm:$0xff] %vm5188, %v5154
      %5444 = vst.msk [vmem:[%s209 + $0x7f8] sm:$0xff] %vm5188, %v5155
      %5445 = vst.msk [vmem:[%s209 + $0x800] sm:$0xff] %vm5188, %v5156
      %5446 = vst.msk [vmem:[%s209 + $0x808] sm:$0xff] %vm5188, %v5157
      %5447 = vst.msk [vmem:[%s209 + $0x810] sm:$0xff] %vm5188, %v5158
      %5448 = vst.msk [vmem:[%s209 + $0x818] sm:$0xff] %vm5188, %v5159
      %5449 = vst.msk [vmem:[%s209 + $0x820] sm:$0xff] %vm5188, %v5160
      %5450 = vst.msk [vmem:[%s209 + $0x828] sm:$0xff] %vm5188, %v5161
      %5451 = vst.msk [vmem:[%s209 + $0x830] sm:$0xff] %vm5188, %v5162
      %5452 = vst.msk [vmem:[%s209 + $0x838] sm:$0xff] %vm5188, %v5163
      %5453 = vst.msk [vmem:[%s209 + $0x840] sm:$0xff] %vm5188, %v5164
      %5454 = vst.msk [vmem:[%s209 + $0x848] sm:$0xff] %vm5188, %v5165
      %5455 = vst.msk [vmem:[%s209 + $0x850] sm:$0xff] %vm5188, %v5166
      %5456 = vst.msk [vmem:[%s209 + $0x858] sm:$0xff] %vm5188, %v5167
      %5457 = vst.msk [vmem:[%s209 + $0x860] sm:$0xff] %vm5188, %v5168
      %5458 = vst.msk [vmem:[%s209 + $0x868] sm:$0xff] %vm5188, %v5169
      %5459 = vst.msk [vmem:[%s209 + $0x870] sm:$0xff] %vm5188, %v5170
      %5460 = vst.msk [vmem:[%s209 + $0x878] sm:$0xff] %vm5188, %v5171
      %5461 = vst.msk [vmem:[%s209 + $0x880] sm:$0xff] %vm5188, %v5172
      %5462 = vst.msk [vmem:[%s209 + $0x888] sm:$0xff] %vm5188, %v5173
      %5463 = vst.msk [vmem:[%s209 + $0x890] sm:$0xff] %vm5188, %v5174
      %5464 = vst.msk [vmem:[%s209 + $0x898] sm:$0xff] %vm5188, %v5175
      %5465 = vst.msk [vmem:[%s209 + $0x8a0] sm:$0xff] %vm5188, %v5176
      %5466 = vst.msk [vmem:[%s209 + $0x8a8] sm:$0xff] %vm5188, %v5177
      %5467 = vst.msk [vmem:[%s209 + $0x8b0] sm:$0xff] %vm5188, %v5178
      %5468 = vst.msk [vmem:[%s209 + $0x8b8] sm:$0xff] %vm5188, %v5179
      %5469 = vst.msk [vmem:[%s209 + $0x8c0] sm:$0xff] %vm5188, %v5180
      %5470 = vst.msk [vmem:[%s209 + $0x8c8] sm:$0xff] %vm5188, %v5181
      %5471 = vst.msk [vmem:[%s209 + $0x8d0] sm:$0xff] %vm5188, %v5182
      %5472 = vst.msk [vmem:[%s209 + $0x8d8] sm:$0xff] %vm5188, %v5183
      %5473 = vst.msk [vmem:[%s209 + $0x8e0] sm:$0xff] %vm5188, %v5184
      %5474 = vst.msk [vmem:[%s209 + $0x8e8] sm:$0xff] %vm5188, %v5185
      %5475 = vst.msk [vmem:[%s209 + $0x8f0] sm:$0xff] %vm5188, %v5186
      %5476 = vst.msk [vmem:[%s209 + $0x8f8] sm:$0xff] %vm5188, %v5187
      %p5477 = scmp.lt.s32.totalorder %s19, 1
      %s5478 = scalar_select %p5477, %s19, 1
      %p5479 = scmp.lt.s32.totalorder %s18, 0
      %s5480 = scalar_select %p5479, %s18, 0
      %s5481 = smul.addr %s5478, 288
      %s5482 = sadd.s32 %s5480, %s5481
      %s5483 = smul.addr %s5482, 8
      %s5484 = scalar_lea.vmem %s3, %s5483
      // Predicated region
      $region33: #{update_block_forward.3} parent=31 // pred_check
        %p5485 = pneg %p116
      $region34: #{update_block_forward.3} parent=31 // pred_check_branch
        %5487 = sbr.rel (%p5485) target = $region36
      $region35: #{update_block_forward.3} parent=31 // pred_region
        _
      $region36: #{update_block_forward.3} parent=31 // pred_fallthru
        _
    $region32: #{update_block_forward.3} parent=5 // pred_fallthru
      _
    %p5488 = scmp.le.s32.totalorder 2, %s9
    // Predicated region
    $region37: #{update_block_forward.3} parent=5 // pred_check
      %p5489 = pneg %p5488
    $region38: #{update_block_forward.3} parent=5 // pred_check_branch
      %5491 = sbr.rel (%p5489) target = $region40
    $region39: #{update_block_forward.3} parent=5 // pred_region
      %s5492 = ssub.s32 %s9, 2
      // Predicated region
      $region41: #{update_block_forward.3} parent=39 // pred_check
        %p5493 = pneg %p122
      $region42: #{update_block_forward.3} parent=39 // pred_check_branch
        %5495 = sbr.rel (%p5493) target = $region44
      $region43: #{update_block_forward.3} parent=39 // pred_region
        %p5496 = scmp.lt.s32.totalorder %s21, 1
        %s5497 = scalar_select %p5496, %s21, 1
        %p5498 = scmp.lt.s32.totalorder %s20, 0
        %s5499 = scalar_select %p5498, %s20, 0
        %s5500 = smul.addr %s5497, 288
        %s5501 = sadd.s32 %s5499, %s5500
        %s5502 = smul.addr %s5501, 8
        %s5503 = scalar_lea.vmem %s3, %s5502
      $region44: #{update_block_forward.3} parent=39 // pred_fallthru
        _
    $region40: #{update_block_forward.3} parent=5 // pred_fallthru
      _
  $region6: #{update_block_forward.3} parent=0 // loop_footer
    %s13 = sadd.s32 1, %s9
  $region7: #{update_block_forward.3} parent=0 // loop_footer_branch
    %8 = sbr.rel target = $region3
  $region8: #{update_block_forward.3} parent=0 // loop_exit
    _

// kernel: update_block_forward.2
$region0: #{update_block_forward.2}
  #allocation0 [shape = 'u32[]', space=smem, size = 0x4, offset = 0x4, fixed_abs, tag = 'smem constant byte address 0x4 - core index']
  #allocation1 [shape = 'u32[144,128]{1,0:T(1,128)}', space=vmem, size = 0x12000, scoped, tag = 'internal scratch']
  #allocation2 [shape = 'bf16[3,10,8,32]{3,2,1,0:T(8,128)(2,1)}', space=vmem, size = 0xf000, scoped, tag = 'scratch operand']
  #allocation3 [shape = 'f32[64,512]{1,0:T(8,128)}', space=vmem, size = 0x20000, scoped, tag = 'scratch operand']
  #allocation4 [shape = 'bf16[64,256]{1,0:T(8,128)(2,1)}', space=vmem, size = 0x8000, scoped, tag = 'scratch operand']
  #allocation5 [shape = 'f32[2,8,8]{2,1,0:T(8,128)}', space=vmem, size = 0x2000, scoped, tag = 'scratch operand']
  %s0 = inlined_call_operand.vmem [shape: bf16[2,8,8,32], index: 0, kind: input, shape index: {}]
  %s1 = inlined_call_operand.vmem [shape: bf16[3,3,32,512], index: 1, kind: input, shape index: {}]
  %s2 = inlined_call_operand.vmem [shape: f32[1,512], index: 2, kind: input, shape index: {}]
  %s3 = inlined_call_operand.vmem [shape: bf16[3,3,2,256], index: 3, kind: input, shape index: {}]
  %s4 = inlined_call_operand.vmem [shape: f32[2,1], index: 4, kind: input, shape index: {}]
  %s5 = inlined_call_operand.vmem [shape: f32[2,2,64], index: 5, kind: input, shape index: {}]
  %s6 = inlined_call_operand.vmem [shape: bf16[2,64,256], index: 6, kind: output, shape index: {0}]
  %s7 = inlined_call_operand.vmem [shape: f32[2,2,64], index: 7, kind: output, shape index: {1}]
  %8 = xla_tuple %s6, %s7
  %s9 = sld [smem:[#allocation0]]
  $region65: #{update_block_forward.2} parent=0
    _
  %s11 = ssub.s32 1, %s9
  %s12 = scalar_select 0, %s11, %s9
  loop: start=0, step=1, limit=4
  $region2: #{update_block_forward.2} parent=0 // loop_pre_header
    _
  $region3: #{update_block_forward.2} parent=0 // loop_header
    %s14 = sphi 0, %s18
    %p15 = scmp.ge.s32.totalorder %s14, 4
    %s24 = sphi 0, %s26
    %s27 = sphi 0, %s24
    %s28 = sphi 0, %s27
    %s44 = sphi 0, %s28
    %s48 = sphi 0, %s48
    %s50 = sphi 0, %s48
    %s51 = sphi 0, %s50
    %s65 = sphi 0, %s51
    %s69 = sphi 0, %s69
    %s71 = sphi 0, %s69
    %s72 = sphi 0, %s71
    %s86 = sphi 0, %s72
    %s90 = sphi 0, %s90
    %s92 = sphi 0, %s90
    %s93 = sphi 0, %s92
    %s107 = sphi 0, %s93
    %s111 = sphi 0, %s111
    %s113 = sphi 0, %s111
    %s114 = sphi 0, %s113
    %s128 = sphi 0, %s114
    %s134 = sphi 0, %s136
    %s137 = sphi 0, %s134
    %s138 = sphi 0, %s137
    %s154 = sphi 0, %s138
    %s160 = sphi 0, %s162
    %s163 = sphi 0, %s160
    %s164 = sphi 0, %s163
    %s180 = sphi 0, %s164
    %s186 = sphi 0, %s188
    %s189 = sphi 0, %s186
    %s190 = sphi 0, %s189
    %s206 = sphi 0, %s190
  $region4: #{update_block_forward.2} parent=0 // loop_header_branch
    %17 = sbr.rel (%p15) target = $region8
  $region5: #{update_block_forward.2} parent=0 // loop_body
    %s19 = ssub.s32 %s14, 1
    %s20 = ssub.s32 %s14, 2
    %s21 = sadd.s32 %s14, 1
    %s22 = ssub.s32 %s14, %s21
    %p23 = scmp.eq.s32.totalorder %s22, 0
    %s25 = sadd.s32 %s24, 1
    %s26 = scalar_select %p23, %s24, %s25
    %p29 = pneg %p23
    %p30 = scmp.eq.s32.totalorder %s14, 1
    %p31 = por %p29, %p30
    %p32 = scmp.ne.s32.totalorder %s24, %s27
    %p33 = scmp.eq.s32.totalorder %s14, 0
    %p34 = por %p32, %p33
    %p35 = scmp.ne.s32.totalorder %s24, %s27
    %p36 = scmp.eq.s32.totalorder %s19, 1
    %p37 = por %p35, %p36
    %p38 = scmp.ne.s32.totalorder %s27, %s28
    %p39 = scmp.eq.s32.totalorder %s19, 0
    %p40 = por %p38, %p39
    %p41 = scmp.ne.s32.totalorder %s27, %s28
    %p42 = scmp.eq.s32.totalorder %s20, 1
    %p43 = por %p41, %p42
    %p45 = scmp.ne.s32.totalorder %s28, %s44
    %p46 = scmp.eq.s32.totalorder %s20, 0
    %p47 = por %p45, %p46
    %s49 = sadd.s32 %s48, 1
    %p52 = scmp.eq.s32.totalorder %s14, 1
    %p53 = scmp.ne.s32.totalorder %s48, %s50
    %p54 = scmp.eq.s32.totalorder %s14, 0
    %p55 = por %p53, %p54
    %p56 = scmp.ne.s32.totalorder %s48, %s50
    %p57 = scmp.eq.s32.totalorder %s19, 1
    %p58 = por %p56, %p57
    %p59 = scmp.ne.s32.totalorder %s50, %s51
    %p60 = scmp.eq.s32.totalorder %s19, 0
    %p61 = por %p59, %p60
    %p62 = scmp.ne.s32.totalorder %s50, %s51
    %p63 = scmp.eq.s32.totalorder %s20, 1
    %p64 = por %p62, %p63
    %p66 = scmp.ne.s32.totalorder %s51, %s65
    %p67 = scmp.eq.s32.totalorder %s20, 0
    %p68 = por %p66, %p67
    %s70 = sadd.s32 %s69, 1
    %p73 = scmp.eq.s32.totalorder %s14, 1
    %p74 = scmp.ne.s32.totalorder %s69, %s71
    %p75 = scmp.eq.s32.totalorder %s14, 0
    %p76 = por %p74, %p75
    %p77 = scmp.ne.s32.totalorder %s69, %s71
    %p78 = scmp.eq.s32.totalorder %s19, 1
    %p79 = por %p77, %p78
    %p80 = scmp.ne.s32.totalorder %s71, %s72
    %p81 = scmp.eq.s32.totalorder %s19, 0
    %p82 = por %p80, %p81
    %p83 = scmp.ne.s32.totalorder %s71, %s72
    %p84 = scmp.eq.s32.totalorder %s20, 1
    %p85 = por %p83, %p84
    %p87 = scmp.ne.s32.totalorder %s72, %s86
    %p88 = scmp.eq.s32.totalorder %s20, 0
    %p89 = por %p87, %p88
    %s91 = sadd.s32 %s90, 1
    %p94 = scmp.eq.s32.totalorder %s14, 1
    %p95 = scmp.ne.s32.totalorder %s90, %s92
    %p96 = scmp.eq.s32.totalorder %s14, 0
    %p97 = por %p95, %p96
    %p98 = scmp.ne.s32.totalorder %s90, %s92
    %p99 = scmp.eq.s32.totalorder %s19, 1
    %p100 = por %p98, %p99
    %p101 = scmp.ne.s32.totalorder %s92, %s93
    %p102 = scmp.eq.s32.totalorder %s19, 0
    %p103 = por %p101, %p102
    %p104 = scmp.ne.s32.totalorder %s92, %s93
    %p105 = scmp.eq.s32.totalorder %s20, 1
    %p106 = por %p104, %p105
    %p108 = scmp.ne.s32.totalorder %s93, %s107
    %p109 = scmp.eq.s32.totalorder %s20, 0
    %p110 = por %p108, %p109
    %s112 = sadd.s32 %s111, 1
    %p115 = scmp.eq.s32.totalorder %s14, 1
    %p116 = scmp.ne.s32.totalorder %s111, %s113
    %p117 = scmp.eq.s32.totalorder %s14, 0
    %p118 = por %p116, %p117
    %p119 = scmp.ne.s32.totalorder %s111, %s113
    %p120 = scmp.eq.s32.totalorder %s19, 1
    %p121 = por %p119, %p120
    %p122 = scmp.ne.s32.totalorder %s113, %s114
    %p123 = scmp.eq.s32.totalorder %s19, 0
    %p124 = por %p122, %p123
    %p125 = scmp.ne.s32.totalorder %s113, %s114
    %p126 = scmp.eq.s32.totalorder %s20, 1
    %p127 = por %p125, %p126
    %p129 = scmp.ne.s32.totalorder %s114, %s128
    %p130 = scmp.eq.s32.totalorder %s20, 0
    %p131 = por %p129, %p130
    %s132 = ssub.s32 %s14, %s21
    %p133 = scmp.eq.s32.totalorder %s132, 0
    %s135 = sadd.s32 %s134, 1
    %s136 = scalar_select %p133, %s134, %s135
    %p139 = pneg %p133
    %p140 = scmp.eq.s32.totalorder %s14, 1
    %p141 = por %p139, %p140
    %p142 = scmp.ne.s32.totalorder %s134, %s137
    %p143 = scmp.eq.s32.totalorder %s14, 0
    %p144 = por %p142, %p143
    %p145 = scmp.ne.s32.totalorder %s134, %s137
    %p146 = scmp.eq.s32.totalorder %s19, 1
    %p147 = por %p145, %p146
    %p148 = scmp.ne.s32.totalorder %s137, %s138
    %p149 = scmp.eq.s32.totalorder %s19, 0
    %p150 = por %p148, %p149
    %p151 = scmp.ne.s32.totalorder %s137, %s138
    %p152 = scmp.eq.s32.totalorder %s20, 1
    %p153 = por %p151, %p152
    %p155 = scmp.ne.s32.totalorder %s138, %s154
    %p156 = scmp.eq.s32.totalorder %s20, 0
    %p157 = por %p155, %p156
    %s158 = ssub.s32 %s14, %s21
    %p159 = scmp.eq.s32.totalorder %s158, 0
    %s161 = sadd.s32 %s160, 1
    %s162 = scalar_select %p159, %s160, %s161
    %p165 = pneg %p159
    %p166 = scmp.eq.s32.totalorder %s14, 1
    %p167 = por %p165, %p166
    %p168 = scmp.ne.s32.totalorder %s160, %s163
    %p169 = scmp.eq.s32.totalorder %s14, 0
    %p170 = por %p168, %p169
    %p171 = scmp.ne.s32.totalorder %s160, %s163
    %p172 = scmp.eq.s32.totalorder %s19, 1
    %p173 = por %p171, %p172
    %p174 = scmp.ne.s32.totalorder %s163, %s164
    %p175 = scmp.eq.s32.totalorder %s19, 0
    %p176 = por %p174, %p175
    %p177 = scmp.ne.s32.totalorder %s163, %s164
    %p178 = scmp.eq.s32.totalorder %s20, 1
    %p179 = por %p177, %p178
    %p181 = scmp.ne.s32.totalorder %s164, %s180
    %p182 = scmp.eq.s32.totalorder %s20, 0
    %p183 = por %p181, %p182
    %s184 = ssub.s32 %s14, %s21
    %p185 = scmp.eq.s32.totalorder %s184, 0
    %s187 = sadd.s32 %s186, 1
    %s188 = scalar_select %p185, %s186, %s187
    %p191 = pneg %p185
    %p192 = scmp.eq.s32.totalorder %s14, 1
    %p193 = por %p191, %p192
    %p194 = scmp.ne.s32.totalorder %s186, %s189
    %p195 = scmp.eq.s32.totalorder %s14, 0
    %p196 = por %p194, %p195
    %p197 = scmp.ne.s32.totalorder %s186, %s189
    %p198 = scmp.eq.s32.totalorder %s19, 1
    %p199 = por %p197, %p198
    %p200 = scmp.ne.s32.totalorder %s189, %s190
    %p201 = scmp.eq.s32.totalorder %s19, 0
    %p202 = por %p200, %p201
    %p203 = scmp.ne.s32.totalorder %s189, %s190
    %p204 = scmp.eq.s32.totalorder %s20, 1
    %p205 = por %p203, %p204
    %p207 = scmp.ne.s32.totalorder %s190, %s206
    %p208 = scmp.eq.s32.totalorder %s20, 0
    %p209 = por %p207, %p208
    %p210 = scmp.le.s32.totalorder 1, %s14
    %p211 = scmp.lt.s32.totalorder %s14, 3
    %p212 = pnand %p210, %p211
    %p213 = pneg %p212
    // Predicated region
    $region9: #{update_block_forward.2} parent=5 // pred_check
      _
    $region10: #{update_block_forward.2} parent=5 // pred_check_branch
      %215 = sbr.rel (%p212) target = $region12
    $region11: #{update_block_forward.2} parent=5 // pred_region
      %s216 = ssub.s32 %s14, 1
      // Predicated region
      $region13: #{update_block_forward.2} parent=11 // pred_check
        %p217 = pneg %p61
      $region14: #{update_block_forward.2} parent=11 // pred_check_branch
        %219 = sbr.rel (%p217) target = $region16
      $region15: #{update_block_forward.2} parent=11 // pred_region
        _
      $region16: #{update_block_forward.2} parent=11 // pred_fallthru
        _
      // Predicated region
      $region17: #{update_block_forward.2} parent=11 // pred_check
        %p220 = pneg %p82
      $region18: #{update_block_forward.2} parent=11 // pred_check_branch
        %222 = sbr.rel (%p220) target = $region20
      $region19: #{update_block_forward.2} parent=11 // pred_region
        _
      $region20: #{update_block_forward.2} parent=11 // pred_fallthru
        _
      // Predicated region
      $region21: #{update_block_forward.2} parent=11 // pred_check
        %p223 = pneg %p103
      $region22: #{update_block_forward.2} parent=11 // pred_check_branch
        %225 = sbr.rel (%p223) target = $region24
      $region23: #{update_block_forward.2} parent=11 // pred_region
        _
      $region24: #{update_block_forward.2} parent=11 // pred_fallthru
        _
      // Predicated region
      $region25: #{update_block_forward.2} parent=11 // pred_check
        %p226 = pneg %p124
      $region26: #{update_block_forward.2} parent=11 // pred_check_branch
        %228 = sbr.rel (%p226) target = $region28
      $region27: #{update_block_forward.2} parent=11 // pred_region
        _
      $region28: #{update_block_forward.2} parent=11 // pred_fallthru
        _
    $region12: #{update_block_forward.2} parent=5 // pred_fallthru
      _
    %p229 = scmp.lt.s32.totalorder %s14, 2
    // Predicated region
    $region29: #{update_block_forward.2} parent=5 // pred_check
      %p230 = pneg %p229
    $region30: #{update_block_forward.2} parent=5 // pred_check_branch
      %232 = sbr.rel (%p230) target = $region32
    $region31: #{update_block_forward.2} parent=5 // pred_region
      // Predicated region
      $region33: #{update_block_forward.2} parent=31 // pred_check
        %p233 = pneg %p34
      $region34: #{update_block_forward.2} parent=31 // pred_check_branch
        %235 = sbr.rel (%p233) target = $region36
      $region35: #{update_block_forward.2} parent=31 // pred_region
        %p236 = scmp.lt.s32.totalorder %s14, 1
        %s237 = scalar_select %p236, %s14, 1
        %s238 = smul.addr %s237, 8
        %s239 = smul.addr %s238, 4
        %s240 = scalar_lea.vmem %s0, %s239
      $region36: #{update_block_forward.2} parent=31 // pred_fallthru
        _
      // Predicated region
      $region37: #{update_block_forward.2} parent=31 // pred_check
        %p241 = pneg %p144
      $region38: #{update_block_forward.2} parent=31 // pred_check_branch
        %243 = sbr.rel (%p241) target = $region40
      $region39: #{update_block_forward.2} parent=31 // pred_region
        %p244 = scmp.lt.s32.totalorder %s14, 1
        %s245 = scalar_select %p244, %s14, 1
        %s246 = smul.addr %s245, 2
        %s247 = scalar_lea.vmem %s5, %s246
      $region40: #{update_block_forward.2} parent=31 // pred_fallthru
        _
    $region32: #{update_block_forward.2} parent=5 // pred_fallthru
      _
    %p248 = scmp.le.s32.totalorder 1, %s14
    %p249 = scmp.lt.s32.totalorder %s14, 3
    %p250 = pnand %p248, %p249
    %p251 = pneg %p250
    // Predicated region
    $region41: #{update_block_forward.2} parent=5 // pred_check
      _
    $region42: #{update_block_forward.2} parent=5 // pred_check_branch
      %253 = sbr.rel (%p250) target = $region44
    $region43: #{update_block_forward.2} parent=5 // pred_region
      %s254 = ssub.s32 %s14, 1
      %p255 = scmp.lt.s32.totalorder %s19, 1
      %s256 = scalar_select %p255, %s19, 1
      %s257 = smul.addr %s256, 8
      %s258 = smul.addr %s257, 4
      %s259 = scalar_lea.vmem %s0, %s258
      %p260 = pneg %p40
      %p261 = pneg %p37
      %p262 = pneg %p61
      %p263 = pneg %p58
      %p264 = pneg %p82
      %p265 = pneg %p79
      %p266 = pneg %p103
      %p267 = pneg %p100
      %p268 = pneg %p124
      %p269 = pneg %p121
      %p270 = scmp.lt.s32.totalorder %s19, 1
      %s271 = scalar_select %p270, %s19, 1
      %s272 = smul.addr %s271, 2
      %s273 = scalar_lea.vmem %s5, %s272
      %p274 = pneg %p150
      %p275 = pneg %p147
      %p276 = pneg %p176
      %p277 = pneg %p173
      %p278 = scmp.lt.s32.totalorder %s19, 1
      %s279 = scalar_select %p278, %s19, 1
      %s280 = smul.addr %s279, 16
      %s281 = smul.addr %s280, 4
      %s282 = scalar_lea.vmem %s6, %s281
      %p283 = pneg %p202
      %p284 = pneg %p199
      %p285 = scmp.lt.s32.totalorder %s19, 1
      %s286 = scalar_select %p285, %s19, 1
      %s287 = smul.addr %s286, 2
      %s288 = scalar_lea.vmem %s7, %s287
      %p289 = scmp.lt.s32.totalorder %s19, 1
      %s290 = scalar_select %p289, %s19, 1
      %s291 = smul.addr %s290, 8
      %s292 = smul.addr %s291, 4
      %s293 = scalar_lea.vmem %s0, %s292
      %p294 = scmp.lt.s32.totalorder %s19, 1
      %s295 = scalar_select %p294, %s19, 1
      %s296 = smul.addr %s295, 2
      %s297 = scalar_lea.vmem %s5, %s296
      %p298 = scmp.lt.s32.totalorder %s19, 1
      %s299 = scalar_select %p298, %s19, 1
      %s300 = smul.addr %s299, 16
      %s301 = smul.addr %s300, 4
      %s302 = scalar_lea.vmem %s6, %s301
      %p303 = scmp.lt.s32.totalorder %s19, 1
      %s304 = scalar_select %p303, %s19, 1
      %s305 = smul.addr %s304, 2
      %s306 = scalar_lea.vmem %s7, %s305
      %v308 = vld [vmem:[%s293] sm:$0xf]
      %v309 = vld [vmem:[%s293 + $0x4] sm:$0xf]
      %v310 = vld [vmem:[%s293 + $0x8] sm:$0xf]
      %v311 = vld [vmem:[%s293 + $0xc] sm:$0xf]
      %v312 = vld [vmem:[%s293 + $0x10] sm:$0xf]
      %v313 = vld [vmem:[%s293 + $0x14] sm:$0xf]
      %v314 = vld [vmem:[%s293 + $0x18] sm:$0xf]
      %v315 = vld [vmem:[%s293 + $0x1c] sm:$0xf]
      %vm316 = vcmask 257024
      %317 = vst.msk [vmem:[#allocation2] sm:$0xf] %vm316, 0
      %s318 = scalar_lea.vmem [#allocation2], 36
      %319 = vst.msk [vmem:[%s318] sm:$0xf] %vm316, 0
      %s320 = scalar_lea.vmem [#allocation2], 40
      %321 = vst.msk [vmem:[%s320] sm:$0xf] %vm316, 0
      %s322 = scalar_lea.vmem [#allocation2], 76
      %323 = vst.msk [vmem:[%s322] sm:$0xf] %vm316, 0
      %s324 = scalar_lea.vmem [#allocation2], 80
      %325 = vst.msk [vmem:[%s324] sm:$0xf] %vm316, 0
      %s326 = scalar_lea.vmem [#allocation2], 116
      %327 = vst.msk [vmem:[%s326] sm:$0xf] %vm316, 0
      %s328 = scalar_lea.vmem [#allocation2], 44
      %329 = vst.msk [vmem:[%s328] sm:$0xf] %vm316, %v308
      %330 = vst.msk [vmem:[%s328 + $0x4] sm:$0xf] %vm316, %v309
      %331 = vst.msk [vmem:[%s328 + $0x8] sm:$0xf] %vm316, %v310
      %332 = vst.msk [vmem:[%s328 + $0xc] sm:$0xf] %vm316, %v311
      %333 = vst.msk [vmem:[%s328 + $0x10] sm:$0xf] %vm316, %v312
      %334 = vst.msk [vmem:[%s328 + $0x14] sm:$0xf] %vm316, %v313
      %335 = vst.msk [vmem:[%s328 + $0x18] sm:$0xf] %vm316, %v314
      %336 = vst.msk [vmem:[%s328 + $0x1c] sm:$0xf] %vm316, %v315
      %s337 = scalar_lea.vmem [#allocation2], 4
      %vm338 = vcmask 253952
      %vm339 = vsmask.f32 256
      %vm340 = vmand %vm338, %vm339
      %v341 = vld [vmem:[%s337] sm:$0x1]
      %v342 = vsel %vm340, 0, %v341
      %343 = vst [vmem:[%s337] sm:$0x1] %v342
      %v344 = vld [vmem:[%s337 + $0x4] sm:$0x1]
      %v345 = vsel %vm340, 0, %v344
      %346 = vst [vmem:[%s337 + $0x4] sm:$0x1] %v345
      %v347 = vld [vmem:[%s337 + $0x8] sm:$0x1]
      %v348 = vsel %vm340, 0, %v347
      %349 = vst [vmem:[%s337 + $0x8] sm:$0x1] %v348
      %v350 = vld [vmem:[%s337 + $0xc] sm:$0x1]
      %v351 = vsel %vm340, 0, %v350
      %352 = vst [vmem:[%s337 + $0xc] sm:$0x1] %v351
      %v353 = vld [vmem:[%s337 + $0x10] sm:$0x1]
      %v354 = vsel %vm340, 0, %v353
      %355 = vst [vmem:[%s337 + $0x10] sm:$0x1] %v354
      %v356 = vld [vmem:[%s337 + $0x14] sm:$0x1]
      %v357 = vsel %vm340, 0, %v356
      %358 = vst [vmem:[%s337 + $0x14] sm:$0x1] %v357
      %v359 = vld [vmem:[%s337 + $0x18] sm:$0x1]
      %v360 = vsel %vm340, 0, %v359
      %361 = vst [vmem:[%s337 + $0x18] sm:$0x1] %v360
      %v362 = vld [vmem:[%s337 + $0x1c] sm:$0x1]
      %v363 = vsel %vm340, 0, %v362
      %364 = vst [vmem:[%s337 + $0x1c] sm:$0x1] %v363
      %v366 = vshrl.u32 %v308, 16
      %v368 = vrot.slane %v366, 7
      %v369 = vshll.u32 %v308, 16
      %v371 = vor.u32 %v368, %v369
      %v373 = vshrl.u32 %v309, 16
      %v375 = vrot.slane %v373, 7
      %v376 = vshll.u32 %v309, 16
      %v378 = vor.u32 %v375, %v376
      %v380 = vshrl.u32 %v310, 16
      %v382 = vrot.slane %v380, 7
      %v383 = vshll.u32 %v310, 16
      %v385 = vor.u32 %v382, %v383
      %v387 = vshrl.u32 %v311, 16
      %v389 = vrot.slane %v387, 7
      %v390 = vshll.u32 %v311, 16
      %v392 = vor.u32 %v389, %v390
      %v394 = vshrl.u32 %v312, 16
      %v396 = vrot.slane %v394, 7
      %v397 = vshll.u32 %v312, 16
      %v399 = vor.u32 %v396, %v397
      %v401 = vshrl.u32 %v313, 16
      %v403 = vrot.slane %v401, 7
      %v404 = vshll.u32 %v313, 16
      %v406 = vor.u32 %v403, %v404
      %v408 = vshrl.u32 %v314, 16
      %v410 = vrot.slane %v408, 7
      %v411 = vshll.u32 %v314, 16
      %v413 = vor.u32 %v410, %v411
      %v415 = vshrl.u32 %v315, 16
      %v417 = vrot.slane %v415, 7
      %v418 = vshll.u32 %v315, 16
      %v420 = vor.u32 %v417, %v418
      %vm429 = vcmask 257024
      %vm430 = vsmask.f32 7938
      %vm431 = vmand %vm429, %vm430
      %v432 = vld [vmem:[%s337] sm:$0xf]
      %v433 = vsel %vm431, %v371, %v432
      %434 = vst [vmem:[%s337] sm:$0xf] %v433
      %v435 = vld [vmem:[%s337 + $0x4] sm:$0xf]
      %v436 = vsel %vm431, %v378, %v435
      %437 = vst [vmem:[%s337 + $0x4] sm:$0xf] %v436
      %v438 = vld [vmem:[%s337 + $0x8] sm:$0xf]
      %v439 = vsel %vm431, %v385, %v438
      %440 = vst [vmem:[%s337 + $0x8] sm:$0xf] %v439
      %v441 = vld [vmem:[%s337 + $0xc] sm:$0xf]
      %v442 = vsel %vm431, %v392, %v441
      %443 = vst [vmem:[%s337 + $0xc] sm:$0xf] %v442
      %v444 = vld [vmem:[%s337 + $0x10] sm:$0xf]
      %v445 = vsel %vm431, %v399, %v444
      %446 = vst [vmem:[%s337 + $0x10] sm:$0xf] %v445
      %v447 = vld [vmem:[%s337 + $0x14] sm:$0xf]
      %v448 = vsel %vm431, %v406, %v447
      %449 = vst [vmem:[%s337 + $0x14] sm:$0xf] %v448
      %v450 = vld [vmem:[%s337 + $0x18] sm:$0xf]
      %v451 = vsel %vm431, %v413, %v450
      %452 = vst [vmem:[%s337 + $0x18] sm:$0xf] %v451
      %v453 = vld [vmem:[%s337 + $0x1c] sm:$0xf]
      %v454 = vsel %vm431, %v420, %v453
      %455 = vst [vmem:[%s337 + $0x1c] sm:$0xf] %v454
      %s456 = scalar_lea.vmem [#allocation2], 84
      %vm457 = vcmask 257027
      %vm458 = vsmask.f32 7950
      %vm459 = vmand %vm457, %vm458
      %v460 = vld [vmem:[%s456] sm:$0x8]
      %v461 = vsel %vm459, 0, %v460
      %462 = vst [vmem:[%s456] sm:$0x8] %v461
      %v463 = vld [vmem:[%s456 + $0x4] sm:$0x8]
      %v464 = vsel %vm459, 0, %v463
      %465 = vst [vmem:[%s456 + $0x4] sm:$0x8] %v464
      %v466 = vld [vmem:[%s456 + $0x8] sm:$0x8]
      %v467 = vsel %vm459, 0, %v466
      %468 = vst [vmem:[%s456 + $0x8] sm:$0x8] %v467
      %v469 = vld [vmem:[%s456 + $0xc] sm:$0x8]
      %v470 = vsel %vm459, 0, %v469
      %471 = vst [vmem:[%s456 + $0xc] sm:$0x8] %v470
      %v472 = vld [vmem:[%s456 + $0x10] sm:$0x8]
      %v473 = vsel %vm459, 0, %v472
      %474 = vst [vmem:[%s456 + $0x10] sm:$0x8] %v473
      %v475 = vld [vmem:[%s456 + $0x14] sm:$0x8]
      %v476 = vsel %vm459, 0, %v475
      %477 = vst [vmem:[%s456 + $0x14] sm:$0x8] %v476
      %v478 = vld [vmem:[%s456 + $0x18] sm:$0x8]
      %v479 = vsel %vm459, 0, %v478
      %480 = vst [vmem:[%s456 + $0x18] sm:$0x8] %v479
      %v481 = vld [vmem:[%s456 + $0x1c] sm:$0x8]
      %v482 = vsel %vm459, 0, %v481
      %483 = vst [vmem:[%s456 + $0x1c] sm:$0x8] %v482
      %v484 = vrot.slane %v366, 4
      %v485 = vrot.slane %v369, 5
      %v486 = vor.u32 %v484, %v485
      %v487 = vrot.slane %v486, 4
      %v488 = vrot.slane %v373, 4
      %v489 = vrot.slane %v376, 5
      %v490 = vor.u32 %v488, %v489
      %v491 = vrot.slane %v490, 4
      %v492 = vrot.slane %v380, 4
      %v493 = vrot.slane %v383, 5
      %v494 = vor.u32 %v492, %v493
      %v495 = vrot.slane %v494, 4
      %v496 = vrot.slane %v387, 4
      %v497 = vrot.slane %v390, 5
      %v498 = vor.u32 %v496, %v497
      %v499 = vrot.slane %v498, 4
      %v500 = vrot.slane %v394, 4
      %v501 = vrot.slane %v397, 5
      %v502 = vor.u32 %v500, %v501
      %v503 = vrot.slane %v502, 4
      %v504 = vrot.slane %v401, 4
      %v505 = vrot.slane %v404, 5
      %v506 = vor.u32 %v504, %v505
      %v507 = vrot.slane %v506, 4
      %v508 = vrot.slane %v408, 4
      %v509 = vrot.slane %v411, 5
      %v510 = vor.u32 %v508, %v509
      %v511 = vrot.slane %v510, 4
      %v512 = vrot.slane %v415, 4
      %v513 = vrot.slane %v418, 5
      %v514 = vor.u32 %v512, %v513
      %v515 = vrot.slane %v514, 4
      %vm524 = vsmask.f32 3328
      %vm525 = vmand %vm429, %vm524
      %v526 = vld [vmem:[%s456] sm:$0xf]
      %v527 = vsel %vm525, %v487, %v526
      %528 = vst [vmem:[%s456] sm:$0xf] %v527
      %v529 = vld [vmem:[%s456 + $0x4] sm:$0xf]
      %v530 = vsel %vm525, %v491, %v529
      %531 = vst [vmem:[%s456 + $0x4] sm:$0xf] %v530
      %v532 = vld [vmem:[%s456 + $0x8] sm:$0xf]
      %v533 = vsel %vm525, %v495, %v532
      %534 = vst [vmem:[%s456 + $0x8] sm:$0xf] %v533
      %v535 = vld [vmem:[%s456 + $0xc] sm:$0xf]
      %v536 = vsel %vm525, %v499, %v535
      %537 = vst [vmem:[%s456 + $0xc] sm:$0xf] %v536
      %v538 = vld [vmem:[%s456 + $0x10] sm:$0xf]
      %v539 = vsel %vm525, %v503, %v538
      %540 = vst [vmem:[%s456 + $0x10] sm:$0xf] %v539
      %v541 = vld [vmem:[%s456 + $0x14] sm:$0xf]
      %v542 = vsel %vm525, %v507, %v541
      %543 = vst [vmem:[%s456 + $0x14] sm:$0xf] %v542
      %v544 = vld [vmem:[%s456 + $0x18] sm:$0xf]
      %v545 = vsel %vm525, %v511, %v544
      %546 = vst [vmem:[%s456 + $0x18] sm:$0xf] %v545
      %v547 = vld [vmem:[%s456 + $0x1c] sm:$0xf]
      %v548 = vsel %vm525, %v515, %v547
      %549 = vst [vmem:[%s456 + $0x1c] sm:$0xf] %v548
      %v550 = vld [vmem:[#allocation2] sm:$0xf]
      %v551 = vld [vmem:[#allocation2 + $0x4] sm:$0xf]
      %v552 = vld [vmem:[#allocation2 + $0x8] sm:$0xf]
      %v553 = vld [vmem:[#allocation2 + $0xc] sm:$0xf]
      %v554 = vld [vmem:[#allocation2 + $0x10] sm:$0xf]
      %v555 = vld [vmem:[#allocation2 + $0x14] sm:$0xf]
      %v556 = vld [vmem:[#allocation2 + $0x18] sm:$0xf]
      %v557 = vld [vmem:[#allocation2 + $0x1c] sm:$0xf]
      %v558 = vld [vmem:[%s1] sm:$0xff]
      %v559 = vld [vmem:[%s1 + $0x8] sm:$0xff]
      %v560 = vld [vmem:[%s1 + $0x10] sm:$0xff]
      %v561 = vld [vmem:[%s1 + $0x18] sm:$0xff]
      %v562 = vld [vmem:[%s1 + $0x20] sm:$0xff]
      %v563 = vld [vmem:[%s1 + $0x28] sm:$0xff]
      %v564 = vld [vmem:[%s1 + $0x30] sm:$0xff]
      %v565 = vld [vmem:[%s1 + $0x38] sm:$0xff]
      %v574 = vunpack.c.l.b16 %v550
      %v575 = vunpack.c.l.b16 %v551
      %v576 = vunpack.c.l.b16 %v552
      %v577 = vunpack.c.l.b16 %v553
      %v578 = vunpack.c.l.b16 %v554
      %v579 = vunpack.c.l.b16 %v555
      %v580 = vunpack.c.l.b16 %v556
      %v581 = vunpack.c.l.b16 %v557
      %v582 = vpack.c.b16 %v575, %v574
      %v583 = vpack.c.b16 %v577, %v576
      %v584 = vpack.c.b16 %v579, %v578
      %v585 = vpack.c.b16 %v581, %v580
      %v594 = vunpack.c.l.b16 %v558
      %v595 = vunpack.c.h.b16 %v558
      %v596 = vunpack.c.l.b16 %v559
      %v597 = vunpack.c.h.b16 %v559
      %v598 = vunpack.c.l.b16 %v560
      %v599 = vunpack.c.h.b16 %v560
      %v600 = vunpack.c.l.b16 %v561
      %v601 = vunpack.c.h.b16 %v561
      %v602 = vunpack.c.l.b16 %v562
      %v603 = vunpack.c.h.b16 %v562
      %v604 = vunpack.c.l.b16 %v563
      %v605 = vunpack.c.h.b16 %v563
      %v606 = vunpack.c.l.b16 %v564
      %v607 = vunpack.c.h.b16 %v564
      %v608 = vunpack.c.l.b16 %v565
      %v609 = vunpack.c.h.b16 %v565
      %v610 = vpack.c.b16 %v598, %v594
      %v611 = vpack.c.b16 %v599, %v595
      %v612 = vpack.c.b16 %v600, %v596
      %v613 = vpack.c.b16 %v601, %v597
      %v614 = vpack.c.b16 %v606, %v602
      %v615 = vpack.c.b16 %v607, %v603
      %v616 = vpack.c.b16 %v608, %v604
      %v617 = vpack.c.b16 %v609, %v605
      %vm626 = vcmask 261120
      %v628 = vsel %vm626, %v582, 0
      %v631 = vsel %vm626, %v583, 0
      %v634 = vsel %vm626, %v584, 0
      %v637 = vsel %vm626, %v585, 0
      %639 = vmatprep.subr.bf16.mxu0 0
      %640 = vmatpush1.bf16.msra.mxu0 0
      %641 = vmatprep.subr.bf16.mxu0 0
      %642 = vmatpush1.bf16.msra.mxu0 0
      %643 = vmatprep.subr.bf16.mxu0 0
      %644 = vmatpush1.bf16.msra.mxu0 0
      %645 = vmatprep.subr.bf16.mxu0 0
      %646 = vmatpush1.bf16.msra.mxu0 0
      %647 = vmatprep.subr.bf16.mxu0 0
      %648 = vmatpush1.bf16.msra.mxu0 0
      %649 = vmatprep.subr.bf16.mxu0 0
      %650 = vmatpush1.bf16.msra.mxu0 0
      %651 = vmatprep.subr.bf16.mxu0 %v615
      %652 = vmatpush1.bf16.msra.mxu0 %v614
      %653 = vmatprep.subr.bf16.mxu0 %v611
      %654 = vmatpush1.bf16.msra.mxu0 %v610
      %655 = vmatprep.subr.bf16.mxu0 0
      %656 = vmatpush2.bf16.msra.mxu0 0
      %657 = vmatprep.subr.bf16.mxu0 0
      %658 = vmatpush2.bf16.msra.mxu0 0
      %659 = vmatprep.subr.bf16.mxu0 0
      %660 = vmatpush2.bf16.msra.mxu0 0
      %661 = vmatprep.subr.bf16.mxu0 0
      %662 = vmatpush2.bf16.msra.mxu0 0
      %663 = vmatprep.subr.bf16.mxu0 0
      %664 = vmatpush2.bf16.msra.mxu0 0
      %665 = vmatprep.subr.bf16.mxu0 0
      %666 = vmatpush2.bf16.msra.mxu0 0
      %667 = vmatprep.subr.bf16.mxu0 0
      %668 = vmatpush2.bf16.msra.mxu0 0
      %669 = vmatprep.subr.bf16.mxu0 0
      %670 = vmatpush2.bf16.msra.mxu0 0
      %671 = vmatprep.mubr.bf16.mxu0 0
      %672 = vmatmul.mubr.bf16.gmra.mxu0 %v628
      %v673 = vpop.f32.mrf.mxu0
      %v674 = vadd.f32 0.0, %v673
      %v675 = vpop.f32.mrf.mxu0
      %v676 = vadd.f32 0.0, %v675
      %v677 = vpop.f32.mrf.mxu0
      %v678 = vadd.f32 0.0, %v677
      %v679 = vpop.f32.mrf.mxu0
      %v680 = vadd.f32 0.0, %v679
      %681 = vmatprep.mubr.bf16.mxu0 0
      %682 = vmatmul.mubr.bf16.gmra.mxu0 %v631
      %v683 = vpop.f32.mrf.mxu0
      %v684 = vadd.f32 0.0, %v683
      %v685 = vpop.f32.mrf.mxu0
      %v686 = vadd.f32 0.0, %v685
      %v687 = vpop.f32.mrf.mxu0
      %v688 = vadd.f32 0.0, %v687
      %v689 = vpop.f32.mrf.mxu0
      %v690 = vadd.f32 0.0, %v689
      %691 = vmatprep.mubr.bf16.mxu0 0
      %692 = vmatmul.mubr.bf16.gmra.mxu0 %v634
      %v693 = vpop.f32.mrf.mxu0
      %v694 = vadd.f32 0.0, %v693
      %v695 = vpop.f32.mrf.mxu0
      %v696 = vadd.f32 0.0, %v695
      %v697 = vpop.f32.mrf.mxu0
      %v698 = vadd.f32 0.0, %v697
      %v699 = vpop.f32.mrf.mxu0
      %v700 = vadd.f32 0.0, %v699
      %701 = vmatprep.mubr.bf16.mxu0 0
      %702 = vmatmul.mubr.bf16.gmra.mxu0 %v637
      %v703 = vpop.f32.mrf.mxu0
      %v704 = vadd.f32 0.0, %v703
      %v705 = vpop.f32.mrf.mxu0
      %v706 = vadd.f32 0.0, %v705
      %v707 = vpop.f32.mrf.mxu0
      %v708 = vadd.f32 0.0, %v707
      %v709 = vpop.f32.mrf.mxu0
      %v710 = vadd.f32 0.0, %v709
      %711 = vdwg.mxu0
      %712 = vmatprep.subr.bf16.mxu0 0
      %713 = vmatpush1.bf16.msra.mxu0 0
      %714 = vmatprep.subr.bf16.mxu0 0
      %715 = vmatpush1.bf16.msra.mxu0 0
      %716 = vmatprep.subr.bf16.mxu0 0
      %717 = vmatpush1.bf16.msra.mxu0 0
      %718 = vmatprep.subr.bf16.mxu0 0
      %719 = vmatpush1.bf16.msra.mxu0 0
      %720 = vmatprep.subr.bf16.mxu0 0
      %721 = vmatpush1.bf16.msra.mxu0 0
      %722 = vmatprep.subr.bf16.mxu0 0
      %723 = vmatpush1.bf16.msra.mxu0 0
      %724 = vmatprep.subr.bf16.mxu0 %v617
      %725 = vmatpush1.bf16.msra.mxu0 %v616
      %726 = vmatprep.subr.bf16.mxu0 %v613
      %727 = vmatpush1.bf16.msra.mxu0 %v612
      %728 = vmatprep.subr.bf16.mxu0 0
      %729 = vmatpush2.bf16.msra.mxu0 0
      %730 = vmatprep.subr.bf16.mxu0 0
      %731 = vmatpush2.bf16.msra.mxu0 0
      %732 = vmatprep.subr.bf16.mxu0 0
      %733 = vmatpush2.bf16.msra.mxu0 0
      %734 = vmatprep.subr.bf16.mxu0 0
      %735 = vmatpush2.bf16.msra.mxu0 0
      %736 = vmatprep.subr.bf16.mxu0 0
      %737 = vmatpush2.bf16.msra.mxu0 0
      %738 = vmatprep.subr.bf16.mxu0 0
      %739 = vmatpush2.bf16.msra.mxu0 0
      %740 = vmatprep.subr.bf16.mxu0 0
      %741 = vmatpush2.bf16.msra.mxu0 0
      %742 = vmatprep.subr.bf16.mxu0 0
      %743 = vmatpush2.bf16.msra.mxu0 0
      %744 = vmatprep.mubr.bf16.mxu0 0
      %745 = vmatmul.mubr.bf16.gmra.mxu0 %v628
      %v746 = vpop.f32.mrf.mxu0
      %v747 = vadd.f32 0.0, %v746
      %v748 = vpop.f32.mrf.mxu0
      %v749 = vadd.f32 0.0, %v748
      %v750 = vpop.f32.mrf.mxu0
      %v751 = vadd.f32 0.0, %v750
      %v752 = vpop.f32.mrf.mxu0
      %v753 = vadd.f32 0.0, %v752
      %754 = vmatprep.mubr.bf16.mxu0 0
      %755 = vmatmul.mubr.bf16.gmra.mxu0 %v631
      %v756 = vpop.f32.mrf.mxu0
      %v757 = vadd.f32 0.0, %v756
      %v758 = vpop.f32.mrf.mxu0
      %v759 = vadd.f32 0.0, %v758
      %v760 = vpop.f32.mrf.mxu0
      %v761 = vadd.f32 0.0, %v760
      %v762 = vpop.f32.mrf.mxu0
      %v763 = vadd.f32 0.0, %v762
      %764 = vmatprep.mubr.bf16.mxu0 0
      %765 = vmatmul.mubr.bf16.gmra.mxu0 %v634
      %v766 = vpop.f32.mrf.mxu0
      %v767 = vadd.f32 0.0, %v766
      %v768 = vpop.f32.mrf.mxu0
      %v769 = vadd.f32 0.0, %v768
      %v770 = vpop.f32.mrf.mxu0
      %v771 = vadd.f32 0.0, %v770
      %v772 = vpop.f32.mrf.mxu0
      %v773 = vadd.f32 0.0, %v772
      %774 = vmatprep.mubr.bf16.mxu0 0
      %775 = vmatmul.mubr.bf16.gmra.mxu0 %v637
      %v776 = vpop.f32.mrf.mxu0
      %v777 = vadd.f32 0.0, %v776
      %v778 = vpop.f32.mrf.mxu0
      %v779 = vadd.f32 0.0, %v778
      %v780 = vpop.f32.mrf.mxu0
      %v781 = vadd.f32 0.0, %v780
      %v782 = vpop.f32.mrf.mxu0
      %v783 = vadd.f32 0.0, %v782
      %784 = vdwg.mxu0
      %785 = vst [vmem:[#allocation3] sm:$0xff] %v674
      %786 = vst [vmem:[#allocation3 + $0x8] sm:$0xff] %v676
      %787 = vst [vmem:[#allocation3 + $0x10] sm:$0xff] %v747
      %788 = vst [vmem:[#allocation3 + $0x18] sm:$0xff] %v749
      %789 = vst [vmem:[#allocation3 + $0x20] sm:$0xff] %v678
      %790 = vst [vmem:[#allocation3 + $0x28] sm:$0xff] %v680
      %791 = vst [vmem:[#allocation3 + $0x30] sm:$0xff] %v751
      %792 = vst [vmem:[#allocation3 + $0x38] sm:$0xff] %v753
      %793 = vst [vmem:[#allocation3 + $0x40] sm:$0xff] %v684
      %794 = vst [vmem:[#allocation3 + $0x48] sm:$0xff] %v686
      %795 = vst [vmem:[#allocation3 + $0x50] sm:$0xff] %v757
      %796 = vst [vmem:[#allocation3 + $0x58] sm:$0xff] %v759
      %797 = vst [vmem:[#allocation3 + $0x60] sm:$0xff] %v688
      %798 = vst [vmem:[#allocation3 + $0x68] sm:$0xff] %v690
      %799 = vst [vmem:[#allocation3 + $0x70] sm:$0xff] %v761
      %800 = vst [vmem:[#allocation3 + $0x78] sm:$0xff] %v763
      %801 = vst [vmem:[#allocation3 + $0x80] sm:$0xff] %v694
      %802 = vst [vmem:[#allocation3 + $0x88] sm:$0xff] %v696
      %803 = vst [vmem:[#allocation3 + $0x90] sm:$0xff] %v767
      %804 = vst [vmem:[#allocation3 + $0x98] sm:$0xff] %v769
      %805 = vst [vmem:[#allocation3 + $0xa0] sm:$0xff] %v698
      %806 = vst [vmem:[#allocation3 + $0xa8] sm:$0xff] %v700
      %807 = vst [vmem:[#allocation3 + $0xb0] sm:$0xff] %v771
      %808 = vst [vmem:[#allocation3 + $0xb8] sm:$0xff] %v773
      %809 = vst [vmem:[#allocation3 + $0xc0] sm:$0xff] %v704
      %810 = vst [vmem:[#allocation3 + $0xc8] sm:$0xff] %v706
      %811 = vst [vmem:[#allocation3 + $0xd0] sm:$0xff] %v777
      %812 = vst [vmem:[#allocation3 + $0xd8] sm:$0xff] %v779
      %813 = vst [vmem:[#allocation3 + $0xe0] sm:$0xff] %v708
      %814 = vst [vmem:[#allocation3 + $0xe8] sm:$0xff] %v710
      %815 = vst [vmem:[#allocation3 + $0xf0] sm:$0xff] %v781
      %816 = vst [vmem:[#allocation3 + $0xf8] sm:$0xff] %v783
      %v817 = vld [vmem:[%s320] sm:$0xf]
      %v818 = vld [vmem:[%s320 + $0x4] sm:$0xf]
      %v819 = vld [vmem:[%s320 + $0x8] sm:$0xf]
      %v820 = vld [vmem:[%s320 + $0xc] sm:$0xf]
      %v821 = vld [vmem:[%s320 + $0x10] sm:$0xf]
      %v822 = vld [vmem:[%s320 + $0x14] sm:$0xf]
      %v823 = vld [vmem:[%s320 + $0x18] sm:$0xf]
      %v824 = vld [vmem:[%s320 + $0x1c] sm:$0xf]
      %s825 = scalar_lea.vmem %s1, 64
      %v826 = vld [vmem:[%s825] sm:$0xff]
      %v827 = vld [vmem:[%s825 + $0x8] sm:$0xff]
      %v828 = vld [vmem:[%s825 + $0x10] sm:$0xff]
      %v829 = vld [vmem:[%s825 + $0x18] sm:$0xff]
      %v830 = vld [vmem:[%s825 + $0x20] sm:$0xff]
      %v831 = vld [vmem:[%s825 + $0x28] sm:$0xff]
      %v832 = vld [vmem:[%s825 + $0x30] sm:$0xff]
      %v833 = vld [vmem:[%s825 + $0x38] sm:$0xff]
      %v842 = vunpack.c.l.b16 %v817
      %v843 = vunpack.c.l.b16 %v818
      %v844 = vunpack.c.l.b16 %v819
      %v845 = vunpack.c.l.b16 %v820
      %v846 = vunpack.c.l.b16 %v821
      %v847 = vunpack.c.l.b16 %v822
      %v848 = vunpack.c.l.b16 %v823
      %v849 = vunpack.c.l.b16 %v824
      %v850 = vpack.c.b16 %v843, %v842
      %v851 = vpack.c.b16 %v845, %v844
      %v852 = vpack.c.b16 %v847, %v846
      %v853 = vpack.c.b16 %v849, %v848
      %v862 = vunpack.c.l.b16 %v826
      %v863 = vunpack.c.h.b16 %v826
      %v864 = vunpack.c.l.b16 %v827
      %v865 = vunpack.c.h.b16 %v827
      %v866 = vunpack.c.l.b16 %v828
      %v867 = vunpack.c.h.b16 %v828
      %v868 = vunpack.c.l.b16 %v829
      %v869 = vunpack.c.h.b16 %v829
      %v870 = vunpack.c.l.b16 %v830
      %v871 = vunpack.c.h.b16 %v830
      %v872 = vunpack.c.l.b16 %v831
      %v873 = vunpack.c.h.b16 %v831
      %v874 = vunpack.c.l.b16 %v832
      %v875 = vunpack.c.h.b16 %v832
      %v876 = vunpack.c.l.b16 %v833
      %v877 = vunpack.c.h.b16 %v833
      %v878 = vpack.c.b16 %v866, %v862
      %v879 = vpack.c.b16 %v867, %v863
      %v880 = vpack.c.b16 %v868, %v864
      %v881 = vpack.c.b16 %v869, %v865
      %v882 = vpack.c.b16 %v874, %v870
      %v883 = vpack.c.b16 %v875, %v871
      %v884 = vpack.c.b16 %v876, %v872
      %v885 = vpack.c.b16 %v877, %v873
      %v895 = vsel %vm626, %v850, 0
      %v898 = vsel %vm626, %v851, 0
      %v901 = vsel %vm626, %v852, 0
      %v904 = vsel %vm626, %v853, 0
      %906 = vmatprep.subr.bf16.mxu0 0
      %907 = vmatpush1.bf16.msra.mxu0 0
      %908 = vmatprep.subr.bf16.mxu0 0
      %909 = vmatpush1.bf16.msra.mxu0 0
      %910 = vmatprep.subr.bf16.mxu0 0
      %911 = vmatpush1.bf16.msra.mxu0 0
      %912 = vmatprep.subr.bf16.mxu0 0
      %913 = vmatpush1.bf16.msra.mxu0 0
      %914 = vmatprep.subr.bf16.mxu0 0
      %915 = vmatpush1.bf16.msra.mxu0 0
      %916 = vmatprep.subr.bf16.mxu0 0
      %917 = vmatpush1.bf16.msra.mxu0 0
      %918 = vmatprep.subr.bf16.mxu0 %v883
      %919 = vmatpush1.bf16.msra.mxu0 %v882
      %920 = vmatprep.subr.bf16.mxu0 %v879
      %921 = vmatpush1.bf16.msra.mxu0 %v878
      %922 = vmatprep.subr.bf16.mxu0 0
      %923 = vmatpush2.bf16.msra.mxu0 0
      %924 = vmatprep.subr.bf16.mxu0 0
      %925 = vmatpush2.bf16.msra.mxu0 0
      %926 = vmatprep.subr.bf16.mxu0 0
      %927 = vmatpush2.bf16.msra.mxu0 0
      %928 = vmatprep.subr.bf16.mxu0 0
      %929 = vmatpush2.bf16.msra.mxu0 0
      %930 = vmatprep.subr.bf16.mxu0 0
      %931 = vmatpush2.bf16.msra.mxu0 0
      %932 = vmatprep.subr.bf16.mxu0 0
      %933 = vmatpush2.bf16.msra.mxu0 0
      %934 = vmatprep.subr.bf16.mxu0 0
      %935 = vmatpush2.bf16.msra.mxu0 0
      %936 = vmatprep.subr.bf16.mxu0 0
      %937 = vmatpush2.bf16.msra.mxu0 0
      %938 = vmatprep.mubr.bf16.mxu0 0
      %939 = vmatmul.mubr.bf16.gmra.mxu0 %v895
      %v940 = vpop.f32.mrf.mxu0
      %v941 = vadd.f32 0.0, %v940
      %v942 = vpop.f32.mrf.mxu0
      %v943 = vadd.f32 0.0, %v942
      %v944 = vpop.f32.mrf.mxu0
      %v945 = vadd.f32 0.0, %v944
      %v946 = vpop.f32.mrf.mxu0
      %v947 = vadd.f32 0.0, %v946
      %948 = vmatprep.mubr.bf16.mxu0 0
      %949 = vmatmul.mubr.bf16.gmra.mxu0 %v898
      %v950 = vpop.f32.mrf.mxu0
      %v951 = vadd.f32 0.0, %v950
      %v952 = vpop.f32.mrf.mxu0
      %v953 = vadd.f32 0.0, %v952
      %v954 = vpop.f32.mrf.mxu0
      %v955 = vadd.f32 0.0, %v954
      %v956 = vpop.f32.mrf.mxu0
      %v957 = vadd.f32 0.0, %v956
      %958 = vmatprep.mubr.bf16.mxu0 0
      %959 = vmatmul.mubr.bf16.gmra.mxu0 %v901
      %v960 = vpop.f32.mrf.mxu0
      %v961 = vadd.f32 0.0, %v960
      %v962 = vpop.f32.mrf.mxu0
      %v963 = vadd.f32 0.0, %v962
      %v964 = vpop.f32.mrf.mxu0
      %v965 = vadd.f32 0.0, %v964
      %v966 = vpop.f32.mrf.mxu0
      %v967 = vadd.f32 0.0, %v966
      %968 = vmatprep.mubr.bf16.mxu0 0
      %969 = vmatmul.mubr.bf16.gmra.mxu0 %v904
      %v970 = vpop.f32.mrf.mxu0
      %v971 = vadd.f32 0.0, %v970
      %v972 = vpop.f32.mrf.mxu0
      %v973 = vadd.f32 0.0, %v972
      %v974 = vpop.f32.mrf.mxu0
      %v975 = vadd.f32 0.0, %v974
      %v976 = vpop.f32.mrf.mxu0
      %v977 = vadd.f32 0.0, %v976
      %978 = vdwg.mxu0
      %979 = vmatprep.subr.bf16.mxu0 0
      %980 = vmatpush1.bf16.msra.mxu0 0
      %981 = vmatprep.subr.bf16.mxu0 0
      %982 = vmatpush1.bf16.msra.mxu0 0
      %983 = vmatprep.subr.bf16.mxu0 0
      %984 = vmatpush1.bf16.msra.mxu0 0
      %985 = vmatprep.subr.bf16.mxu0 0
      %986 = vmatpush1.bf16.msra.mxu0 0
      %987 = vmatprep.subr.bf16.mxu0 0
      %988 = vmatpush1.bf16.msra.mxu0 0
      %989 = vmatprep.subr.bf16.mxu0 0
      %990 = vmatpush1.bf16.msra.mxu0 0
      %991 = vmatprep.subr.bf16.mxu0 %v885
      %992 = vmatpush1.bf16.msra.mxu0 %v884
      %993 = vmatprep.subr.bf16.mxu0 %v881
      %994 = vmatpush1.bf16.msra.mxu0 %v880
      %995 = vmatprep.subr.bf16.mxu0 0
      %996 = vmatpush2.bf16.msra.mxu0 0
      %997 = vmatprep.subr.bf16.mxu0 0
      %998 = vmatpush2.bf16.msra.mxu0 0
      %999 = vmatprep.subr.bf16.mxu0 0
      %1000 = vmatpush2.bf16.msra.mxu0 0
      %1001 = vmatprep.subr.bf16.mxu0 0
      %1002 = vmatpush2.bf16.msra.mxu0 0
      %1003 = vmatprep.subr.bf16.mxu0 0
      %1004 = vmatpush2.bf16.msra.mxu0 0
      %1005 = vmatprep.subr.bf16.mxu0 0
      %1006 = vmatpush2.bf16.msra.mxu0 0
      %1007 = vmatprep.subr.bf16.mxu0 0
      %1008 = vmatpush2.bf16.msra.mxu0 0
      %1009 = vmatprep.subr.bf16.mxu0 0
      %1010 = vmatpush2.bf16.msra.mxu0 0
      %1011 = vmatprep.mubr.bf16.mxu0 0
      %1012 = vmatmul.mubr.bf16.gmra.mxu0 %v895
      %v1013 = vpop.f32.mrf.mxu0
      %v1014 = vadd.f32 0.0, %v1013
      %v1015 = vpop.f32.mrf.mxu0
      %v1016 = vadd.f32 0.0, %v1015
      %v1017 = vpop.f32.mrf.mxu0
      %v1018 = vadd.f32 0.0, %v1017
      %v1019 = vpop.f32.mrf.mxu0
      %v1020 = vadd.f32 0.0, %v1019
      %1021 = vmatprep.mubr.bf16.mxu0 0
      %1022 = vmatmul.mubr.bf16.gmra.mxu0 %v898
      %v1023 = vpop.f32.mrf.mxu0
      %v1024 = vadd.f32 0.0, %v1023
      %v1025 = vpop.f32.mrf.mxu0
      %v1026 = vadd.f32 0.0, %v1025
      %v1027 = vpop.f32.mrf.mxu0
      %v1028 = vadd.f32 0.0, %v1027
      %v1029 = vpop.f32.mrf.mxu0
      %v1030 = vadd.f32 0.0, %v1029
      %1031 = vmatprep.mubr.bf16.mxu0 0
      %1032 = vmatmul.mubr.bf16.gmra.mxu0 %v901
      %v1033 = vpop.f32.mrf.mxu0
      %v1034 = vadd.f32 0.0, %v1033
      %v1035 = vpop.f32.mrf.mxu0
      %v1036 = vadd.f32 0.0, %v1035
      %v1037 = vpop.f32.mrf.mxu0
      %v1038 = vadd.f32 0.0, %v1037
      %v1039 = vpop.f32.mrf.mxu0
      %v1040 = vadd.f32 0.0, %v1039
      %1041 = vmatprep.mubr.bf16.mxu0 0
      %1042 = vmatmul.mubr.bf16.gmra.mxu0 %v904
      %v1043 = vpop.f32.mrf.mxu0
      %v1044 = vadd.f32 0.0, %v1043
      %v1045 = vpop.f32.mrf.mxu0
      %v1046 = vadd.f32 0.0, %v1045
      %v1047 = vpop.f32.mrf.mxu0
      %v1048 = vadd.f32 0.0, %v1047
      %v1049 = vpop.f32.mrf.mxu0
      %v1050 = vadd.f32 0.0, %v1049
      %1051 = vdwg.mxu0
      %v1052 = vld [vmem:[#allocation3] sm:$0xff]
      %v1053 = vld [vmem:[#allocation3 + $0x8] sm:$0xff]
      %v1054 = vld [vmem:[#allocation3 + $0x10] sm:$0xff]
      %v1055 = vld [vmem:[#allocation3 + $0x18] sm:$0xff]
      %v1056 = vld [vmem:[#allocation3 + $0x20] sm:$0xff]
      %v1057 = vld [vmem:[#allocation3 + $0x28] sm:$0xff]
      %v1058 = vld [vmem:[#allocation3 + $0x30] sm:$0xff]
      %v1059 = vld [vmem:[#allocation3 + $0x38] sm:$0xff]
      %v1060 = vld [vmem:[#allocation3 + $0x40] sm:$0xff]
      %v1061 = vld [vmem:[#allocation3 + $0x48] sm:$0xff]
      %v1062 = vld [vmem:[#allocation3 + $0x50] sm:$0xff]
      %v1063 = vld [vmem:[#allocation3 + $0x58] sm:$0xff]
      %v1064 = vld [vmem:[#allocation3 + $0x60] sm:$0xff]
      %v1065 = vld [vmem:[#allocation3 + $0x68] sm:$0xff]
      %v1066 = vld [vmem:[#allocation3 + $0x70] sm:$0xff]
      %v1067 = vld [vmem:[#allocation3 + $0x78] sm:$0xff]
      %v1068 = vld [vmem:[#allocation3 + $0x80] sm:$0xff]
      %v1069 = vld [vmem:[#allocation3 + $0x88] sm:$0xff]
      %v1070 = vld [vmem:[#allocation3 + $0x90] sm:$0xff]
      %v1071 = vld [vmem:[#allocation3 + $0x98] sm:$0xff]
      %v1072 = vld [vmem:[#allocation3 + $0xa0] sm:$0xff]
      %v1073 = vld [vmem:[#allocation3 + $0xa8] sm:$0xff]
      %v1074 = vld [vmem:[#allocation3 + $0xb0] sm:$0xff]
      %v1075 = vld [vmem:[#allocation3 + $0xb8] sm:$0xff]
      %v1076 = vld [vmem:[#allocation3 + $0xc0] sm:$0xff]
      %v1077 = vld [vmem:[#allocation3 + $0xc8] sm:$0xff]
      %v1078 = vld [vmem:[#allocation3 + $0xd0] sm:$0xff]
      %v1079 = vld [vmem:[#allocation3 + $0xd8] sm:$0xff]
      %v1080 = vld [vmem:[#allocation3 + $0xe0] sm:$0xff]
      %v1081 = vld [vmem:[#allocation3 + $0xe8] sm:$0xff]
      %v1082 = vld [vmem:[#allocation3 + $0xf0] sm:$0xff]
      %v1083 = vld [vmem:[#allocation3 + $0xf8] sm:$0xff]
      %v1084 = vadd.f32 %v1052, %v941
      %v1085 = vadd.f32 %v1053, %v943
      %v1086 = vadd.f32 %v1054, %v1014
      %v1087 = vadd.f32 %v1055, %v1016
      %v1088 = vadd.f32 %v1056, %v945
      %v1089 = vadd.f32 %v1057, %v947
      %v1090 = vadd.f32 %v1058, %v1018
      %v1091 = vadd.f32 %v1059, %v1020
      %v1092 = vadd.f32 %v1060, %v951
      %v1093 = vadd.f32 %v1061, %v953
      %v1094 = vadd.f32 %v1062, %v1024
      %v1095 = vadd.f32 %v1063, %v1026
      %v1096 = vadd.f32 %v1064, %v955
      %v1097 = vadd.f32 %v1065, %v957
      %v1098 = vadd.f32 %v1066, %v1028
      %v1099 = vadd.f32 %v1067, %v1030
      %v1100 = vadd.f32 %v1068, %v961
      %v1101 = vadd.f32 %v1069, %v963
      %v1102 = vadd.f32 %v1070, %v1034
      %v1103 = vadd.f32 %v1071, %v1036
      %v1104 = vadd.f32 %v1072, %v965
      %v1105 = vadd.f32 %v1073, %v967
      %v1106 = vadd.f32 %v1074, %v1038
      %v1107 = vadd.f32 %v1075, %v1040
      %v1108 = vadd.f32 %v1076, %v971
      %v1109 = vadd.f32 %v1077, %v973
      %v1110 = vadd.f32 %v1078, %v1044
      %v1111 = vadd.f32 %v1079, %v1046
      %v1112 = vadd.f32 %v1080, %v975
      %v1113 = vadd.f32 %v1081, %v977
      %v1114 = vadd.f32 %v1082, %v1048
      %v1115 = vadd.f32 %v1083, %v1050
      %1116 = vst [vmem:[#allocation3] sm:$0xff] %v1084
      %1117 = vst [vmem:[#allocation3 + $0x8] sm:$0xff] %v1085
      %1118 = vst [vmem:[#allocation3 + $0x10] sm:$0xff] %v1086
      %1119 = vst [vmem:[#allocation3 + $0x18] sm:$0xff] %v1087
      %1120 = vst [vmem:[#allocation3 + $0x20] sm:$0xff] %v1088
      %1121 = vst [vmem:[#allocation3 + $0x28] sm:$0xff] %v1089
      %1122 = vst [vmem:[#allocation3 + $0x30] sm:$0xff] %v1090
      %1123 = vst [vmem:[#allocation3 + $0x38] sm:$0xff] %v1091
      %1124 = vst [vmem:[#allocation3 + $0x40] sm:$0xff] %v1092
      %1125 = vst [vmem:[#allocation3 + $0x48] sm:$0xff] %v1093
      %1126 = vst [vmem:[#allocation3 + $0x50] sm:$0xff] %v1094
      %1127 = vst [vmem:[#allocation3 + $0x58] sm:$0xff] %v1095
      %1128 = vst [vmem:[#allocation3 + $0x60] sm:$0xff] %v1096
      %1129 = vst [vmem:[#allocation3 + $0x68] sm:$0xff] %v1097
      %1130 = vst [vmem:[#allocation3 + $0x70] sm:$0xff] %v1098
      %1131 = vst [vmem:[#allocation3 + $0x78] sm:$0xff] %v1099
      %1132 = vst [vmem:[#allocation3 + $0x80] sm:$0xff] %v1100
      %1133 = vst [vmem:[#allocation3 + $0x88] sm:$0xff] %v1101
      %1134 = vst [vmem:[#allocation3 + $0x90] sm:$0xff] %v1102
      %1135 = vst [vmem:[#allocation3 + $0x98] sm:$0xff] %v1103
      %1136 = vst [vmem:[#allocation3 + $0xa0] sm:$0xff] %v1104
      %1137 = vst [vmem:[#allocation3 + $0xa8] sm:$0xff] %v1105
      %1138 = vst [vmem:[#allocation3 + $0xb0] sm:$0xff] %v1106
      %1139 = vst [vmem:[#allocation3 + $0xb8] sm:$0xff] %v1107
      %1140 = vst [vmem:[#allocation3 + $0xc0] sm:$0xff] %v1108
      %1141 = vst [vmem:[#allocation3 + $0xc8] sm:$0xff] %v1109
      %1142 = vst [vmem:[#allocation3 + $0xd0] sm:$0xff] %v1110
      %1143 = vst [vmem:[#allocation3 + $0xd8] sm:$0xff] %v1111
      %1144 = vst [vmem:[#allocation3 + $0xe0] sm:$0xff] %v1112
      %1145 = vst [vmem:[#allocation3 + $0xe8] sm:$0xff] %v1113
      %1146 = vst [vmem:[#allocation3 + $0xf0] sm:$0xff] %v1114
      %1147 = vst [vmem:[#allocation3 + $0xf8] sm:$0xff] %v1115
      %v1148 = vld [vmem:[%s324] sm:$0xf]
      %v1149 = vld [vmem:[%s324 + $0x4] sm:$0xf]
      %v1150 = vld [vmem:[%s324 + $0x8] sm:$0xf]
      %v1151 = vld [vmem:[%s324 + $0xc] sm:$0xf]
      %v1152 = vld [vmem:[%s324 + $0x10] sm:$0xf]
      %v1153 = vld [vmem:[%s324 + $0x14] sm:$0xf]
      %v1154 = vld [vmem:[%s324 + $0x18] sm:$0xf]
      %v1155 = vld [vmem:[%s324 + $0x1c] sm:$0xf]
      %s1156 = scalar_lea.vmem %s1, 128
      %v1157 = vld [vmem:[%s1156] sm:$0xff]
      %v1158 = vld [vmem:[%s1156 + $0x8] sm:$0xff]
      %v1159 = vld [vmem:[%s1156 + $0x10] sm:$0xff]
      %v1160 = vld [vmem:[%s1156 + $0x18] sm:$0xff]
      %v1161 = vld [vmem:[%s1156 + $0x20] sm:$0xff]
      %v1162 = vld [vmem:[%s1156 + $0x28] sm:$0xff]
      %v1163 = vld [vmem:[%s1156 + $0x30] sm:$0xff]
      %v1164 = vld [vmem:[%s1156 + $0x38] sm:$0xff]
      %v1173 = vunpack.c.l.b16 %v1148
      %v1174 = vunpack.c.l.b16 %v1149
      %v1175 = vunpack.c.l.b16 %v1150
      %v1176 = vunpack.c.l.b16 %v1151
      %v1177 = vunpack.c.l.b16 %v1152
      %v1178 = vunpack.c.l.b16 %v1153
      %v1179 = vunpack.c.l.b16 %v1154
      %v1180 = vunpack.c.l.b16 %v1155
      %v1181 = vpack.c.b16 %v1174, %v1173
      %v1182 = vpack.c.b16 %v1176, %v1175
      %v1183 = vpack.c.b16 %v1178, %v1177
      %v1184 = vpack.c.b16 %v1180, %v1179
      %v1193 = vunpack.c.l.b16 %v1157
      %v1194 = vunpack.c.h.b16 %v1157
      %v1195 = vunpack.c.l.b16 %v1158
      %v1196 = vunpack.c.h.b16 %v1158
      %v1197 = vunpack.c.l.b16 %v1159
      %v1198 = vunpack.c.h.b16 %v1159
      %v1199 = vunpack.c.l.b16 %v1160
      %v1200 = vunpack.c.h.b16 %v1160
      %v1201 = vunpack.c.l.b16 %v1161
      %v1202 = vunpack.c.h.b16 %v1161
      %v1203 = vunpack.c.l.b16 %v1162
      %v1204 = vunpack.c.h.b16 %v1162
      %v1205 = vunpack.c.l.b16 %v1163
      %v1206 = vunpack.c.h.b16 %v1163
      %v1207 = vunpack.c.l.b16 %v1164
      %v1208 = vunpack.c.h.b16 %v1164
      %v1209 = vpack.c.b16 %v1197, %v1193
      %v1210 = vpack.c.b16 %v1198, %v1194
      %v1211 = vpack.c.b16 %v1199, %v1195
      %v1212 = vpack.c.b16 %v1200, %v1196
      %v1213 = vpack.c.b16 %v1205, %v1201
      %v1214 = vpack.c.b16 %v1206, %v1202
      %v1215 = vpack.c.b16 %v1207, %v1203
      %v1216 = vpack.c.b16 %v1208, %v1204
      %v1226 = vsel %vm626, %v1181, 0
      %v1229 = vsel %vm626, %v1182, 0
      %v1232 = vsel %vm626, %v1183, 0
      %v1235 = vsel %vm626, %v1184, 0
      %1237 = vmatprep.subr.bf16.mxu0 0
      %1238 = vmatpush1.bf16.msra.mxu0 0
      %1239 = vmatprep.subr.bf16.mxu0 0
      %1240 = vmatpush1.bf16.msra.mxu0 0
      %1241 = vmatprep.subr.bf16.mxu0 0
      %1242 = vmatpush1.bf16.msra.mxu0 0
      %1243 = vmatprep.subr.bf16.mxu0 0
      %1244 = vmatpush1.bf16.msra.mxu0 0
      %1245 = vmatprep.subr.bf16.mxu0 0
      %1246 = vmatpush1.bf16.msra.mxu0 0
      %1247 = vmatprep.subr.bf16.mxu0 0
      %1248 = vmatpush1.bf16.msra.mxu0 0
      %1249 = vmatprep.subr.bf16.mxu0 %v1214
      %1250 = vmatpush1.bf16.msra.mxu0 %v1213
      %1251 = vmatprep.subr.bf16.mxu0 %v1210
      %1252 = vmatpush1.bf16.msra.mxu0 %v1209
      %1253 = vmatprep.subr.bf16.mxu0 0
      %1254 = vmatpush2.bf16.msra.mxu0 0
      %1255 = vmatprep.subr.bf16.mxu0 0
      %1256 = vmatpush2.bf16.msra.mxu0 0
      %1257 = vmatprep.subr.bf16.mxu0 0
      %1258 = vmatpush2.bf16.msra.mxu0 0
      %1259 = vmatprep.subr.bf16.mxu0 0
      %1260 = vmatpush2.bf16.msra.mxu0 0
      %1261 = vmatprep.subr.bf16.mxu0 0
      %1262 = vmatpush2.bf16.msra.mxu0 0
      %1263 = vmatprep.subr.bf16.mxu0 0
      %1264 = vmatpush2.bf16.msra.mxu0 0
      %1265 = vmatprep.subr.bf16.mxu0 0
      %1266 = vmatpush2.bf16.msra.mxu0 0
      %1267 = vmatprep.subr.bf16.mxu0 0
      %1268 = vmatpush2.bf16.msra.mxu0 0
      %1269 = vmatprep.mubr.bf16.mxu0 0
      %1270 = vmatmul.mubr.bf16.gmra.mxu0 %v1226
      %v1271 = vpop.f32.mrf.mxu0
      %v1272 = vadd.f32 0.0, %v1271
      %v1273 = vpop.f32.mrf.mxu0
      %v1274 = vadd.f32 0.0, %v1273
      %v1275 = vpop.f32.mrf.mxu0
      %v1276 = vadd.f32 0.0, %v1275
      %v1277 = vpop.f32.mrf.mxu0
      %v1278 = vadd.f32 0.0, %v1277
      %1279 = vmatprep.mubr.bf16.mxu0 0
      %1280 = vmatmul.mubr.bf16.gmra.mxu0 %v1229
      %v1281 = vpop.f32.mrf.mxu0
      %v1282 = vadd.f32 0.0, %v1281
      %v1283 = vpop.f32.mrf.mxu0
      %v1284 = vadd.f32 0.0, %v1283
      %v1285 = vpop.f32.mrf.mxu0
      %v1286 = vadd.f32 0.0, %v1285
      %v1287 = vpop.f32.mrf.mxu0
      %v1288 = vadd.f32 0.0, %v1287
      %1289 = vmatprep.mubr.bf16.mxu0 0
      %1290 = vmatmul.mubr.bf16.gmra.mxu0 %v1232
      %v1291 = vpop.f32.mrf.mxu0
      %v1292 = vadd.f32 0.0, %v1291
      %v1293 = vpop.f32.mrf.mxu0
      %v1294 = vadd.f32 0.0, %v1293
      %v1295 = vpop.f32.mrf.mxu0
      %v1296 = vadd.f32 0.0, %v1295
      %v1297 = vpop.f32.mrf.mxu0
      %v1298 = vadd.f32 0.0, %v1297
      %1299 = vmatprep.mubr.bf16.mxu0 0
      %1300 = vmatmul.mubr.bf16.gmra.mxu0 %v1235
      %v1301 = vpop.f32.mrf.mxu0
      %v1302 = vadd.f32 0.0, %v1301
      %v1303 = vpop.f32.mrf.mxu0
      %v1304 = vadd.f32 0.0, %v1303
      %v1305 = vpop.f32.mrf.mxu0
      %v1306 = vadd.f32 0.0, %v1305
      %v1307 = vpop.f32.mrf.mxu0
      %v1308 = vadd.f32 0.0, %v1307
      %1309 = vdwg.mxu0
      %1310 = vmatprep.subr.bf16.mxu0 0
      %1311 = vmatpush1.bf16.msra.mxu0 0
      %1312 = vmatprep.subr.bf16.mxu0 0
      %1313 = vmatpush1.bf16.msra.mxu0 0
      %1314 = vmatprep.subr.bf16.mxu0 0
      %1315 = vmatpush1.bf16.msra.mxu0 0
      %1316 = vmatprep.subr.bf16.mxu0 0
      %1317 = vmatpush1.bf16.msra.mxu0 0
      %1318 = vmatprep.subr.bf16.mxu0 0
      %1319 = vmatpush1.bf16.msra.mxu0 0
      %1320 = vmatprep.subr.bf16.mxu0 0
      %1321 = vmatpush1.bf16.msra.mxu0 0
      %1322 = vmatprep.subr.bf16.mxu0 %v1216
      %1323 = vmatpush1.bf16.msra.mxu0 %v1215
      %1324 = vmatprep.subr.bf16.mxu0 %v1212
      %1325 = vmatpush1.bf16.msra.mxu0 %v1211
      %1326 = vmatprep.subr.bf16.mxu0 0
      %1327 = vmatpush2.bf16.msra.mxu0 0
      %1328 = vmatprep.subr.bf16.mxu0 0
      %1329 = vmatpush2.bf16.msra.mxu0 0
      %1330 = vmatprep.subr.bf16.mxu0 0
      %1331 = vmatpush2.bf16.msra.mxu0 0
      %1332 = vmatprep.subr.bf16.mxu0 0
      %1333 = vmatpush2.bf16.msra.mxu0 0
      %1334 = vmatprep.subr.bf16.mxu0 0
      %1335 = vmatpush2.bf16.msra.mxu0 0
      %1336 = vmatprep.subr.bf16.mxu0 0
      %1337 = vmatpush2.bf16.msra.mxu0 0
      %1338 = vmatprep.subr.bf16.mxu0 0
      %1339 = vmatpush2.bf16.msra.mxu0 0
      %1340 = vmatprep.subr.bf16.mxu0 0
      %1341 = vmatpush2.bf16.msra.mxu0 0
      %1342 = vmatprep.mubr.bf16.mxu0 0
      %1343 = vmatmul.mubr.bf16.gmra.mxu0 %v1226
      %v1344 = vpop.f32.mrf.mxu0
      %v1345 = vadd.f32 0.0, %v1344
      %v1346 = vpop.f32.mrf.mxu0
      %v1347 = vadd.f32 0.0, %v1346
      %v1348 = vpop.f32.mrf.mxu0
      %v1349 = vadd.f32 0.0, %v1348
      %v1350 = vpop.f32.mrf.mxu0
      %v1351 = vadd.f32 0.0, %v1350
      %1352 = vmatprep.mubr.bf16.mxu0 0
      %1353 = vmatmul.mubr.bf16.gmra.mxu0 %v1229
      %v1354 = vpop.f32.mrf.mxu0
      %v1355 = vadd.f32 0.0, %v1354
      %v1356 = vpop.f32.mrf.mxu0
      %v1357 = vadd.f32 0.0, %v1356
      %v1358 = vpop.f32.mrf.mxu0
      %v1359 = vadd.f32 0.0, %v1358
      %v1360 = vpop.f32.mrf.mxu0
      %v1361 = vadd.f32 0.0, %v1360
      %1362 = vmatprep.mubr.bf16.mxu0 0
      %1363 = vmatmul.mubr.bf16.gmra.mxu0 %v1232
      %v1364 = vpop.f32.mrf.mxu0
      %v1365 = vadd.f32 0.0, %v1364
      %v1366 = vpop.f32.mrf.mxu0
      %v1367 = vadd.f32 0.0, %v1366
      %v1368 = vpop.f32.mrf.mxu0
      %v1369 = vadd.f32 0.0, %v1368
      %v1370 = vpop.f32.mrf.mxu0
      %v1371 = vadd.f32 0.0, %v1370
      %1372 = vmatprep.mubr.bf16.mxu0 0
      %1373 = vmatmul.mubr.bf16.gmra.mxu0 %v1235
      %v1374 = vpop.f32.mrf.mxu0
      %v1375 = vadd.f32 0.0, %v1374
      %v1376 = vpop.f32.mrf.mxu0
      %v1377 = vadd.f32 0.0, %v1376
      %v1378 = vpop.f32.mrf.mxu0
      %v1379 = vadd.f32 0.0, %v1378
      %v1380 = vpop.f32.mrf.mxu0
      %v1381 = vadd.f32 0.0, %v1380
      %1382 = vdwg.mxu0
      %v1383 = vld [vmem:[#allocation3] sm:$0xff]
      %v1384 = vld [vmem:[#allocation3 + $0x8] sm:$0xff]
      %v1385 = vld [vmem:[#allocation3 + $0x10] sm:$0xff]
      %v1386 = vld [vmem:[#allocation3 + $0x18] sm:$0xff]
      %v1387 = vld [vmem:[#allocation3 + $0x20] sm:$0xff]
      %v1388 = vld [vmem:[#allocation3 + $0x28] sm:$0xff]
      %v1389 = vld [vmem:[#allocation3 + $0x30] sm:$0xff]
      %v1390 = vld [vmem:[#allocation3 + $0x38] sm:$0xff]
      %v1391 = vld [vmem:[#allocation3 + $0x40] sm:$0xff]
      %v1392 = vld [vmem:[#allocation3 + $0x48] sm:$0xff]
      %v1393 = vld [vmem:[#allocation3 + $0x50] sm:$0xff]
      %v1394 = vld [vmem:[#allocation3 + $0x58] sm:$0xff]
      %v1395 = vld [vmem:[#allocation3 + $0x60] sm:$0xff]
      %v1396 = vld [vmem:[#allocation3 + $0x68] sm:$0xff]
      %v1397 = vld [vmem:[#allocation3 + $0x70] sm:$0xff]
      %v1398 = vld [vmem:[#allocation3 + $0x78] sm:$0xff]
      %v1399 = vld [vmem:[#allocation3 + $0x80] sm:$0xff]
      %v1400 = vld [vmem:[#allocation3 + $0x88] sm:$0xff]
      %v1401 = vld [vmem:[#allocation3 + $0x90] sm:$0xff]
      %v1402 = vld [vmem:[#allocation3 + $0x98] sm:$0xff]
      %v1403 = vld [vmem:[#allocation3 + $0xa0] sm:$0xff]
      %v1404 = vld [vmem:[#allocation3 + $0xa8] sm:$0xff]
      %v1405 = vld [vmem:[#allocation3 + $0xb0] sm:$0xff]
      %v1406 = vld [vmem:[#allocation3 + $0xb8] sm:$0xff]
      %v1407 = vld [vmem:[#allocation3 + $0xc0] sm:$0xff]
      %v1408 = vld [vmem:[#allocation3 + $0xc8] sm:$0xff]
      %v1409 = vld [vmem:[#allocation3 + $0xd0] sm:$0xff]
      %v1410 = vld [vmem:[#allocation3 + $0xd8] sm:$0xff]
      %v1411 = vld [vmem:[#allocation3 + $0xe0] sm:$0xff]
      %v1412 = vld [vmem:[#allocation3 + $0xe8] sm:$0xff]
      %v1413 = vld [vmem:[#allocation3 + $0xf0] sm:$0xff]
      %v1414 = vld [vmem:[#allocation3 + $0xf8] sm:$0xff]
      %v1415 = vadd.f32 %v1383, %v1272
      %v1416 = vadd.f32 %v1384, %v1274
      %v1417 = vadd.f32 %v1385, %v1345
      %v1418 = vadd.f32 %v1386, %v1347
      %v1419 = vadd.f32 %v1387, %v1276
      %v1420 = vadd.f32 %v1388, %v1278
      %v1421 = vadd.f32 %v1389, %v1349
      %v1422 = vadd.f32 %v1390, %v1351
      %v1423 = vadd.f32 %v1391, %v1282
      %v1424 = vadd.f32 %v1392, %v1284
      %v1425 = vadd.f32 %v1393, %v1355
      %v1426 = vadd.f32 %v1394, %v1357
      %v1427 = vadd.f32 %v1395, %v1286
      %v1428 = vadd.f32 %v1396, %v1288
      %v1429 = vadd.f32 %v1397, %v1359
      %v1430 = vadd.f32 %v1398, %v1361
      %v1431 = vadd.f32 %v1399, %v1292
      %v1432 = vadd.f32 %v1400, %v1294
      %v1433 = vadd.f32 %v1401, %v1365
      %v1434 = vadd.f32 %v1402, %v1367
      %v1435 = vadd.f32 %v1403, %v1296
      %v1436 = vadd.f32 %v1404, %v1298
      %v1437 = vadd.f32 %v1405, %v1369
      %v1438 = vadd.f32 %v1406, %v1371
      %v1439 = vadd.f32 %v1407, %v1302
      %v1440 = vadd.f32 %v1408, %v1304
      %v1441 = vadd.f32 %v1409, %v1375
      %v1442 = vadd.f32 %v1410, %v1377
      %v1443 = vadd.f32 %v1411, %v1306
      %v1444 = vadd.f32 %v1412, %v1308
      %v1445 = vadd.f32 %v1413, %v1379
      %v1446 = vadd.f32 %v1414, %v1381
      %1447 = vst [vmem:[#allocation3] sm:$0xff] %v1415
      %1448 = vst [vmem:[#allocation3 + $0x8] sm:$0xff] %v1416
      %1449 = vst [vmem:[#allocation3 + $0x10] sm:$0xff] %v1417
      %1450 = vst [vmem:[#allocation3 + $0x18] sm:$0xff] %v1418
      %1451 = vst [vmem:[#allocation3 + $0x20] sm:$0xff] %v1419
      %1452 = vst [vmem:[#allocation3 + $0x28] sm:$0xff] %v1420
      %1453 = vst [vmem:[#allocation3 + $0x30] sm:$0xff] %v1421
      %1454 = vst [vmem:[#allocation3 + $0x38] sm:$0xff] %v1422
      %1455 = vst [vmem:[#allocation3 + $0x40] sm:$0xff] %v1423
      %1456 = vst [vmem:[#allocation3 + $0x48] sm:$0xff] %v1424
      %1457 = vst [vmem:[#allocation3 + $0x50] sm:$0xff] %v1425
      %1458 = vst [vmem:[#allocation3 + $0x58] sm:$0xff] %v1426
      %1459 = vst [vmem:[#allocation3 + $0x60] sm:$0xff] %v1427
      %1460 = vst [vmem:[#allocation3 + $0x68] sm:$0xff] %v1428
      %1461 = vst [vmem:[#allocation3 + $0x70] sm:$0xff] %v1429
      %1462 = vst [vmem:[#allocation3 + $0x78] sm:$0xff] %v1430
      %1463 = vst [vmem:[#allocation3 + $0x80] sm:$0xff] %v1431
      %1464 = vst [vmem:[#allocation3 + $0x88] sm:$0xff] %v1432
      %1465 = vst [vmem:[#allocation3 + $0x90] sm:$0xff] %v1433
      %1466 = vst [vmem:[#allocation3 + $0x98] sm:$0xff] %v1434
      %1467 = vst [vmem:[#allocation3 + $0xa0] sm:$0xff] %v1435
      %1468 = vst [vmem:[#allocation3 + $0xa8] sm:$0xff] %v1436
      %1469 = vst [vmem:[#allocation3 + $0xb0] sm:$0xff] %v1437
      %1470 = vst [vmem:[#allocation3 + $0xb8] sm:$0xff] %v1438
      %1471 = vst [vmem:[#allocation3 + $0xc0] sm:$0xff] %v1439
      %1472 = vst [vmem:[#allocation3 + $0xc8] sm:$0xff] %v1440
      %1473 = vst [vmem:[#allocation3 + $0xd0] sm:$0xff] %v1441
      %1474 = vst [vmem:[#allocation3 + $0xd8] sm:$0xff] %v1442
      %1475 = vst [vmem:[#allocation3 + $0xe0] sm:$0xff] %v1443
      %1476 = vst [vmem:[#allocation3 + $0xe8] sm:$0xff] %v1444
      %1477 = vst [vmem:[#allocation3 + $0xf0] sm:$0xff] %v1445
      %1478 = vst [vmem:[#allocation3 + $0xf8] sm:$0xff] %v1446
      %v1479 = vld [vmem:[%s337] sm:$0xf]
      %v1480 = vld [vmem:[%s337 + $0x4] sm:$0xf]
      %v1481 = vld [vmem:[%s337 + $0x8] sm:$0xf]
      %v1482 = vld [vmem:[%s337 + $0xc] sm:$0xf]
      %v1483 = vld [vmem:[%s337 + $0x10] sm:$0xf]
      %v1484 = vld [vmem:[%s337 + $0x14] sm:$0xf]
      %v1485 = vld [vmem:[%s337 + $0x18] sm:$0xf]
      %v1486 = vld [vmem:[%s337 + $0x1c] sm:$0xf]
      %s1487 = scalar_lea.vmem %s1, 192
      %v1488 = vld [vmem:[%s1487] sm:$0xff]
      %v1489 = vld [vmem:[%s1487 + $0x8] sm:$0xff]
      %v1490 = vld [vmem:[%s1487 + $0x10] sm:$0xff]
      %v1491 = vld [vmem:[%s1487 + $0x18] sm:$0xff]
      %v1492 = vld [vmem:[%s1487 + $0x20] sm:$0xff]
      %v1493 = vld [vmem:[%s1487 + $0x28] sm:$0xff]
      %v1494 = vld [vmem:[%s1487 + $0x30] sm:$0xff]
      %v1495 = vld [vmem:[%s1487 + $0x38] sm:$0xff]
      %v1504 = vunpack.c.l.b16 %v1479
      %v1505 = vunpack.c.l.b16 %v1480
      %v1506 = vunpack.c.l.b16 %v1481
      %v1507 = vunpack.c.l.b16 %v1482
      %v1508 = vunpack.c.l.b16 %v1483
      %v1509 = vunpack.c.l.b16 %v1484
      %v1510 = vunpack.c.l.b16 %v1485
      %v1511 = vunpack.c.l.b16 %v1486
      %v1512 = vpack.c.b16 %v1505, %v1504
      %v1513 = vpack.c.b16 %v1507, %v1506
      %v1514 = vpack.c.b16 %v1509, %v1508
      %v1515 = vpack.c.b16 %v1511, %v1510
      %v1524 = vunpack.c.l.b16 %v1488
      %v1525 = vunpack.c.h.b16 %v1488
      %v1526 = vunpack.c.l.b16 %v1489
      %v1527 = vunpack.c.h.b16 %v1489
      %v1528 = vunpack.c.l.b16 %v1490
      %v1529 = vunpack.c.h.b16 %v1490
      %v1530 = vunpack.c.l.b16 %v1491
      %v1531 = vunpack.c.h.b16 %v1491
      %v1532 = vunpack.c.l.b16 %v1492
      %v1533 = vunpack.c.h.b16 %v1492
      %v1534 = vunpack.c.l.b16 %v1493
      %v1535 = vunpack.c.h.b16 %v1493
      %v1536 = vunpack.c.l.b16 %v1494
      %v1537 = vunpack.c.h.b16 %v1494
      %v1538 = vunpack.c.l.b16 %v1495
      %v1539 = vunpack.c.h.b16 %v1495
      %v1540 = vpack.c.b16 %v1528, %v1524
      %v1541 = vpack.c.b16 %v1529, %v1525
      %v1542 = vpack.c.b16 %v1530, %v1526
      %v1543 = vpack.c.b16 %v1531, %v1527
      %v1544 = vpack.c.b16 %v1536, %v1532
      %v1545 = vpack.c.b16 %v1537, %v1533
      %v1546 = vpack.c.b16 %v1538, %v1534
      %v1547 = vpack.c.b16 %v1539, %v1535
      %v1557 = vsel %vm626, %v1512, 0
      %v1560 = vsel %vm626, %v1513, 0
      %v1563 = vsel %vm626, %v1514, 0
      %v1566 = vsel %vm626, %v1515, 0
      %1568 = vmatprep.subr.bf16.mxu0 0
      %1569 = vmatpush1.bf16.msra.mxu0 0
      %1570 = vmatprep.subr.bf16.mxu0 0
      %1571 = vmatpush1.bf16.msra.mxu0 0
      %1572 = vmatprep.subr.bf16.mxu0 0
      %1573 = vmatpush1.bf16.msra.mxu0 0
      %1574 = vmatprep.subr.bf16.mxu0 0
      %1575 = vmatpush1.bf16.msra.mxu0 0
      %1576 = vmatprep.subr.bf16.mxu0 0
      %1577 = vmatpush1.bf16.msra.mxu0 0
      %1578 = vmatprep.subr.bf16.mxu0 0
      %1579 = vmatpush1.bf16.msra.mxu0 0
      %1580 = vmatprep.subr.bf16.mxu0 %v1545
      %1581 = vmatpush1.bf16.msra.mxu0 %v1544
      %1582 = vmatprep.subr.bf16.mxu0 %v1541
      %1583 = vmatpush1.bf16.msra.mxu0 %v1540
      %1584 = vmatprep.subr.bf16.mxu0 0
      %1585 = vmatpush2.bf16.msra.mxu0 0
      %1586 = vmatprep.subr.bf16.mxu0 0
      %1587 = vmatpush2.bf16.msra.mxu0 0
      %1588 = vmatprep.subr.bf16.mxu0 0
      %1589 = vmatpush2.bf16.msra.mxu0 0
      %1590 = vmatprep.subr.bf16.mxu0 0
      %1591 = vmatpush2.bf16.msra.mxu0 0
      %1592 = vmatprep.subr.bf16.mxu0 0
      %1593 = vmatpush2.bf16.msra.mxu0 0
      %1594 = vmatprep.subr.bf16.mxu0 0
      %1595 = vmatpush2.bf16.msra.mxu0 0
      %1596 = vmatprep.subr.bf16.mxu0 0
      %1597 = vmatpush2.bf16.msra.mxu0 0
      %1598 = vmatprep.subr.bf16.mxu0 0
      %1599 = vmatpush2.bf16.msra.mxu0 0
      %1600 = vmatprep.mubr.bf16.mxu0 0
      %1601 = vmatmul.mubr.bf16.gmra.mxu0 %v1557
      %v1602 = vpop.f32.mrf.mxu0
      %v1603 = vadd.f32 0.0, %v1602
      %v1604 = vpop.f32.mrf.mxu0
      %v1605 = vadd.f32 0.0, %v1604
      %v1606 = vpop.f32.mrf.mxu0
      %v1607 = vadd.f32 0.0, %v1606
      %v1608 = vpop.f32.mrf.mxu0
      %v1609 = vadd.f32 0.0, %v1608
      %1610 = vmatprep.mubr.bf16.mxu0 0
      %1611 = vmatmul.mubr.bf16.gmra.mxu0 %v1560
      %v1612 = vpop.f32.mrf.mxu0
      %v1613 = vadd.f32 0.0, %v1612
      %v1614 = vpop.f32.mrf.mxu0
      %v1615 = vadd.f32 0.0, %v1614
      %v1616 = vpop.f32.mrf.mxu0
      %v1617 = vadd.f32 0.0, %v1616
      %v1618 = vpop.f32.mrf.mxu0
      %v1619 = vadd.f32 0.0, %v1618
      %1620 = vmatprep.mubr.bf16.mxu0 0
      %1621 = vmatmul.mubr.bf16.gmra.mxu0 %v1563
      %v1622 = vpop.f32.mrf.mxu0
      %v1623 = vadd.f32 0.0, %v1622
      %v1624 = vpop.f32.mrf.mxu0
      %v1625 = vadd.f32 0.0, %v1624
      %v1626 = vpop.f32.mrf.mxu0
      %v1627 = vadd.f32 0.0, %v1626
      %v1628 = vpop.f32.mrf.mxu0
      %v1629 = vadd.f32 0.0, %v1628
      %1630 = vmatprep.mubr.bf16.mxu0 0
      %1631 = vmatmul.mubr.bf16.gmra.mxu0 %v1566
      %v1632 = vpop.f32.mrf.mxu0
      %v1633 = vadd.f32 0.0, %v1632
      %v1634 = vpop.f32.mrf.mxu0
      %v1635 = vadd.f32 0.0, %v1634
      %v1636 = vpop.f32.mrf.mxu0
      %v1637 = vadd.f32 0.0, %v1636
      %v1638 = vpop.f32.mrf.mxu0
      %v1639 = vadd.f32 0.0, %v1638
      %1640 = vdwg.mxu0
      %1641 = vmatprep.subr.bf16.mxu0 0
      %1642 = vmatpush1.bf16.msra.mxu0 0
      %1643 = vmatprep.subr.bf16.mxu0 0
      %1644 = vmatpush1.bf16.msra.mxu0 0
      %1645 = vmatprep.subr.bf16.mxu0 0
      %1646 = vmatpush1.bf16.msra.mxu0 0
      %1647 = vmatprep.subr.bf16.mxu0 0
      %1648 = vmatpush1.bf16.msra.mxu0 0
      %1649 = vmatprep.subr.bf16.mxu0 0
      %1650 = vmatpush1.bf16.msra.mxu0 0
      %1651 = vmatprep.subr.bf16.mxu0 0
      %1652 = vmatpush1.bf16.msra.mxu0 0
      %1653 = vmatprep.subr.bf16.mxu0 %v1547
      %1654 = vmatpush1.bf16.msra.mxu0 %v1546
      %1655 = vmatprep.subr.bf16.mxu0 %v1543
      %1656 = vmatpush1.bf16.msra.mxu0 %v1542
      %1657 = vmatprep.subr.bf16.mxu0 0
      %1658 = vmatpush2.bf16.msra.mxu0 0
      %1659 = vmatprep.subr.bf16.mxu0 0
      %1660 = vmatpush2.bf16.msra.mxu0 0
      %1661 = vmatprep.subr.bf16.mxu0 0
      %1662 = vmatpush2.bf16.msra.mxu0 0
      %1663 = vmatprep.subr.bf16.mxu0 0
      %1664 = vmatpush2.bf16.msra.mxu0 0
      %1665 = vmatprep.subr.bf16.mxu0 0
      %1666 = vmatpush2.bf16.msra.mxu0 0
      %1667 = vmatprep.subr.bf16.mxu0 0
      %1668 = vmatpush2.bf16.msra.mxu0 0
      %1669 = vmatprep.subr.bf16.mxu0 0
      %1670 = vmatpush2.bf16.msra.mxu0 0
      %1671 = vmatprep.subr.bf16.mxu0 0
      %1672 = vmatpush2.bf16.msra.mxu0 0
      %1673 = vmatprep.mubr.bf16.mxu0 0
      %1674 = vmatmul.mubr.bf16.gmra.mxu0 %v1557
      %v1675 = vpop.f32.mrf.mxu0
      %v1676 = vadd.f32 0.0, %v1675
      %v1677 = vpop.f32.mrf.mxu0
      %v1678 = vadd.f32 0.0, %v1677
      %v1679 = vpop.f32.mrf.mxu0
      %v1680 = vadd.f32 0.0, %v1679
      %v1681 = vpop.f32.mrf.mxu0
      %v1682 = vadd.f32 0.0, %v1681
      %1683 = vmatprep.mubr.bf16.mxu0 0
      %1684 = vmatmul.mubr.bf16.gmra.mxu0 %v1560
      %v1685 = vpop.f32.mrf.mxu0
      %v1686 = vadd.f32 0.0, %v1685
      %v1687 = vpop.f32.mrf.mxu0
      %v1688 = vadd.f32 0.0, %v1687
      %v1689 = vpop.f32.mrf.mxu0
      %v1690 = vadd.f32 0.0, %v1689
      %v1691 = vpop.f32.mrf.mxu0
      %v1692 = vadd.f32 0.0, %v1691
      %1693 = vmatprep.mubr.bf16.mxu0 0
      %1694 = vmatmul.mubr.bf16.gmra.mxu0 %v1563
      %v1695 = vpop.f32.mrf.mxu0
      %v1696 = vadd.f32 0.0, %v1695
      %v1697 = vpop.f32.mrf.mxu0
      %v1698 = vadd.f32 0.0, %v1697
      %v1699 = vpop.f32.mrf.mxu0
      %v1700 = vadd.f32 0.0, %v1699
      %v1701 = vpop.f32.mrf.mxu0
      %v1702 = vadd.f32 0.0, %v1701
      %1703 = vmatprep.mubr.bf16.mxu0 0
      %1704 = vmatmul.mubr.bf16.gmra.mxu0 %v1566
      %v1705 = vpop.f32.mrf.mxu0
      %v1706 = vadd.f32 0.0, %v1705
      %v1707 = vpop.f32.mrf.mxu0
      %v1708 = vadd.f32 0.0, %v1707
      %v1709 = vpop.f32.mrf.mxu0
      %v1710 = vadd.f32 0.0, %v1709
      %v1711 = vpop.f32.mrf.mxu0
      %v1712 = vadd.f32 0.0, %v1711
      %1713 = vdwg.mxu0
      %v1714 = vld [vmem:[#allocation3] sm:$0xff]
      %v1715 = vld [vmem:[#allocation3 + $0x8] sm:$0xff]
      %v1716 = vld [vmem:[#allocation3 + $0x10] sm:$0xff]
      %v1717 = vld [vmem:[#allocation3 + $0x18] sm:$0xff]
      %v1718 = vld [vmem:[#allocation3 + $0x20] sm:$0xff]
      %v1719 = vld [vmem:[#allocation3 + $0x28] sm:$0xff]
      %v1720 = vld [vmem:[#allocation3 + $0x30] sm:$0xff]
      %v1721 = vld [vmem:[#allocation3 + $0x38] sm:$0xff]
      %v1722 = vld [vmem:[#allocation3 + $0x40] sm:$0xff]
      %v1723 = vld [vmem:[#allocation3 + $0x48] sm:$0xff]
      %v1724 = vld [vmem:[#allocation3 + $0x50] sm:$0xff]
      %v1725 = vld [vmem:[#allocation3 + $0x58] sm:$0xff]
      %v1726 = vld [vmem:[#allocation3 + $0x60] sm:$0xff]
      %v1727 = vld [vmem:[#allocation3 + $0x68] sm:$0xff]
      %v1728 = vld [vmem:[#allocation3 + $0x70] sm:$0xff]
      %v1729 = vld [vmem:[#allocation3 + $0x78] sm:$0xff]
      %v1730 = vld [vmem:[#allocation3 + $0x80] sm:$0xff]
      %v1731 = vld [vmem:[#allocation3 + $0x88] sm:$0xff]
      %v1732 = vld [vmem:[#allocation3 + $0x90] sm:$0xff]
      %v1733 = vld [vmem:[#allocation3 + $0x98] sm:$0xff]
      %v1734 = vld [vmem:[#allocation3 + $0xa0] sm:$0xff]
      %v1735 = vld [vmem:[#allocation3 + $0xa8] sm:$0xff]
      %v1736 = vld [vmem:[#allocation3 + $0xb0] sm:$0xff]
      %v1737 = vld [vmem:[#allocation3 + $0xb8] sm:$0xff]
      %v1738 = vld [vmem:[#allocation3 + $0xc0] sm:$0xff]
      %v1739 = vld [vmem:[#allocation3 + $0xc8] sm:$0xff]
      %v1740 = vld [vmem:[#allocation3 + $0xd0] sm:$0xff]
      %v1741 = vld [vmem:[#allocation3 + $0xd8] sm:$0xff]
      %v1742 = vld [vmem:[#allocation3 + $0xe0] sm:$0xff]
      %v1743 = vld [vmem:[#allocation3 + $0xe8] sm:$0xff]
      %v1744 = vld [vmem:[#allocation3 + $0xf0] sm:$0xff]
      %v1745 = vld [vmem:[#allocation3 + $0xf8] sm:$0xff]
      %v1746 = vadd.f32 %v1714, %v1603
      %v1747 = vadd.f32 %v1715, %v1605
      %v1748 = vadd.f32 %v1716, %v1676
      %v1749 = vadd.f32 %v1717, %v1678
      %v1750 = vadd.f32 %v1718, %v1607
      %v1751 = vadd.f32 %v1719, %v1609
      %v1752 = vadd.f32 %v1720, %v1680
      %v1753 = vadd.f32 %v1721, %v1682
      %v1754 = vadd.f32 %v1722, %v1613
      %v1755 = vadd.f32 %v1723, %v1615
      %v1756 = vadd.f32 %v1724, %v1686
      %v1757 = vadd.f32 %v1725, %v1688
      %v1758 = vadd.f32 %v1726, %v1617
      %v1759 = vadd.f32 %v1727, %v1619
      %v1760 = vadd.f32 %v1728, %v1690
      %v1761 = vadd.f32 %v1729, %v1692
      %v1762 = vadd.f32 %v1730, %v1623
      %v1763 = vadd.f32 %v1731, %v1625
      %v1764 = vadd.f32 %v1732, %v1696
      %v1765 = vadd.f32 %v1733, %v1698
      %v1766 = vadd.f32 %v1734, %v1627
      %v1767 = vadd.f32 %v1735, %v1629
      %v1768 = vadd.f32 %v1736, %v1700
      %v1769 = vadd.f32 %v1737, %v1702
      %v1770 = vadd.f32 %v1738, %v1633
      %v1771 = vadd.f32 %v1739, %v1635
      %v1772 = vadd.f32 %v1740, %v1706
      %v1773 = vadd.f32 %v1741, %v1708
      %v1774 = vadd.f32 %v1742, %v1637
      %v1775 = vadd.f32 %v1743, %v1639
      %v1776 = vadd.f32 %v1744, %v1710
      %v1777 = vadd.f32 %v1745, %v1712
      %1778 = vst [vmem:[#allocation3] sm:$0xff] %v1746
      %1779 = vst [vmem:[#allocation3 + $0x8] sm:$0xff] %v1747
      %1780 = vst [vmem:[#allocation3 + $0x10] sm:$0xff] %v1748
      %1781 = vst [vmem:[#allocation3 + $0x18] sm:$0xff] %v1749
      %1782 = vst [vmem:[#allocation3 + $0x20] sm:$0xff] %v1750
      %1783 = vst [vmem:[#allocation3 + $0x28] sm:$0xff] %v1751
      %1784 = vst [vmem:[#allocation3 + $0x30] sm:$0xff] %v1752
      %1785 = vst [vmem:[#allocation3 + $0x38] sm:$0xff] %v1753
      %1786 = vst [vmem:[#allocation3 + $0x40] sm:$0xff] %v1754
      %1787 = vst [vmem:[#allocation3 + $0x48] sm:$0xff] %v1755
      %1788 = vst [vmem:[#allocation3 + $0x50] sm:$0xff] %v1756
      %1789 = vst [vmem:[#allocation3 + $0x58] sm:$0xff] %v1757
      %1790 = vst [vmem:[#allocation3 + $0x60] sm:$0xff] %v1758
      %1791 = vst [vmem:[#allocation3 + $0x68] sm:$0xff] %v1759
      %1792 = vst [vmem:[#allocation3 + $0x70] sm:$0xff] %v1760
      %1793 = vst [vmem:[#allocation3 + $0x78] sm:$0xff] %v1761
      %1794 = vst [vmem:[#allocation3 + $0x80] sm:$0xff] %v1762
      %1795 = vst [vmem:[#allocation3 + $0x88] sm:$0xff] %v1763
      %1796 = vst [vmem:[#allocation3 + $0x90] sm:$0xff] %v1764
      %1797 = vst [vmem:[#allocation3 + $0x98] sm:$0xff] %v1765
      %1798 = vst [vmem:[#allocation3 + $0xa0] sm:$0xff] %v1766
      %1799 = vst [vmem:[#allocation3 + $0xa8] sm:$0xff] %v1767
      %1800 = vst [vmem:[#allocation3 + $0xb0] sm:$0xff] %v1768
      %1801 = vst [vmem:[#allocation3 + $0xb8] sm:$0xff] %v1769
      %1802 = vst [vmem:[#allocation3 + $0xc0] sm:$0xff] %v1770
      %1803 = vst [vmem:[#allocation3 + $0xc8] sm:$0xff] %v1771
      %1804 = vst [vmem:[#allocation3 + $0xd0] sm:$0xff] %v1772
      %1805 = vst [vmem:[#allocation3 + $0xd8] sm:$0xff] %v1773
      %1806 = vst [vmem:[#allocation3 + $0xe0] sm:$0xff] %v1774
      %1807 = vst [vmem:[#allocation3 + $0xe8] sm:$0xff] %v1775
      %1808 = vst [vmem:[#allocation3 + $0xf0] sm:$0xff] %v1776
      %1809 = vst [vmem:[#allocation3 + $0xf8] sm:$0xff] %v1777
      %v1810 = vld [vmem:[%s328] sm:$0xf]
      %v1811 = vld [vmem:[%s328 + $0x4] sm:$0xf]
      %v1812 = vld [vmem:[%s328 + $0x8] sm:$0xf]
      %v1813 = vld [vmem:[%s328 + $0xc] sm:$0xf]
      %v1814 = vld [vmem:[%s328 + $0x10] sm:$0xf]
      %v1815 = vld [vmem:[%s328 + $0x14] sm:$0xf]
      %v1816 = vld [vmem:[%s328 + $0x18] sm:$0xf]
      %v1817 = vld [vmem:[%s328 + $0x1c] sm:$0xf]
      %s1818 = scalar_lea.vmem %s1, 256
      %v1819 = vld [vmem:[%s1818] sm:$0xff]
      %v1820 = vld [vmem:[%s1818 + $0x8] sm:$0xff]
      %v1821 = vld [vmem:[%s1818 + $0x10] sm:$0xff]
      %v1822 = vld [vmem:[%s1818 + $0x18] sm:$0xff]
      %v1823 = vld [vmem:[%s1818 + $0x20] sm:$0xff]
      %v1824 = vld [vmem:[%s1818 + $0x28] sm:$0xff]
      %v1825 = vld [vmem:[%s1818 + $0x30] sm:$0xff]
      %v1826 = vld [vmem:[%s1818 + $0x38] sm:$0xff]
      %v1835 = vunpack.c.l.b16 %v1810
      %v1836 = vunpack.c.l.b16 %v1811
      %v1837 = vunpack.c.l.b16 %v1812
      %v1838 = vunpack.c.l.b16 %v1813
      %v1839 = vunpack.c.l.b16 %v1814
      %v1840 = vunpack.c.l.b16 %v1815
      %v1841 = vunpack.c.l.b16 %v1816
      %v1842 = vunpack.c.l.b16 %v1817
      %v1843 = vpack.c.b16 %v1836, %v1835
      %v1844 = vpack.c.b16 %v1838, %v1837
      %v1845 = vpack.c.b16 %v1840, %v1839
      %v1846 = vpack.c.b16 %v1842, %v1841
      %v1855 = vunpack.c.l.b16 %v1819
      %v1856 = vunpack.c.h.b16 %v1819
      %v1857 = vunpack.c.l.b16 %v1820
      %v1858 = vunpack.c.h.b16 %v1820
      %v1859 = vunpack.c.l.b16 %v1821
      %v1860 = vunpack.c.h.b16 %v1821
      %v1861 = vunpack.c.l.b16 %v1822
      %v1862 = vunpack.c.h.b16 %v1822
      %v1863 = vunpack.c.l.b16 %v1823
      %v1864 = vunpack.c.h.b16 %v1823
      %v1865 = vunpack.c.l.b16 %v1824
      %v1866 = vunpack.c.h.b16 %v1824
      %v1867 = vunpack.c.l.b16 %v1825
      %v1868 = vunpack.c.h.b16 %v1825
      %v1869 = vunpack.c.l.b16 %v1826
      %v1870 = vunpack.c.h.b16 %v1826
      %v1871 = vpack.c.b16 %v1859, %v1855
      %v1872 = vpack.c.b16 %v1860, %v1856
      %v1873 = vpack.c.b16 %v1861, %v1857
      %v1874 = vpack.c.b16 %v1862, %v1858
      %v1875 = vpack.c.b16 %v1867, %v1863
      %v1876 = vpack.c.b16 %v1868, %v1864
      %v1877 = vpack.c.b16 %v1869, %v1865
      %v1878 = vpack.c.b16 %v1870, %v1866
      %v1888 = vsel %vm626, %v1843, 0
      %v1891 = vsel %vm626, %v1844, 0
      %v1894 = vsel %vm626, %v1845, 0
      %v1897 = vsel %vm626, %v1846, 0
      %1899 = vmatprep.subr.bf16.mxu0 0
      %1900 = vmatpush1.bf16.msra.mxu0 0
      %1901 = vmatprep.subr.bf16.mxu0 0
      %1902 = vmatpush1.bf16.msra.mxu0 0
      %1903 = vmatprep.subr.bf16.mxu0 0
      %1904 = vmatpush1.bf16.msra.mxu0 0
      %1905 = vmatprep.subr.bf16.mxu0 0
      %1906 = vmatpush1.bf16.msra.mxu0 0
      %1907 = vmatprep.subr.bf16.mxu0 0
      %1908 = vmatpush1.bf16.msra.mxu0 0
      %1909 = vmatprep.subr.bf16.mxu0 0
      %1910 = vmatpush1.bf16.msra.mxu0 0
      %1911 = vmatprep.subr.bf16.mxu0 %v1876
      %1912 = vmatpush1.bf16.msra.mxu0 %v1875
      %1913 = vmatprep.subr.bf16.mxu0 %v1872
      %1914 = vmatpush1.bf16.msra.mxu0 %v1871
      %1915 = vmatprep.subr.bf16.mxu0 0
      %1916 = vmatpush2.bf16.msra.mxu0 0
      %1917 = vmatprep.subr.bf16.mxu0 0
      %1918 = vmatpush2.bf16.msra.mxu0 0
      %1919 = vmatprep.subr.bf16.mxu0 0
      %1920 = vmatpush2.bf16.msra.mxu0 0
      %1921 = vmatprep.subr.bf16.mxu0 0
      %1922 = vmatpush2.bf16.msra.mxu0 0
      %1923 = vmatprep.subr.bf16.mxu0 0
      %1924 = vmatpush2.bf16.msra.mxu0 0
      %1925 = vmatprep.subr.bf16.mxu0 0
      %1926 = vmatpush2.bf16.msra.mxu0 0
      %1927 = vmatprep.subr.bf16.mxu0 0
      %1928 = vmatpush2.bf16.msra.mxu0 0
      %1929 = vmatprep.subr.bf16.mxu0 0
      %1930 = vmatpush2.bf16.msra.mxu0 0
      %1931 = vmatprep.mubr.bf16.mxu0 0
      %1932 = vmatmul.mubr.bf16.gmra.mxu0 %v1888
      %v1933 = vpop.f32.mrf.mxu0
      %v1934 = vadd.f32 0.0, %v1933
      %v1935 = vpop.f32.mrf.mxu0
      %v1936 = vadd.f32 0.0, %v1935
      %v1937 = vpop.f32.mrf.mxu0
      %v1938 = vadd.f32 0.0, %v1937
      %v1939 = vpop.f32.mrf.mxu0
      %v1940 = vadd.f32 0.0, %v1939
      %1941 = vmatprep.mubr.bf16.mxu0 0
      %1942 = vmatmul.mubr.bf16.gmra.mxu0 %v1891
      %v1943 = vpop.f32.mrf.mxu0
      %v1944 = vadd.f32 0.0, %v1943
      %v1945 = vpop.f32.mrf.mxu0
      %v1946 = vadd.f32 0.0, %v1945
      %v1947 = vpop.f32.mrf.mxu0
      %v1948 = vadd.f32 0.0, %v1947
      %v1949 = vpop.f32.mrf.mxu0
      %v1950 = vadd.f32 0.0, %v1949
      %1951 = vmatprep.mubr.bf16.mxu0 0
      %1952 = vmatmul.mubr.bf16.gmra.mxu0 %v1894
      %v1953 = vpop.f32.mrf.mxu0
      %v1954 = vadd.f32 0.0, %v1953
      %v1955 = vpop.f32.mrf.mxu0
      %v1956 = vadd.f32 0.0, %v1955
      %v1957 = vpop.f32.mrf.mxu0
      %v1958 = vadd.f32 0.0, %v1957
      %v1959 = vpop.f32.mrf.mxu0
      %v1960 = vadd.f32 0.0, %v1959
      %1961 = vmatprep.mubr.bf16.mxu0 0
      %1962 = vmatmul.mubr.bf16.gmra.mxu0 %v1897
      %v1963 = vpop.f32.mrf.mxu0
      %v1964 = vadd.f32 0.0, %v1963
      %v1965 = vpop.f32.mrf.mxu0
      %v1966 = vadd.f32 0.0, %v1965
      %v1967 = vpop.f32.mrf.mxu0
      %v1968 = vadd.f32 0.0, %v1967
      %v1969 = vpop.f32.mrf.mxu0
      %v1970 = vadd.f32 0.0, %v1969
      %1971 = vdwg.mxu0
      %1972 = vmatprep.subr.bf16.mxu0 0
      %1973 = vmatpush1.bf16.msra.mxu0 0
      %1974 = vmatprep.subr.bf16.mxu0 0
      %1975 = vmatpush1.bf16.msra.mxu0 0
      %1976 = vmatprep.subr.bf16.mxu0 0
      %1977 = vmatpush1.bf16.msra.mxu0 0
      %1978 = vmatprep.subr.bf16.mxu0 0
      %1979 = vmatpush1.bf16.msra.mxu0 0
      %1980 = vmatprep.subr.bf16.mxu0 0
      %1981 = vmatpush1.bf16.msra.mxu0 0
      %1982 = vmatprep.subr.bf16.mxu0 0
      %1983 = vmatpush1.bf16.msra.mxu0 0
      %1984 = vmatprep.subr.bf16.mxu0 %v1878
      %1985 = vmatpush1.bf16.msra.mxu0 %v1877
      %1986 = vmatprep.subr.bf16.mxu0 %v1874
      %1987 = vmatpush1.bf16.msra.mxu0 %v1873
      %1988 = vmatprep.subr.bf16.mxu0 0
      %1989 = vmatpush2.bf16.msra.mxu0 0
      %1990 = vmatprep.subr.bf16.mxu0 0
      %1991 = vmatpush2.bf16.msra.mxu0 0
      %1992 = vmatprep.subr.bf16.mxu0 0
      %1993 = vmatpush2.bf16.msra.mxu0 0
      %1994 = vmatprep.subr.bf16.mxu0 0
      %1995 = vmatpush2.bf16.msra.mxu0 0
      %1996 = vmatprep.subr.bf16.mxu0 0
      %1997 = vmatpush2.bf16.msra.mxu0 0
      %1998 = vmatprep.subr.bf16.mxu0 0
      %1999 = vmatpush2.bf16.msra.mxu0 0
      %2000 = vmatprep.subr.bf16.mxu0 0
      %2001 = vmatpush2.bf16.msra.mxu0 0
      %2002 = vmatprep.subr.bf16.mxu0 0
      %2003 = vmatpush2.bf16.msra.mxu0 0
      %2004 = vmatprep.mubr.bf16.mxu0 0
      %2005 = vmatmul.mubr.bf16.gmra.mxu0 %v1888
      %v2006 = vpop.f32.mrf.mxu0
      %v2007 = vadd.f32 0.0, %v2006
      %v2008 = vpop.f32.mrf.mxu0
      %v2009 = vadd.f32 0.0, %v2008
      %v2010 = vpop.f32.mrf.mxu0
      %v2011 = vadd.f32 0.0, %v2010
      %v2012 = vpop.f32.mrf.mxu0
      %v2013 = vadd.f32 0.0, %v2012
      %2014 = vmatprep.mubr.bf16.mxu0 0
      %2015 = vmatmul.mubr.bf16.gmra.mxu0 %v1891
      %v2016 = vpop.f32.mrf.mxu0
      %v2017 = vadd.f32 0.0, %v2016
      %v2018 = vpop.f32.mrf.mxu0
      %v2019 = vadd.f32 0.0, %v2018
      %v2020 = vpop.f32.mrf.mxu0
      %v2021 = vadd.f32 0.0, %v2020
      %v2022 = vpop.f32.mrf.mxu0
      %v2023 = vadd.f32 0.0, %v2022
      %2024 = vmatprep.mubr.bf16.mxu0 0
      %2025 = vmatmul.mubr.bf16.gmra.mxu0 %v1894
      %v2026 = vpop.f32.mrf.mxu0
      %v2027 = vadd.f32 0.0, %v2026
      %v2028 = vpop.f32.mrf.mxu0
      %v2029 = vadd.f32 0.0, %v2028
      %v2030 = vpop.f32.mrf.mxu0
      %v2031 = vadd.f32 0.0, %v2030
      %v2032 = vpop.f32.mrf.mxu0
      %v2033 = vadd.f32 0.0, %v2032
      %2034 = vmatprep.mubr.bf16.mxu0 0
      %2035 = vmatmul.mubr.bf16.gmra.mxu0 %v1897
      %v2036 = vpop.f32.mrf.mxu0
      %v2037 = vadd.f32 0.0, %v2036
      %v2038 = vpop.f32.mrf.mxu0
      %v2039 = vadd.f32 0.0, %v2038
      %v2040 = vpop.f32.mrf.mxu0
      %v2041 = vadd.f32 0.0, %v2040
      %v2042 = vpop.f32.mrf.mxu0
      %v2043 = vadd.f32 0.0, %v2042
      %2044 = vdwg.mxu0
      %v2045 = vld [vmem:[#allocation3] sm:$0xff]
      %v2046 = vld [vmem:[#allocation3 + $0x8] sm:$0xff]
      %v2047 = vld [vmem:[#allocation3 + $0x10] sm:$0xff]
      %v2048 = vld [vmem:[#allocation3 + $0x18] sm:$0xff]
      %v2049 = vld [vmem:[#allocation3 + $0x20] sm:$0xff]
      %v2050 = vld [vmem:[#allocation3 + $0x28] sm:$0xff]
      %v2051 = vld [vmem:[#allocation3 + $0x30] sm:$0xff]
      %v2052 = vld [vmem:[#allocation3 + $0x38] sm:$0xff]
      %v2053 = vld [vmem:[#allocation3 + $0x40] sm:$0xff]
      %v2054 = vld [vmem:[#allocation3 + $0x48] sm:$0xff]
      %v2055 = vld [vmem:[#allocation3 + $0x50] sm:$0xff]
      %v2056 = vld [vmem:[#allocation3 + $0x58] sm:$0xff]
      %v2057 = vld [vmem:[#allocation3 + $0x60] sm:$0xff]
      %v2058 = vld [vmem:[#allocation3 + $0x68] sm:$0xff]
      %v2059 = vld [vmem:[#allocation3 + $0x70] sm:$0xff]
      %v2060 = vld [vmem:[#allocation3 + $0x78] sm:$0xff]
      %v2061 = vld [vmem:[#allocation3 + $0x80] sm:$0xff]
      %v2062 = vld [vmem:[#allocation3 + $0x88] sm:$0xff]
      %v2063 = vld [vmem:[#allocation3 + $0x90] sm:$0xff]
      %v2064 = vld [vmem:[#allocation3 + $0x98] sm:$0xff]
      %v2065 = vld [vmem:[#allocation3 + $0xa0] sm:$0xff]
      %v2066 = vld [vmem:[#allocation3 + $0xa8] sm:$0xff]
      %v2067 = vld [vmem:[#allocation3 + $0xb0] sm:$0xff]
      %v2068 = vld [vmem:[#allocation3 + $0xb8] sm:$0xff]
      %v2069 = vld [vmem:[#allocation3 + $0xc0] sm:$0xff]
      %v2070 = vld [vmem:[#allocation3 + $0xc8] sm:$0xff]
      %v2071 = vld [vmem:[#allocation3 + $0xd0] sm:$0xff]
      %v2072 = vld [vmem:[#allocation3 + $0xd8] sm:$0xff]
      %v2073 = vld [vmem:[#allocation3 + $0xe0] sm:$0xff]
      %v2074 = vld [vmem:[#allocation3 + $0xe8] sm:$0xff]
      %v2075 = vld [vmem:[#allocation3 + $0xf0] sm:$0xff]
      %v2076 = vld [vmem:[#allocation3 + $0xf8] sm:$0xff]
      %v2077 = vadd.f32 %v2045, %v1934
      %v2078 = vadd.f32 %v2046, %v1936
      %v2079 = vadd.f32 %v2047, %v2007
      %v2080 = vadd.f32 %v2048, %v2009
      %v2081 = vadd.f32 %v2049, %v1938
      %v2082 = vadd.f32 %v2050, %v1940
      %v2083 = vadd.f32 %v2051, %v2011
      %v2084 = vadd.f32 %v2052, %v2013
      %v2085 = vadd.f32 %v2053, %v1944
      %v2086 = vadd.f32 %v2054, %v1946
      %v2087 = vadd.f32 %v2055, %v2017
      %v2088 = vadd.f32 %v2056, %v2019
      %v2089 = vadd.f32 %v2057, %v1948
      %v2090 = vadd.f32 %v2058, %v1950
      %v2091 = vadd.f32 %v2059, %v2021
      %v2092 = vadd.f32 %v2060, %v2023
      %v2093 = vadd.f32 %v2061, %v1954
      %v2094 = vadd.f32 %v2062, %v1956
      %v2095 = vadd.f32 %v2063, %v2027
      %v2096 = vadd.f32 %v2064, %v2029
      %v2097 = vadd.f32 %v2065, %v1958
      %v2098 = vadd.f32 %v2066, %v1960
      %v2099 = vadd.f32 %v2067, %v2031
      %v2100 = vadd.f32 %v2068, %v2033
      %v2101 = vadd.f32 %v2069, %v1964
      %v2102 = vadd.f32 %v2070, %v1966
      %v2103 = vadd.f32 %v2071, %v2037
      %v2104 = vadd.f32 %v2072, %v2039
      %v2105 = vadd.f32 %v2073, %v1968
      %v2106 = vadd.f32 %v2074, %v1970
      %v2107 = vadd.f32 %v2075, %v2041
      %v2108 = vadd.f32 %v2076, %v2043
      %2109 = vst [vmem:[#allocation3] sm:$0xff] %v2077
      %2110 = vst [vmem:[#allocation3 + $0x8] sm:$0xff] %v2078
      %2111 = vst [vmem:[#allocation3 + $0x10] sm:$0xff] %v2079
      %2112 = vst [vmem:[#allocation3 + $0x18] sm:$0xff] %v2080
      %2113 = vst [vmem:[#allocation3 + $0x20] sm:$0xff] %v2081
      %2114 = vst [vmem:[#allocation3 + $0x28] sm:$0xff] %v2082
      %2115 = vst [vmem:[#allocation3 + $0x30] sm:$0xff] %v2083
      %2116 = vst [vmem:[#allocation3 + $0x38] sm:$0xff] %v2084
      %2117 = vst [vmem:[#allocation3 + $0x40] sm:$0xff] %v2085
      %2118 = vst [vmem:[#allocation3 + $0x48] sm:$0xff] %v2086
      %2119 = vst [vmem:[#allocation3 + $0x50] sm:$0xff] %v2087
      %2120 = vst [vmem:[#allocation3 + $0x58] sm:$0xff] %v2088
      %2121 = vst [vmem:[#allocation3 + $0x60] sm:$0xff] %v2089
      %2122 = vst [vmem:[#allocation3 + $0x68] sm:$0xff] %v2090
      %2123 = vst [vmem:[#allocation3 + $0x70] sm:$0xff] %v2091
      %2124 = vst [vmem:[#allocation3 + $0x78] sm:$0xff] %v2092
      %2125 = vst [vmem:[#allocation3 + $0x80] sm:$0xff] %v2093
      %2126 = vst [vmem:[#allocation3 + $0x88] sm:$0xff] %v2094
      %2127 = vst [vmem:[#allocation3 + $0x90] sm:$0xff] %v2095
      %2128 = vst [vmem:[#allocation3 + $0x98] sm:$0xff] %v2096
      %2129 = vst [vmem:[#allocation3 + $0xa0] sm:$0xff] %v2097
      %2130 = vst [vmem:[#allocation3 + $0xa8] sm:$0xff] %v2098
      %2131 = vst [vmem:[#allocation3 + $0xb0] sm:$0xff] %v2099
      %2132 = vst [vmem:[#allocation3 + $0xb8] sm:$0xff] %v2100
      %2133 = vst [vmem:[#allocation3 + $0xc0] sm:$0xff] %v2101
      %2134 = vst [vmem:[#allocation3 + $0xc8] sm:$0xff] %v2102
      %2135 = vst [vmem:[#allocation3 + $0xd0] sm:$0xff] %v2103
      %2136 = vst [vmem:[#allocation3 + $0xd8] sm:$0xff] %v2104
      %2137 = vst [vmem:[#allocation3 + $0xe0] sm:$0xff] %v2105
      %2138 = vst [vmem:[#allocation3 + $0xe8] sm:$0xff] %v2106
      %2139 = vst [vmem:[#allocation3 + $0xf0] sm:$0xff] %v2107
      %2140 = vst [vmem:[#allocation3 + $0xf8] sm:$0xff] %v2108
      %v2141 = vld [vmem:[%s456] sm:$0xf]
      %v2142 = vld [vmem:[%s456 + $0x4] sm:$0xf]
      %v2143 = vld [vmem:[%s456 + $0x8] sm:$0xf]
      %v2144 = vld [vmem:[%s456 + $0xc] sm:$0xf]
      %v2145 = vld [vmem:[%s456 + $0x10] sm:$0xf]
      %v2146 = vld [vmem:[%s456 + $0x14] sm:$0xf]
      %v2147 = vld [vmem:[%s456 + $0x18] sm:$0xf]
      %v2148 = vld [vmem:[%s456 + $0x1c] sm:$0xf]
      %s2149 = scalar_lea.vmem %s1, 320
      %v2150 = vld [vmem:[%s2149] sm:$0xff]
      %v2151 = vld [vmem:[%s2149 + $0x8] sm:$0xff]
      %v2152 = vld [vmem:[%s2149 + $0x10] sm:$0xff]
      %v2153 = vld [vmem:[%s2149 + $0x18] sm:$0xff]
      %v2154 = vld [vmem:[%s2149 + $0x20] sm:$0xff]
      %v2155 = vld [vmem:[%s2149 + $0x28] sm:$0xff]
      %v2156 = vld [vmem:[%s2149 + $0x30] sm:$0xff]
      %v2157 = vld [vmem:[%s2149 + $0x38] sm:$0xff]
      %v2166 = vunpack.c.l.b16 %v2141
      %v2167 = vunpack.c.l.b16 %v2142
      %v2168 = vunpack.c.l.b16 %v2143
      %v2169 = vunpack.c.l.b16 %v2144
      %v2170 = vunpack.c.l.b16 %v2145
      %v2171 = vunpack.c.l.b16 %v2146
      %v2172 = vunpack.c.l.b16 %v2147
      %v2173 = vunpack.c.l.b16 %v2148
      %v2174 = vpack.c.b16 %v2167, %v2166
      %v2175 = vpack.c.b16 %v2169, %v2168
      %v2176 = vpack.c.b16 %v2171, %v2170
      %v2177 = vpack.c.b16 %v2173, %v2172
      %v2186 = vunpack.c.l.b16 %v2150
      %v2187 = vunpack.c.h.b16 %v2150
      %v2188 = vunpack.c.l.b16 %v2151
      %v2189 = vunpack.c.h.b16 %v2151
      %v2190 = vunpack.c.l.b16 %v2152
      %v2191 = vunpack.c.h.b16 %v2152
      %v2192 = vunpack.c.l.b16 %v2153
      %v2193 = vunpack.c.h.b16 %v2153
      %v2194 = vunpack.c.l.b16 %v2154
      %v2195 = vunpack.c.h.b16 %v2154
      %v2196 = vunpack.c.l.b16 %v2155
      %v2197 = vunpack.c.h.b16 %v2155
      %v2198 = vunpack.c.l.b16 %v2156
      %v2199 = vunpack.c.h.b16 %v2156
      %v2200 = vunpack.c.l.b16 %v2157
      %v2201 = vunpack.c.h.b16 %v2157
      %v2202 = vpack.c.b16 %v2190, %v2186
      %v2203 = vpack.c.b16 %v2191, %v2187
      %v2204 = vpack.c.b16 %v2192, %v2188
      %v2205 = vpack.c.b16 %v2193, %v2189
      %v2206 = vpack.c.b16 %v2198, %v2194
      %v2207 = vpack.c.b16 %v2199, %v2195
      %v2208 = vpack.c.b16 %v2200, %v2196
      %v2209 = vpack.c.b16 %v2201, %v2197
      %v2219 = vsel %vm626, %v2174, 0
      %v2222 = vsel %vm626, %v2175, 0
      %v2225 = vsel %vm626, %v2176, 0
      %v2228 = vsel %vm626, %v2177, 0
      %2230 = vmatprep.subr.bf16.mxu0 0
      %2231 = vmatpush1.bf16.msra.mxu0 0
      %2232 = vmatprep.subr.bf16.mxu0 0
      %2233 = vmatpush1.bf16.msra.mxu0 0
      %2234 = vmatprep.subr.bf16.mxu0 0
      %2235 = vmatpush1.bf16.msra.mxu0 0
      %2236 = vmatprep.subr.bf16.mxu0 0
      %2237 = vmatpush1.bf16.msra.mxu0 0
      %2238 = vmatprep.subr.bf16.mxu0 0
      %2239 = vmatpush1.bf16.msra.mxu0 0
      %2240 = vmatprep.subr.bf16.mxu0 0
      %2241 = vmatpush1.bf16.msra.mxu0 0
      %2242 = vmatprep.subr.bf16.mxu0 %v2207
      %2243 = vmatpush1.bf16.msra.mxu0 %v2206
      %2244 = vmatprep.subr.bf16.mxu0 %v2203
      %2245 = vmatpush1.bf16.msra.mxu0 %v2202
      %2246 = vmatprep.subr.bf16.mxu0 0
      %2247 = vmatpush2.bf16.msra.mxu0 0
      %2248 = vmatprep.subr.bf16.mxu0 0
      %2249 = vmatpush2.bf16.msra.mxu0 0
      %2250 = vmatprep.subr.bf16.mxu0 0
      %2251 = vmatpush2.bf16.msra.mxu0 0
      %2252 = vmatprep.subr.bf16.mxu0 0
      %2253 = vmatpush2.bf16.msra.mxu0 0
      %2254 = vmatprep.subr.bf16.mxu0 0
      %2255 = vmatpush2.bf16.msra.mxu0 0
      %2256 = vmatprep.subr.bf16.mxu0 0
      %2257 = vmatpush2.bf16.msra.mxu0 0
      %2258 = vmatprep.subr.bf16.mxu0 0
      %2259 = vmatpush2.bf16.msra.mxu0 0
      %2260 = vmatprep.subr.bf16.mxu0 0
      %2261 = vmatpush2.bf16.msra.mxu0 0
      %2262 = vmatprep.mubr.bf16.mxu0 0
      %2263 = vmatmul.mubr.bf16.gmra.mxu0 %v2219
      %v2264 = vpop.f32.mrf.mxu0
      %v2265 = vadd.f32 0.0, %v2264
      %v2266 = vpop.f32.mrf.mxu0
      %v2267 = vadd.f32 0.0, %v2266
      %v2268 = vpop.f32.mrf.mxu0
      %v2269 = vadd.f32 0.0, %v2268
      %v2270 = vpop.f32.mrf.mxu0
      %v2271 = vadd.f32 0.0, %v2270
      %2272 = vmatprep.mubr.bf16.mxu0 0
      %2273 = vmatmul.mubr.bf16.gmra.mxu0 %v2222
      %v2274 = vpop.f32.mrf.mxu0
      %v2275 = vadd.f32 0.0, %v2274
      %v2276 = vpop.f32.mrf.mxu0
      %v2277 = vadd.f32 0.0, %v2276
      %v2278 = vpop.f32.mrf.mxu0
      %v2279 = vadd.f32 0.0, %v2278
      %v2280 = vpop.f32.mrf.mxu0
      %v2281 = vadd.f32 0.0, %v2280
      %2282 = vmatprep.mubr.bf16.mxu0 0
      %2283 = vmatmul.mubr.bf16.gmra.mxu0 %v2225
      %v2284 = vpop.f32.mrf.mxu0
      %v2285 = vadd.f32 0.0, %v2284
      %v2286 = vpop.f32.mrf.mxu0
      %v2287 = vadd.f32 0.0, %v2286
      %v2288 = vpop.f32.mrf.mxu0
      %v2289 = vadd.f32 0.0, %v2288
      %v2290 = vpop.f32.mrf.mxu0
      %v2291 = vadd.f32 0.0, %v2290
      %2292 = vmatprep.mubr.bf16.mxu0 0
      %2293 = vmatmul.mubr.bf16.gmra.mxu0 %v2228
      %v2294 = vpop.f32.mrf.mxu0
      %v2295 = vadd.f32 0.0, %v2294
      %v2296 = vpop.f32.mrf.mxu0
      %v2297 = vadd.f32 0.0, %v2296
      %v2298 = vpop.f32.mrf.mxu0
      %v2299 = vadd.f32 0.0, %v2298
      %v2300 = vpop.f32.mrf.mxu0
      %v2301 = vadd.f32 0.0, %v2300
      %2302 = vdwg.mxu0
      %2303 = vmatprep.subr.bf16.mxu0 0
      %2304 = vmatpush1.bf16.msra.mxu0 0
      %2305 = vmatprep.subr.bf16.mxu0 0
      %2306 = vmatpush1.bf16.msra.mxu0 0
      %2307 = vmatprep.subr.bf16.mxu0 0
      %2308 = vmatpush1.bf16.msra.mxu0 0
      %2309 = vmatprep.subr.bf16.mxu0 0
      %2310 = vmatpush1.bf16.msra.mxu0 0
      %2311 = vmatprep.subr.bf16.mxu0 0
      %2312 = vmatpush1.bf16.msra.mxu0 0
      %2313 = vmatprep.subr.bf16.mxu0 0
      %2314 = vmatpush1.bf16.msra.mxu0 0
      %2315 = vmatprep.subr.bf16.mxu0 %v2209
      %2316 = vmatpush1.bf16.msra.mxu0 %v2208
      %2317 = vmatprep.subr.bf16.mxu0 %v2205
      %2318 = vmatpush1.bf16.msra.mxu0 %v2204
      %2319 = vmatprep.subr.bf16.mxu0 0
      %2320 = vmatpush2.bf16.msra.mxu0 0
      %2321 = vmatprep.subr.bf16.mxu0 0
      %2322 = vmatpush2.bf16.msra.mxu0 0
      %2323 = vmatprep.subr.bf16.mxu0 0
      %2324 = vmatpush2.bf16.msra.mxu0 0
      %2325 = vmatprep.subr.bf16.mxu0 0
      %2326 = vmatpush2.bf16.msra.mxu0 0
      %2327 = vmatprep.subr.bf16.mxu0 0
      %2328 = vmatpush2.bf16.msra.mxu0 0
      %2329 = vmatprep.subr.bf16.mxu0 0
      %2330 = vmatpush2.bf16.msra.mxu0 0
      %2331 = vmatprep.subr.bf16.mxu0 0
      %2332 = vmatpush2.bf16.msra.mxu0 0
      %2333 = vmatprep.subr.bf16.mxu0 0
      %2334 = vmatpush2.bf16.msra.mxu0 0
      %2335 = vmatprep.mubr.bf16.mxu0 0
      %2336 = vmatmul.mubr.bf16.gmra.mxu0 %v2219
      %v2337 = vpop.f32.mrf.mxu0
      %v2338 = vadd.f32 0.0, %v2337
      %v2339 = vpop.f32.mrf.mxu0
      %v2340 = vadd.f32 0.0, %v2339
      %v2341 = vpop.f32.mrf.mxu0
      %v2342 = vadd.f32 0.0, %v2341
      %v2343 = vpop.f32.mrf.mxu0
      %v2344 = vadd.f32 0.0, %v2343
      %2345 = vmatprep.mubr.bf16.mxu0 0
      %2346 = vmatmul.mubr.bf16.gmra.mxu0 %v2222
      %v2347 = vpop.f32.mrf.mxu0
      %v2348 = vadd.f32 0.0, %v2347
      %v2349 = vpop.f32.mrf.mxu0
      %v2350 = vadd.f32 0.0, %v2349
      %v2351 = vpop.f32.mrf.mxu0
      %v2352 = vadd.f32 0.0, %v2351
      %v2353 = vpop.f32.mrf.mxu0
      %v2354 = vadd.f32 0.0, %v2353
      %2355 = vmatprep.mubr.bf16.mxu0 0
      %2356 = vmatmul.mubr.bf16.gmra.mxu0 %v2225
      %v2357 = vpop.f32.mrf.mxu0
      %v2358 = vadd.f32 0.0, %v2357
      %v2359 = vpop.f32.mrf.mxu0
      %v2360 = vadd.f32 0.0, %v2359
      %v2361 = vpop.f32.mrf.mxu0
      %v2362 = vadd.f32 0.0, %v2361
      %v2363 = vpop.f32.mrf.mxu0
      %v2364 = vadd.f32 0.0, %v2363
      %2365 = vmatprep.mubr.bf16.mxu0 0
      %2366 = vmatmul.mubr.bf16.gmra.mxu0 %v2228
      %v2367 = vpop.f32.mrf.mxu0
      %v2368 = vadd.f32 0.0, %v2367
      %v2369 = vpop.f32.mrf.mxu0
      %v2370 = vadd.f32 0.0, %v2369
      %v2371 = vpop.f32.mrf.mxu0
      %v2372 = vadd.f32 0.0, %v2371
      %v2373 = vpop.f32.mrf.mxu0
      %v2374 = vadd.f32 0.0, %v2373
      %2375 = vdwg.mxu0
      %v2376 = vld [vmem:[#allocation3] sm:$0xff]
      %v2377 = vld [vmem:[#allocation3 + $0x8] sm:$0xff]
      %v2378 = vld [vmem:[#allocation3 + $0x10] sm:$0xff]
      %v2379 = vld [vmem:[#allocation3 + $0x18] sm:$0xff]
      %v2380 = vld [vmem:[#allocation3 + $0x20] sm:$0xff]
      %v2381 = vld [vmem:[#allocation3 + $0x28] sm:$0xff]
      %v2382 = vld [vmem:[#allocation3 + $0x30] sm:$0xff]
      %v2383 = vld [vmem:[#allocation3 + $0x38] sm:$0xff]
      %v2384 = vld [vmem:[#allocation3 + $0x40] sm:$0xff]
      %v2385 = vld [vmem:[#allocation3 + $0x48] sm:$0xff]
      %v2386 = vld [vmem:[#allocation3 + $0x50] sm:$0xff]
      %v2387 = vld [vmem:[#allocation3 + $0x58] sm:$0xff]
      %v2388 = vld [vmem:[#allocation3 + $0x60] sm:$0xff]
      %v2389 = vld [vmem:[#allocation3 + $0x68] sm:$0xff]
      %v2390 = vld [vmem:[#allocation3 + $0x70] sm:$0xff]
      %v2391 = vld [vmem:[#allocation3 + $0x78] sm:$0xff]
      %v2392 = vld [vmem:[#allocation3 + $0x80] sm:$0xff]
      %v2393 = vld [vmem:[#allocation3 + $0x88] sm:$0xff]
      %v2394 = vld [vmem:[#allocation3 + $0x90] sm:$0xff]
      %v2395 = vld [vmem:[#allocation3 + $0x98] sm:$0xff]
      %v2396 = vld [vmem:[#allocation3 + $0xa0] sm:$0xff]
      %v2397 = vld [vmem:[#allocation3 + $0xa8] sm:$0xff]
      %v2398 = vld [vmem:[#allocation3 + $0xb0] sm:$0xff]
      %v2399 = vld [vmem:[#allocation3 + $0xb8] sm:$0xff]
      %v2400 = vld [vmem:[#allocation3 + $0xc0] sm:$0xff]
      %v2401 = vld [vmem:[#allocation3 + $0xc8] sm:$0xff]
      %v2402 = vld [vmem:[#allocation3 + $0xd0] sm:$0xff]
      %v2403 = vld [vmem:[#allocation3 + $0xd8] sm:$0xff]
      %v2404 = vld [vmem:[#allocation3 + $0xe0] sm:$0xff]
      %v2405 = vld [vmem:[#allocation3 + $0xe8] sm:$0xff]
      %v2406 = vld [vmem:[#allocation3 + $0xf0] sm:$0xff]
      %v2407 = vld [vmem:[#allocation3 + $0xf8] sm:$0xff]
      %v2408 = vadd.f32 %v2376, %v2265
      %v2409 = vadd.f32 %v2377, %v2267
      %v2410 = vadd.f32 %v2378, %v2338
      %v2411 = vadd.f32 %v2379, %v2340
      %v2412 = vadd.f32 %v2380, %v2269
      %v2413 = vadd.f32 %v2381, %v2271
      %v2414 = vadd.f32 %v2382, %v2342
      %v2415 = vadd.f32 %v2383, %v2344
      %v2416 = vadd.f32 %v2384, %v2275
      %v2417 = vadd.f32 %v2385, %v2277
      %v2418 = vadd.f32 %v2386, %v2348
      %v2419 = vadd.f32 %v2387, %v2350
      %v2420 = vadd.f32 %v2388, %v2279
      %v2421 = vadd.f32 %v2389, %v2281
      %v2422 = vadd.f32 %v2390, %v2352
      %v2423 = vadd.f32 %v2391, %v2354
      %v2424 = vadd.f32 %v2392, %v2285
      %v2425 = vadd.f32 %v2393, %v2287
      %v2426 = vadd.f32 %v2394, %v2358
      %v2427 = vadd.f32 %v2395, %v2360
      %v2428 = vadd.f32 %v2396, %v2289
      %v2429 = vadd.f32 %v2397, %v2291
      %v2430 = vadd.f32 %v2398, %v2362
      %v2431 = vadd.f32 %v2399, %v2364
      %v2432 = vadd.f32 %v2400, %v2295
      %v2433 = vadd.f32 %v2401, %v2297
      %v2434 = vadd.f32 %v2402, %v2368
      %v2435 = vadd.f32 %v2403, %v2370
      %v2436 = vadd.f32 %v2404, %v2299
      %v2437 = vadd.f32 %v2405, %v2301
      %v2438 = vadd.f32 %v2406, %v2372
      %v2439 = vadd.f32 %v2407, %v2374
      %2440 = vst [vmem:[#allocation3] sm:$0xff] %v2408
      %2441 = vst [vmem:[#allocation3 + $0x8] sm:$0xff] %v2409
      %2442 = vst [vmem:[#allocation3 + $0x10] sm:$0xff] %v2410
      %2443 = vst [vmem:[#allocation3 + $0x18] sm:$0xff] %v2411
      %2444 = vst [vmem:[#allocation3 + $0x20] sm:$0xff] %v2412
      %2445 = vst [vmem:[#allocation3 + $0x28] sm:$0xff] %v2413
      %2446 = vst [vmem:[#allocation3 + $0x30] sm:$0xff] %v2414
      %2447 = vst [vmem:[#allocation3 + $0x38] sm:$0xff] %v2415
      %2448 = vst [vmem:[#allocation3 + $0x40] sm:$0xff] %v2416
      %2449 = vst [vmem:[#allocation3 + $0x48] sm:$0xff] %v2417
      %2450 = vst [vmem:[#allocation3 + $0x50] sm:$0xff] %v2418
      %2451 = vst [vmem:[#allocation3 + $0x58] sm:$0xff] %v2419
      %2452 = vst [vmem:[#allocation3 + $0x60] sm:$0xff] %v2420
      %2453 = vst [vmem:[#allocation3 + $0x68] sm:$0xff] %v2421
      %2454 = vst [vmem:[#allocation3 + $0x70] sm:$0xff] %v2422
      %2455 = vst [vmem:[#allocation3 + $0x78] sm:$0xff] %v2423
      %2456 = vst [vmem:[#allocation3 + $0x80] sm:$0xff] %v2424
      %2457 = vst [vmem:[#allocation3 + $0x88] sm:$0xff] %v2425
      %2458 = vst [vmem:[#allocation3 + $0x90] sm:$0xff] %v2426
      %2459 = vst [vmem:[#allocation3 + $0x98] sm:$0xff] %v2427
      %2460 = vst [vmem:[#allocation3 + $0xa0] sm:$0xff] %v2428
      %2461 = vst [vmem:[#allocation3 + $0xa8] sm:$0xff] %v2429
      %2462 = vst [vmem:[#allocation3 + $0xb0] sm:$0xff] %v2430
      %2463 = vst [vmem:[#allocation3 + $0xb8] sm:$0xff] %v2431
      %2464 = vst [vmem:[#allocation3 + $0xc0] sm:$0xff] %v2432
      %2465 = vst [vmem:[#allocation3 + $0xc8] sm:$0xff] %v2433
      %2466 = vst [vmem:[#allocation3 + $0xd0] sm:$0xff] %v2434
      %2467 = vst [vmem:[#allocation3 + $0xd8] sm:$0xff] %v2435
      %2468 = vst [vmem:[#allocation3 + $0xe0] sm:$0xff] %v2436
      %2469 = vst [vmem:[#allocation3 + $0xe8] sm:$0xff] %v2437
      %2470 = vst [vmem:[#allocation3 + $0xf0] sm:$0xff] %v2438
      %2471 = vst [vmem:[#allocation3 + $0xf8] sm:$0xff] %v2439
      %s2472 = scalar_lea.vmem [#allocation2], 8
      %v2473 = vld [vmem:[%s2472] sm:$0xf]
      %v2474 = vld [vmem:[%s2472 + $0x4] sm:$0xf]
      %v2475 = vld [vmem:[%s2472 + $0x8] sm:$0xf]
      %v2476 = vld [vmem:[%s2472 + $0xc] sm:$0xf]
      %v2477 = vld [vmem:[%s2472 + $0x10] sm:$0xf]
      %v2478 = vld [vmem:[%s2472 + $0x14] sm:$0xf]
      %v2479 = vld [vmem:[%s2472 + $0x18] sm:$0xf]
      %v2480 = vld [vmem:[%s2472 + $0x1c] sm:$0xf]
      %s2481 = scalar_lea.vmem %s1, 384
      %v2482 = vld [vmem:[%s2481] sm:$0xff]
      %v2483 = vld [vmem:[%s2481 + $0x8] sm:$0xff]
      %v2484 = vld [vmem:[%s2481 + $0x10] sm:$0xff]
      %v2485 = vld [vmem:[%s2481 + $0x18] sm:$0xff]
      %v2486 = vld [vmem:[%s2481 + $0x20] sm:$0xff]
      %v2487 = vld [vmem:[%s2481 + $0x28] sm:$0xff]
      %v2488 = vld [vmem:[%s2481 + $0x30] sm:$0xff]
      %v2489 = vld [vmem:[%s2481 + $0x38] sm:$0xff]
      %v2498 = vunpack.c.l.b16 %v2473
      %v2499 = vunpack.c.l.b16 %v2474
      %v2500 = vunpack.c.l.b16 %v2475
      %v2501 = vunpack.c.l.b16 %v2476
      %v2502 = vunpack.c.l.b16 %v2477
      %v2503 = vunpack.c.l.b16 %v2478
      %v2504 = vunpack.c.l.b16 %v2479
      %v2505 = vunpack.c.l.b16 %v2480
      %v2506 = vpack.c.b16 %v2499, %v2498
      %v2507 = vpack.c.b16 %v2501, %v2500
      %v2508 = vpack.c.b16 %v2503, %v2502
      %v2509 = vpack.c.b16 %v2505, %v2504
      %v2518 = vunpack.c.l.b16 %v2482
      %v2519 = vunpack.c.h.b16 %v2482
      %v2520 = vunpack.c.l.b16 %v2483
      %v2521 = vunpack.c.h.b16 %v2483
      %v2522 = vunpack.c.l.b16 %v2484
      %v2523 = vunpack.c.h.b16 %v2484
      %v2524 = vunpack.c.l.b16 %v2485
      %v2525 = vunpack.c.h.b16 %v2485
      %v2526 = vunpack.c.l.b16 %v2486
      %v2527 = vunpack.c.h.b16 %v2486
      %v2528 = vunpack.c.l.b16 %v2487
      %v2529 = vunpack.c.h.b16 %v2487
      %v2530 = vunpack.c.l.b16 %v2488
      %v2531 = vunpack.c.h.b16 %v2488
      %v2532 = vunpack.c.l.b16 %v2489
      %v2533 = vunpack.c.h.b16 %v2489
      %v2534 = vpack.c.b16 %v2522, %v2518
      %v2535 = vpack.c.b16 %v2523, %v2519
      %v2536 = vpack.c.b16 %v2524, %v2520
      %v2537 = vpack.c.b16 %v2525, %v2521
      %v2538 = vpack.c.b16 %v2530, %v2526
      %v2539 = vpack.c.b16 %v2531, %v2527
      %v2540 = vpack.c.b16 %v2532, %v2528
      %v2541 = vpack.c.b16 %v2533, %v2529
      %v2551 = vsel %vm626, %v2506, 0
      %v2554 = vsel %vm626, %v2507, 0
      %v2557 = vsel %vm626, %v2508, 0
      %v2560 = vsel %vm626, %v2509, 0
      %2562 = vmatprep.subr.bf16.mxu0 0
      %2563 = vmatpush1.bf16.msra.mxu0 0
      %2564 = vmatprep.subr.bf16.mxu0 0
      %2565 = vmatpush1.bf16.msra.mxu0 0
      %2566 = vmatprep.subr.bf16.mxu0 0
      %2567 = vmatpush1.bf16.msra.mxu0 0
      %2568 = vmatprep.subr.bf16.mxu0 0
      %2569 = vmatpush1.bf16.msra.mxu0 0
      %2570 = vmatprep.subr.bf16.mxu0 0
      %2571 = vmatpush1.bf16.msra.mxu0 0
      %2572 = vmatprep.subr.bf16.mxu0 0
      %2573 = vmatpush1.bf16.msra.mxu0 0
      %2574 = vmatprep.subr.bf16.mxu0 %v2539
      %2575 = vmatpush1.bf16.msra.mxu0 %v2538
      %2576 = vmatprep.subr.bf16.mxu0 %v2535
      %2577 = vmatpush1.bf16.msra.mxu0 %v2534
      %2578 = vmatprep.subr.bf16.mxu0 0
      %2579 = vmatpush2.bf16.msra.mxu0 0
      %2580 = vmatprep.subr.bf16.mxu0 0
      %2581 = vmatpush2.bf16.msra.mxu0 0
      %2582 = vmatprep.subr.bf16.mxu0 0
      %2583 = vmatpush2.bf16.msra.mxu0 0
      %2584 = vmatprep.subr.bf16.mxu0 0
      %2585 = vmatpush2.bf16.msra.mxu0 0
      %2586 = vmatprep.subr.bf16.mxu0 0
      %2587 = vmatpush2.bf16.msra.mxu0 0
      %2588 = vmatprep.subr.bf16.mxu0 0
      %2589 = vmatpush2.bf16.msra.mxu0 0
      %2590 = vmatprep.subr.bf16.mxu0 0
      %2591 = vmatpush2.bf16.msra.mxu0 0
      %2592 = vmatprep.subr.bf16.mxu0 0
      %2593 = vmatpush2.bf16.msra.mxu0 0
      %2594 = vmatprep.mubr.bf16.mxu0 0
      %2595 = vmatmul.mubr.bf16.gmra.mxu0 %v2551
      %v2596 = vpop.f32.mrf.mxu0
      %v2597 = vadd.f32 0.0, %v2596
      %v2598 = vpop.f32.mrf.mxu0
      %v2599 = vadd.f32 0.0, %v2598
      %v2600 = vpop.f32.mrf.mxu0
      %v2601 = vadd.f32 0.0, %v2600
      %v2602 = vpop.f32.mrf.mxu0
      %v2603 = vadd.f32 0.0, %v2602
      %2604 = vmatprep.mubr.bf16.mxu0 0
      %2605 = vmatmul.mubr.bf16.gmra.mxu0 %v2554
      %v2606 = vpop.f32.mrf.mxu0
      %v2607 = vadd.f32 0.0, %v2606
      %v2608 = vpop.f32.mrf.mxu0
      %v2609 = vadd.f32 0.0, %v2608
      %v2610 = vpop.f32.mrf.mxu0
      %v2611 = vadd.f32 0.0, %v2610
      %v2612 = vpop.f32.mrf.mxu0
      %v2613 = vadd.f32 0.0, %v2612
      %2614 = vmatprep.mubr.bf16.mxu0 0
      %2615 = vmatmul.mubr.bf16.gmra.mxu0 %v2557
      %v2616 = vpop.f32.mrf.mxu0
      %v2617 = vadd.f32 0.0, %v2616
      %v2618 = vpop.f32.mrf.mxu0
      %v2619 = vadd.f32 0.0, %v2618
      %v2620 = vpop.f32.mrf.mxu0
      %v2621 = vadd.f32 0.0, %v2620
      %v2622 = vpop.f32.mrf.mxu0
      %v2623 = vadd.f32 0.0, %v2622
      %2624 = vmatprep.mubr.bf16.mxu0 0
      %2625 = vmatmul.mubr.bf16.gmra.mxu0 %v2560
      %v2626 = vpop.f32.mrf.mxu0
      %v2627 = vadd.f32 0.0, %v2626
      %v2628 = vpop.f32.mrf.mxu0
      %v2629 = vadd.f32 0.0, %v2628
      %v2630 = vpop.f32.mrf.mxu0
      %v2631 = vadd.f32 0.0, %v2630
      %v2632 = vpop.f32.mrf.mxu0
      %v2633 = vadd.f32 0.0, %v2632
      %2634 = vdwg.mxu0
      %2635 = vmatprep.subr.bf16.mxu0 0
      %2636 = vmatpush1.bf16.msra.mxu0 0
      %2637 = vmatprep.subr.bf16.mxu0 0
      %2638 = vmatpush1.bf16.msra.mxu0 0
      %2639 = vmatprep.subr.bf16.mxu0 0
      %2640 = vmatpush1.bf16.msra.mxu0 0
      %2641 = vmatprep.subr.bf16.mxu0 0
      %2642 = vmatpush1.bf16.msra.mxu0 0
      %2643 = vmatprep.subr.bf16.mxu0 0
      %2644 = vmatpush1.bf16.msra.mxu0 0
      %2645 = vmatprep.subr.bf16.mxu0 0
      %2646 = vmatpush1.bf16.msra.mxu0 0
      %2647 = vmatprep.subr.bf16.mxu0 %v2541
      %2648 = vmatpush1.bf16.msra.mxu0 %v2540
      %2649 = vmatprep.subr.bf16.mxu0 %v2537
      %2650 = vmatpush1.bf16.msra.mxu0 %v2536
      %2651 = vmatprep.subr.bf16.mxu0 0
      %2652 = vmatpush2.bf16.msra.mxu0 0
      %2653 = vmatprep.subr.bf16.mxu0 0
      %2654 = vmatpush2.bf16.msra.mxu0 0
      %2655 = vmatprep.subr.bf16.mxu0 0
      %2656 = vmatpush2.bf16.msra.mxu0 0
      %2657 = vmatprep.subr.bf16.mxu0 0
      %2658 = vmatpush2.bf16.msra.mxu0 0
      %2659 = vmatprep.subr.bf16.mxu0 0
      %2660 = vmatpush2.bf16.msra.mxu0 0
      %2661 = vmatprep.subr.bf16.mxu0 0
      %2662 = vmatpush2.bf16.msra.mxu0 0
      %2663 = vmatprep.subr.bf16.mxu0 0
      %2664 = vmatpush2.bf16.msra.mxu0 0
      %2665 = vmatprep.subr.bf16.mxu0 0
      %2666 = vmatpush2.bf16.msra.mxu0 0
      %2667 = vmatprep.mubr.bf16.mxu0 0
      %2668 = vmatmul.mubr.bf16.gmra.mxu0 %v2551
      %v2669 = vpop.f32.mrf.mxu0
      %v2670 = vadd.f32 0.0, %v2669
      %v2671 = vpop.f32.mrf.mxu0
      %v2672 = vadd.f32 0.0, %v2671
      %v2673 = vpop.f32.mrf.mxu0
      %v2674 = vadd.f32 0.0, %v2673
      %v2675 = vpop.f32.mrf.mxu0
      %v2676 = vadd.f32 0.0, %v2675
      %2677 = vmatprep.mubr.bf16.mxu0 0
      %2678 = vmatmul.mubr.bf16.gmra.mxu0 %v2554
      %v2679 = vpop.f32.mrf.mxu0
      %v2680 = vadd.f32 0.0, %v2679
      %v2681 = vpop.f32.mrf.mxu0
      %v2682 = vadd.f32 0.0, %v2681
      %v2683 = vpop.f32.mrf.mxu0
      %v2684 = vadd.f32 0.0, %v2683
      %v2685 = vpop.f32.mrf.mxu0
      %v2686 = vadd.f32 0.0, %v2685
      %2687 = vmatprep.mubr.bf16.mxu0 0
      %2688 = vmatmul.mubr.bf16.gmra.mxu0 %v2557
      %v2689 = vpop.f32.mrf.mxu0
      %v2690 = vadd.f32 0.0, %v2689
      %v2691 = vpop.f32.mrf.mxu0
      %v2692 = vadd.f32 0.0, %v2691
      %v2693 = vpop.f32.mrf.mxu0
      %v2694 = vadd.f32 0.0, %v2693
      %v2695 = vpop.f32.mrf.mxu0
      %v2696 = vadd.f32 0.0, %v2695
      %2697 = vmatprep.mubr.bf16.mxu0 0
      %2698 = vmatmul.mubr.bf16.gmra.mxu0 %v2560
      %v2699 = vpop.f32.mrf.mxu0
      %v2700 = vadd.f32 0.0, %v2699
      %v2701 = vpop.f32.mrf.mxu0
      %v2702 = vadd.f32 0.0, %v2701
      %v2703 = vpop.f32.mrf.mxu0
      %v2704 = vadd.f32 0.0, %v2703
      %v2705 = vpop.f32.mrf.mxu0
      %v2706 = vadd.f32 0.0, %v2705
      %2707 = vdwg.mxu0
      %v2708 = vld [vmem:[#allocation3] sm:$0xff]
      %v2709 = vld [vmem:[#allocation3 + $0x8] sm:$0xff]
      %v2710 = vld [vmem:[#allocation3 + $0x10] sm:$0xff]
      %v2711 = vld [vmem:[#allocation3 + $0x18] sm:$0xff]
      %v2712 = vld [vmem:[#allocation3 + $0x20] sm:$0xff]
      %v2713 = vld [vmem:[#allocation3 + $0x28] sm:$0xff]
      %v2714 = vld [vmem:[#allocation3 + $0x30] sm:$0xff]
      %v2715 = vld [vmem:[#allocation3 + $0x38] sm:$0xff]
      %v2716 = vld [vmem:[#allocation3 + $0x40] sm:$0xff]
      %v2717 = vld [vmem:[#allocation3 + $0x48] sm:$0xff]
      %v2718 = vld [vmem:[#allocation3 + $0x50] sm:$0xff]
      %v2719 = vld [vmem:[#allocation3 + $0x58] sm:$0xff]
      %v2720 = vld [vmem:[#allocation3 + $0x60] sm:$0xff]
      %v2721 = vld [vmem:[#allocation3 + $0x68] sm:$0xff]
      %v2722 = vld [vmem:[#allocation3 + $0x70] sm:$0xff]
      %v2723 = vld [vmem:[#allocation3 + $0x78] sm:$0xff]
      %v2724 = vld [vmem:[#allocation3 + $0x80] sm:$0xff]
      %v2725 = vld [vmem:[#allocation3 + $0x88] sm:$0xff]
      %v2726 = vld [vmem:[#allocation3 + $0x90] sm:$0xff]
      %v2727 = vld [vmem:[#allocation3 + $0x98] sm:$0xff]
      %v2728 = vld [vmem:[#allocation3 + $0xa0] sm:$0xff]
      %v2729 = vld [vmem:[#allocation3 + $0xa8] sm:$0xff]
      %v2730 = vld [vmem:[#allocation3 + $0xb0] sm:$0xff]
      %v2731 = vld [vmem:[#allocation3 + $0xb8] sm:$0xff]
      %v2732 = vld [vmem:[#allocation3 + $0xc0] sm:$0xff]
      %v2733 = vld [vmem:[#allocation3 + $0xc8] sm:$0xff]
      %v2734 = vld [vmem:[#allocation3 + $0xd0] sm:$0xff]
      %v2735 = vld [vmem:[#allocation3 + $0xd8] sm:$0xff]
      %v2736 = vld [vmem:[#allocation3 + $0xe0] sm:$0xff]
      %v2737 = vld [vmem:[#allocation3 + $0xe8] sm:$0xff]
      %v2738 = vld [vmem:[#allocation3 + $0xf0] sm:$0xff]
      %v2739 = vld [vmem:[#allocation3 + $0xf8] sm:$0xff]
      %v2740 = vadd.f32 %v2708, %v2597
      %v2741 = vadd.f32 %v2709, %v2599
      %v2742 = vadd.f32 %v2710, %v2670
      %v2743 = vadd.f32 %v2711, %v2672
      %v2744 = vadd.f32 %v2712, %v2601
      %v2745 = vadd.f32 %v2713, %v2603
      %v2746 = vadd.f32 %v2714, %v2674
      %v2747 = vadd.f32 %v2715, %v2676
      %v2748 = vadd.f32 %v2716, %v2607
      %v2749 = vadd.f32 %v2717, %v2609
      %v2750 = vadd.f32 %v2718, %v2680
      %v2751 = vadd.f32 %v2719, %v2682
      %v2752 = vadd.f32 %v2720, %v2611
      %v2753 = vadd.f32 %v2721, %v2613
      %v2754 = vadd.f32 %v2722, %v2684
      %v2755 = vadd.f32 %v2723, %v2686
      %v2756 = vadd.f32 %v2724, %v2617
      %v2757 = vadd.f32 %v2725, %v2619
      %v2758 = vadd.f32 %v2726, %v2690
      %v2759 = vadd.f32 %v2727, %v2692
      %v2760 = vadd.f32 %v2728, %v2621
      %v2761 = vadd.f32 %v2729, %v2623
      %v2762 = vadd.f32 %v2730, %v2694
      %v2763 = vadd.f32 %v2731, %v2696
      %v2764 = vadd.f32 %v2732, %v2627
      %v2765 = vadd.f32 %v2733, %v2629
      %v2766 = vadd.f32 %v2734, %v2700
      %v2767 = vadd.f32 %v2735, %v2702
      %v2768 = vadd.f32 %v2736, %v2631
      %v2769 = vadd.f32 %v2737, %v2633
      %v2770 = vadd.f32 %v2738, %v2704
      %v2771 = vadd.f32 %v2739, %v2706
      %2772 = vst [vmem:[#allocation3] sm:$0xff] %v2740
      %2773 = vst [vmem:[#allocation3 + $0x8] sm:$0xff] %v2741
      %2774 = vst [vmem:[#allocation3 + $0x10] sm:$0xff] %v2742
      %2775 = vst [vmem:[#allocation3 + $0x18] sm:$0xff] %v2743
      %2776 = vst [vmem:[#allocation3 + $0x20] sm:$0xff] %v2744
      %2777 = vst [vmem:[#allocation3 + $0x28] sm:$0xff] %v2745
      %2778 = vst [vmem:[#allocation3 + $0x30] sm:$0xff] %v2746
      %2779 = vst [vmem:[#allocation3 + $0x38] sm:$0xff] %v2747
      %2780 = vst [vmem:[#allocation3 + $0x40] sm:$0xff] %v2748
      %2781 = vst [vmem:[#allocation3 + $0x48] sm:$0xff] %v2749
      %2782 = vst [vmem:[#allocation3 + $0x50] sm:$0xff] %v2750
      %2783 = vst [vmem:[#allocation3 + $0x58] sm:$0xff] %v2751
      %2784 = vst [vmem:[#allocation3 + $0x60] sm:$0xff] %v2752
      %2785 = vst [vmem:[#allocation3 + $0x68] sm:$0xff] %v2753
      %2786 = vst [vmem:[#allocation3 + $0x70] sm:$0xff] %v2754
      %2787 = vst [vmem:[#allocation3 + $0x78] sm:$0xff] %v2755
      %2788 = vst [vmem:[#allocation3 + $0x80] sm:$0xff] %v2756
      %2789 = vst [vmem:[#allocation3 + $0x88] sm:$0xff] %v2757
      %2790 = vst [vmem:[#allocation3 + $0x90] sm:$0xff] %v2758
      %2791 = vst [vmem:[#allocation3 + $0x98] sm:$0xff] %v2759
      %2792 = vst [vmem:[#allocation3 + $0xa0] sm:$0xff] %v2760
      %2793 = vst [vmem:[#allocation3 + $0xa8] sm:$0xff] %v2761
      %2794 = vst [vmem:[#allocation3 + $0xb0] sm:$0xff] %v2762
      %2795 = vst [vmem:[#allocation3 + $0xb8] sm:$0xff] %v2763
      %2796 = vst [vmem:[#allocation3 + $0xc0] sm:$0xff] %v2764
      %2797 = vst [vmem:[#allocation3 + $0xc8] sm:$0xff] %v2765
      %2798 = vst [vmem:[#allocation3 + $0xd0] sm:$0xff] %v2766
      %2799 = vst [vmem:[#allocation3 + $0xd8] sm:$0xff] %v2767
      %2800 = vst [vmem:[#allocation3 + $0xe0] sm:$0xff] %v2768
      %2801 = vst [vmem:[#allocation3 + $0xe8] sm:$0xff] %v2769
      %2802 = vst [vmem:[#allocation3 + $0xf0] sm:$0xff] %v2770
      %2803 = vst [vmem:[#allocation3 + $0xf8] sm:$0xff] %v2771
      %s2804 = scalar_lea.vmem [#allocation2], 48
      %v2805 = vld [vmem:[%s2804] sm:$0xf]
      %v2806 = vld [vmem:[%s2804 + $0x4] sm:$0xf]
      %v2807 = vld [vmem:[%s2804 + $0x8] sm:$0xf]
      %v2808 = vld [vmem:[%s2804 + $0xc] sm:$0xf]
      %v2809 = vld [vmem:[%s2804 + $0x10] sm:$0xf]
      %v2810 = vld [vmem:[%s2804 + $0x14] sm:$0xf]
      %v2811 = vld [vmem:[%s2804 + $0x18] sm:$0xf]
      %v2812 = vld [vmem:[%s2804 + $0x1c] sm:$0xf]
      %s2813 = scalar_lea.vmem %s1, 448
      %v2814 = vld [vmem:[%s2813] sm:$0xff]
      %v2815 = vld [vmem:[%s2813 + $0x8] sm:$0xff]
      %v2816 = vld [vmem:[%s2813 + $0x10] sm:$0xff]
      %v2817 = vld [vmem:[%s2813 + $0x18] sm:$0xff]
      %v2818 = vld [vmem:[%s2813 + $0x20] sm:$0xff]
      %v2819 = vld [vmem:[%s2813 + $0x28] sm:$0xff]
      %v2820 = vld [vmem:[%s2813 + $0x30] sm:$0xff]
      %v2821 = vld [vmem:[%s2813 + $0x38] sm:$0xff]
      %v2830 = vunpack.c.l.b16 %v2805
      %v2831 = vunpack.c.l.b16 %v2806
      %v2832 = vunpack.c.l.b16 %v2807
      %v2833 = vunpack.c.l.b16 %v2808
      %v2834 = vunpack.c.l.b16 %v2809
      %v2835 = vunpack.c.l.b16 %v2810
      %v2836 = vunpack.c.l.b16 %v2811
      %v2837 = vunpack.c.l.b16 %v2812
      %v2838 = vpack.c.b16 %v2831, %v2830
      %v2839 = vpack.c.b16 %v2833, %v2832
      %v2840 = vpack.c.b16 %v2835, %v2834
      %v2841 = vpack.c.b16 %v2837, %v2836
      %v2850 = vunpack.c.l.b16 %v2814
      %v2851 = vunpack.c.h.b16 %v2814
      %v2852 = vunpack.c.l.b16 %v2815
      %v2853 = vunpack.c.h.b16 %v2815
      %v2854 = vunpack.c.l.b16 %v2816
      %v2855 = vunpack.c.h.b16 %v2816
      %v2856 = vunpack.c.l.b16 %v2817
      %v2857 = vunpack.c.h.b16 %v2817
      %v2858 = vunpack.c.l.b16 %v2818
      %v2859 = vunpack.c.h.b16 %v2818
      %v2860 = vunpack.c.l.b16 %v2819
      %v2861 = vunpack.c.h.b16 %v2819
      %v2862 = vunpack.c.l.b16 %v2820
      %v2863 = vunpack.c.h.b16 %v2820
      %v2864 = vunpack.c.l.b16 %v2821
      %v2865 = vunpack.c.h.b16 %v2821
      %v2866 = vpack.c.b16 %v2854, %v2850
      %v2867 = vpack.c.b16 %v2855, %v2851
      %v2868 = vpack.c.b16 %v2856, %v2852
      %v2869 = vpack.c.b16 %v2857, %v2853
      %v2870 = vpack.c.b16 %v2862, %v2858
      %v2871 = vpack.c.b16 %v2863, %v2859
      %v2872 = vpack.c.b16 %v2864, %v2860
      %v2873 = vpack.c.b16 %v2865, %v2861
      %v2883 = vsel %vm626, %v2838, 0
      %v2886 = vsel %vm626, %v2839, 0
      %v2889 = vsel %vm626, %v2840, 0
      %v2892 = vsel %vm626, %v2841, 0
      %2894 = vmatprep.subr.bf16.mxu0 0
      %2895 = vmatpush1.bf16.msra.mxu0 0
      %2896 = vmatprep.subr.bf16.mxu0 0
      %2897 = vmatpush1.bf16.msra.mxu0 0
      %2898 = vmatprep.subr.bf16.mxu0 0
      %2899 = vmatpush1.bf16.msra.mxu0 0
      %2900 = vmatprep.subr.bf16.mxu0 0
      %2901 = vmatpush1.bf16.msra.mxu0 0
      %2902 = vmatprep.subr.bf16.mxu0 0
      %2903 = vmatpush1.bf16.msra.mxu0 0
      %2904 = vmatprep.subr.bf16.mxu0 0
      %2905 = vmatpush1.bf16.msra.mxu0 0
      %2906 = vmatprep.subr.bf16.mxu0 %v2871
      %2907 = vmatpush1.bf16.msra.mxu0 %v2870
      %2908 = vmatprep.subr.bf16.mxu0 %v2867
      %2909 = vmatpush1.bf16.msra.mxu0 %v2866
      %2910 = vmatprep.subr.bf16.mxu0 0
      %2911 = vmatpush2.bf16.msra.mxu0 0
      %2912 = vmatprep.subr.bf16.mxu0 0
      %2913 = vmatpush2.bf16.msra.mxu0 0
      %2914 = vmatprep.subr.bf16.mxu0 0
      %2915 = vmatpush2.bf16.msra.mxu0 0
      %2916 = vmatprep.subr.bf16.mxu0 0
      %2917 = vmatpush2.bf16.msra.mxu0 0
      %2918 = vmatprep.subr.bf16.mxu0 0
      %2919 = vmatpush2.bf16.msra.mxu0 0
      %2920 = vmatprep.subr.bf16.mxu0 0
      %2921 = vmatpush2.bf16.msra.mxu0 0
      %2922 = vmatprep.subr.bf16.mxu0 0
      %2923 = vmatpush2.bf16.msra.mxu0 0
      %2924 = vmatprep.subr.bf16.mxu0 0
      %2925 = vmatpush2.bf16.msra.mxu0 0
      %2926 = vmatprep.mubr.bf16.mxu0 0
      %2927 = vmatmul.mubr.bf16.gmra.mxu0 %v2883
      %v2928 = vpop.f32.mrf.mxu0
      %v2929 = vadd.f32 0.0, %v2928
      %v2930 = vpop.f32.mrf.mxu0
      %v2931 = vadd.f32 0.0, %v2930
      %v2932 = vpop.f32.mrf.mxu0
      %v2933 = vadd.f32 0.0, %v2932
      %v2934 = vpop.f32.mrf.mxu0
      %v2935 = vadd.f32 0.0, %v2934
      %2936 = vmatprep.mubr.bf16.mxu0 0
      %2937 = vmatmul.mubr.bf16.gmra.mxu0 %v2886
      %v2938 = vpop.f32.mrf.mxu0
      %v2939 = vadd.f32 0.0, %v2938
      %v2940 = vpop.f32.mrf.mxu0
      %v2941 = vadd.f32 0.0, %v2940
      %v2942 = vpop.f32.mrf.mxu0
      %v2943 = vadd.f32 0.0, %v2942
      %v2944 = vpop.f32.mrf.mxu0
      %v2945 = vadd.f32 0.0, %v2944
      %2946 = vmatprep.mubr.bf16.mxu0 0
      %2947 = vmatmul.mubr.bf16.gmra.mxu0 %v2889
      %v2948 = vpop.f32.mrf.mxu0
      %v2949 = vadd.f32 0.0, %v2948
      %v2950 = vpop.f32.mrf.mxu0
      %v2951 = vadd.f32 0.0, %v2950
      %v2952 = vpop.f32.mrf.mxu0
      %v2953 = vadd.f32 0.0, %v2952
      %v2954 = vpop.f32.mrf.mxu0
      %v2955 = vadd.f32 0.0, %v2954
      %2956 = vmatprep.mubr.bf16.mxu0 0
      %2957 = vmatmul.mubr.bf16.gmra.mxu0 %v2892
      %v2958 = vpop.f32.mrf.mxu0
      %v2959 = vadd.f32 0.0, %v2958
      %v2960 = vpop.f32.mrf.mxu0
      %v2961 = vadd.f32 0.0, %v2960
      %v2962 = vpop.f32.mrf.mxu0
      %v2963 = vadd.f32 0.0, %v2962
      %v2964 = vpop.f32.mrf.mxu0
      %v2965 = vadd.f32 0.0, %v2964
      %2966 = vdwg.mxu0
      %2967 = vmatprep.subr.bf16.mxu0 0
      %2968 = vmatpush1.bf16.msra.mxu0 0
      %2969 = vmatprep.subr.bf16.mxu0 0
      %2970 = vmatpush1.bf16.msra.mxu0 0
      %2971 = vmatprep.subr.bf16.mxu0 0
      %2972 = vmatpush1.bf16.msra.mxu0 0
      %2973 = vmatprep.subr.bf16.mxu0 0
      %2974 = vmatpush1.bf16.msra.mxu0 0
      %2975 = vmatprep.subr.bf16.mxu0 0
      %2976 = vmatpush1.bf16.msra.mxu0 0
      %2977 = vmatprep.subr.bf16.mxu0 0
      %2978 = vmatpush1.bf16.msra.mxu0 0
      %2979 = vmatprep.subr.bf16.mxu0 %v2873
      %2980 = vmatpush1.bf16.msra.mxu0 %v2872
      %2981 = vmatprep.subr.bf16.mxu0 %v2869
      %2982 = vmatpush1.bf16.msra.mxu0 %v2868
      %2983 = vmatprep.subr.bf16.mxu0 0
      %2984 = vmatpush2.bf16.msra.mxu0 0
      %2985 = vmatprep.subr.bf16.mxu0 0
      %2986 = vmatpush2.bf16.msra.mxu0 0
      %2987 = vmatprep.subr.bf16.mxu0 0
      %2988 = vmatpush2.bf16.msra.mxu0 0
      %2989 = vmatprep.subr.bf16.mxu0 0
      %2990 = vmatpush2.bf16.msra.mxu0 0
      %2991 = vmatprep.subr.bf16.mxu0 0
      %2992 = vmatpush2.bf16.msra.mxu0 0
      %2993 = vmatprep.subr.bf16.mxu0 0
      %2994 = vmatpush2.bf16.msra.mxu0 0
      %2995 = vmatprep.subr.bf16.mxu0 0
      %2996 = vmatpush2.bf16.msra.mxu0 0
      %2997 = vmatprep.subr.bf16.mxu0 0
      %2998 = vmatpush2.bf16.msra.mxu0 0
      %2999 = vmatprep.mubr.bf16.mxu0 0
      %3000 = vmatmul.mubr.bf16.gmra.mxu0 %v2883
      %v3001 = vpop.f32.mrf.mxu0
      %v3002 = vadd.f32 0.0, %v3001
      %v3003 = vpop.f32.mrf.mxu0
      %v3004 = vadd.f32 0.0, %v3003
      %v3005 = vpop.f32.mrf.mxu0
      %v3006 = vadd.f32 0.0, %v3005
      %v3007 = vpop.f32.mrf.mxu0
      %v3008 = vadd.f32 0.0, %v3007
      %3009 = vmatprep.mubr.bf16.mxu0 0
      %3010 = vmatmul.mubr.bf16.gmra.mxu0 %v2886
      %v3011 = vpop.f32.mrf.mxu0
      %v3012 = vadd.f32 0.0, %v3011
      %v3013 = vpop.f32.mrf.mxu0
      %v3014 = vadd.f32 0.0, %v3013
      %v3015 = vpop.f32.mrf.mxu0
      %v3016 = vadd.f32 0.0, %v3015
      %v3017 = vpop.f32.mrf.mxu0
      %v3018 = vadd.f32 0.0, %v3017
      %3019 = vmatprep.mubr.bf16.mxu0 0
      %3020 = vmatmul.mubr.bf16.gmra.mxu0 %v2889
      %v3021 = vpop.f32.mrf.mxu0
      %v3022 = vadd.f32 0.0, %v3021
      %v3023 = vpop.f32.mrf.mxu0
      %v3024 = vadd.f32 0.0, %v3023
      %v3025 = vpop.f32.mrf.mxu0
      %v3026 = vadd.f32 0.0, %v3025
      %v3027 = vpop.f32.mrf.mxu0
      %v3028 = vadd.f32 0.0, %v3027
      %3029 = vmatprep.mubr.bf16.mxu0 0
      %3030 = vmatmul.mubr.bf16.gmra.mxu0 %v2892
      %v3031 = vpop.f32.mrf.mxu0
      %v3032 = vadd.f32 0.0, %v3031
      %v3033 = vpop.f32.mrf.mxu0
      %v3034 = vadd.f32 0.0, %v3033
      %v3035 = vpop.f32.mrf.mxu0
      %v3036 = vadd.f32 0.0, %v3035
      %v3037 = vpop.f32.mrf.mxu0
      %v3038 = vadd.f32 0.0, %v3037
      %3039 = vdwg.mxu0
      %v3040 = vld [vmem:[#allocation3] sm:$0xff]
      %v3041 = vld [vmem:[#allocation3 + $0x8] sm:$0xff]
      %v3042 = vld [vmem:[#allocation3 + $0x10] sm:$0xff]
      %v3043 = vld [vmem:[#allocation3 + $0x18] sm:$0xff]
      %v3044 = vld [vmem:[#allocation3 + $0x20] sm:$0xff]
      %v3045 = vld [vmem:[#allocation3 + $0x28] sm:$0xff]
      %v3046 = vld [vmem:[#allocation3 + $0x30] sm:$0xff]
      %v3047 = vld [vmem:[#allocation3 + $0x38] sm:$0xff]
      %v3048 = vld [vmem:[#allocation3 + $0x40] sm:$0xff]
      %v3049 = vld [vmem:[#allocation3 + $0x48] sm:$0xff]
      %v3050 = vld [vmem:[#allocation3 + $0x50] sm:$0xff]
      %v3051 = vld [vmem:[#allocation3 + $0x58] sm:$0xff]
      %v3052 = vld [vmem:[#allocation3 + $0x60] sm:$0xff]
      %v3053 = vld [vmem:[#allocation3 + $0x68] sm:$0xff]
      %v3054 = vld [vmem:[#allocation3 + $0x70] sm:$0xff]
      %v3055 = vld [vmem:[#allocation3 + $0x78] sm:$0xff]
      %v3056 = vld [vmem:[#allocation3 + $0x80] sm:$0xff]
      %v3057 = vld [vmem:[#allocation3 + $0x88] sm:$0xff]
      %v3058 = vld [vmem:[#allocation3 + $0x90] sm:$0xff]
      %v3059 = vld [vmem:[#allocation3 + $0x98] sm:$0xff]
      %v3060 = vld [vmem:[#allocation3 + $0xa0] sm:$0xff]
      %v3061 = vld [vmem:[#allocation3 + $0xa8] sm:$0xff]
      %v3062 = vld [vmem:[#allocation3 + $0xb0] sm:$0xff]
      %v3063 = vld [vmem:[#allocation3 + $0xb8] sm:$0xff]
      %v3064 = vld [vmem:[#allocation3 + $0xc0] sm:$0xff]
      %v3065 = vld [vmem:[#allocation3 + $0xc8] sm:$0xff]
      %v3066 = vld [vmem:[#allocation3 + $0xd0] sm:$0xff]
      %v3067 = vld [vmem:[#allocation3 + $0xd8] sm:$0xff]
      %v3068 = vld [vmem:[#allocation3 + $0xe0] sm:$0xff]
      %v3069 = vld [vmem:[#allocation3 + $0xe8] sm:$0xff]
      %v3070 = vld [vmem:[#allocation3 + $0xf0] sm:$0xff]
      %v3071 = vld [vmem:[#allocation3 + $0xf8] sm:$0xff]
      %v3072 = vadd.f32 %v3040, %v2929
      %v3073 = vadd.f32 %v3041, %v2931
      %v3074 = vadd.f32 %v3042, %v3002
      %v3075 = vadd.f32 %v3043, %v3004
      %v3076 = vadd.f32 %v3044, %v2933
      %v3077 = vadd.f32 %v3045, %v2935
      %v3078 = vadd.f32 %v3046, %v3006
      %v3079 = vadd.f32 %v3047, %v3008
      %v3080 = vadd.f32 %v3048, %v2939
      %v3081 = vadd.f32 %v3049, %v2941
      %v3082 = vadd.f32 %v3050, %v3012
      %v3083 = vadd.f32 %v3051, %v3014
      %v3084 = vadd.f32 %v3052, %v2943
      %v3085 = vadd.f32 %v3053, %v2945
      %v3086 = vadd.f32 %v3054, %v3016
      %v3087 = vadd.f32 %v3055, %v3018
      %v3088 = vadd.f32 %v3056, %v2949
      %v3089 = vadd.f32 %v3057, %v2951
      %v3090 = vadd.f32 %v3058, %v3022
      %v3091 = vadd.f32 %v3059, %v3024
      %v3092 = vadd.f32 %v3060, %v2953
      %v3093 = vadd.f32 %v3061, %v2955
      %v3094 = vadd.f32 %v3062, %v3026
      %v3095 = vadd.f32 %v3063, %v3028
      %v3096 = vadd.f32 %v3064, %v2959
      %v3097 = vadd.f32 %v3065, %v2961
      %v3098 = vadd.f32 %v3066, %v3032
      %v3099 = vadd.f32 %v3067, %v3034
      %v3100 = vadd.f32 %v3068, %v2963
      %v3101 = vadd.f32 %v3069, %v2965
      %v3102 = vadd.f32 %v3070, %v3036
      %v3103 = vadd.f32 %v3071, %v3038
      %3104 = vst [vmem:[#allocation3] sm:$0xff] %v3072
      %3105 = vst [vmem:[#allocation3 + $0x8] sm:$0xff] %v3073
      %3106 = vst [vmem:[#allocation3 + $0x10] sm:$0xff] %v3074
      %3107 = vst [vmem:[#allocation3 + $0x18] sm:$0xff] %v3075
      %3108 = vst [vmem:[#allocation3 + $0x20] sm:$0xff] %v3076
      %3109 = vst [vmem:[#allocation3 + $0x28] sm:$0xff] %v3077
      %3110 = vst [vmem:[#allocation3 + $0x30] sm:$0xff] %v3078
      %3111 = vst [vmem:[#allocation3 + $0x38] sm:$0xff] %v3079
      %3112 = vst [vmem:[#allocation3 + $0x40] sm:$0xff] %v3080
      %3113 = vst [vmem:[#allocation3 + $0x48] sm:$0xff] %v3081
      %3114 = vst [vmem:[#allocation3 + $0x50] sm:$0xff] %v3082
      %3115 = vst [vmem:[#allocation3 + $0x58] sm:$0xff] %v3083
      %3116 = vst [vmem:[#allocation3 + $0x60] sm:$0xff] %v3084
      %3117 = vst [vmem:[#allocation3 + $0x68] sm:$0xff] %v3085
      %3118 = vst [vmem:[#allocation3 + $0x70] sm:$0xff] %v3086
      %3119 = vst [vmem:[#allocation3 + $0x78] sm:$0xff] %v3087
      %3120 = vst [vmem:[#allocation3 + $0x80] sm:$0xff] %v3088
      %3121 = vst [vmem:[#allocation3 + $0x88] sm:$0xff] %v3089
      %3122 = vst [vmem:[#allocation3 + $0x90] sm:$0xff] %v3090
      %3123 = vst [vmem:[#allocation3 + $0x98] sm:$0xff] %v3091
      %3124 = vst [vmem:[#allocation3 + $0xa0] sm:$0xff] %v3092
      %3125 = vst [vmem:[#allocation3 + $0xa8] sm:$0xff] %v3093
      %3126 = vst [vmem:[#allocation3 + $0xb0] sm:$0xff] %v3094
      %3127 = vst [vmem:[#allocation3 + $0xb8] sm:$0xff] %v3095
      %3128 = vst [vmem:[#allocation3 + $0xc0] sm:$0xff] %v3096
      %3129 = vst [vmem:[#allocation3 + $0xc8] sm:$0xff] %v3097
      %3130 = vst [vmem:[#allocation3 + $0xd0] sm:$0xff] %v3098
      %3131 = vst [vmem:[#allocation3 + $0xd8] sm:$0xff] %v3099
      %3132 = vst [vmem:[#allocation3 + $0xe0] sm:$0xff] %v3100
      %3133 = vst [vmem:[#allocation3 + $0xe8] sm:$0xff] %v3101
      %3134 = vst [vmem:[#allocation3 + $0xf0] sm:$0xff] %v3102
      %3135 = vst [vmem:[#allocation3 + $0xf8] sm:$0xff] %v3103
      %s3136 = scalar_lea.vmem [#allocation2], 88
      %v3137 = vld [vmem:[%s3136] sm:$0xf]
      %v3138 = vld [vmem:[%s3136 + $0x4] sm:$0xf]
      %v3139 = vld [vmem:[%s3136 + $0x8] sm:$0xf]
      %v3140 = vld [vmem:[%s3136 + $0xc] sm:$0xf]
      %v3141 = vld [vmem:[%s3136 + $0x10] sm:$0xf]
      %v3142 = vld [vmem:[%s3136 + $0x14] sm:$0xf]
      %v3143 = vld [vmem:[%s3136 + $0x18] sm:$0xf]
      %v3144 = vld [vmem:[%s3136 + $0x1c] sm:$0xf]
      %s3145 = scalar_lea.vmem %s1, 512
      %v3146 = vld [vmem:[%s3145] sm:$0xff]
      %v3147 = vld [vmem:[%s3145 + $0x8] sm:$0xff]
      %v3148 = vld [vmem:[%s3145 + $0x10] sm:$0xff]
      %v3149 = vld [vmem:[%s3145 + $0x18] sm:$0xff]
      %v3150 = vld [vmem:[%s3145 + $0x20] sm:$0xff]
      %v3151 = vld [vmem:[%s3145 + $0x28] sm:$0xff]
      %v3152 = vld [vmem:[%s3145 + $0x30] sm:$0xff]
      %v3153 = vld [vmem:[%s3145 + $0x38] sm:$0xff]
      %v3162 = vunpack.c.l.b16 %v3137
      %v3163 = vunpack.c.l.b16 %v3138
      %v3164 = vunpack.c.l.b16 %v3139
      %v3165 = vunpack.c.l.b16 %v3140
      %v3166 = vunpack.c.l.b16 %v3141
      %v3167 = vunpack.c.l.b16 %v3142
      %v3168 = vunpack.c.l.b16 %v3143
      %v3169 = vunpack.c.l.b16 %v3144
      %v3170 = vpack.c.b16 %v3163, %v3162
      %v3171 = vpack.c.b16 %v3165, %v3164
      %v3172 = vpack.c.b16 %v3167, %v3166
      %v3173 = vpack.c.b16 %v3169, %v3168
      %v3182 = vunpack.c.l.b16 %v3146
      %v3183 = vunpack.c.h.b16 %v3146
      %v3184 = vunpack.c.l.b16 %v3147
      %v3185 = vunpack.c.h.b16 %v3147
      %v3186 = vunpack.c.l.b16 %v3148
      %v3187 = vunpack.c.h.b16 %v3148
      %v3188 = vunpack.c.l.b16 %v3149
      %v3189 = vunpack.c.h.b16 %v3149
      %v3190 = vunpack.c.l.b16 %v3150
      %v3191 = vunpack.c.h.b16 %v3150
      %v3192 = vunpack.c.l.b16 %v3151
      %v3193 = vunpack.c.h.b16 %v3151
      %v3194 = vunpack.c.l.b16 %v3152
      %v3195 = vunpack.c.h.b16 %v3152
      %v3196 = vunpack.c.l.b16 %v3153
      %v3197 = vunpack.c.h.b16 %v3153
      %v3198 = vpack.c.b16 %v3186, %v3182
      %v3199 = vpack.c.b16 %v3187, %v3183
      %v3200 = vpack.c.b16 %v3188, %v3184
      %v3201 = vpack.c.b16 %v3189, %v3185
      %v3202 = vpack.c.b16 %v3194, %v3190
      %v3203 = vpack.c.b16 %v3195, %v3191
      %v3204 = vpack.c.b16 %v3196, %v3192
      %v3205 = vpack.c.b16 %v3197, %v3193
      %v3215 = vsel %vm626, %v3170, 0
      %v3218 = vsel %vm626, %v3171, 0
      %v3221 = vsel %vm626, %v3172, 0
      %v3224 = vsel %vm626, %v3173, 0
      %3226 = vmatprep.subr.bf16.mxu0 0
      %3227 = vmatpush1.bf16.msra.mxu0 0
      %3228 = vmatprep.subr.bf16.mxu0 0
      %3229 = vmatpush1.bf16.msra.mxu0 0
      %3230 = vmatprep.subr.bf16.mxu0 0
      %3231 = vmatpush1.bf16.msra.mxu0 0
      %3232 = vmatprep.subr.bf16.mxu0 0
      %3233 = vmatpush1.bf16.msra.mxu0 0
      %3234 = vmatprep.subr.bf16.mxu0 0
      %3235 = vmatpush1.bf16.msra.mxu0 0
      %3236 = vmatprep.subr.bf16.mxu0 0
      %3237 = vmatpush1.bf16.msra.mxu0 0
      %3238 = vmatprep.subr.bf16.mxu0 %v3203
      %3239 = vmatpush1.bf16.msra.mxu0 %v3202
      %3240 = vmatprep.subr.bf16.mxu0 %v3199
      %3241 = vmatpush1.bf16.msra.mxu0 %v3198
      %3242 = vmatprep.subr.bf16.mxu0 0
      %3243 = vmatpush2.bf16.msra.mxu0 0
      %3244 = vmatprep.subr.bf16.mxu0 0
      %3245 = vmatpush2.bf16.msra.mxu0 0
      %3246 = vmatprep.subr.bf16.mxu0 0
      %3247 = vmatpush2.bf16.msra.mxu0 0
      %3248 = vmatprep.subr.bf16.mxu0 0
      %3249 = vmatpush2.bf16.msra.mxu0 0
      %3250 = vmatprep.subr.bf16.mxu0 0
      %3251 = vmatpush2.bf16.msra.mxu0 0
      %3252 = vmatprep.subr.bf16.mxu0 0
      %3253 = vmatpush2.bf16.msra.mxu0 0
      %3254 = vmatprep.subr.bf16.mxu0 0
      %3255 = vmatpush2.bf16.msra.mxu0 0
      %3256 = vmatprep.subr.bf16.mxu0 0
      %3257 = vmatpush2.bf16.msra.mxu0 0
      %3258 = vmatprep.mubr.bf16.mxu0 0
      %3259 = vmatmul.mubr.bf16.gmra.mxu0 %v3215
      %v3260 = vpop.f32.mrf.mxu0
      %v3261 = vadd.f32 0.0, %v3260
      %v3262 = vpop.f32.mrf.mxu0
      %v3263 = vadd.f32 0.0, %v3262
      %v3264 = vpop.f32.mrf.mxu0
      %v3265 = vadd.f32 0.0, %v3264
      %v3266 = vpop.f32.mrf.mxu0
      %v3267 = vadd.f32 0.0, %v3266
      %3268 = vmatprep.mubr.bf16.mxu0 0
      %3269 = vmatmul.mubr.bf16.gmra.mxu0 %v3218
      %v3270 = vpop.f32.mrf.mxu0
      %v3271 = vadd.f32 0.0, %v3270
      %v3272 = vpop.f32.mrf.mxu0
      %v3273 = vadd.f32 0.0, %v3272
      %v3274 = vpop.f32.mrf.mxu0
      %v3275 = vadd.f32 0.0, %v3274
      %v3276 = vpop.f32.mrf.mxu0
      %v3277 = vadd.f32 0.0, %v3276
      %3278 = vmatprep.mubr.bf16.mxu0 0
      %3279 = vmatmul.mubr.bf16.gmra.mxu0 %v3221
      %v3280 = vpop.f32.mrf.mxu0
      %v3281 = vadd.f32 0.0, %v3280
      %v3282 = vpop.f32.mrf.mxu0
      %v3283 = vadd.f32 0.0, %v3282
      %v3284 = vpop.f32.mrf.mxu0
      %v3285 = vadd.f32 0.0, %v3284
      %v3286 = vpop.f32.mrf.mxu0
      %v3287 = vadd.f32 0.0, %v3286
      %3288 = vmatprep.mubr.bf16.mxu0 0
      %3289 = vmatmul.mubr.bf16.gmra.mxu0 %v3224
      %v3290 = vpop.f32.mrf.mxu0
      %v3291 = vadd.f32 0.0, %v3290
      %v3292 = vpop.f32.mrf.mxu0
      %v3293 = vadd.f32 0.0, %v3292
      %v3294 = vpop.f32.mrf.mxu0
      %v3295 = vadd.f32 0.0, %v3294
      %v3296 = vpop.f32.mrf.mxu0
      %v3297 = vadd.f32 0.0, %v3296
      %3298 = vdwg.mxu0
      %3299 = vmatprep.subr.bf16.mxu0 0
      %3300 = vmatpush1.bf16.msra.mxu0 0
      %3301 = vmatprep.subr.bf16.mxu0 0
      %3302 = vmatpush1.bf16.msra.mxu0 0
      %3303 = vmatprep.subr.bf16.mxu0 0
      %3304 = vmatpush1.bf16.msra.mxu0 0
      %3305 = vmatprep.subr.bf16.mxu0 0
      %3306 = vmatpush1.bf16.msra.mxu0 0
      %3307 = vmatprep.subr.bf16.mxu0 0
      %3308 = vmatpush1.bf16.msra.mxu0 0
      %3309 = vmatprep.subr.bf16.mxu0 0
      %3310 = vmatpush1.bf16.msra.mxu0 0
      %3311 = vmatprep.subr.bf16.mxu0 %v3205
      %3312 = vmatpush1.bf16.msra.mxu0 %v3204
      %3313 = vmatprep.subr.bf16.mxu0 %v3201
      %3314 = vmatpush1.bf16.msra.mxu0 %v3200
      %3315 = vmatprep.subr.bf16.mxu0 0
      %3316 = vmatpush2.bf16.msra.mxu0 0
      %3317 = vmatprep.subr.bf16.mxu0 0
      %3318 = vmatpush2.bf16.msra.mxu0 0
      %3319 = vmatprep.subr.bf16.mxu0 0
      %3320 = vmatpush2.bf16.msra.mxu0 0
      %3321 = vmatprep.subr.bf16.mxu0 0
      %3322 = vmatpush2.bf16.msra.mxu0 0
      %3323 = vmatprep.subr.bf16.mxu0 0
      %3324 = vmatpush2.bf16.msra.mxu0 0
      %3325 = vmatprep.subr.bf16.mxu0 0
      %3326 = vmatpush2.bf16.msra.mxu0 0
      %3327 = vmatprep.subr.bf16.mxu0 0
      %3328 = vmatpush2.bf16.msra.mxu0 0
      %3329 = vmatprep.subr.bf16.mxu0 0
      %3330 = vmatpush2.bf16.msra.mxu0 0
      %3331 = vmatprep.mubr.bf16.mxu0 0
      %3332 = vmatmul.mubr.bf16.gmra.mxu0 %v3215
      %v3333 = vpop.f32.mrf.mxu0
      %v3334 = vadd.f32 0.0, %v3333
      %v3335 = vpop.f32.mrf.mxu0
      %v3336 = vadd.f32 0.0, %v3335
      %v3337 = vpop.f32.mrf.mxu0
      %v3338 = vadd.f32 0.0, %v3337
      %v3339 = vpop.f32.mrf.mxu0
      %v3340 = vadd.f32 0.0, %v3339
      %3341 = vmatprep.mubr.bf16.mxu0 0
      %3342 = vmatmul.mubr.bf16.gmra.mxu0 %v3218
      %v3343 = vpop.f32.mrf.mxu0
      %v3344 = vadd.f32 0.0, %v3343
      %v3345 = vpop.f32.mrf.mxu0
      %v3346 = vadd.f32 0.0, %v3345
      %v3347 = vpop.f32.mrf.mxu0
      %v3348 = vadd.f32 0.0, %v3347
      %v3349 = vpop.f32.mrf.mxu0
      %v3350 = vadd.f32 0.0, %v3349
      %3351 = vmatprep.mubr.bf16.mxu0 0
      %3352 = vmatmul.mubr.bf16.gmra.mxu0 %v3221
      %v3353 = vpop.f32.mrf.mxu0
      %v3354 = vadd.f32 0.0, %v3353
      %v3355 = vpop.f32.mrf.mxu0
      %v3356 = vadd.f32 0.0, %v3355
      %v3357 = vpop.f32.mrf.mxu0
      %v3358 = vadd.f32 0.0, %v3357
      %v3359 = vpop.f32.mrf.mxu0
      %v3360 = vadd.f32 0.0, %v3359
      %3361 = vmatprep.mubr.bf16.mxu0 0
      %3362 = vmatmul.mubr.bf16.gmra.mxu0 %v3224
      %v3363 = vpop.f32.mrf.mxu0
      %v3364 = vadd.f32 0.0, %v3363
      %v3365 = vpop.f32.mrf.mxu0
      %v3366 = vadd.f32 0.0, %v3365
      %v3367 = vpop.f32.mrf.mxu0
      %v3368 = vadd.f32 0.0, %v3367
      %v3369 = vpop.f32.mrf.mxu0
      %v3370 = vadd.f32 0.0, %v3369
      %3371 = vdwg.mxu0
      %v3372 = vld [vmem:[#allocation3] sm:$0xff]
      %v3373 = vld [vmem:[#allocation3 + $0x8] sm:$0xff]
      %v3374 = vld [vmem:[#allocation3 + $0x10] sm:$0xff]
      %v3375 = vld [vmem:[#allocation3 + $0x18] sm:$0xff]
      %v3376 = vld [vmem:[#allocation3 + $0x20] sm:$0xff]
      %v3377 = vld [vmem:[#allocation3 + $0x28] sm:$0xff]
      %v3378 = vld [vmem:[#allocation3 + $0x30] sm:$0xff]
      %v3379 = vld [vmem:[#allocation3 + $0x38] sm:$0xff]
      %v3380 = vld [vmem:[#allocation3 + $0x40] sm:$0xff]
      %v3381 = vld [vmem:[#allocation3 + $0x48] sm:$0xff]
      %v3382 = vld [vmem:[#allocation3 + $0x50] sm:$0xff]
      %v3383 = vld [vmem:[#allocation3 + $0x58] sm:$0xff]
      %v3384 = vld [vmem:[#allocation3 + $0x60] sm:$0xff]
      %v3385 = vld [vmem:[#allocation3 + $0x68] sm:$0xff]
      %v3386 = vld [vmem:[#allocation3 + $0x70] sm:$0xff]
      %v3387 = vld [vmem:[#allocation3 + $0x78] sm:$0xff]
      %v3388 = vld [vmem:[#allocation3 + $0x80] sm:$0xff]
      %v3389 = vld [vmem:[#allocation3 + $0x88] sm:$0xff]
      %v3390 = vld [vmem:[#allocation3 + $0x90] sm:$0xff]
      %v3391 = vld [vmem:[#allocation3 + $0x98] sm:$0xff]
      %v3392 = vld [vmem:[#allocation3 + $0xa0] sm:$0xff]
      %v3393 = vld [vmem:[#allocation3 + $0xa8] sm:$0xff]
      %v3394 = vld [vmem:[#allocation3 + $0xb0] sm:$0xff]
      %v3395 = vld [vmem:[#allocation3 + $0xb8] sm:$0xff]
      %v3396 = vld [vmem:[#allocation3 + $0xc0] sm:$0xff]
      %v3397 = vld [vmem:[#allocation3 + $0xc8] sm:$0xff]
      %v3398 = vld [vmem:[#allocation3 + $0xd0] sm:$0xff]
      %v3399 = vld [vmem:[#allocation3 + $0xd8] sm:$0xff]
      %v3400 = vld [vmem:[#allocation3 + $0xe0] sm:$0xff]
      %v3401 = vld [vmem:[#allocation3 + $0xe8] sm:$0xff]
      %v3402 = vld [vmem:[#allocation3 + $0xf0] sm:$0xff]
      %v3403 = vld [vmem:[#allocation3 + $0xf8] sm:$0xff]
      %v3404 = vadd.f32 %v3372, %v3261
      %v3405 = vadd.f32 %v3373, %v3263
      %v3406 = vadd.f32 %v3374, %v3334
      %v3407 = vadd.f32 %v3375, %v3336
      %v3408 = vadd.f32 %v3376, %v3265
      %v3409 = vadd.f32 %v3377, %v3267
      %v3410 = vadd.f32 %v3378, %v3338
      %v3411 = vadd.f32 %v3379, %v3340
      %v3412 = vadd.f32 %v3380, %v3271
      %v3413 = vadd.f32 %v3381, %v3273
      %v3414 = vadd.f32 %v3382, %v3344
      %v3415 = vadd.f32 %v3383, %v3346
      %v3416 = vadd.f32 %v3384, %v3275
      %v3417 = vadd.f32 %v3385, %v3277
      %v3418 = vadd.f32 %v3386, %v3348
      %v3419 = vadd.f32 %v3387, %v3350
      %v3420 = vadd.f32 %v3388, %v3281
      %v3421 = vadd.f32 %v3389, %v3283
      %v3422 = vadd.f32 %v3390, %v3354
      %v3423 = vadd.f32 %v3391, %v3356
      %v3424 = vadd.f32 %v3392, %v3285
      %v3425 = vadd.f32 %v3393, %v3287
      %v3426 = vadd.f32 %v3394, %v3358
      %v3427 = vadd.f32 %v3395, %v3360
      %v3428 = vadd.f32 %v3396, %v3291
      %v3429 = vadd.f32 %v3397, %v3293
      %v3430 = vadd.f32 %v3398, %v3364
      %v3431 = vadd.f32 %v3399, %v3366
      %v3432 = vadd.f32 %v3400, %v3295
      %v3433 = vadd.f32 %v3401, %v3297
      %v3434 = vadd.f32 %v3402, %v3368
      %v3435 = vadd.f32 %v3403, %v3370
      %3436 = vst [vmem:[#allocation3] sm:$0xff] %v3404
      %3437 = vst [vmem:[#allocation3 + $0x8] sm:$0xff] %v3405
      %3438 = vst [vmem:[#allocation3 + $0x10] sm:$0xff] %v3406
      %3439 = vst [vmem:[#allocation3 + $0x18] sm:$0xff] %v3407
      %3440 = vst [vmem:[#allocation3 + $0x20] sm:$0xff] %v3408
      %3441 = vst [vmem:[#allocation3 + $0x28] sm:$0xff] %v3409
      %3442 = vst [vmem:[#allocation3 + $0x30] sm:$0xff] %v3410
      %3443 = vst [vmem:[#allocation3 + $0x38] sm:$0xff] %v3411
      %3444 = vst [vmem:[#allocation3 + $0x40] sm:$0xff] %v3412
      %3445 = vst [vmem:[#allocation3 + $0x48] sm:$0xff] %v3413
      %3446 = vst [vmem:[#allocation3 + $0x50] sm:$0xff] %v3414
      %3447 = vst [vmem:[#allocation3 + $0x58] sm:$0xff] %v3415
      %3448 = vst [vmem:[#allocation3 + $0x60] sm:$0xff] %v3416
      %3449 = vst [vmem:[#allocation3 + $0x68] sm:$0xff] %v3417
      %3450 = vst [vmem:[#allocation3 + $0x70] sm:$0xff] %v3418
      %3451 = vst [vmem:[#allocation3 + $0x78] sm:$0xff] %v3419
      %3452 = vst [vmem:[#allocation3 + $0x80] sm:$0xff] %v3420
      %3453 = vst [vmem:[#allocation3 + $0x88] sm:$0xff] %v3421
      %3454 = vst [vmem:[#allocation3 + $0x90] sm:$0xff] %v3422
      %3455 = vst [vmem:[#allocation3 + $0x98] sm:$0xff] %v3423
      %3456 = vst [vmem:[#allocation3 + $0xa0] sm:$0xff] %v3424
      %3457 = vst [vmem:[#allocation3 + $0xa8] sm:$0xff] %v3425
      %3458 = vst [vmem:[#allocation3 + $0xb0] sm:$0xff] %v3426
      %3459 = vst [vmem:[#allocation3 + $0xb8] sm:$0xff] %v3427
      %3460 = vst [vmem:[#allocation3 + $0xc0] sm:$0xff] %v3428
      %3461 = vst [vmem:[#allocation3 + $0xc8] sm:$0xff] %v3429
      %3462 = vst [vmem:[#allocation3 + $0xd0] sm:$0xff] %v3430
      %3463 = vst [vmem:[#allocation3 + $0xd8] sm:$0xff] %v3431
      %3464 = vst [vmem:[#allocation3 + $0xe0] sm:$0xff] %v3432
      %3465 = vst [vmem:[#allocation3 + $0xe8] sm:$0xff] %v3433
      %3466 = vst [vmem:[#allocation3 + $0xf0] sm:$0xff] %v3434
      %3467 = vst [vmem:[#allocation3 + $0xf8] sm:$0xff] %v3435
      %v3468 = vld [vmem:[#allocation3] sm:$0xff]
      %v3469 = vld [vmem:[#allocation3 + $0x8] sm:$0xff]
      %v3470 = vld [vmem:[#allocation3 + $0x20] sm:$0xff]
      %v3471 = vld [vmem:[#allocation3 + $0x28] sm:$0xff]
      %v3472 = vld [vmem:[#allocation3 + $0x40] sm:$0xff]
      %v3473 = vld [vmem:[#allocation3 + $0x48] sm:$0xff]
      %v3474 = vld [vmem:[#allocation3 + $0x60] sm:$0xff]
      %v3475 = vld [vmem:[#allocation3 + $0x68] sm:$0xff]
      %v3476 = vld [vmem:[#allocation3 + $0x80] sm:$0xff]
      %v3477 = vld [vmem:[#allocation3 + $0x88] sm:$0xff]
      %v3478 = vld [vmem:[#allocation3 + $0xa0] sm:$0xff]
      %v3479 = vld [vmem:[#allocation3 + $0xa8] sm:$0xff]
      %v3480 = vld [vmem:[#allocation3 + $0xc0] sm:$0xff]
      %v3481 = vld [vmem:[#allocation3 + $0xc8] sm:$0xff]
      %v3482 = vld [vmem:[#allocation3 + $0xe0] sm:$0xff]
      %v3483 = vld [vmem:[#allocation3 + $0xe8] sm:$0xff]
      %v3484 = vld [vmem:[%s2] sm:$0x3]
      %v3486 = vlaneseq
      %v3487 = vshrl.u32 %v3486, 7
      %v3488 = vsub.s32 0, %v3487
      %v3489 = vrot.slane %v3484, %v3488
      %v3490 = vlaneseq
      %v3491 = vshrl.u32 %v3490, 7
      %v3492 = vsub.s32 1, %v3491
      %v3493 = vrot.slane %v3484, %v3492
      %v3496 = vadd.f32 %v3468, %v3489
      %v3497 = vadd.f32 %v3469, %v3493
      %v3498 = vadd.f32 %v3470, %v3489
      %v3499 = vadd.f32 %v3471, %v3493
      %v3500 = vadd.f32 %v3472, %v3489
      %v3501 = vadd.f32 %v3473, %v3493
      %v3502 = vadd.f32 %v3474, %v3489
      %v3503 = vadd.f32 %v3475, %v3493
      %v3504 = vadd.f32 %v3476, %v3489
      %v3505 = vadd.f32 %v3477, %v3493
      %v3506 = vadd.f32 %v3478, %v3489
      %v3507 = vadd.f32 %v3479, %v3493
      %v3508 = vadd.f32 %v3480, %v3489
      %v3509 = vadd.f32 %v3481, %v3493
      %v3510 = vadd.f32 %v3482, %v3489
      %v3511 = vadd.f32 %v3483, %v3493
      %v3512 = vmax.f32 %v3496, 0.0
      %v3513 = vmax.f32 %v3497, 0.0
      %v3514 = vmax.f32 %v3498, 0.0
      %v3515 = vmax.f32 %v3499, 0.0
      %v3516 = vmax.f32 %v3500, 0.0
      %v3517 = vmax.f32 %v3501, 0.0
      %v3518 = vmax.f32 %v3502, 0.0
      %v3519 = vmax.f32 %v3503, 0.0
      %v3520 = vmax.f32 %v3504, 0.0
      %v3521 = vmax.f32 %v3505, 0.0
      %v3522 = vmax.f32 %v3506, 0.0
      %v3523 = vmax.f32 %v3507, 0.0
      %v3524 = vmax.f32 %v3508, 0.0
      %v3525 = vmax.f32 %v3509, 0.0
      %v3526 = vmax.f32 %v3510, 0.0
      %v3527 = vmax.f32 %v3511, 0.0
      %v3528 = vpack.c.bf16 %v3514, %v3512
      %v3529 = vpack.c.bf16 %v3515, %v3513
      %v3530 = vpack.c.bf16 %v3518, %v3516
      %v3531 = vpack.c.bf16 %v3519, %v3517
      %v3532 = vpack.c.bf16 %v3522, %v3520
      %v3533 = vpack.c.bf16 %v3523, %v3521
      %v3534 = vpack.c.bf16 %v3526, %v3524
      %v3535 = vpack.c.bf16 %v3527, %v3525
      %v3544 = vunpack.c.l.b16 %v3528
      %v3545 = vunpack.c.l.b16 %v3529
      %v3546 = vunpack.c.h.b16 %v3528
      %v3547 = vunpack.c.h.b16 %v3529
      %v3548 = vunpack.c.l.b16 %v3530
      %v3549 = vunpack.c.l.b16 %v3531
      %v3550 = vunpack.c.h.b16 %v3530
      %v3551 = vunpack.c.h.b16 %v3531
      %v3552 = vunpack.c.l.b16 %v3532
      %v3553 = vunpack.c.l.b16 %v3533
      %v3554 = vunpack.c.h.b16 %v3532
      %v3555 = vunpack.c.h.b16 %v3533
      %v3556 = vunpack.c.l.b16 %v3534
      %v3557 = vunpack.c.l.b16 %v3535
      %v3558 = vunpack.c.h.b16 %v3534
      %v3559 = vunpack.c.h.b16 %v3535
      %v3560 = vpack.c.b16 %v3545, %v3544
      %v3561 = vpack.c.b16 %v3547, %v3546
      %v3562 = vpack.c.b16 %v3549, %v3548
      %v3563 = vpack.c.b16 %v3551, %v3550
      %v3564 = vpack.c.b16 %v3553, %v3552
      %v3565 = vpack.c.b16 %v3555, %v3554
      %v3566 = vpack.c.b16 %v3557, %v3556
      %v3567 = vpack.c.b16 %v3559, %v3558
      %3576 = vst [vmem:[%s302] sm:$0xff] %v3560
      %3577 = vst [vmem:[%s302 + $0x8] sm:$0xff] %v3561
      %3578 = vst [vmem:[%s302 + $0x10] sm:$0xff] %v3562
      %3579 = vst [vmem:[%s302 + $0x18] sm:$0xff] %v3563
      %3580 = vst [vmem:[%s302 + $0x20] sm:$0xff] %v3564
      %3581 = vst [vmem:[%s302 + $0x28] sm:$0xff] %v3565
      %3582 = vst [vmem:[%s302 + $0x30] sm:$0xff] %v3566
      %3583 = vst [vmem:[%s302 + $0x38] sm:$0xff] %v3567
      %v3584 = vld [vmem:[#allocation3 + $0x10] sm:$0xff]
      %v3585 = vld [vmem:[#allocation3 + $0x18] sm:$0xff]
      %v3586 = vld [vmem:[#allocation3 + $0x30] sm:$0xff]
      %v3587 = vld [vmem:[#allocation3 + $0x38] sm:$0xff]
      %v3588 = vld [vmem:[#allocation3 + $0x50] sm:$0xff]
      %v3589 = vld [vmem:[#allocation3 + $0x58] sm:$0xff]
      %v3590 = vld [vmem:[#allocation3 + $0x70] sm:$0xff]
      %v3591 = vld [vmem:[#allocation3 + $0x78] sm:$0xff]
      %v3592 = vld [vmem:[#allocation3 + $0x90] sm:$0xff]
      %v3593 = vld [vmem:[#allocation3 + $0x98] sm:$0xff]
      %v3594 = vld [vmem:[#allocation3 + $0xb0] sm:$0xff]
      %v3595 = vld [vmem:[#allocation3 + $0xb8] sm:$0xff]
      %v3596 = vld [vmem:[#allocation3 + $0xd0] sm:$0xff]
      %v3597 = vld [vmem:[#allocation3 + $0xd8] sm:$0xff]
      %v3598 = vld [vmem:[#allocation3 + $0xf0] sm:$0xff]
      %v3599 = vld [vmem:[#allocation3 + $0xf8] sm:$0xff]
      %v3600 = vld [vmem:[%s2 + $0x2] sm:$0x3]
      %v3602 = vlaneseq
      %v3603 = vshrl.u32 %v3602, 7
      %v3604 = vsub.s32 0, %v3603
      %v3605 = vrot.slane %v3600, %v3604
      %v3606 = vlaneseq
      %v3607 = vshrl.u32 %v3606, 7
      %v3608 = vsub.s32 1, %v3607
      %v3609 = vrot.slane %v3600, %v3608
      %v3612 = vadd.f32 %v3584, %v3605
      %v3613 = vadd.f32 %v3585, %v3609
      %v3614 = vadd.f32 %v3586, %v3605
      %v3615 = vadd.f32 %v3587, %v3609
      %v3616 = vadd.f32 %v3588, %v3605
      %v3617 = vadd.f32 %v3589, %v3609
      %v3618 = vadd.f32 %v3590, %v3605
      %v3619 = vadd.f32 %v3591, %v3609
      %v3620 = vadd.f32 %v3592, %v3605
      %v3621 = vadd.f32 %v3593, %v3609
      %v3622 = vadd.f32 %v3594, %v3605
      %v3623 = vadd.f32 %v3595, %v3609
      %v3624 = vadd.f32 %v3596, %v3605
      %v3625 = vadd.f32 %v3597, %v3609
      %v3626 = vadd.f32 %v3598, %v3605
      %v3627 = vadd.f32 %v3599, %v3609
      %v3628 = vmax.f32 %v3612, 0.0
      %v3629 = vmax.f32 %v3613, 0.0
      %v3630 = vmax.f32 %v3614, 0.0
      %v3631 = vmax.f32 %v3615, 0.0
      %v3632 = vmax.f32 %v3616, 0.0
      %v3633 = vmax.f32 %v3617, 0.0
      %v3634 = vmax.f32 %v3618, 0.0
      %v3635 = vmax.f32 %v3619, 0.0
      %v3636 = vmax.f32 %v3620, 0.0
      %v3637 = vmax.f32 %v3621, 0.0
      %v3638 = vmax.f32 %v3622, 0.0
      %v3639 = vmax.f32 %v3623, 0.0
      %v3640 = vmax.f32 %v3624, 0.0
      %v3641 = vmax.f32 %v3625, 0.0
      %v3642 = vmax.f32 %v3626, 0.0
      %v3643 = vmax.f32 %v3627, 0.0
      %v3644 = vpack.c.bf16 %v3630, %v3628
      %v3645 = vpack.c.bf16 %v3631, %v3629
      %v3646 = vpack.c.bf16 %v3634, %v3632
      %v3647 = vpack.c.bf16 %v3635, %v3633
      %v3648 = vpack.c.bf16 %v3638, %v3636
      %v3649 = vpack.c.bf16 %v3639, %v3637
      %v3650 = vpack.c.bf16 %v3642, %v3640
      %v3651 = vpack.c.bf16 %v3643, %v3641
      %v3660 = vunpack.c.l.b16 %v3644
      %v3661 = vunpack.c.l.b16 %v3645
      %v3662 = vunpack.c.h.b16 %v3644
      %v3663 = vunpack.c.h.b16 %v3645
      %v3664 = vunpack.c.l.b16 %v3646
      %v3665 = vunpack.c.l.b16 %v3647
      %v3666 = vunpack.c.h.b16 %v3646
      %v3667 = vunpack.c.h.b16 %v3647
      %v3668 = vunpack.c.l.b16 %v3648
      %v3669 = vunpack.c.l.b16 %v3649
      %v3670 = vunpack.c.h.b16 %v3648
      %v3671 = vunpack.c.h.b16 %v3649
      %v3672 = vunpack.c.l.b16 %v3650
      %v3673 = vunpack.c.l.b16 %v3651
      %v3674 = vunpack.c.h.b16 %v3650
      %v3675 = vunpack.c.h.b16 %v3651
      %v3676 = vpack.c.b16 %v3661, %v3660
      %v3677 = vpack.c.b16 %v3663, %v3662
      %v3678 = vpack.c.b16 %v3665, %v3664
      %v3679 = vpack.c.b16 %v3667, %v3666
      %v3680 = vpack.c.b16 %v3669, %v3668
      %v3681 = vpack.c.b16 %v3671, %v3670
      %v3682 = vpack.c.b16 %v3673, %v3672
      %v3683 = vpack.c.b16 %v3675, %v3674
      %3692 = vst [vmem:[#allocation4] sm:$0xff] %v3676
      %3693 = vst [vmem:[#allocation4 + $0x8] sm:$0xff] %v3677
      %3694 = vst [vmem:[#allocation4 + $0x10] sm:$0xff] %v3678
      %3695 = vst [vmem:[#allocation4 + $0x18] sm:$0xff] %v3679
      %3696 = vst [vmem:[#allocation4 + $0x20] sm:$0xff] %v3680
      %3697 = vst [vmem:[#allocation4 + $0x28] sm:$0xff] %v3681
      %3698 = vst [vmem:[#allocation4 + $0x30] sm:$0xff] %v3682
      %3699 = vst [vmem:[#allocation4 + $0x38] sm:$0xff] %v3683
      %vm3700 = vcmask 64512
      %3701 = vst.msk [vmem:[#allocation5] sm:$0xff] %vm3700, 0.0
      %3702 = vst.msk [vmem:[#allocation5 + $0x8] sm:$0xff] %vm3700, 0.0
      %v3703 = vld [vmem:[%s3] sm:$0x3]
      %v3704 = vld [vmem:[#allocation4] sm:$0xff]
      %v3705 = vld [vmem:[#allocation4 + $0x8] sm:$0xff]
      %v3706 = vld [vmem:[#allocation4 + $0x10] sm:$0xff]
      %v3707 = vld [vmem:[#allocation4 + $0x18] sm:$0xff]
      %v3708 = vld [vmem:[#allocation4 + $0x20] sm:$0xff]
      %v3709 = vld [vmem:[#allocation4 + $0x28] sm:$0xff]
      %v3710 = vld [vmem:[#allocation4 + $0x30] sm:$0xff]
      %v3711 = vld [vmem:[#allocation4 + $0x38] sm:$0xff]
      %v3714 = vunpack.c.l.s4 1966171168
      %v3715 = vunpack.c.0.s8 %v3714
      %v3716 = vlaneseq
      %v3717 = vshrl.u32 %v3716, 7
      %v3718 = vsub.s32 %v3715, %v3717
      %v3719 = vrot.slane %v3703, %v3718
      %v3720 = vcombine.high %v3719, %v3719
      %v3722 = vunpack.c.l.s4 1966171168
      %v3723 = vunpack.c.0.s8 %v3722
      %v3724 = vlaneseq
      %v3725 = vshrl.u32 %v3724, 7
      %v3726 = vsub.s32 %v3723, %v3725
      %v3727 = vrot.slane %v3719, %v3726
      %v3729 = vunpack.c.l.s4 1966171168
      %v3730 = vunpack.c.0.s8 %v3729
      %v3731 = vlaneseq
      %v3732 = vshrl.u32 %v3731, 7
      %v3733 = vsub.s32 %v3730, %v3732
      %v3734 = vrot.slane %v3720, %v3733
      %v3745 = vunpack.c.l.b16 %v3704
      %v3746 = vunpack.c.h.b16 %v3704
      %v3747 = vunpack.c.l.b16 %v3705
      %v3748 = vunpack.c.h.b16 %v3705
      %v3749 = vunpack.c.l.b16 %v3706
      %v3750 = vunpack.c.h.b16 %v3706
      %v3751 = vunpack.c.l.b16 %v3707
      %v3752 = vunpack.c.h.b16 %v3707
      %v3753 = vunpack.c.l.b16 %v3708
      %v3754 = vunpack.c.h.b16 %v3708
      %v3755 = vunpack.c.l.b16 %v3709
      %v3756 = vunpack.c.h.b16 %v3709
      %v3757 = vunpack.c.l.b16 %v3710
      %v3758 = vunpack.c.h.b16 %v3710
      %v3759 = vunpack.c.l.b16 %v3711
      %v3760 = vunpack.c.h.b16 %v3711
      %v3761 = vpack.c.b16 %v3747, %v3745
      %v3762 = vpack.c.b16 %v3748, %v3746
      %v3763 = vpack.c.b16 %v3751, %v3749
      %v3764 = vpack.c.b16 %v3752, %v3750
      %v3765 = vpack.c.b16 %v3755, %v3753
      %v3766 = vpack.c.b16 %v3756, %v3754
      %v3767 = vpack.c.b16 %v3759, %v3757
      %v3768 = vpack.c.b16 %v3760, %v3758
      %3777 = vmatprep.subr.bf16.mxu0 0
      %3778 = vmatpush1.bf16.xpose.msra.mxu0 0
      %3779 = vmatprep.subr.bf16.mxu0 0
      %3780 = vmatpush1.bf16.xpose.msra.mxu0 0
      %3781 = vmatprep.subr.bf16.mxu0 0
      %3782 = vmatpush1.bf16.xpose.msra.mxu0 0
      %3783 = vmatprep.subr.bf16.mxu0 0
      %3784 = vmatpush1.bf16.xpose.msra.mxu0 0
      %3785 = vmatprep.subr.bf16.mxu0 %v3768
      %3786 = vmatpush1.bf16.xpose.msra.mxu0 %v3767
      %3787 = vmatprep.subr.bf16.mxu0 %v3766
      %3788 = vmatpush1.bf16.xpose.msra.mxu0 %v3765
      %3789 = vmatprep.subr.bf16.mxu0 %v3764
      %3790 = vmatpush1.bf16.xpose.msra.mxu0 %v3763
      %3791 = vmatprep.subr.bf16.mxu0 %v3762
      %3792 = vmatpush1.bf16.xpose.msra.mxu0 %v3761
      %3793 = vmatprep.subr.bf16.mxu0 0
      %3794 = vmatpush2.bf16.xpose.msra.mxu0 0
      %3795 = vmatprep.subr.bf16.mxu0 0
      %3796 = vmatpush2.bf16.xpose.msra.mxu0 0
      %3797 = vmatprep.subr.bf16.mxu0 0
      %3798 = vmatpush2.bf16.xpose.msra.mxu0 0
      %3799 = vmatprep.subr.bf16.mxu0 0
      %3800 = vmatpush2.bf16.xpose.msra.mxu0 0
      %3801 = vmatprep.subr.bf16.mxu0 0
      %3802 = vmatpush2.bf16.xpose.msra.mxu0 0
      %3803 = vmatprep.subr.bf16.mxu0 0
      %3804 = vmatpush2.bf16.xpose.msra.mxu0 0
      %3805 = vmatprep.subr.bf16.mxu0 0
      %3806 = vmatpush2.bf16.xpose.msra.mxu0 0
      %3807 = vmatprep.subr.bf16.mxu0 0
      %3808 = vmatpush2.bf16.xpose.msra.mxu0 0
      %3809 = vmatprep.mubr.bf16.mxu0 %v3734
      %3810 = vmatmul.mubr.bf16.gmra.mxu0 %v3727
      %v3811 = vpop.f32.mrf.mxu0
      %v3812 = vadd.f32 0.0, %v3811
      %v3813 = vpop.f32.mrf.mxu0
      %v3814 = vpop.f32.mrf.mxu0
      %v3815 = vpop.f32.mrf.mxu0
      %3816 = vdwg.mxu0
      %3818 = vrot.lane.b32.xlu0 %v3812, 120
      %v3819 = vpop.permute.xlu0 %3818
      %3821 = vrot.lane.b32.xlu0 %v3812, 112
      %v3822 = vpop.permute.xlu0 %3821
      %3824 = vrot.lane.b32.xlu0 %v3812, 104
      %v3825 = vpop.permute.xlu0 %3824
      %3827 = vrot.lane.b32.xlu0 %v3812, 96
      %v3828 = vpop.permute.xlu0 %3827
      %3830 = vrot.lane.b32.xlu0 %v3812, 88
      %v3831 = vpop.permute.xlu0 %3830
      %3833 = vrot.lane.b32.xlu0 %v3812, 80
      %v3834 = vpop.permute.xlu0 %3833
      %3836 = vrot.lane.b32.xlu0 %v3812, 72
      %v3837 = vpop.permute.xlu0 %3836
      %v3839 = vcombine.low %v3812, %v3822
      %v3841 = vunpack.c.l.s4 1983009808
      %v3842 = vunpack.c.0.s8 %v3841
      %v3843 = vlaneseq
      %v3844 = vshrl.u32 %v3843, 7
      %v3845 = vsub.s32 %v3842, %v3844
      %v3846 = vrot.slane %v3839, %v3845
      %v3847 = vcombine.low %v3819, %v3825
      %v3849 = vunpack.c.l.s4 1983009808
      %v3850 = vunpack.c.0.s8 %v3849
      %v3851 = vlaneseq
      %v3852 = vshrl.u32 %v3851, 7
      %v3853 = vsub.s32 %v3850, %v3852
      %v3854 = vrot.slane %v3847, %v3853
      %v3855 = vcombine.low %v3828, %v3834
      %v3857 = vunpack.c.l.s4 1983009808
      %v3858 = vunpack.c.0.s8 %v3857
      %v3859 = vlaneseq
      %v3860 = vshrl.u32 %v3859, 7
      %v3861 = vsub.s32 %v3858, %v3860
      %v3862 = vrot.slane %v3855, %v3861
      %v3863 = vcombine.low %v3831, %v3837
      %v3865 = vunpack.c.l.s4 1983009808
      %v3866 = vunpack.c.0.s8 %v3865
      %v3867 = vlaneseq
      %v3868 = vshrl.u32 %v3867, 7
      %v3869 = vsub.s32 %v3866, %v3868
      %v3870 = vrot.slane %v3863, %v3869
      %v3871 = vcombine.low %v3846, %v3854
      %v3873 = vunpack.c.l.s4 1934713408
      %v3874 = vunpack.c.0.s8 %v3873
      %v3875 = vlaneseq
      %v3876 = vshrl.u32 %v3875, 7
      %v3877 = vsub.s32 %v3874, %v3876
      %v3878 = vrot.slane %v3871, %v3877
      %v3879 = vcombine.low %v3862, %v3870
      %v3881 = vunpack.c.l.s4 1934713408
      %v3882 = vunpack.c.0.s8 %v3881
      %v3883 = vlaneseq
      %v3884 = vshrl.u32 %v3883, 7
      %v3885 = vsub.s32 %v3882, %v3884
      %v3886 = vrot.slane %v3879, %v3885
      %v3887 = vcombine.low %v3878, %v3886
      %v3888 = vcombine.high %v3878, %v3886
      %v3889 = vld [vmem:[#allocation5 + $0x1] sm:$0x7f]
      %v3890 = vld [vmem:[#allocation5 + $0x9] sm:$0x7f]
      %3893 = vrot.lane.b32.xlu0 %v3887, 1
      %v3894 = vpop.permute.xlu0 %3893
      %3895 = vrot.lane.b32.xlu0 %v3888, 1
      %v3896 = vpop.permute.xlu0 %3895
      %v3899 = vadd.f32 %v3889, %v3894
      %v3900 = vadd.f32 %v3890, %v3896
      %vm3901 = vcmask 63496
      %3902 = vst.msk [vmem:[#allocation5 + $0x1] sm:$0x7f] %vm3901, %v3899
      %3903 = vst.msk [vmem:[#allocation5 + $0x9] sm:$0x7f] %vm3901, %v3900
      %s3904 = scalar_lea.vmem %s3, 2
      %v3905 = vld [vmem:[%s3904] sm:$0x3]
      %v3906 = vld [vmem:[#allocation4] sm:$0xff]
      %v3907 = vld [vmem:[#allocation4 + $0x8] sm:$0xff]
      %v3908 = vld [vmem:[#allocation4 + $0x10] sm:$0xff]
      %v3909 = vld [vmem:[#allocation4 + $0x18] sm:$0xff]
      %v3910 = vld [vmem:[#allocation4 + $0x20] sm:$0xff]
      %v3911 = vld [vmem:[#allocation4 + $0x28] sm:$0xff]
      %v3912 = vld [vmem:[#allocation4 + $0x30] sm:$0xff]
      %v3913 = vld [vmem:[#allocation4 + $0x38] sm:$0xff]
      %v3916 = vunpack.c.l.s4 1966171168
      %v3917 = vunpack.c.0.s8 %v3916
      %v3918 = vlaneseq
      %v3919 = vshrl.u32 %v3918, 7
      %v3920 = vsub.s32 %v3917, %v3919
      %v3921 = vrot.slane %v3905, %v3920
      %v3922 = vcombine.high %v3921, %v3921
      %v3924 = vunpack.c.l.s4 1966171168
      %v3925 = vunpack.c.0.s8 %v3924
      %v3926 = vlaneseq
      %v3927 = vshrl.u32 %v3926, 7
      %v3928 = vsub.s32 %v3925, %v3927
      %v3929 = vrot.slane %v3921, %v3928
      %v3931 = vunpack.c.l.s4 1966171168
      %v3932 = vunpack.c.0.s8 %v3931
      %v3933 = vlaneseq
      %v3934 = vshrl.u32 %v3933, 7
      %v3935 = vsub.s32 %v3932, %v3934
      %v3936 = vrot.slane %v3922, %v3935
      %v3947 = vunpack.c.l.b16 %v3906
      %v3948 = vunpack.c.h.b16 %v3906
      %v3949 = vunpack.c.l.b16 %v3907
      %v3950 = vunpack.c.h.b16 %v3907
      %v3951 = vunpack.c.l.b16 %v3908
      %v3952 = vunpack.c.h.b16 %v3908
      %v3953 = vunpack.c.l.b16 %v3909
      %v3954 = vunpack.c.h.b16 %v3909
      %v3955 = vunpack.c.l.b16 %v3910
      %v3956 = vunpack.c.h.b16 %v3910
      %v3957 = vunpack.c.l.b16 %v3911
      %v3958 = vunpack.c.h.b16 %v3911
      %v3959 = vunpack.c.l.b16 %v3912
      %v3960 = vunpack.c.h.b16 %v3912
      %v3961 = vunpack.c.l.b16 %v3913
      %v3962 = vunpack.c.h.b16 %v3913
      %v3963 = vpack.c.b16 %v3949, %v3947
      %v3964 = vpack.c.b16 %v3950, %v3948
      %v3965 = vpack.c.b16 %v3953, %v3951
      %v3966 = vpack.c.b16 %v3954, %v3952
      %v3967 = vpack.c.b16 %v3957, %v3955
      %v3968 = vpack.c.b16 %v3958, %v3956
      %v3969 = vpack.c.b16 %v3961, %v3959
      %v3970 = vpack.c.b16 %v3962, %v3960
      %3979 = vmatprep.subr.bf16.mxu0 0
      %3980 = vmatpush1.bf16.xpose.msra.mxu0 0
      %3981 = vmatprep.subr.bf16.mxu0 0
      %3982 = vmatpush1.bf16.xpose.msra.mxu0 0
      %3983 = vmatprep.subr.bf16.mxu0 0
      %3984 = vmatpush1.bf16.xpose.msra.mxu0 0
      %3985 = vmatprep.subr.bf16.mxu0 0
      %3986 = vmatpush1.bf16.xpose.msra.mxu0 0
      %3987 = vmatprep.subr.bf16.mxu0 %v3970
      %3988 = vmatpush1.bf16.xpose.msra.mxu0 %v3969
      %3989 = vmatprep.subr.bf16.mxu0 %v3968
      %3990 = vmatpush1.bf16.xpose.msra.mxu0 %v3967
      %3991 = vmatprep.subr.bf16.mxu0 %v3966
      %3992 = vmatpush1.bf16.xpose.msra.mxu0 %v3965
      %3993 = vmatprep.subr.bf16.mxu0 %v3964
      %3994 = vmatpush1.bf16.xpose.msra.mxu0 %v3963
      %3995 = vmatprep.subr.bf16.mxu0 0
      %3996 = vmatpush2.bf16.xpose.msra.mxu0 0
      %3997 = vmatprep.subr.bf16.mxu0 0
      %3998 = vmatpush2.bf16.xpose.msra.mxu0 0
      %3999 = vmatprep.subr.bf16.mxu0 0
      %4000 = vmatpush2.bf16.xpose.msra.mxu0 0
      %4001 = vmatprep.subr.bf16.mxu0 0
      %4002 = vmatpush2.bf16.xpose.msra.mxu0 0
      %4003 = vmatprep.subr.bf16.mxu0 0
      %4004 = vmatpush2.bf16.xpose.msra.mxu0 0
      %4005 = vmatprep.subr.bf16.mxu0 0
      %4006 = vmatpush2.bf16.xpose.msra.mxu0 0
      %4007 = vmatprep.subr.bf16.mxu0 0
      %4008 = vmatpush2.bf16.xpose.msra.mxu0 0
      %4009 = vmatprep.subr.bf16.mxu0 0
      %4010 = vmatpush2.bf16.xpose.msra.mxu0 0
      %4011 = vmatprep.mubr.bf16.mxu0 %v3936
      %4012 = vmatmul.mubr.bf16.gmra.mxu0 %v3929
      %v4013 = vpop.f32.mrf.mxu0
      %v4014 = vadd.f32 0.0, %v4013
      %v4015 = vpop.f32.mrf.mxu0
      %v4016 = vpop.f32.mrf.mxu0
      %v4017 = vpop.f32.mrf.mxu0
      %4018 = vdwg.mxu0
      %4020 = vrot.lane.b32.xlu0 %v4014, 120
      %v4021 = vpop.permute.xlu0 %4020
      %4023 = vrot.lane.b32.xlu0 %v4014, 112
      %v4024 = vpop.permute.xlu0 %4023
      %4026 = vrot.lane.b32.xlu0 %v4014, 104
      %v4027 = vpop.permute.xlu0 %4026
      %4029 = vrot.lane.b32.xlu0 %v4014, 96
      %v4030 = vpop.permute.xlu0 %4029
      %4032 = vrot.lane.b32.xlu0 %v4014, 88
      %v4033 = vpop.permute.xlu0 %4032
      %4035 = vrot.lane.b32.xlu0 %v4014, 80
      %v4036 = vpop.permute.xlu0 %4035
      %4038 = vrot.lane.b32.xlu0 %v4014, 72
      %v4039 = vpop.permute.xlu0 %4038
      %v4041 = vcombine.low %v4014, %v4024
      %v4043 = vunpack.c.l.s4 1983009808
      %v4044 = vunpack.c.0.s8 %v4043
      %v4045 = vlaneseq
      %v4046 = vshrl.u32 %v4045, 7
      %v4047 = vsub.s32 %v4044, %v4046
      %v4048 = vrot.slane %v4041, %v4047
      %v4049 = vcombine.low %v4021, %v4027
      %v4051 = vunpack.c.l.s4 1983009808
      %v4052 = vunpack.c.0.s8 %v4051
      %v4053 = vlaneseq
      %v4054 = vshrl.u32 %v4053, 7
      %v4055 = vsub.s32 %v4052, %v4054
      %v4056 = vrot.slane %v4049, %v4055
      %v4057 = vcombine.low %v4030, %v4036
      %v4059 = vunpack.c.l.s4 1983009808
      %v4060 = vunpack.c.0.s8 %v4059
      %v4061 = vlaneseq
      %v4062 = vshrl.u32 %v4061, 7
      %v4063 = vsub.s32 %v4060, %v4062
      %v4064 = vrot.slane %v4057, %v4063
      %v4065 = vcombine.low %v4033, %v4039
      %v4067 = vunpack.c.l.s4 1983009808
      %v4068 = vunpack.c.0.s8 %v4067
      %v4069 = vlaneseq
      %v4070 = vshrl.u32 %v4069, 7
      %v4071 = vsub.s32 %v4068, %v4070
      %v4072 = vrot.slane %v4065, %v4071
      %v4073 = vcombine.low %v4048, %v4056
      %v4075 = vunpack.c.l.s4 1934713408
      %v4076 = vunpack.c.0.s8 %v4075
      %v4077 = vlaneseq
      %v4078 = vshrl.u32 %v4077, 7
      %v4079 = vsub.s32 %v4076, %v4078
      %v4080 = vrot.slane %v4073, %v4079
      %v4081 = vcombine.low %v4064, %v4072
      %v4083 = vunpack.c.l.s4 1934713408
      %v4084 = vunpack.c.0.s8 %v4083
      %v4085 = vlaneseq
      %v4086 = vshrl.u32 %v4085, 7
      %v4087 = vsub.s32 %v4084, %v4086
      %v4088 = vrot.slane %v4081, %v4087
      %v4089 = vcombine.low %v4080, %v4088
      %v4090 = vcombine.high %v4080, %v4088
      %v4091 = vld [vmem:[#allocation5 + $0x1] sm:$0x7f]
      %v4092 = vld [vmem:[#allocation5 + $0x9] sm:$0x7f]
      %v4093 = vadd.f32 %v4091, %v4089
      %v4094 = vadd.f32 %v4092, %v4090
      %vm4095 = vcmask 63488
      %4096 = vst.msk [vmem:[#allocation5 + $0x1] sm:$0x7f] %vm4095, %v4093
      %4097 = vst.msk [vmem:[#allocation5 + $0x9] sm:$0x7f] %vm4095, %v4094
      %s4098 = scalar_lea.vmem %s3, 4
      %v4099 = vld [vmem:[%s4098] sm:$0x3]
      %v4100 = vld [vmem:[#allocation4] sm:$0xff]
      %v4101 = vld [vmem:[#allocation4 + $0x8] sm:$0xff]
      %v4102 = vld [vmem:[#allocation4 + $0x10] sm:$0xff]
      %v4103 = vld [vmem:[#allocation4 + $0x18] sm:$0xff]
      %v4104 = vld [vmem:[#allocation4 + $0x20] sm:$0xff]
      %v4105 = vld [vmem:[#allocation4 + $0x28] sm:$0xff]
      %v4106 = vld [vmem:[#allocation4 + $0x30] sm:$0xff]
      %v4107 = vld [vmem:[#allocation4 + $0x38] sm:$0xff]
      %v4110 = vunpack.c.l.s4 1966171168
      %v4111 = vunpack.c.0.s8 %v4110
      %v4112 = vlaneseq
      %v4113 = vshrl.u32 %v4112, 7
      %v4114 = vsub.s32 %v4111, %v4113
      %v4115 = vrot.slane %v4099, %v4114
      %v4116 = vcombine.high %v4115, %v4115
      %v4118 = vunpack.c.l.s4 1966171168
      %v4119 = vunpack.c.0.s8 %v4118
      %v4120 = vlaneseq
      %v4121 = vshrl.u32 %v4120, 7
      %v4122 = vsub.s32 %v4119, %v4121
      %v4123 = vrot.slane %v4115, %v4122
      %v4125 = vunpack.c.l.s4 1966171168
      %v4126 = vunpack.c.0.s8 %v4125
      %v4127 = vlaneseq
      %v4128 = vshrl.u32 %v4127, 7
      %v4129 = vsub.s32 %v4126, %v4128
      %v4130 = vrot.slane %v4116, %v4129
      %v4141 = vunpack.c.l.b16 %v4100
      %v4142 = vunpack.c.h.b16 %v4100
      %v4143 = vunpack.c.l.b16 %v4101
      %v4144 = vunpack.c.h.b16 %v4101
      %v4145 = vunpack.c.l.b16 %v4102
      %v4146 = vunpack.c.h.b16 %v4102
      %v4147 = vunpack.c.l.b16 %v4103
      %v4148 = vunpack.c.h.b16 %v4103
      %v4149 = vunpack.c.l.b16 %v4104
      %v4150 = vunpack.c.h.b16 %v4104
      %v4151 = vunpack.c.l.b16 %v4105
      %v4152 = vunpack.c.h.b16 %v4105
      %v4153 = vunpack.c.l.b16 %v4106
      %v4154 = vunpack.c.h.b16 %v4106
      %v4155 = vunpack.c.l.b16 %v4107
      %v4156 = vunpack.c.h.b16 %v4107
      %v4157 = vpack.c.b16 %v4143, %v4141
      %v4158 = vpack.c.b16 %v4144, %v4142
      %v4159 = vpack.c.b16 %v4147, %v4145
      %v4160 = vpack.c.b16 %v4148, %v4146
      %v4161 = vpack.c.b16 %v4151, %v4149
      %v4162 = vpack.c.b16 %v4152, %v4150
      %v4163 = vpack.c.b16 %v4155, %v4153
      %v4164 = vpack.c.b16 %v4156, %v4154
      %4173 = vmatprep.subr.bf16.mxu0 0
      %4174 = vmatpush1.bf16.xpose.msra.mxu0 0
      %4175 = vmatprep.subr.bf16.mxu0 0
      %4176 = vmatpush1.bf16.xpose.msra.mxu0 0
      %4177 = vmatprep.subr.bf16.mxu0 0
      %4178 = vmatpush1.bf16.xpose.msra.mxu0 0
      %4179 = vmatprep.subr.bf16.mxu0 0
      %4180 = vmatpush1.bf16.xpose.msra.mxu0 0
      %4181 = vmatprep.subr.bf16.mxu0 %v4164
      %4182 = vmatpush1.bf16.xpose.msra.mxu0 %v4163
      %4183 = vmatprep.subr.bf16.mxu0 %v4162
      %4184 = vmatpush1.bf16.xpose.msra.mxu0 %v4161
      %4185 = vmatprep.subr.bf16.mxu0 %v4160
      %4186 = vmatpush1.bf16.xpose.msra.mxu0 %v4159
      %4187 = vmatprep.subr.bf16.mxu0 %v4158
      %4188 = vmatpush1.bf16.xpose.msra.mxu0 %v4157
      %4189 = vmatprep.subr.bf16.mxu0 0
      %4190 = vmatpush2.bf16.xpose.msra.mxu0 0
      %4191 = vmatprep.subr.bf16.mxu0 0
      %4192 = vmatpush2.bf16.xpose.msra.mxu0 0
      %4193 = vmatprep.subr.bf16.mxu0 0
      %4194 = vmatpush2.bf16.xpose.msra.mxu0 0
      %4195 = vmatprep.subr.bf16.mxu0 0
      %4196 = vmatpush2.bf16.xpose.msra.mxu0 0
      %4197 = vmatprep.subr.bf16.mxu0 0
      %4198 = vmatpush2.bf16.xpose.msra.mxu0 0
      %4199 = vmatprep.subr.bf16.mxu0 0
      %4200 = vmatpush2.bf16.xpose.msra.mxu0 0
      %4201 = vmatprep.subr.bf16.mxu0 0
      %4202 = vmatpush2.bf16.xpose.msra.mxu0 0
      %4203 = vmatprep.subr.bf16.mxu0 0
      %4204 = vmatpush2.bf16.xpose.msra.mxu0 0
      %4205 = vmatprep.mubr.bf16.mxu0 %v4130
      %4206 = vmatmul.mubr.bf16.gmra.mxu0 %v4123
      %v4207 = vpop.f32.mrf.mxu0
      %v4208 = vadd.f32 0.0, %v4207
      %v4209 = vpop.f32.mrf.mxu0
      %v4210 = vpop.f32.mrf.mxu0
      %v4211 = vpop.f32.mrf.mxu0
      %4212 = vdwg.mxu0
      %4214 = vrot.lane.b32.xlu0 %v4208, 120
      %v4215 = vpop.permute.xlu0 %4214
      %4217 = vrot.lane.b32.xlu0 %v4208, 112
      %v4218 = vpop.permute.xlu0 %4217
      %4220 = vrot.lane.b32.xlu0 %v4208, 104
      %v4221 = vpop.permute.xlu0 %4220
      %4223 = vrot.lane.b32.xlu0 %v4208, 96
      %v4224 = vpop.permute.xlu0 %4223
      %4226 = vrot.lane.b32.xlu0 %v4208, 88
      %v4227 = vpop.permute.xlu0 %4226
      %4229 = vrot.lane.b32.xlu0 %v4208, 80
      %v4230 = vpop.permute.xlu0 %4229
      %4232 = vrot.lane.b32.xlu0 %v4208, 72
      %v4233 = vpop.permute.xlu0 %4232
      %v4235 = vcombine.low %v4208, %v4218
      %v4237 = vunpack.c.l.s4 1983009808
      %v4238 = vunpack.c.0.s8 %v4237
      %v4239 = vlaneseq
      %v4240 = vshrl.u32 %v4239, 7
      %v4241 = vsub.s32 %v4238, %v4240
      %v4242 = vrot.slane %v4235, %v4241
      %v4243 = vcombine.low %v4215, %v4221
      %v4245 = vunpack.c.l.s4 1983009808
      %v4246 = vunpack.c.0.s8 %v4245
      %v4247 = vlaneseq
      %v4248 = vshrl.u32 %v4247, 7
      %v4249 = vsub.s32 %v4246, %v4248
      %v4250 = vrot.slane %v4243, %v4249
      %v4251 = vcombine.low %v4224, %v4230
      %v4253 = vunpack.c.l.s4 1983009808
      %v4254 = vunpack.c.0.s8 %v4253
      %v4255 = vlaneseq
      %v4256 = vshrl.u32 %v4255, 7
      %v4257 = vsub.s32 %v4254, %v4256
      %v4258 = vrot.slane %v4251, %v4257
      %v4259 = vcombine.low %v4227, %v4233
      %v4261 = vunpack.c.l.s4 1983009808
      %v4262 = vunpack.c.0.s8 %v4261
      %v4263 = vlaneseq
      %v4264 = vshrl.u32 %v4263, 7
      %v4265 = vsub.s32 %v4262, %v4264
      %v4266 = vrot.slane %v4259, %v4265
      %v4267 = vcombine.low %v4242, %v4250
      %v4269 = vunpack.c.l.s4 1934713408
      %v4270 = vunpack.c.0.s8 %v4269
      %v4271 = vlaneseq
      %v4272 = vshrl.u32 %v4271, 7
      %v4273 = vsub.s32 %v4270, %v4272
      %v4274 = vrot.slane %v4267, %v4273
      %v4275 = vcombine.low %v4258, %v4266
      %v4277 = vunpack.c.l.s4 1934713408
      %v4278 = vunpack.c.0.s8 %v4277
      %v4279 = vlaneseq
      %v4280 = vshrl.u32 %v4279, 7
      %v4281 = vsub.s32 %v4278, %v4280
      %v4282 = vrot.slane %v4275, %v4281
      %v4283 = vcombine.low %v4274, %v4282
      %v4284 = vcombine.high %v4274, %v4282
      %v4285 = vld [vmem:[#allocation5 + $0x1] sm:$0x7f]
      %v4286 = vld [vmem:[#allocation5 + $0x9] sm:$0x7f]
      %4289 = vrot.lane.b32.xlu0 %v4283, 127
      %v4290 = vpop.permute.xlu0 %4289
      %4291 = vrot.lane.b32.xlu0 %v4284, 127
      %v4292 = vpop.permute.xlu0 %4291
      %v4295 = vadd.f32 %v4285, %v4290
      %v4296 = vadd.f32 %v4286, %v4292
      %vm4297 = vcmask 55296
      %4298 = vst.msk [vmem:[#allocation5 + $0x1] sm:$0x7f] %vm4297, %v4295
      %4299 = vst.msk [vmem:[#allocation5 + $0x9] sm:$0x7f] %vm4297, %v4296
      %s4300 = scalar_lea.vmem %s3, 6
      %v4301 = vld [vmem:[%s4300] sm:$0x3]
      %v4302 = vld [vmem:[#allocation4] sm:$0xff]
      %v4303 = vld [vmem:[#allocation4 + $0x8] sm:$0xff]
      %v4304 = vld [vmem:[#allocation4 + $0x10] sm:$0xff]
      %v4305 = vld [vmem:[#allocation4 + $0x18] sm:$0xff]
      %v4306 = vld [vmem:[#allocation4 + $0x20] sm:$0xff]
      %v4307 = vld [vmem:[#allocation4 + $0x28] sm:$0xff]
      %v4308 = vld [vmem:[#allocation4 + $0x30] sm:$0xff]
      %v4309 = vld [vmem:[#allocation4 + $0x38] sm:$0xff]
      %v4312 = vunpack.c.l.s4 1966171168
      %v4313 = vunpack.c.0.s8 %v4312
      %v4314 = vlaneseq
      %v4315 = vshrl.u32 %v4314, 7
      %v4316 = vsub.s32 %v4313, %v4315
      %v4317 = vrot.slane %v4301, %v4316
      %v4318 = vcombine.high %v4317, %v4317
      %v4320 = vunpack.c.l.s4 1966171168
      %v4321 = vunpack.c.0.s8 %v4320
      %v4322 = vlaneseq
      %v4323 = vshrl.u32 %v4322, 7
      %v4324 = vsub.s32 %v4321, %v4323
      %v4325 = vrot.slane %v4317, %v4324
      %v4327 = vunpack.c.l.s4 1966171168
      %v4328 = vunpack.c.0.s8 %v4327
      %v4329 = vlaneseq
      %v4330 = vshrl.u32 %v4329, 7
      %v4331 = vsub.s32 %v4328, %v4330
      %v4332 = vrot.slane %v4318, %v4331
      %v4343 = vunpack.c.l.b16 %v4302
      %v4344 = vunpack.c.h.b16 %v4302
      %v4345 = vunpack.c.l.b16 %v4303
      %v4346 = vunpack.c.h.b16 %v4303
      %v4347 = vunpack.c.l.b16 %v4304
      %v4348 = vunpack.c.h.b16 %v4304
      %v4349 = vunpack.c.l.b16 %v4305
      %v4350 = vunpack.c.h.b16 %v4305
      %v4351 = vunpack.c.l.b16 %v4306
      %v4352 = vunpack.c.h.b16 %v4306
      %v4353 = vunpack.c.l.b16 %v4307
      %v4354 = vunpack.c.h.b16 %v4307
      %v4355 = vunpack.c.l.b16 %v4308
      %v4356 = vunpack.c.h.b16 %v4308
      %v4357 = vunpack.c.l.b16 %v4309
      %v4358 = vunpack.c.h.b16 %v4309
      %v4359 = vpack.c.b16 %v4345, %v4343
      %v4360 = vpack.c.b16 %v4346, %v4344
      %v4361 = vpack.c.b16 %v4349, %v4347
      %v4362 = vpack.c.b16 %v4350, %v4348
      %v4363 = vpack.c.b16 %v4353, %v4351
      %v4364 = vpack.c.b16 %v4354, %v4352
      %v4365 = vpack.c.b16 %v4357, %v4355
      %v4366 = vpack.c.b16 %v4358, %v4356
      %4375 = vmatprep.subr.bf16.mxu0 0
      %4376 = vmatpush1.bf16.xpose.msra.mxu0 0
      %4377 = vmatprep.subr.bf16.mxu0 0
      %4378 = vmatpush1.bf16.xpose.msra.mxu0 0
      %4379 = vmatprep.subr.bf16.mxu0 0
      %4380 = vmatpush1.bf16.xpose.msra.mxu0 0
      %4381 = vmatprep.subr.bf16.mxu0 0
      %4382 = vmatpush1.bf16.xpose.msra.mxu0 0
      %4383 = vmatprep.subr.bf16.mxu0 %v4366
      %4384 = vmatpush1.bf16.xpose.msra.mxu0 %v4365
      %4385 = vmatprep.subr.bf16.mxu0 %v4364
      %4386 = vmatpush1.bf16.xpose.msra.mxu0 %v4363
      %4387 = vmatprep.subr.bf16.mxu0 %v4362
      %4388 = vmatpush1.bf16.xpose.msra.mxu0 %v4361
      %4389 = vmatprep.subr.bf16.mxu0 %v4360
      %4390 = vmatpush1.bf16.xpose.msra.mxu0 %v4359
      %4391 = vmatprep.subr.bf16.mxu0 0
      %4392 = vmatpush2.bf16.xpose.msra.mxu0 0
      %4393 = vmatprep.subr.bf16.mxu0 0
      %4394 = vmatpush2.bf16.xpose.msra.mxu0 0
      %4395 = vmatprep.subr.bf16.mxu0 0
      %4396 = vmatpush2.bf16.xpose.msra.mxu0 0
      %4397 = vmatprep.subr.bf16.mxu0 0
      %4398 = vmatpush2.bf16.xpose.msra.mxu0 0
      %4399 = vmatprep.subr.bf16.mxu0 0
      %4400 = vmatpush2.bf16.xpose.msra.mxu0 0
      %4401 = vmatprep.subr.bf16.mxu0 0
      %4402 = vmatpush2.bf16.xpose.msra.mxu0 0
      %4403 = vmatprep.subr.bf16.mxu0 0
      %4404 = vmatpush2.bf16.xpose.msra.mxu0 0
      %4405 = vmatprep.subr.bf16.mxu0 0
      %4406 = vmatpush2.bf16.xpose.msra.mxu0 0
      %4407 = vmatprep.mubr.bf16.mxu0 %v4332
      %4408 = vmatmul.mubr.bf16.gmra.mxu0 %v4325
      %v4409 = vpop.f32.mrf.mxu0
      %v4410 = vadd.f32 0.0, %v4409
      %v4411 = vpop.f32.mrf.mxu0
      %v4412 = vpop.f32.mrf.mxu0
      %v4413 = vpop.f32.mrf.mxu0
      %4414 = vdwg.mxu0
      %4416 = vrot.lane.b32.xlu0 %v4410, 120
      %v4417 = vpop.permute.xlu0 %4416
      %4419 = vrot.lane.b32.xlu0 %v4410, 112
      %v4420 = vpop.permute.xlu0 %4419
      %4422 = vrot.lane.b32.xlu0 %v4410, 104
      %v4423 = vpop.permute.xlu0 %4422
      %4425 = vrot.lane.b32.xlu0 %v4410, 96
      %v4426 = vpop.permute.xlu0 %4425
      %4428 = vrot.lane.b32.xlu0 %v4410, 88
      %v4429 = vpop.permute.xlu0 %4428
      %4431 = vrot.lane.b32.xlu0 %v4410, 80
      %v4432 = vpop.permute.xlu0 %4431
      %4434 = vrot.lane.b32.xlu0 %v4410, 72
      %v4435 = vpop.permute.xlu0 %4434
      %v4437 = vcombine.low %v4410, %v4420
      %v4439 = vunpack.c.l.s4 1983009808
      %v4440 = vunpack.c.0.s8 %v4439
      %v4441 = vlaneseq
      %v4442 = vshrl.u32 %v4441, 7
      %v4443 = vsub.s32 %v4440, %v4442
      %v4444 = vrot.slane %v4437, %v4443
      %v4445 = vcombine.low %v4417, %v4423
      %v4447 = vunpack.c.l.s4 1983009808
      %v4448 = vunpack.c.0.s8 %v4447
      %v4449 = vlaneseq
      %v4450 = vshrl.u32 %v4449, 7
      %v4451 = vsub.s32 %v4448, %v4450
      %v4452 = vrot.slane %v4445, %v4451
      %v4453 = vcombine.low %v4426, %v4432
      %v4455 = vunpack.c.l.s4 1983009808
      %v4456 = vunpack.c.0.s8 %v4455
      %v4457 = vlaneseq
      %v4458 = vshrl.u32 %v4457, 7
      %v4459 = vsub.s32 %v4456, %v4458
      %v4460 = vrot.slane %v4453, %v4459
      %v4461 = vcombine.low %v4429, %v4435
      %v4463 = vunpack.c.l.s4 1983009808
      %v4464 = vunpack.c.0.s8 %v4463
      %v4465 = vlaneseq
      %v4466 = vshrl.u32 %v4465, 7
      %v4467 = vsub.s32 %v4464, %v4466
      %v4468 = vrot.slane %v4461, %v4467
      %v4469 = vcombine.low %v4444, %v4452
      %v4471 = vunpack.c.l.s4 1934713408
      %v4472 = vunpack.c.0.s8 %v4471
      %v4473 = vlaneseq
      %v4474 = vshrl.u32 %v4473, 7
      %v4475 = vsub.s32 %v4472, %v4474
      %v4476 = vrot.slane %v4469, %v4475
      %v4477 = vcombine.low %v4460, %v4468
      %v4479 = vunpack.c.l.s4 1934713408
      %v4480 = vunpack.c.0.s8 %v4479
      %v4481 = vlaneseq
      %v4482 = vshrl.u32 %v4481, 7
      %v4483 = vsub.s32 %v4480, %v4482
      %v4484 = vrot.slane %v4477, %v4483
      %v4485 = vcombine.low %v4476, %v4484
      %v4486 = vcombine.high %v4476, %v4484
      %v4487 = vld [vmem:[#allocation5] sm:$0xff]
      %v4488 = vld [vmem:[#allocation5 + $0x8] sm:$0xff]
      %4491 = vrot.lane.b32.xlu0 %v4485, 1
      %v4492 = vpop.permute.xlu0 %4491
      %4493 = vrot.lane.b32.xlu0 %v4486, 1
      %v4494 = vpop.permute.xlu0 %4493
      %v4497 = vadd.f32 %v4487, %v4492
      %v4498 = vadd.f32 %v4488, %v4494
      %vm4499 = vcmask 64520
      %4500 = vst.msk [vmem:[#allocation5] sm:$0xff] %vm4499, %v4497
      %4501 = vst.msk [vmem:[#allocation5 + $0x8] sm:$0xff] %vm4499, %v4498
      %s4502 = scalar_lea.vmem %s3, 8
      %v4503 = vld [vmem:[%s4502] sm:$0x3]
      %v4504 = vld [vmem:[#allocation4] sm:$0xff]
      %v4505 = vld [vmem:[#allocation4 + $0x8] sm:$0xff]
      %v4506 = vld [vmem:[#allocation4 + $0x10] sm:$0xff]
      %v4507 = vld [vmem:[#allocation4 + $0x18] sm:$0xff]
      %v4508 = vld [vmem:[#allocation4 + $0x20] sm:$0xff]
      %v4509 = vld [vmem:[#allocation4 + $0x28] sm:$0xff]
      %v4510 = vld [vmem:[#allocation4 + $0x30] sm:$0xff]
      %v4511 = vld [vmem:[#allocation4 + $0x38] sm:$0xff]
      %v4514 = vunpack.c.l.s4 1966171168
      %v4515 = vunpack.c.0.s8 %v4514
      %v4516 = vlaneseq
      %v4517 = vshrl.u32 %v4516, 7
      %v4518 = vsub.s32 %v4515, %v4517
      %v4519 = vrot.slane %v4503, %v4518
      %v4520 = vcombine.high %v4519, %v4519
      %v4522 = vunpack.c.l.s4 1966171168
      %v4523 = vunpack.c.0.s8 %v4522
      %v4524 = vlaneseq
      %v4525 = vshrl.u32 %v4524, 7
      %v4526 = vsub.s32 %v4523, %v4525
      %v4527 = vrot.slane %v4519, %v4526
      %v4529 = vunpack.c.l.s4 1966171168
      %v4530 = vunpack.c.0.s8 %v4529
      %v4531 = vlaneseq
      %v4532 = vshrl.u32 %v4531, 7
      %v4533 = vsub.s32 %v4530, %v4532
      %v4534 = vrot.slane %v4520, %v4533
      %v4545 = vunpack.c.l.b16 %v4504
      %v4546 = vunpack.c.h.b16 %v4504
      %v4547 = vunpack.c.l.b16 %v4505
      %v4548 = vunpack.c.h.b16 %v4505
      %v4549 = vunpack.c.l.b16 %v4506
      %v4550 = vunpack.c.h.b16 %v4506
      %v4551 = vunpack.c.l.b16 %v4507
      %v4552 = vunpack.c.h.b16 %v4507
      %v4553 = vunpack.c.l.b16 %v4508
      %v4554 = vunpack.c.h.b16 %v4508
      %v4555 = vunpack.c.l.b16 %v4509
      %v4556 = vunpack.c.h.b16 %v4509
      %v4557 = vunpack.c.l.b16 %v4510
      %v4558 = vunpack.c.h.b16 %v4510
      %v4559 = vunpack.c.l.b16 %v4511
      %v4560 = vunpack.c.h.b16 %v4511
      %v4561 = vpack.c.b16 %v4547, %v4545
      %v4562 = vpack.c.b16 %v4548, %v4546
      %v4563 = vpack.c.b16 %v4551, %v4549
      %v4564 = vpack.c.b16 %v4552, %v4550
      %v4565 = vpack.c.b16 %v4555, %v4553
      %v4566 = vpack.c.b16 %v4556, %v4554
      %v4567 = vpack.c.b16 %v4559, %v4557
      %v4568 = vpack.c.b16 %v4560, %v4558
      %4577 = vmatprep.subr.bf16.mxu0 0
      %4578 = vmatpush1.bf16.xpose.msra.mxu0 0
      %4579 = vmatprep.subr.bf16.mxu0 0
      %4580 = vmatpush1.bf16.xpose.msra.mxu0 0
      %4581 = vmatprep.subr.bf16.mxu0 0
      %4582 = vmatpush1.bf16.xpose.msra.mxu0 0
      %4583 = vmatprep.subr.bf16.mxu0 0
      %4584 = vmatpush1.bf16.xpose.msra.mxu0 0
      %4585 = vmatprep.subr.bf16.mxu0 %v4568
      %4586 = vmatpush1.bf16.xpose.msra.mxu0 %v4567
      %4587 = vmatprep.subr.bf16.mxu0 %v4566
      %4588 = vmatpush1.bf16.xpose.msra.mxu0 %v4565
      %4589 = vmatprep.subr.bf16.mxu0 %v4564
      %4590 = vmatpush1.bf16.xpose.msra.mxu0 %v4563
      %4591 = vmatprep.subr.bf16.mxu0 %v4562
      %4592 = vmatpush1.bf16.xpose.msra.mxu0 %v4561
      %4593 = vmatprep.subr.bf16.mxu0 0
      %4594 = vmatpush2.bf16.xpose.msra.mxu0 0
      %4595 = vmatprep.subr.bf16.mxu0 0
      %4596 = vmatpush2.bf16.xpose.msra.mxu0 0
      %4597 = vmatprep.subr.bf16.mxu0 0
      %4598 = vmatpush2.bf16.xpose.msra.mxu0 0
      %4599 = vmatprep.subr.bf16.mxu0 0
      %4600 = vmatpush2.bf16.xpose.msra.mxu0 0
      %4601 = vmatprep.subr.bf16.mxu0 0
      %4602 = vmatpush2.bf16.xpose.msra.mxu0 0
      %4603 = vmatprep.subr.bf16.mxu0 0
      %4604 = vmatpush2.bf16.xpose.msra.mxu0 0
      %4605 = vmatprep.subr.bf16.mxu0 0
      %4606 = vmatpush2.bf16.xpose.msra.mxu0 0
      %4607 = vmatprep.subr.bf16.mxu0 0
      %4608 = vmatpush2.bf16.xpose.msra.mxu0 0
      %4609 = vmatprep.mubr.bf16.mxu0 %v4534
      %4610 = vmatmul.mubr.bf16.gmra.mxu0 %v4527
      %v4611 = vpop.f32.mrf.mxu0
      %v4612 = vadd.f32 0.0, %v4611
      %v4613 = vpop.f32.mrf.mxu0
      %v4614 = vpop.f32.mrf.mxu0
      %v4615 = vpop.f32.mrf.mxu0
      %4616 = vdwg.mxu0
      %4618 = vrot.lane.b32.xlu0 %v4612, 120
      %v4619 = vpop.permute.xlu0 %4618
      %4621 = vrot.lane.b32.xlu0 %v4612, 112
      %v4622 = vpop.permute.xlu0 %4621
      %4624 = vrot.lane.b32.xlu0 %v4612, 104
      %v4625 = vpop.permute.xlu0 %4624
      %4627 = vrot.lane.b32.xlu0 %v4612, 96
      %v4628 = vpop.permute.xlu0 %4627
      %4630 = vrot.lane.b32.xlu0 %v4612, 88
      %v4631 = vpop.permute.xlu0 %4630
      %4633 = vrot.lane.b32.xlu0 %v4612, 80
      %v4634 = vpop.permute.xlu0 %4633
      %4636 = vrot.lane.b32.xlu0 %v4612, 72
      %v4637 = vpop.permute.xlu0 %4636
      %v4639 = vcombine.low %v4612, %v4622
      %v4641 = vunpack.c.l.s4 1983009808
      %v4642 = vunpack.c.0.s8 %v4641
      %v4643 = vlaneseq
      %v4644 = vshrl.u32 %v4643, 7
      %v4645 = vsub.s32 %v4642, %v4644
      %v4646 = vrot.slane %v4639, %v4645
      %v4647 = vcombine.low %v4619, %v4625
      %v4649 = vunpack.c.l.s4 1983009808
      %v4650 = vunpack.c.0.s8 %v4649
      %v4651 = vlaneseq
      %v4652 = vshrl.u32 %v4651, 7
      %v4653 = vsub.s32 %v4650, %v4652
      %v4654 = vrot.slane %v4647, %v4653
      %v4655 = vcombine.low %v4628, %v4634
      %v4657 = vunpack.c.l.s4 1983009808
      %v4658 = vunpack.c.0.s8 %v4657
      %v4659 = vlaneseq
      %v4660 = vshrl.u32 %v4659, 7
      %v4661 = vsub.s32 %v4658, %v4660
      %v4662 = vrot.slane %v4655, %v4661
      %v4663 = vcombine.low %v4631, %v4637
      %v4665 = vunpack.c.l.s4 1983009808
      %v4666 = vunpack.c.0.s8 %v4665
      %v4667 = vlaneseq
      %v4668 = vshrl.u32 %v4667, 7
      %v4669 = vsub.s32 %v4666, %v4668
      %v4670 = vrot.slane %v4663, %v4669
      %v4671 = vcombine.low %v4646, %v4654
      %v4673 = vunpack.c.l.s4 1934713408
      %v4674 = vunpack.c.0.s8 %v4673
      %v4675 = vlaneseq
      %v4676 = vshrl.u32 %v4675, 7
      %v4677 = vsub.s32 %v4674, %v4676
      %v4678 = vrot.slane %v4671, %v4677
      %v4679 = vcombine.low %v4662, %v4670
      %v4681 = vunpack.c.l.s4 1934713408
      %v4682 = vunpack.c.0.s8 %v4681
      %v4683 = vlaneseq
      %v4684 = vshrl.u32 %v4683, 7
      %v4685 = vsub.s32 %v4682, %v4684
      %v4686 = vrot.slane %v4679, %v4685
      %v4687 = vcombine.low %v4678, %v4686
      %v4688 = vcombine.high %v4678, %v4686
      %v4689 = vld [vmem:[#allocation5] sm:$0xff]
      %v4690 = vld [vmem:[#allocation5 + $0x8] sm:$0xff]
      %v4691 = vadd.f32 %v4689, %v4687
      %v4692 = vadd.f32 %v4690, %v4688
      %4693 = vst.msk [vmem:[#allocation5] sm:$0xff] %vm3700, %v4691
      %4694 = vst.msk [vmem:[#allocation5 + $0x8] sm:$0xff] %vm3700, %v4692
      %s4695 = scalar_lea.vmem %s3, 10
      %v4696 = vld [vmem:[%s4695] sm:$0x3]
      %v4697 = vld [vmem:[#allocation4] sm:$0xff]
      %v4698 = vld [vmem:[#allocation4 + $0x8] sm:$0xff]
      %v4699 = vld [vmem:[#allocation4 + $0x10] sm:$0xff]
      %v4700 = vld [vmem:[#allocation4 + $0x18] sm:$0xff]
      %v4701 = vld [vmem:[#allocation4 + $0x20] sm:$0xff]
      %v4702 = vld [vmem:[#allocation4 + $0x28] sm:$0xff]
      %v4703 = vld [vmem:[#allocation4 + $0x30] sm:$0xff]
      %v4704 = vld [vmem:[#allocation4 + $0x38] sm:$0xff]
      %v4707 = vunpack.c.l.s4 1966171168
      %v4708 = vunpack.c.0.s8 %v4707
      %v4709 = vlaneseq
      %v4710 = vshrl.u32 %v4709, 7
      %v4711 = vsub.s32 %v4708, %v4710
      %v4712 = vrot.slane %v4696, %v4711
      %v4713 = vcombine.high %v4712, %v4712
      %v4715 = vunpack.c.l.s4 1966171168
      %v4716 = vunpack.c.0.s8 %v4715
      %v4717 = vlaneseq
      %v4718 = vshrl.u32 %v4717, 7
      %v4719 = vsub.s32 %v4716, %v4718
      %v4720 = vrot.slane %v4712, %v4719
      %v4722 = vunpack.c.l.s4 1966171168
      %v4723 = vunpack.c.0.s8 %v4722
      %v4724 = vlaneseq
      %v4725 = vshrl.u32 %v4724, 7
      %v4726 = vsub.s32 %v4723, %v4725
      %v4727 = vrot.slane %v4713, %v4726
      %v4738 = vunpack.c.l.b16 %v4697
      %v4739 = vunpack.c.h.b16 %v4697
      %v4740 = vunpack.c.l.b16 %v4698
      %v4741 = vunpack.c.h.b16 %v4698
      %v4742 = vunpack.c.l.b16 %v4699
      %v4743 = vunpack.c.h.b16 %v4699
      %v4744 = vunpack.c.l.b16 %v4700
      %v4745 = vunpack.c.h.b16 %v4700
      %v4746 = vunpack.c.l.b16 %v4701
      %v4747 = vunpack.c.h.b16 %v4701
      %v4748 = vunpack.c.l.b16 %v4702
      %v4749 = vunpack.c.h.b16 %v4702
      %v4750 = vunpack.c.l.b16 %v4703
      %v4751 = vunpack.c.h.b16 %v4703
      %v4752 = vunpack.c.l.b16 %v4704
      %v4753 = vunpack.c.h.b16 %v4704
      %v4754 = vpack.c.b16 %v4740, %v4738
      %v4755 = vpack.c.b16 %v4741, %v4739
      %v4756 = vpack.c.b16 %v4744, %v4742
      %v4757 = vpack.c.b16 %v4745, %v4743
      %v4758 = vpack.c.b16 %v4748, %v4746
      %v4759 = vpack.c.b16 %v4749, %v4747
      %v4760 = vpack.c.b16 %v4752, %v4750
      %v4761 = vpack.c.b16 %v4753, %v4751
      %4770 = vmatprep.subr.bf16.mxu0 0
      %4771 = vmatpush1.bf16.xpose.msra.mxu0 0
      %4772 = vmatprep.subr.bf16.mxu0 0
      %4773 = vmatpush1.bf16.xpose.msra.mxu0 0
      %4774 = vmatprep.subr.bf16.mxu0 0
      %4775 = vmatpush1.bf16.xpose.msra.mxu0 0
      %4776 = vmatprep.subr.bf16.mxu0 0
      %4777 = vmatpush1.bf16.xpose.msra.mxu0 0
      %4778 = vmatprep.subr.bf16.mxu0 %v4761
      %4779 = vmatpush1.bf16.xpose.msra.mxu0 %v4760
      %4780 = vmatprep.subr.bf16.mxu0 %v4759
      %4781 = vmatpush1.bf16.xpose.msra.mxu0 %v4758
      %4782 = vmatprep.subr.bf16.mxu0 %v4757
      %4783 = vmatpush1.bf16.xpose.msra.mxu0 %v4756
      %4784 = vmatprep.subr.bf16.mxu0 %v4755
      %4785 = vmatpush1.bf16.xpose.msra.mxu0 %v4754
      %4786 = vmatprep.subr.bf16.mxu0 0
      %4787 = vmatpush2.bf16.xpose.msra.mxu0 0
      %4788 = vmatprep.subr.bf16.mxu0 0
      %4789 = vmatpush2.bf16.xpose.msra.mxu0 0
      %4790 = vmatprep.subr.bf16.mxu0 0
      %4791 = vmatpush2.bf16.xpose.msra.mxu0 0
      %4792 = vmatprep.subr.bf16.mxu0 0
      %4793 = vmatpush2.bf16.xpose.msra.mxu0 0
      %4794 = vmatprep.subr.bf16.mxu0 0
      %4795 = vmatpush2.bf16.xpose.msra.mxu0 0
      %4796 = vmatprep.subr.bf16.mxu0 0
      %4797 = vmatpush2.bf16.xpose.msra.mxu0 0
      %4798 = vmatprep.subr.bf16.mxu0 0
      %4799 = vmatpush2.bf16.xpose.msra.mxu0 0
      %4800 = vmatprep.subr.bf16.mxu0 0
      %4801 = vmatpush2.bf16.xpose.msra.mxu0 0
      %4802 = vmatprep.mubr.bf16.mxu0 %v4727
      %4803 = vmatmul.mubr.bf16.gmra.mxu0 %v4720
      %v4804 = vpop.f32.mrf.mxu0
      %v4805 = vadd.f32 0.0, %v4804
      %v4806 = vpop.f32.mrf.mxu0
      %v4807 = vpop.f32.mrf.mxu0
      %v4808 = vpop.f32.mrf.mxu0
      %4809 = vdwg.mxu0
      %4811 = vrot.lane.b32.xlu0 %v4805, 120
      %v4812 = vpop.permute.xlu0 %4811
      %4814 = vrot.lane.b32.xlu0 %v4805, 112
      %v4815 = vpop.permute.xlu0 %4814
      %4817 = vrot.lane.b32.xlu0 %v4805, 104
      %v4818 = vpop.permute.xlu0 %4817
      %4820 = vrot.lane.b32.xlu0 %v4805, 96
      %v4821 = vpop.permute.xlu0 %4820
      %4823 = vrot.lane.b32.xlu0 %v4805, 88
      %v4824 = vpop.permute.xlu0 %4823
      %4826 = vrot.lane.b32.xlu0 %v4805, 80
      %v4827 = vpop.permute.xlu0 %4826
      %4829 = vrot.lane.b32.xlu0 %v4805, 72
      %v4830 = vpop.permute.xlu0 %4829
      %v4832 = vcombine.low %v4805, %v4815
      %v4834 = vunpack.c.l.s4 1983009808
      %v4835 = vunpack.c.0.s8 %v4834
      %v4836 = vlaneseq
      %v4837 = vshrl.u32 %v4836, 7
      %v4838 = vsub.s32 %v4835, %v4837
      %v4839 = vrot.slane %v4832, %v4838
      %v4840 = vcombine.low %v4812, %v4818
      %v4842 = vunpack.c.l.s4 1983009808
      %v4843 = vunpack.c.0.s8 %v4842
      %v4844 = vlaneseq
      %v4845 = vshrl.u32 %v4844, 7
      %v4846 = vsub.s32 %v4843, %v4845
      %v4847 = vrot.slane %v4840, %v4846
      %v4848 = vcombine.low %v4821, %v4827
      %v4850 = vunpack.c.l.s4 1983009808
      %v4851 = vunpack.c.0.s8 %v4850
      %v4852 = vlaneseq
      %v4853 = vshrl.u32 %v4852, 7
      %v4854 = vsub.s32 %v4851, %v4853
      %v4855 = vrot.slane %v4848, %v4854
      %v4856 = vcombine.low %v4824, %v4830
      %v4858 = vunpack.c.l.s4 1983009808
      %v4859 = vunpack.c.0.s8 %v4858
      %v4860 = vlaneseq
      %v4861 = vshrl.u32 %v4860, 7
      %v4862 = vsub.s32 %v4859, %v4861
      %v4863 = vrot.slane %v4856, %v4862
      %v4864 = vcombine.low %v4839, %v4847
      %v4866 = vunpack.c.l.s4 1934713408
      %v4867 = vunpack.c.0.s8 %v4866
      %v4868 = vlaneseq
      %v4869 = vshrl.u32 %v4868, 7
      %v4870 = vsub.s32 %v4867, %v4869
      %v4871 = vrot.slane %v4864, %v4870
      %v4872 = vcombine.low %v4855, %v4863
      %v4874 = vunpack.c.l.s4 1934713408
      %v4875 = vunpack.c.0.s8 %v4874
      %v4876 = vlaneseq
      %v4877 = vshrl.u32 %v4876, 7
      %v4878 = vsub.s32 %v4875, %v4877
      %v4879 = vrot.slane %v4872, %v4878
      %v4880 = vcombine.low %v4871, %v4879
      %v4881 = vcombine.high %v4871, %v4879
      %v4882 = vld [vmem:[#allocation5] sm:$0xff]
      %v4883 = vld [vmem:[#allocation5 + $0x8] sm:$0xff]
      %4886 = vrot.lane.b32.xlu0 %v4880, 127
      %v4887 = vpop.permute.xlu0 %4886
      %4888 = vrot.lane.b32.xlu0 %v4881, 127
      %v4889 = vpop.permute.xlu0 %4888
      %v4892 = vadd.f32 %v4882, %v4887
      %v4893 = vadd.f32 %v4883, %v4889
      %vm4894 = vcmask 56320
      %4895 = vst.msk [vmem:[#allocation5] sm:$0xff] %vm4894, %v4892
      %4896 = vst.msk [vmem:[#allocation5 + $0x8] sm:$0xff] %vm4894, %v4893
      %s4897 = scalar_lea.vmem %s3, 12
      %v4898 = vld [vmem:[%s4897] sm:$0x3]
      %v4899 = vld [vmem:[#allocation4] sm:$0xff]
      %v4900 = vld [vmem:[#allocation4 + $0x8] sm:$0xff]
      %v4901 = vld [vmem:[#allocation4 + $0x10] sm:$0xff]
      %v4902 = vld [vmem:[#allocation4 + $0x18] sm:$0xff]
      %v4903 = vld [vmem:[#allocation4 + $0x20] sm:$0xff]
      %v4904 = vld [vmem:[#allocation4 + $0x28] sm:$0xff]
      %v4905 = vld [vmem:[#allocation4 + $0x30] sm:$0xff]
      %v4906 = vld [vmem:[#allocation4 + $0x38] sm:$0xff]
      %v4909 = vunpack.c.l.s4 1966171168
      %v4910 = vunpack.c.0.s8 %v4909
      %v4911 = vlaneseq
      %v4912 = vshrl.u32 %v4911, 7
      %v4913 = vsub.s32 %v4910, %v4912
      %v4914 = vrot.slane %v4898, %v4913
      %v4915 = vcombine.high %v4914, %v4914
      %v4917 = vunpack.c.l.s4 1966171168
      %v4918 = vunpack.c.0.s8 %v4917
      %v4919 = vlaneseq
      %v4920 = vshrl.u32 %v4919, 7
      %v4921 = vsub.s32 %v4918, %v4920
      %v4922 = vrot.slane %v4914, %v4921
      %v4924 = vunpack.c.l.s4 1966171168
      %v4925 = vunpack.c.0.s8 %v4924
      %v4926 = vlaneseq
      %v4927 = vshrl.u32 %v4926, 7
      %v4928 = vsub.s32 %v4925, %v4927
      %v4929 = vrot.slane %v4915, %v4928
      %v4940 = vunpack.c.l.b16 %v4899
      %v4941 = vunpack.c.h.b16 %v4899
      %v4942 = vunpack.c.l.b16 %v4900
      %v4943 = vunpack.c.h.b16 %v4900
      %v4944 = vunpack.c.l.b16 %v4901
      %v4945 = vunpack.c.h.b16 %v4901
      %v4946 = vunpack.c.l.b16 %v4902
      %v4947 = vunpack.c.h.b16 %v4902
      %v4948 = vunpack.c.l.b16 %v4903
      %v4949 = vunpack.c.h.b16 %v4903
      %v4950 = vunpack.c.l.b16 %v4904
      %v4951 = vunpack.c.h.b16 %v4904
      %v4952 = vunpack.c.l.b16 %v4905
      %v4953 = vunpack.c.h.b16 %v4905
      %v4954 = vunpack.c.l.b16 %v4906
      %v4955 = vunpack.c.h.b16 %v4906
      %v4956 = vpack.c.b16 %v4942, %v4940
      %v4957 = vpack.c.b16 %v4943, %v4941
      %v4958 = vpack.c.b16 %v4946, %v4944
      %v4959 = vpack.c.b16 %v4947, %v4945
      %v4960 = vpack.c.b16 %v4950, %v4948
      %v4961 = vpack.c.b16 %v4951, %v4949
      %v4962 = vpack.c.b16 %v4954, %v4952
      %v4963 = vpack.c.b16 %v4955, %v4953
      %4972 = vmatprep.subr.bf16.mxu0 0
      %4973 = vmatpush1.bf16.xpose.msra.mxu0 0
      %4974 = vmatprep.subr.bf16.mxu0 0
      %4975 = vmatpush1.bf16.xpose.msra.mxu0 0
      %4976 = vmatprep.subr.bf16.mxu0 0
      %4977 = vmatpush1.bf16.xpose.msra.mxu0 0
      %4978 = vmatprep.subr.bf16.mxu0 0
      %4979 = vmatpush1.bf16.xpose.msra.mxu0 0
      %4980 = vmatprep.subr.bf16.mxu0 %v4963
      %4981 = vmatpush1.bf16.xpose.msra.mxu0 %v4962
      %4982 = vmatprep.subr.bf16.mxu0 %v4961
      %4983 = vmatpush1.bf16.xpose.msra.mxu0 %v4960
      %4984 = vmatprep.subr.bf16.mxu0 %v4959
      %4985 = vmatpush1.bf16.xpose.msra.mxu0 %v4958
      %4986 = vmatprep.subr.bf16.mxu0 %v4957
      %4987 = vmatpush1.bf16.xpose.msra.mxu0 %v4956
      %4988 = vmatprep.subr.bf16.mxu0 0
      %4989 = vmatpush2.bf16.xpose.msra.mxu0 0
      %4990 = vmatprep.subr.bf16.mxu0 0
      %4991 = vmatpush2.bf16.xpose.msra.mxu0 0
      %4992 = vmatprep.subr.bf16.mxu0 0
      %4993 = vmatpush2.bf16.xpose.msra.mxu0 0
      %4994 = vmatprep.subr.bf16.mxu0 0
      %4995 = vmatpush2.bf16.xpose.msra.mxu0 0
      %4996 = vmatprep.subr.bf16.mxu0 0
      %4997 = vmatpush2.bf16.xpose.msra.mxu0 0
      %4998 = vmatprep.subr.bf16.mxu0 0
      %4999 = vmatpush2.bf16.xpose.msra.mxu0 0
      %5000 = vmatprep.subr.bf16.mxu0 0
      %5001 = vmatpush2.bf16.xpose.msra.mxu0 0
      %5002 = vmatprep.subr.bf16.mxu0 0
      %5003 = vmatpush2.bf16.xpose.msra.mxu0 0
      %5004 = vmatprep.mubr.bf16.mxu0 %v4929
      %5005 = vmatmul.mubr.bf16.gmra.mxu0 %v4922
      %v5006 = vpop.f32.mrf.mxu0
      %v5007 = vadd.f32 0.0, %v5006
      %v5008 = vpop.f32.mrf.mxu0
      %v5009 = vpop.f32.mrf.mxu0
      %v5010 = vpop.f32.mrf.mxu0
      %5011 = vdwg.mxu0
      %5013 = vrot.lane.b32.xlu0 %v5007, 120
      %v5014 = vpop.permute.xlu0 %5013
      %5016 = vrot.lane.b32.xlu0 %v5007, 112
      %v5017 = vpop.permute.xlu0 %5016
      %5019 = vrot.lane.b32.xlu0 %v5007, 104
      %v5020 = vpop.permute.xlu0 %5019
      %5022 = vrot.lane.b32.xlu0 %v5007, 96
      %v5023 = vpop.permute.xlu0 %5022
      %5025 = vrot.lane.b32.xlu0 %v5007, 88
      %v5026 = vpop.permute.xlu0 %5025
      %5028 = vrot.lane.b32.xlu0 %v5007, 80
      %v5029 = vpop.permute.xlu0 %5028
      %5031 = vrot.lane.b32.xlu0 %v5007, 72
      %v5032 = vpop.permute.xlu0 %5031
      %v5034 = vcombine.low %v5007, %v5017
      %v5036 = vunpack.c.l.s4 1983009808
      %v5037 = vunpack.c.0.s8 %v5036
      %v5038 = vlaneseq
      %v5039 = vshrl.u32 %v5038, 7
      %v5040 = vsub.s32 %v5037, %v5039
      %v5041 = vrot.slane %v5034, %v5040
      %v5042 = vcombine.low %v5014, %v5020
      %v5044 = vunpack.c.l.s4 1983009808
      %v5045 = vunpack.c.0.s8 %v5044
      %v5046 = vlaneseq
      %v5047 = vshrl.u32 %v5046, 7
      %v5048 = vsub.s32 %v5045, %v5047
      %v5049 = vrot.slane %v5042, %v5048
      %v5050 = vcombine.low %v5023, %v5029
      %v5052 = vunpack.c.l.s4 1983009808
      %v5053 = vunpack.c.0.s8 %v5052
      %v5054 = vlaneseq
      %v5055 = vshrl.u32 %v5054, 7
      %v5056 = vsub.s32 %v5053, %v5055
      %v5057 = vrot.slane %v5050, %v5056
      %v5058 = vcombine.low %v5026, %v5032
      %v5060 = vunpack.c.l.s4 1983009808
      %v5061 = vunpack.c.0.s8 %v5060
      %v5062 = vlaneseq
      %v5063 = vshrl.u32 %v5062, 7
      %v5064 = vsub.s32 %v5061, %v5063
      %v5065 = vrot.slane %v5058, %v5064
      %v5066 = vcombine.low %v5041, %v5049
      %v5068 = vunpack.c.l.s4 1934713408
      %v5069 = vunpack.c.0.s8 %v5068
      %v5070 = vlaneseq
      %v5071 = vshrl.u32 %v5070, 7
      %v5072 = vsub.s32 %v5069, %v5071
      %v5073 = vrot.slane %v5066, %v5072
      %v5074 = vcombine.low %v5057, %v5065
      %v5076 = vunpack.c.l.s4 1934713408
      %v5077 = vunpack.c.0.s8 %v5076
      %v5078 = vlaneseq
      %v5079 = vshrl.u32 %v5078, 7
      %v5080 = vsub.s32 %v5077, %v5079
      %v5081 = vrot.slane %v5074, %v5080
      %v5082 = vcombine.low %v5073, %v5081
      %v5083 = vcombine.high %v5073, %v5081
      %v5084 = vld [vmem:[#allocation5] sm:$0x7f]
      %v5085 = vld [vmem:[#allocation5 + $0x8] sm:$0x7f]
      %v5088 = vrot.slane %v5082, 1
      %v5089 = vrot.slane %v5083, 1
      %5090 = vrot.lane.b32.xlu0 %v5088, 1
      %v5091 = vpop.permute.xlu0 %5090
      %5092 = vrot.lane.b32.xlu0 %v5089, 1
      %v5093 = vpop.permute.xlu0 %5092
      %v5096 = vadd.f32 %v5084, %v5091
      %v5097 = vadd.f32 %v5085, %v5093
      %5098 = vst.msk [vmem:[#allocation5] sm:$0x7f] %vm3901, %v5096
      %5099 = vst.msk [vmem:[#allocation5 + $0x8] sm:$0x7f] %vm3901, %v5097
      %s5100 = scalar_lea.vmem %s3, 14
      %v5101 = vld [vmem:[%s5100] sm:$0x3]
      %v5102 = vld [vmem:[#allocation4] sm:$0xff]
      %v5103 = vld [vmem:[#allocation4 + $0x8] sm:$0xff]
      %v5104 = vld [vmem:[#allocation4 + $0x10] sm:$0xff]
      %v5105 = vld [vmem:[#allocation4 + $0x18] sm:$0xff]
      %v5106 = vld [vmem:[#allocation4 + $0x20] sm:$0xff]
      %v5107 = vld [vmem:[#allocation4 + $0x28] sm:$0xff]
      %v5108 = vld [vmem:[#allocation4 + $0x30] sm:$0xff]
      %v5109 = vld [vmem:[#allocation4 + $0x38] sm:$0xff]
      %v5112 = vunpack.c.l.s4 1966171168
      %v5113 = vunpack.c.0.s8 %v5112
      %v5114 = vlaneseq
      %v5115 = vshrl.u32 %v5114, 7
      %v5116 = vsub.s32 %v5113, %v5115
      %v5117 = vrot.slane %v5101, %v5116
      %v5118 = vcombine.high %v5117, %v5117
      %v5120 = vunpack.c.l.s4 1966171168
      %v5121 = vunpack.c.0.s8 %v5120
      %v5122 = vlaneseq
      %v5123 = vshrl.u32 %v5122, 7
      %v5124 = vsub.s32 %v5121, %v5123
      %v5125 = vrot.slane %v5117, %v5124
      %v5127 = vunpack.c.l.s4 1966171168
      %v5128 = vunpack.c.0.s8 %v5127
      %v5129 = vlaneseq
      %v5130 = vshrl.u32 %v5129, 7
      %v5131 = vsub.s32 %v5128, %v5130
      %v5132 = vrot.slane %v5118, %v5131
      %v5143 = vunpack.c.l.b16 %v5102
      %v5144 = vunpack.c.h.b16 %v5102
      %v5145 = vunpack.c.l.b16 %v5103
      %v5146 = vunpack.c.h.b16 %v5103
      %v5147 = vunpack.c.l.b16 %v5104
      %v5148 = vunpack.c.h.b16 %v5104
      %v5149 = vunpack.c.l.b16 %v5105
      %v5150 = vunpack.c.h.b16 %v5105
      %v5151 = vunpack.c.l.b16 %v5106
      %v5152 = vunpack.c.h.b16 %v5106
      %v5153 = vunpack.c.l.b16 %v5107
      %v5154 = vunpack.c.h.b16 %v5107
      %v5155 = vunpack.c.l.b16 %v5108
      %v5156 = vunpack.c.h.b16 %v5108
      %v5157 = vunpack.c.l.b16 %v5109
      %v5158 = vunpack.c.h.b16 %v5109
      %v5159 = vpack.c.b16 %v5145, %v5143
      %v5160 = vpack.c.b16 %v5146, %v5144
      %v5161 = vpack.c.b16 %v5149, %v5147
      %v5162 = vpack.c.b16 %v5150, %v5148
      %v5163 = vpack.c.b16 %v5153, %v5151
      %v5164 = vpack.c.b16 %v5154, %v5152
      %v5165 = vpack.c.b16 %v5157, %v5155
      %v5166 = vpack.c.b16 %v5158, %v5156
      %5175 = vmatprep.subr.bf16.mxu0 0
      %5176 = vmatpush1.bf16.xpose.msra.mxu0 0
      %5177 = vmatprep.subr.bf16.mxu0 0
      %5178 = vmatpush1.bf16.xpose.msra.mxu0 0
      %5179 = vmatprep.subr.bf16.mxu0 0
      %5180 = vmatpush1.bf16.xpose.msra.mxu0 0
      %5181 = vmatprep.subr.bf16.mxu0 0
      %5182 = vmatpush1.bf16.xpose.msra.mxu0 0
      %5183 = vmatprep.subr.bf16.mxu0 %v5166
      %5184 = vmatpush1.bf16.xpose.msra.mxu0 %v5165
      %5185 = vmatprep.subr.bf16.mxu0 %v5164
      %5186 = vmatpush1.bf16.xpose.msra.mxu0 %v5163
      %5187 = vmatprep.subr.bf16.mxu0 %v5162
      %5188 = vmatpush1.bf16.xpose.msra.mxu0 %v5161
      %5189 = vmatprep.subr.bf16.mxu0 %v5160
      %5190 = vmatpush1.bf16.xpose.msra.mxu0 %v5159
      %5191 = vmatprep.subr.bf16.mxu0 0
      %5192 = vmatpush2.bf16.xpose.msra.mxu0 0
      %5193 = vmatprep.subr.bf16.mxu0 0
      %5194 = vmatpush2.bf16.xpose.msra.mxu0 0
      %5195 = vmatprep.subr.bf16.mxu0 0
      %5196 = vmatpush2.bf16.xpose.msra.mxu0 0
      %5197 = vmatprep.subr.bf16.mxu0 0
      %5198 = vmatpush2.bf16.xpose.msra.mxu0 0
      %5199 = vmatprep.subr.bf16.mxu0 0
      %5200 = vmatpush2.bf16.xpose.msra.mxu0 0
      %5201 = vmatprep.subr.bf16.mxu0 0
      %5202 = vmatpush2.bf16.xpose.msra.mxu0 0
      %5203 = vmatprep.subr.bf16.mxu0 0
      %5204 = vmatpush2.bf16.xpose.msra.mxu0 0
      %5205 = vmatprep.subr.bf16.mxu0 0
      %5206 = vmatpush2.bf16.xpose.msra.mxu0 0
      %5207 = vmatprep.mubr.bf16.mxu0 %v5132
      %5208 = vmatmul.mubr.bf16.gmra.mxu0 %v5125
      %v5209 = vpop.f32.mrf.mxu0
      %v5210 = vadd.f32 0.0, %v5209
      %v5211 = vpop.f32.mrf.mxu0
      %v5212 = vpop.f32.mrf.mxu0
      %v5213 = vpop.f32.mrf.mxu0
      %5214 = vdwg.mxu0
      %5216 = vrot.lane.b32.xlu0 %v5210, 120
      %v5217 = vpop.permute.xlu0 %5216
      %5219 = vrot.lane.b32.xlu0 %v5210, 112
      %v5220 = vpop.permute.xlu0 %5219
      %5222 = vrot.lane.b32.xlu0 %v5210, 104
      %v5223 = vpop.permute.xlu0 %5222
      %5225 = vrot.lane.b32.xlu0 %v5210, 96
      %v5226 = vpop.permute.xlu0 %5225
      %5228 = vrot.lane.b32.xlu0 %v5210, 88
      %v5229 = vpop.permute.xlu0 %5228
      %5231 = vrot.lane.b32.xlu0 %v5210, 80
      %v5232 = vpop.permute.xlu0 %5231
      %5234 = vrot.lane.b32.xlu0 %v5210, 72
      %v5235 = vpop.permute.xlu0 %5234
      %v5237 = vcombine.low %v5210, %v5220
      %v5239 = vunpack.c.l.s4 1983009808
      %v5240 = vunpack.c.0.s8 %v5239
      %v5241 = vlaneseq
      %v5242 = vshrl.u32 %v5241, 7
      %v5243 = vsub.s32 %v5240, %v5242
      %v5244 = vrot.slane %v5237, %v5243
      %v5245 = vcombine.low %v5217, %v5223
      %v5247 = vunpack.c.l.s4 1983009808
      %v5248 = vunpack.c.0.s8 %v5247
      %v5249 = vlaneseq
      %v5250 = vshrl.u32 %v5249, 7
      %v5251 = vsub.s32 %v5248, %v5250
      %v5252 = vrot.slane %v5245, %v5251
      %v5253 = vcombine.low %v5226, %v5232
      %v5255 = vunpack.c.l.s4 1983009808
      %v5256 = vunpack.c.0.s8 %v5255
      %v5257 = vlaneseq
      %v5258 = vshrl.u32 %v5257, 7
      %v5259 = vsub.s32 %v5256, %v5258
      %v5260 = vrot.slane %v5253, %v5259
      %v5261 = vcombine.low %v5229, %v5235
      %v5263 = vunpack.c.l.s4 1983009808
      %v5264 = vunpack.c.0.s8 %v5263
      %v5265 = vlaneseq
      %v5266 = vshrl.u32 %v5265, 7
      %v5267 = vsub.s32 %v5264, %v5266
      %v5268 = vrot.slane %v5261, %v5267
      %v5269 = vcombine.low %v5244, %v5252
      %v5271 = vunpack.c.l.s4 1934713408
      %v5272 = vunpack.c.0.s8 %v5271
      %v5273 = vlaneseq
      %v5274 = vshrl.u32 %v5273, 7
      %v5275 = vsub.s32 %v5272, %v5274
      %v5276 = vrot.slane %v5269, %v5275
      %v5277 = vcombine.low %v5260, %v5268
      %v5279 = vunpack.c.l.s4 1934713408
      %v5280 = vunpack.c.0.s8 %v5279
      %v5281 = vlaneseq
      %v5282 = vshrl.u32 %v5281, 7
      %v5283 = vsub.s32 %v5280, %v5282
      %v5284 = vrot.slane %v5277, %v5283
      %v5285 = vcombine.low %v5276, %v5284
      %v5286 = vcombine.high %v5276, %v5284
      %v5287 = vld [vmem:[#allocation5] sm:$0x7f]
      %v5288 = vld [vmem:[#allocation5 + $0x8] sm:$0x7f]
      %v5291 = vrot.slane %v5285, 1
      %v5292 = vrot.slane %v5286, 1
      %v5295 = vadd.f32 %v5287, %v5291
      %v5296 = vadd.f32 %v5288, %v5292
      %5297 = vst.msk [vmem:[#allocation5] sm:$0x7f] %vm4095, %v5295
      %5298 = vst.msk [vmem:[#allocation5 + $0x8] sm:$0x7f] %vm4095, %v5296
      %s5299 = scalar_lea.vmem %s3, 16
      %v5300 = vld [vmem:[%s5299] sm:$0x3]
      %v5301 = vld [vmem:[#allocation4] sm:$0xff]
      %v5302 = vld [vmem:[#allocation4 + $0x8] sm:$0xff]
      %v5303 = vld [vmem:[#allocation4 + $0x10] sm:$0xff]
      %v5304 = vld [vmem:[#allocation4 + $0x18] sm:$0xff]
      %v5305 = vld [vmem:[#allocation4 + $0x20] sm:$0xff]
      %v5306 = vld [vmem:[#allocation4 + $0x28] sm:$0xff]
      %v5307 = vld [vmem:[#allocation4 + $0x30] sm:$0xff]
      %v5308 = vld [vmem:[#allocation4 + $0x38] sm:$0xff]
      %v5311 = vunpack.c.l.s4 1966171168
      %v5312 = vunpack.c.0.s8 %v5311
      %v5313 = vlaneseq
      %v5314 = vshrl.u32 %v5313, 7
      %v5315 = vsub.s32 %v5312, %v5314
      %v5316 = vrot.slane %v5300, %v5315
      %v5317 = vcombine.high %v5316, %v5316
      %v5319 = vunpack.c.l.s4 1966171168
      %v5320 = vunpack.c.0.s8 %v5319
      %v5321 = vlaneseq
      %v5322 = vshrl.u32 %v5321, 7
      %v5323 = vsub.s32 %v5320, %v5322
      %v5324 = vrot.slane %v5316, %v5323
      %v5326 = vunpack.c.l.s4 1966171168
      %v5327 = vunpack.c.0.s8 %v5326
      %v5328 = vlaneseq
      %v5329 = vshrl.u32 %v5328, 7
      %v5330 = vsub.s32 %v5327, %v5329
      %v5331 = vrot.slane %v5317, %v5330
      %v5342 = vunpack.c.l.b16 %v5301
      %v5343 = vunpack.c.h.b16 %v5301
      %v5344 = vunpack.c.l.b16 %v5302
      %v5345 = vunpack.c.h.b16 %v5302
      %v5346 = vunpack.c.l.b16 %v5303
      %v5347 = vunpack.c.h.b16 %v5303
      %v5348 = vunpack.c.l.b16 %v5304
      %v5349 = vunpack.c.h.b16 %v5304
      %v5350 = vunpack.c.l.b16 %v5305
      %v5351 = vunpack.c.h.b16 %v5305
      %v5352 = vunpack.c.l.b16 %v5306
      %v5353 = vunpack.c.h.b16 %v5306
      %v5354 = vunpack.c.l.b16 %v5307
      %v5355 = vunpack.c.h.b16 %v5307
      %v5356 = vunpack.c.l.b16 %v5308
      %v5357 = vunpack.c.h.b16 %v5308
      %v5358 = vpack.c.b16 %v5344, %v5342
      %v5359 = vpack.c.b16 %v5345, %v5343
      %v5360 = vpack.c.b16 %v5348, %v5346
      %v5361 = vpack.c.b16 %v5349, %v5347
      %v5362 = vpack.c.b16 %v5352, %v5350
      %v5363 = vpack.c.b16 %v5353, %v5351
      %v5364 = vpack.c.b16 %v5356, %v5354
      %v5365 = vpack.c.b16 %v5357, %v5355
      %5374 = vmatprep.subr.bf16.mxu0 0
      %5375 = vmatpush1.bf16.xpose.msra.mxu0 0
      %5376 = vmatprep.subr.bf16.mxu0 0
      %5377 = vmatpush1.bf16.xpose.msra.mxu0 0
      %5378 = vmatprep.subr.bf16.mxu0 0
      %5379 = vmatpush1.bf16.xpose.msra.mxu0 0
      %5380 = vmatprep.subr.bf16.mxu0 0
      %5381 = vmatpush1.bf16.xpose.msra.mxu0 0
      %5382 = vmatprep.subr.bf16.mxu0 %v5365
      %5383 = vmatpush1.bf16.xpose.msra.mxu0 %v5364
      %5384 = vmatprep.subr.bf16.mxu0 %v5363
      %5385 = vmatpush1.bf16.xpose.msra.mxu0 %v5362
      %5386 = vmatprep.subr.bf16.mxu0 %v5361
      %5387 = vmatpush1.bf16.xpose.msra.mxu0 %v5360
      %5388 = vmatprep.subr.bf16.mxu0 %v5359
      %5389 = vmatpush1.bf16.xpose.msra.mxu0 %v5358
      %5390 = vmatprep.subr.bf16.mxu0 0
      %5391 = vmatpush2.bf16.xpose.msra.mxu0 0
      %5392 = vmatprep.subr.bf16.mxu0 0
      %5393 = vmatpush2.bf16.xpose.msra.mxu0 0
      %5394 = vmatprep.subr.bf16.mxu0 0
      %5395 = vmatpush2.bf16.xpose.msra.mxu0 0
      %5396 = vmatprep.subr.bf16.mxu0 0
      %5397 = vmatpush2.bf16.xpose.msra.mxu0 0
      %5398 = vmatprep.subr.bf16.mxu0 0
      %5399 = vmatpush2.bf16.xpose.msra.mxu0 0
      %5400 = vmatprep.subr.bf16.mxu0 0
      %5401 = vmatpush2.bf16.xpose.msra.mxu0 0
      %5402 = vmatprep.subr.bf16.mxu0 0
      %5403 = vmatpush2.bf16.xpose.msra.mxu0 0
      %5404 = vmatprep.subr.bf16.mxu0 0
      %5405 = vmatpush2.bf16.xpose.msra.mxu0 0
      %5406 = vmatprep.mubr.bf16.mxu0 %v5331
      %5407 = vmatmul.mubr.bf16.gmra.mxu0 %v5324
      %v5408 = vpop.f32.mrf.mxu0
      %v5409 = vadd.f32 0.0, %v5408
      %v5410 = vpop.f32.mrf.mxu0
      %v5411 = vpop.f32.mrf.mxu0
      %v5412 = vpop.f32.mrf.mxu0
      %5413 = vdwg.mxu0
      %5415 = vrot.lane.b32.xlu0 %v5409, 120
      %v5416 = vpop.permute.xlu0 %5415
      %5418 = vrot.lane.b32.xlu0 %v5409, 112
      %v5419 = vpop.permute.xlu0 %5418
      %5421 = vrot.lane.b32.xlu0 %v5409, 104
      %v5422 = vpop.permute.xlu0 %5421
      %5424 = vrot.lane.b32.xlu0 %v5409, 96
      %v5425 = vpop.permute.xlu0 %5424
      %5427 = vrot.lane.b32.xlu0 %v5409, 88
      %v5428 = vpop.permute.xlu0 %5427
      %5430 = vrot.lane.b32.xlu0 %v5409, 80
      %v5431 = vpop.permute.xlu0 %5430
      %5433 = vrot.lane.b32.xlu0 %v5409, 72
      %v5434 = vpop.permute.xlu0 %5433
      %v5436 = vcombine.low %v5409, %v5419
      %v5438 = vunpack.c.l.s4 1983009808
      %v5439 = vunpack.c.0.s8 %v5438
      %v5440 = vlaneseq
      %v5441 = vshrl.u32 %v5440, 7
      %v5442 = vsub.s32 %v5439, %v5441
      %v5443 = vrot.slane %v5436, %v5442
      %v5444 = vcombine.low %v5416, %v5422
      %v5446 = vunpack.c.l.s4 1983009808
      %v5447 = vunpack.c.0.s8 %v5446
      %v5448 = vlaneseq
      %v5449 = vshrl.u32 %v5448, 7
      %v5450 = vsub.s32 %v5447, %v5449
      %v5451 = vrot.slane %v5444, %v5450
      %v5452 = vcombine.low %v5425, %v5431
      %v5454 = vunpack.c.l.s4 1983009808
      %v5455 = vunpack.c.0.s8 %v5454
      %v5456 = vlaneseq
      %v5457 = vshrl.u32 %v5456, 7
      %v5458 = vsub.s32 %v5455, %v5457
      %v5459 = vrot.slane %v5452, %v5458
      %v5460 = vcombine.low %v5428, %v5434
      %v5462 = vunpack.c.l.s4 1983009808
      %v5463 = vunpack.c.0.s8 %v5462
      %v5464 = vlaneseq
      %v5465 = vshrl.u32 %v5464, 7
      %v5466 = vsub.s32 %v5463, %v5465
      %v5467 = vrot.slane %v5460, %v5466
      %v5468 = vcombine.low %v5443, %v5451
      %v5470 = vunpack.c.l.s4 1934713408
      %v5471 = vunpack.c.0.s8 %v5470
      %v5472 = vlaneseq
      %v5473 = vshrl.u32 %v5472, 7
      %v5474 = vsub.s32 %v5471, %v5473
      %v5475 = vrot.slane %v5468, %v5474
      %v5476 = vcombine.low %v5459, %v5467
      %v5478 = vunpack.c.l.s4 1934713408
      %v5479 = vunpack.c.0.s8 %v5478
      %v5480 = vlaneseq
      %v5481 = vshrl.u32 %v5480, 7
      %v5482 = vsub.s32 %v5479, %v5481
      %v5483 = vrot.slane %v5476, %v5482
      %v5484 = vcombine.low %v5475, %v5483
      %v5485 = vcombine.high %v5475, %v5483
      %v5486 = vld [vmem:[#allocation5] sm:$0x7f]
      %v5487 = vld [vmem:[#allocation5 + $0x8] sm:$0x7f]
      %v5490 = vrot.slane %v5484, 1
      %v5491 = vrot.slane %v5485, 1
      %5492 = vrot.lane.b32.xlu0 %v5490, 127
      %v5493 = vpop.permute.xlu0 %5492
      %5494 = vrot.lane.b32.xlu0 %v5491, 127
      %v5495 = vpop.permute.xlu0 %5494
      %v5498 = vadd.f32 %v5486, %v5493
      %v5499 = vadd.f32 %v5487, %v5495
      %5500 = vst.msk [vmem:[#allocation5] sm:$0x7f] %vm4297, %v5498
      %5501 = vst.msk [vmem:[#allocation5 + $0x8] sm:$0x7f] %vm4297, %v5499
      %v5502 = vld [vmem:[%s297] sm:$0x3]
      %v5503 = vld [vmem:[#allocation5] sm:$0xff]
      %v5504 = vld [vmem:[#allocation5 + $0x8] sm:$0xff]
      %v5505 = vcombine.high %v5503, 0.0
      %v5507 = vunpack.c.l.s4 1983009808
      %v5508 = vunpack.c.0.s8 %v5507
      %v5509 = vlaneseq
      %v5510 = vshrl.u32 %v5509, 7
      %v5511 = vsub.s32 %v5508, %v5510
      %v5512 = vrot.slane %v5503, %v5511
      %v5514 = vunpack.c.l.s4 1983009808
      %v5515 = vunpack.c.0.s8 %v5514
      %v5516 = vlaneseq
      %v5517 = vshrl.u32 %v5516, 7
      %v5518 = vsub.s32 %v5515, %v5517
      %v5519 = vrot.slane %v5505, %v5518
      %v5520 = vcombine.high %v5504, 0.0
      %v5522 = vunpack.c.l.s4 1983009808
      %v5523 = vunpack.c.0.s8 %v5522
      %v5524 = vlaneseq
      %v5525 = vshrl.u32 %v5524, 7
      %v5526 = vsub.s32 %v5523, %v5525
      %v5527 = vrot.slane %v5504, %v5526
      %v5529 = vunpack.c.l.s4 1983009808
      %v5530 = vunpack.c.0.s8 %v5529
      %v5531 = vlaneseq
      %v5532 = vshrl.u32 %v5531, 7
      %v5533 = vsub.s32 %v5530, %v5532
      %v5534 = vrot.slane %v5520, %v5533
      %v5535 = vcombine.low %v5512, %v5527
      %v5536 = vcombine.high %v5512, %v5527
      %v5538 = vunpack.c.l.s4 1934713408
      %v5539 = vunpack.c.0.s8 %v5538
      %v5540 = vlaneseq
      %v5541 = vshrl.u32 %v5540, 7
      %v5542 = vsub.s32 %v5539, %v5541
      %v5543 = vrot.slane %v5535, %v5542
      %v5545 = vunpack.c.l.s4 1934713408
      %v5546 = vunpack.c.0.s8 %v5545
      %v5547 = vlaneseq
      %v5548 = vshrl.u32 %v5547, 7
      %v5549 = vsub.s32 %v5546, %v5548
      %v5550 = vrot.slane %v5536, %v5549
      %v5551 = vcombine.low %v5519, %v5534
      %v5552 = vcombine.high %v5519, %v5534
      %v5554 = vunpack.c.l.s4 1934713408
      %v5555 = vunpack.c.0.s8 %v5554
      %v5556 = vlaneseq
      %v5557 = vshrl.u32 %v5556, 7
      %v5558 = vsub.s32 %v5555, %v5557
      %v5559 = vrot.slane %v5551, %v5558
      %v5561 = vunpack.c.l.s4 1934713408
      %v5562 = vunpack.c.0.s8 %v5561
      %v5563 = vlaneseq
      %v5564 = vshrl.u32 %v5563, 7
      %v5565 = vsub.s32 %v5562, %v5564
      %v5566 = vrot.slane %v5552, %v5565
      %v5567 = vcombine.high %v5543, 0.0
      %v5568 = vcombine.high %v5550, 0.0
      %v5569 = vcombine.high %v5559, 0.0
      %v5570 = vcombine.high %v5566, 0.0
      %5572 = vrot.lane.b32.xlu0 %v5567, 8
      %v5573 = vpop.permute.xlu0 %5572
      %5576 = vrot.lane.b32.xlu0 %v5550, 16
      %v5577 = vpop.permute.xlu0 %5576
      %5580 = vrot.lane.b32.xlu0 %v5568, 24
      %v5581 = vpop.permute.xlu0 %5580
      %5584 = vrot.lane.b32.xlu0 %v5559, 32
      %v5585 = vpop.permute.xlu0 %5584
      %5588 = vrot.lane.b32.xlu0 %v5569, 40
      %v5589 = vpop.permute.xlu0 %5588
      %5592 = vrot.lane.b32.xlu0 %v5566, 48
      %v5593 = vpop.permute.xlu0 %5592
      %5596 = vrot.lane.b32.xlu0 %v5570, 56
      %v5597 = vpop.permute.xlu0 %5596
      %v5599 = vsel %vm3700, %v5543, %v5573
      %vm5600 = vcmask 130048
      %v5601 = vsel %vm5600, %v5599, %v5577
      %vm5602 = vcmask 195584
      %v5603 = vsel %vm5602, %v5601, %v5581
      %v5604 = vsel %vm626, %v5603, %v5585
      %vm5605 = vcmask 326656
      %v5606 = vsel %vm5605, %v5604, %v5589
      %vm5607 = vcmask 392192
      %v5608 = vsel %vm5607, %v5606, %v5593
      %vm5609 = vcmask 457728
      %v5610 = vsel %vm5609, %v5608, %v5597
      %v5611 = vadd.f32 %v5502, %v5610
      %v5612 = vld [vmem:[%s4] sm:$0x3]
      %5614 = vset.pattern.permute.xlu0 0
      %5615 = vperm.xlu0 %5614, %v5612
      %v5616 = vpop.permute.xlu0 %5615
      %v5618 = vadd.f32 %v5611, %v5616
      %vm5619 = vcmask 517120
      %5620 = vst.msk [vmem:[%s306] sm:$0x3] %vm5619, %v5618
      %p5621 = scmp.lt.s32.totalorder %s19, 1
      %s5622 = scalar_select %p5621, %s19, 1
      %s5623 = smul.addr %s5622, 16
      %s5624 = smul.addr %s5623, 4
      %s5625 = scalar_lea.vmem %s6, %s5624
      %p5626 = scmp.lt.s32.totalorder %s19, 1
      %s5627 = scalar_select %p5626, %s19, 1
      %s5628 = smul.addr %s5627, 2
      %s5629 = scalar_lea.vmem %s7, %s5628
      // Predicated region
      $region45: #{update_block_forward.2} parent=43 // pred_check
        %p5630 = pneg %p173
      $region46: #{update_block_forward.2} parent=43 // pred_check_branch
        %5632 = sbr.rel (%p5630) target = $region48
      $region47: #{update_block_forward.2} parent=43 // pred_region
        _
      $region48: #{update_block_forward.2} parent=43 // pred_fallthru
        _
      // Predicated region
      $region49: #{update_block_forward.2} parent=43 // pred_check
        %p5633 = pneg %p199
      $region50: #{update_block_forward.2} parent=43 // pred_check_branch
        %5635 = sbr.rel (%p5633) target = $region52
      $region51: #{update_block_forward.2} parent=43 // pred_region
        _
      $region52: #{update_block_forward.2} parent=43 // pred_fallthru
        _
    $region44: #{update_block_forward.2} parent=5 // pred_fallthru
      _
    %p5636 = scmp.le.s32.totalorder 2, %s14
    // Predicated region
    $region53: #{update_block_forward.2} parent=5 // pred_check
      %p5637 = pneg %p5636
    $region54: #{update_block_forward.2} parent=5 // pred_check_branch
      %5639 = sbr.rel (%p5637) target = $region56
    $region55: #{update_block_forward.2} parent=5 // pred_region
      %s5640 = ssub.s32 %s14, 2
      // Predicated region
      $region57: #{update_block_forward.2} parent=55 // pred_check
        %p5641 = pneg %p179
      $region58: #{update_block_forward.2} parent=55 // pred_check_branch
        %5643 = sbr.rel (%p5641) target = $region60
      $region59: #{update_block_forward.2} parent=55 // pred_region
        %p5644 = scmp.lt.s32.totalorder %s20, 1
        %s5645 = scalar_select %p5644, %s20, 1
        %s5646 = smul.addr %s5645, 16
        %s5647 = smul.addr %s5646, 4
        %s5648 = scalar_lea.vmem %s6, %s5647
      $region60: #{update_block_forward.2} parent=55 // pred_fallthru
        _
      // Predicated region
      $region61: #{update_block_forward.2} parent=55 // pred_check
        %p5649 = pneg %p205
      $region62: #{update_block_forward.2} parent=55 // pred_check_branch
        %5651 = sbr.rel (%p5649) target = $region64
      $region63: #{update_block_forward.2} parent=55 // pred_region
        %p5652 = scmp.lt.s32.totalorder %s20, 1
        %s5653 = scalar_select %p5652, %s20, 1
        %s5654 = smul.addr %s5653, 2
        %s5655 = scalar_lea.vmem %s7, %s5654
      $region64: #{update_block_forward.2} parent=55 // pred_fallthru
        _
    $region56: #{update_block_forward.2} parent=5 // pred_fallthru
      _
  $region6: #{update_block_forward.2} parent=0 // loop_footer
    %s18 = sadd.s32 1, %s14
  $region7: #{update_block_forward.2} parent=0 // loop_footer_branch
    %13 = sbr.rel target = $region3
  $region8: #{update_block_forward.2} parent=0 // loop_exit
    _

</llo_original>
